<compile_context>
chip_gen: v7x
topology: tpu7x:2x2x1
jax: 0.10.0
libtpu: 0.0.40
codegen_flags: <defaults>
</compile_context>

<pallas_src>
import jax
import jax.numpy as jnp
from jax.experimental import pallas as pl
from jax.experimental.pallas import tpu as pltpu

_BN_EPS = 1e-5
_VMEM_CACHE = []


def _cparams(*sem):
    if not _VMEM_CACHE:
        try:
            cap = pltpu.get_tpu_info().vmem_capacity_bytes
        except Exception:
            cap = 64 * 1024 * 1024
        _VMEM_CACHE.append(int(min(max(cap * 3 // 4, 32 << 20), 112 << 20)))
    return pltpu.CompilerParams(dimension_semantics=sem,
                                vmem_limit_bytes=_VMEM_CACHE[0])


# ------------------------------ Pallas kernels ------------------------------

def _stage1_kernel(x_ref, s1_ref, b1_ref, w1_ref, s2_ref, b2_ref, h2_ref,
                   pad_ref, col_ref):
    """h2 = relu(bn2(conv1(relu(bn1(x))))) for one image, fully fused in VMEM."""
    _, H, W, Cin = x_ref.shape
    Cout = h2_ref.shape[-1]

    # bn1 + relu (f32 math). Zero halo is written BEFORE the interior so the
    # border stays exactly 0 after the affine+ReLU.
    pad_ref[...] = jnp.zeros_like(pad_ref)
    h1 = jnp.maximum(x_ref[0] * s1_ref[...].reshape(1, 1, Cin)
                     + b1_ref[...].reshape(1, 1, Cin), 0.0)
    pad_ref[pl.ds(1, H), pl.ds(1, W), :] = h1.astype(pad_ref.dtype)

    # In-VMEM im2col -> one deep-K (9*Cin) MXU matmul.
    for ky in range(3):
        for kx in range(3):
            t = ky * 3 + kx
            col_ref[:, :, pl.ds(t * Cin, Cin)] = pad_ref[pl.ds(ky, H),
                                                         pl.ds(kx, W), :]
    acc = jnp.dot(col_ref[...].reshape(H * W, 9 * Cin), w1_ref[...],
                  preferred_element_type=jnp.float32)

    # bn2 + relu fused into the epilogue (applied to the f32 accumulator,
    # single rounding to bf16 on store).
    h2 = jnp.maximum(acc * s2_ref[...] + b2_ref[...], 0.0)
    h2_ref[...] = h2.reshape(1, H, W, Cout).astype(h2_ref.dtype)


def _make_stage2_s1_kernel(has_sc):
    """conv2 (3x3 stride-1) + residual, residual = identity or 1x1 conv w/ bias."""
    def kernel(h2_ref, w2_ref, x_ref, *rest):
        if has_sc:
            wsc_ref, bsc_ref, out_ref, pad_ref, col_ref = rest
        else:
            out_ref, pad_ref, col_ref = rest
        _, H, W, C = h2_ref.shape
        Cin = x_ref.shape[-1]

        pad_ref[...] = jnp.zeros_like(pad_ref)
        pad_ref[pl.ds(1, H), pl.ds(1, W), :] = h2_ref[0]
        for ky in range(3):
            for kx in range(3):
                t = ky * 3 + kx
                col_ref[:, :, pl.ds(t * C, C)] = pad_ref[pl.ds(ky, H),
                                                         pl.ds(kx, W), :]
        acc = jnp.dot(col_ref[...].reshape(H * W, 9 * C), w2_ref[...],
                      preferred_element_type=jnp.float32)

        xr = x_ref[0].reshape(H * W, Cin)
        if has_sc:
            res = jnp.dot(xr.astype(jnp.bfloat16), wsc_ref[...],
                          preferred_element_type=jnp.float32) + bsc_ref[...]
        else:
            res = xr.astype(jnp.float32)
        out_ref[...] = (acc + res).reshape(1, H, W, C).astype(out_ref.dtype)
    return kernel


def _stage2_s2_kernel(e_ref, eo_ref, oe_ref, oo_ref, w2_ref, xe_ref, wsc_ref,
                      bsc_ref, out_ref, pe_ref, peo_ref, poe_ref, poo_ref, col_ref):
    """conv2 (3x3 stride-2) over the four phases of h2 + 1x1-conv shortcut, fused."""
    _, Ho, Wo, C = e_ref.shape
    Cin = xe_ref.shape[-1]

    # Zero-padded (top row / left col) phase buffers in VMEM.
    for dst, src in ((pe_ref, e_ref), (peo_ref, eo_ref),
                     (poe_ref, oe_ref), (poo_ref, oo_ref)):
        dst[...] = jnp.zeros_like(dst)
        dst[pl.ds(1, Ho), pl.ds(1, Wo), :] = src[0]

    def win(p, row_shift, col_shift):
        # row_shift/col_shift = -1 selects phase[i-1]/[j-1] (zero at the border),
        # 0 selects phase[i]/[j].
        return p[pl.ds(1 + row_shift, Ho), pl.ds(1 + col_shift, Wo), :]

    # Tap order (ky, kx) = (0,0)..(2,2); stride-2 taps map onto the parity phases.
    taps = (win(poo_ref, -1, -1), win(poe_ref, -1, 0), win(poo_ref, -1, 0),
            win(peo_ref, 0, -1),  win(pe_ref, 0, 0),   win(peo_ref, 0, 0),
            win(poo_ref, 0, -1),  win(poe_ref, 0, 0),  win(poo_ref, 0, 0))
    for t, tap in enumerate(taps):
        col_ref[:, :, pl.ds(t * C, C)] = tap
    acc = jnp.dot(col_ref[...].reshape(Ho * Wo, 9 * C), w2_ref[...],
                  preferred_element_type=jnp.float32)

    res = jnp.dot(xe_ref[0].reshape(Ho * Wo, Cin).astype(jnp.bfloat16), wsc_ref[...],
                  preferred_element_type=jnp.float32) + bsc_ref[...]
    out_ref[...] = (acc + res).reshape(1, Ho, Wo, C).astype(out_ref.dtype)


# --------------------------- pallas_call wrappers ---------------------------

def _conv1_bn_fused(x, s1, b1, w1, s2, b2):
    N, H, W, Cin = x.shape
    Cout = w1.shape[-1]
    return pl.pallas_call(
        _stage1_kernel,
        grid=(N,),
        in_specs=[
            pl.BlockSpec((1, H, W, Cin), lambda n: (n, 0, 0, 0)),
            pl.BlockSpec((1, Cin), lambda n: (0, 0)),
            pl.BlockSpec((1, Cin), lambda n: (0, 0)),
            pl.BlockSpec((9 * Cin, Cout), lambda n: (0, 0)),
            pl.BlockSpec((1, Cout), lambda n: (0, 0)),
            pl.BlockSpec((1, Cout), lambda n: (0, 0)),
        ],
        out_specs=pl.BlockSpec((1, H, W, Cout), lambda n: (n, 0, 0, 0)),
        out_shape=jax.ShapeDtypeStruct((N, H, W, Cout), jnp.bfloat16),
        scratch_shapes=[pltpu.VMEM((H + 2, W + 2, Cin), jnp.bfloat16),
                        pltpu.VMEM((H, W, 9 * Cin), jnp.bfloat16)],
        compiler_params=_cparams("parallel"),
    )(x, s1.reshape(1, Cin), b1.reshape(1, Cin), w1,
      s2.reshape(1, Cout), b2.reshape(1, Cout))


def _conv2_s1_fused(h2, w2, x, wsc=None, bsc=None):
    N, H, W, C = h2.shape
    Cin = x.shape[-1]
    has_sc = wsc is not None
    in_specs = [
        pl.BlockSpec((1, H, W, C), lambda n: (n, 0, 0, 0)),
        pl.BlockSpec((9 * C, C), lambda n: (0, 0)),
        pl.BlockSpec((1, H, W, Cin), lambda n: (n, 0, 0, 0)),
    ]
    args = [h2, w2, x]
    if has_sc:
        in_specs += [pl.BlockSpec((Cin, C), lambda n: (0, 0)),
                     pl.BlockSpec((1, C), lambda n: (0, 0))]
        args += [wsc, bsc.reshape(1, C)]
    return pl.pallas_call(
        _make_stage2_s1_kernel(has_sc),
        grid=(N,),
        in_specs=in_specs,
        out_specs=pl.BlockSpec((1, H, W, C), lambda n: (n, 0, 0, 0)),
        out_shape=jax.ShapeDtypeStruct((N, H, W, C), jnp.float32),
        scratch_shapes=[pltpu.VMEM((H + 2, W + 2, C), jnp.bfloat16),
                        pltpu.VMEM((H, W, 9 * C), jnp.bfloat16)],
        compiler_params=_cparams("parallel"),
    )(*args)


def _conv2_s2_fused(h2, w2, x, wsc, bsc):
    N, H, W, C = h2.shape
    Cin = x.shape[-1]
    assert H % 2 == 0 and W % 2 == 0, "strided path assumes even spatial dims"
    Ho, Wo = H // 2, W // 2
    # Phase split of h2 (one cheap bf16 XLA pass). The stride-2 3x3 conv becomes
    # nine shifted stride-1 taps over the four parity phases inside the kernel.
    # TODO(synk): emit the phases directly from the stage-1 kernel to drop this pass.
    e, eo = h2[:, 0::2, 0::2, :], h2[:, 0::2, 1::2, :]
    oe, oo = h2[:, 1::2, 0::2, :], h2[:, 1::2, 1::2, :]
    xe = x[:, 0::2, 0::2, :]
    phase_spec = pl.BlockSpec((1, Ho, Wo, C), lambda n: (n, 0, 0, 0))
    return pl.pallas_call(
        _stage2_s2_kernel,
        grid=(N,),
        in_specs=[phase_spec, phase_spec, phase_spec, phase_spec,
                  pl.BlockSpec((9 * C, C), lambda n: (0, 0)),
                  pl.BlockSpec((1, Ho, Wo, Cin), lambda n: (n, 0, 0, 0)),
                  pl.BlockSpec((Cin, C), lambda n: (0, 0)),
                  pl.BlockSpec((1, C), lambda n: (0, 0))],
        out_specs=pl.BlockSpec((1, Ho, Wo, C), lambda n: (n, 0, 0, 0)),
        out_shape=jax.ShapeDtypeStruct((N, Ho, Wo, C), jnp.float32),
        scratch_shapes=[pltpu.VMEM((Ho + 1, Wo + 1, C), jnp.bfloat16),
                        pltpu.VMEM((Ho + 1, Wo + 1, C), jnp.bfloat16),
                        pltpu.VMEM((Ho + 1, Wo + 1, C), jnp.bfloat16),
                        pltpu.VMEM((Ho + 1, Wo + 1, C), jnp.bfloat16),
                        pltpu.VMEM((Ho, Wo, 9 * C), jnp.bfloat16)],
        compiler_params=_cparams("parallel"),
    )(e, eo, oe, oo, w2, xe, wsc, bsc.reshape(1, C))


# ------------------------------- wide_basic ---------------------------------

def _bn_scale_bias(bn):
    scale = bn['gamma'] * jax.lax.rsqrt(bn['var'] + _BN_EPS)
    bias = bn['beta'] - bn['mean'] * scale
    return scale, bias


def wide_basic_forward(params, x_nchw, stride):
    """Pallas forward of wide_basic (inference: running-stats BN, dropout=identity)."""
    x = jnp.transpose(x_nchw.astype(jnp.float32), (0, 2, 3, 1))          # NHWC
    N, H, W, Cin = x.shape
    planes = params['conv1'].shape[-1]

    s1, b1 = _bn_scale_bias(params['bn1'])
    s2, b2 = _bn_scale_bias(params['bn2'])
    w1 = params['conv1'].reshape(9 * Cin, planes).astype(jnp.bfloat16)
    w2 = params['conv2'].reshape(9 * planes, planes).astype(jnp.bfloat16)

    # Stage 1 (fused): h2 = relu(bn2(conv1(relu(bn1(x))))), bf16.
    h2 = _conv1_bn_fused(x, s1, b1, w1, s2, b2)

    has_sc = (stride != 1) or (Cin != planes)
    wsc = params['shortcut_w'].astype(jnp.bfloat16) if has_sc else None
    bsc = params['shortcut_b'] if has_sc else None

    # Stage 2 (fused): conv2 (stride s) + shortcut add.
    if stride == 1:
        out = _conv2_s1_fused(h2, w2, x, wsc, bsc)
    elif stride == 2:
        out = _conv2_s2_fused(h2, w2, x, wsc, bsc)
    else:
        raise NotImplementedError("wide_basic uses stride in {1, 2}")

    return jnp.transpose(out, (0, 3, 1, 2))                              # back to NCHW


# ------------------------------ parameter init ------------------------------

def _bn_init(key, c):
    kg, kb, km, kv = jax.random.split(key, 4)
    return {
        'gamma': 1.0 + 0.05 * jax.random.normal(kg, (c,), jnp.float32),
        'beta': 0.05 * jax.random.normal(kb, (c,), jnp.float32),
        'mean': 0.1 * jax.random.normal(km, (c,), jnp.float32),
        'var': 0.9 + 0.2 * jax.random.uniform(kv, (c,), jnp.float32),
    }


def _he_conv(key, kh, kw, cin, cout):
    fan_in = kh * kw * cin
    return jax.random.normal(key, (kh, kw, cin, cout), jnp.float32) * (2.0 / fan_in) ** 0.5


def init_wide_basic_params(key, in_planes, planes, stride):
    ks = jax.random.split(key, 6)
    p = {
        'bn1': _bn_init(ks[0], in_planes),
        'conv1': _he_conv(ks[1], 3, 3, in_planes, planes),
        'bn2': _bn_init(ks[2], planes),
        'conv2': _he_conv(ks[3], 3, 3, planes, planes),
    }
    if stride != 1 or in_planes != planes:
        p['shortcut_w'] = (jax.random.normal(ks[4], (in_planes, planes), jnp.float32)
                           * (1.0 / in_planes) ** 0.5)
        p['shortcut_b'] = 0.05 * jax.random.normal(ks[5], (planes,), jnp.float32)
    return p


# ---------------------------- pure-JAX reference ----------------------------

def reference_forward(params, x_nchw, stride):
    x = jnp.transpose(x_nchw.astype(jnp.float32), (0, 2, 3, 1))
    Cin = x.shape[-1]
    planes = params['conv1'].shape[-1]

    def bn_relu(v, bn):
        s, b = _bn_scale_bias(bn)
        return jnp.maximum(v * s + b, 0.0)

    def conv(v, w, st):
        return jax.lax.conv_general_dilated(
            v, w, window_strides=(st, st), padding=((1, 1), (1, 1)),
            dimension_numbers=('NHWC', 'HWIO', 'NHWC'),
            precision=jax.lax.Precision.HIGHEST)

    out = conv(bn_relu(x, params['bn1']), params['conv1'], 1)
    out = conv(bn_relu(out, params['bn2']), params['conv2'], stride)
    if stride != 1 or Cin != planes:
        xs = x[:, ::stride, ::stride, :] if stride != 1 else x
        sc = jnp.einsum('nhwc,cd->nhwd', xs, params['shortcut_w'],
                        precision=jax.lax.Precision.HIGHEST) + params['shortcut_b']
    else:
        sc = x
    return jnp.transpose(out + sc, (0, 3, 1, 2))


def _rel_err(a, b):
    a = a.astype(jnp.float32)
    b = b.astype(jnp.float32)
    return float(jnp.linalg.norm((a - b).ravel()) /
                 (jnp.linalg.norm(b.ravel()) + 1e-12))


if __name__ == "__main__":
    key = jax.random.PRNGKey(0)
    kp1, kp2, kp3, kx = jax.random.split(key, 4)
    # PyTorch NCHW input: batch=2, in_planes=32, 16x16 spatial.
    x = jax.random.normal(kx, (2, 32, 16, 16), jnp.float32)

    fwd = jax.jit(wide_basic_forward, static_argnames=('stride',))

    # Block A: stride=1, in_planes == planes  -> identity shortcut.
    params_a = init_wide_basic_params(kp1, in_planes=32, planes=32, stride=1)
    out_a = fwd(params_a, x, stride=1)

    # Block B: stride=1, in_planes != planes  -> 1x1 conv shortcut (bias=True).
    params_b = init_wide_basic_params(kp2, in_planes=32, planes=64, stride=1)
    out_b = fwd(params_b, x, stride=1)

    # Block C: stride=2, in_planes != planes  -> 1x1 conv shortcut, downsampling.
    params_c = init_wide_basic_params(kp3, in_planes=32, planes=64, stride=2)
    out_c = fwd(params_c, x, stride=2)

    out_a, out_b, out_c = jax.block_until_ready((out_a, out_b, out_c))
    assert out_a.shape == (2, 32, 16, 16), out_a.shape
    assert out_b.shape == (2, 64, 16, 16), out_b.shape
    assert out_c.shape == (2, 64, 8, 8), out_c.shape

    # Numerics check against a pure-JAX f32 reference (loose tol: bf16 MXU operands).
    for out, p, s in ((out_a, params_a, 1), (out_b, params_b, 1), (out_c, params_c, 2)):
        err = _rel_err(out, reference_forward(p, x, s))
        assert err < 0.05, err

    print("KERNEL_OK")
</pallas_src>

<mosaic_0001>
module attributes {stable_mosaic.version = 11 : i64} {
  func.func @_stage1_kernel(%arg0: i32, %arg1: memref<1x16x16x32xf32, #tpu.memory_space<vmem>>, %arg2: memref<1x32xf32, #tpu.memory_space<vmem>>, %arg3: memref<1x32xf32, #tpu.memory_space<vmem>>, %arg4: memref<288x32xbf16, #tpu.memory_space<vmem>>, %arg5: memref<1x32xf32, #tpu.memory_space<vmem>>, %arg6: memref<1x32xf32, #tpu.memory_space<vmem>>, %arg7: memref<1x16x16x32xbf16, #tpu.memory_space<vmem>>, %arg8: memref<18x18x32xbf16, #tpu.memory_space<vmem>>, %arg9: memref<16x16x288xbf16, #tpu.memory_space<vmem>>) attributes {dimension_semantics = [#tpu.dimension_semantics<parallel>], iteration_bounds = array<i64: 2>, scalar_prefetch = 0 : i64, scratch_operands = 2 : i64, tpu.core_type = #tpu.core_type<tc>, window_params = [{transform_indices = @transform_0, window_bounds = array<i64: 1, 16, 16, 32>}, {pipeline_mode = #tpu.pipeline_mode<synchronous>, transform_indices = @transform_1, window_bounds = array<i64: 1, 32>}, {pipeline_mode = #tpu.pipeline_mode<synchronous>, transform_indices = @transform_2, window_bounds = array<i64: 1, 32>}, {pipeline_mode = #tpu.pipeline_mode<synchronous>, transform_indices = @transform_3, window_bounds = array<i64: 288, 32>}, {pipeline_mode = #tpu.pipeline_mode<synchronous>, transform_indices = @transform_4, window_bounds = array<i64: 1, 32>}, {pipeline_mode = #tpu.pipeline_mode<synchronous>, transform_indices = @transform_5, window_bounds = array<i64: 1, 32>}, {transform_indices = @transform_6, window_bounds = array<i64: 1, 16, 16, 32>}]} {
    %cst = arith.constant 0.000000e+00 : bf16
    %0 = vector.broadcast %cst : bf16 to vector<18x18x32xbf16>
    %c0 = arith.constant 0 : index
    %c0_0 = arith.constant 0 : index
    %c0_1 = arith.constant 0 : index
    %1 = vector.load %arg8[%c0, %c0_0, %c0_1] : memref<18x18x32xbf16, #tpu.memory_space<vmem>>, vector<18x18x32xbf16>
    tpu.vector_store %arg8[%c0, %c0_0, %c0_1], %0 {strides = array<i32>} : memref<18x18x32xbf16, #tpu.memory_space<vmem>>, vector<18x18x32xbf16>,
    %c0_2 = arith.constant 0 : index
    %c0_3 = arith.constant 0 : index
    %c0_4 = arith.constant 0 : index
    %c0_5 = arith.constant 0 : index
    %2 = vector.load %arg1[%c0_2, %c0_3, %c0_4, %c0_5] : memref<1x16x16x32xf32, #tpu.memory_space<vmem>>, vector<1x16x16x32xf32>
    %3 = vector.shape_cast %2 : vector<1x16x16x32xf32> to vector<16x16x32xf32>
    %c0_6 = arith.constant 0 : index
    %c0_7 = arith.constant 0 : index
    %4 = vector.load %arg2[%c0_6, %c0_7] : memref<1x32xf32, #tpu.memory_space<vmem>>, vector<1x32xf32>
    %5 = vector.shape_cast %4 : vector<1x32xf32> to vector<1x1x32xf32>
    %6 = vector.broadcast %5 : vector<1x1x32xf32> to vector<16x16x32xf32>
    %7 = arith.mulf %3, %6 : vector<16x16x32xf32>
    %c0_8 = arith.constant 0 : index
    %c0_9 = arith.constant 0 : index
    %8 = vector.load %arg3[%c0_8, %c0_9] : memref<1x32xf32, #tpu.memory_space<vmem>>, vector<1x32xf32>
    %9 = vector.shape_cast %8 : vector<1x32xf32> to vector<1x1x32xf32>
    %10 = vector.broadcast %9 : vector<1x1x32xf32> to vector<16x16x32xf32>
    %11 = arith.addf %7, %10 : vector<16x16x32xf32>
    %cst_10 = arith.constant 0.000000e+00 : f32
    %12 = vector.broadcast %cst_10 : f32 to vector<16x16x32xf32>
    %13 = arith.maximumf %11, %12 : vector<16x16x32xf32>
    %14 = arith.truncf %13 : vector<16x16x32xf32> to vector<16x16x32xbf16>
    %c1 = arith.constant 1 : index
    %c1_11 = arith.constant 1 : index
    %c0_12 = arith.constant 0 : index
    %15 = vector.load %arg8[%c1, %c1_11, %c0_12] : memref<18x18x32xbf16, #tpu.memory_space<vmem>>, vector<16x16x32xbf16>
    tpu.vector_store %arg8[%c1, %c1_11, %c0_12], %14 {strides = array<i32>} : memref<18x18x32xbf16, #tpu.memory_space<vmem>>, vector<16x16x32xbf16>,
    %c0_13 = arith.constant 0 : index
    %c0_14 = arith.constant 0 : index
    %c0_15 = arith.constant 0 : index
    %16 = vector.load %arg8[%c0_13, %c0_14, %c0_15] : memref<18x18x32xbf16, #tpu.memory_space<vmem>>, vector<16x16x32xbf16>
    %c0_16 = arith.constant 0 : index
    %c0_17 = arith.constant 0 : index
    %c0_18 = arith.constant 0 : index
    %17 = vector.load %arg9[%c0_16, %c0_17, %c0_18] : memref<16x16x288xbf16, #tpu.memory_space<vmem>>, vector<16x16x32xbf16>
    tpu.vector_store %arg9[%c0_16, %c0_17, %c0_18], %16 {strides = array<i32>} : memref<16x16x288xbf16, #tpu.memory_space<vmem>>, vector<16x16x32xbf16>,
    %c0_19 = arith.constant 0 : index
    %c1_20 = arith.constant 1 : index
    %c0_21 = arith.constant 0 : index
    %18 = vector.load %arg8[%c0_19, %c1_20, %c0_21] : memref<18x18x32xbf16, #tpu.memory_space<vmem>>, vector<16x16x32xbf16>
    %c0_22 = arith.constant 0 : index
    %c0_23 = arith.constant 0 : index
    %c32 = arith.constant 32 : index
    %19 = vector.load %arg9[%c0_22, %c0_23, %c32] : memref<16x16x288xbf16, #tpu.memory_space<vmem>>, vector<16x16x32xbf16>
    tpu.vector_store %arg9[%c0_22, %c0_23, %c32], %18 {strides = array<i32>} : memref<16x16x288xbf16, #tpu.memory_space<vmem>>, vector<16x16x32xbf16>,
    %c0_24 = arith.constant 0 : index
    %c2 = arith.constant 2 : index
    %c0_25 = arith.constant 0 : index
    %20 = vector.load %arg8[%c0_24, %c2, %c0_25] : memref<18x18x32xbf16, #tpu.memory_space<vmem>>, vector<16x16x32xbf16>
    %c0_26 = arith.constant 0 : index
    %c0_27 = arith.constant 0 : index
    %c64 = arith.constant 64 : index
    %21 = vector.load %arg9[%c0_26, %c0_27, %c64] : memref<16x16x288xbf16, #tpu.memory_space<vmem>>, vector<16x16x32xbf16>
    tpu.vector_store %arg9[%c0_26, %c0_27, %c64], %20 {strides = array<i32>} : memref<16x16x288xbf16, #tpu.memory_space<vmem>>, vector<16x16x32xbf16>,
    %c1_28 = arith.constant 1 : index
    %c0_29 = arith.constant 0 : index
    %c0_30 = arith.constant 0 : index
    %22 = vector.load %arg8[%c1_28, %c0_29, %c0_30] : memref<18x18x32xbf16, #tpu.memory_space<vmem>>, vector<16x16x32xbf16>
    %c0_31 = arith.constant 0 : index
    %c0_32 = arith.constant 0 : index
    %c96 = arith.constant 96 : index
    %23 = vector.load %arg9[%c0_31, %c0_32, %c96] : memref<16x16x288xbf16, #tpu.memory_space<vmem>>, vector<16x16x32xbf16>
    tpu.vector_store %arg9[%c0_31, %c0_32, %c96], %22 {strides = array<i32>} : memref<16x16x288xbf16, #tpu.memory_space<vmem>>, vector<16x16x32xbf16>,
    %c1_33 = arith.constant 1 : index
    %c1_34 = arith.constant 1 : index
    %c0_35 = arith.constant 0 : index
    %24 = vector.load %arg8[%c1_33, %c1_34, %c0_35] : memref<18x18x32xbf16, #tpu.memory_space<vmem>>, vector<16x16x32xbf16>
    %c0_36 = arith.constant 0 : index
    %c0_37 = arith.constant 0 : index
    %c128 = arith.constant 128 : index
    %25 = vector.load %arg9[%c0_36, %c0_37, %c128] : memref<16x16x288xbf16, #tpu.memory_space<vmem>>, vector<16x16x32xbf16>
    tpu.vector_store %arg9[%c0_36, %c0_37, %c128], %24 {strides = array<i32>} : memref<16x16x288xbf16, #tpu.memory_space<vmem>>, vector<16x16x32xbf16>,
    %c1_38 = arith.constant 1 : index
    %c2_39 = arith.constant 2 : index
    %c0_40 = arith.constant 0 : index
    %26 = vector.load %arg8[%c1_38, %c2_39, %c0_40] : memref<18x18x32xbf16, #tpu.memory_space<vmem>>, vector<16x16x32xbf16>
    %c0_41 = arith.constant 0 : index
    %c0_42 = arith.constant 0 : index
    %c160 = arith.constant 160 : index
    %27 = vector.load %arg9[%c0_41, %c0_42, %c160] : memref<16x16x288xbf16, #tpu.memory_space<vmem>>, vector<16x16x32xbf16>
    tpu.vector_store %arg9[%c0_41, %c0_42, %c160], %26 {strides = array<i32>} : memref<16x16x288xbf16, #tpu.memory_space<vmem>>, vector<16x16x32xbf16>,
    %c2_43 = arith.constant 2 : index
    %c0_44 = arith.constant 0 : index
    %c0_45 = arith.constant 0 : index
    %28 = vector.load %arg8[%c2_43, %c0_44, %c0_45] : memref<18x18x32xbf16, #tpu.memory_space<vmem>>, vector<16x16x32xbf16>
    %c0_46 = arith.constant 0 : index
    %c0_47 = arith.constant 0 : index
    %c192 = arith.constant 192 : index
    %29 = vector.load %arg9[%c0_46, %c0_47, %c192] : memref<16x16x288xbf16, #tpu.memory_space<vmem>>, vector<16x16x32xbf16>
    tpu.vector_store %arg9[%c0_46, %c0_47, %c192], %28 {strides = array<i32>} : memref<16x16x288xbf16, #tpu.memory_space<vmem>>, vector<16x16x32xbf16>,
    %c2_48 = arith.constant 2 : index
    %c1_49 = arith.constant 1 : index
    %c0_50 = arith.constant 0 : index
    %30 = vector.load %arg8[%c2_48, %c1_49, %c0_50] : memref<18x18x32xbf16, #tpu.memory_space<vmem>>, vector<16x16x32xbf16>
    %c0_51 = arith.constant 0 : index
    %c0_52 = arith.constant 0 : index
    %c224 = arith.constant 224 : index
    %31 = vector.load %arg9[%c0_51, %c0_52, %c224] : memref<16x16x288xbf16, #tpu.memory_space<vmem>>, vector<16x16x32xbf16>
    tpu.vector_store %arg9[%c0_51, %c0_52, %c224], %30 {strides = array<i32>} : memref<16x16x288xbf16, #tpu.memory_space<vmem>>, vector<16x16x32xbf16>,
    %c2_53 = arith.constant 2 : index
    %c2_54 = arith.constant 2 : index
    %c0_55 = arith.constant 0 : index
    %32 = vector.load %arg8[%c2_53, %c2_54, %c0_55] : memref<18x18x32xbf16, #tpu.memory_space<vmem>>, vector<16x16x32xbf16>
    %c0_56 = arith.constant 0 : index
    %c0_57 = arith.constant 0 : index
    %c256 = arith.constant 256 : index
    %33 = vector.load %arg9[%c0_56, %c0_57, %c256] : memref<16x16x288xbf16, #tpu.memory_space<vmem>>, vector<16x16x32xbf16>
    tpu.vector_store %arg9[%c0_56, %c0_57, %c256], %32 {strides = array<i32>} : memref<16x16x288xbf16, #tpu.memory_space<vmem>>, vector<16x16x32xbf16>,
    %c0_58 = arith.constant 0 : index
    %c0_59 = arith.constant 0 : index
    %c0_60 = arith.constant 0 : index
    %34 = vector.load %arg9[%c0_58, %c0_59, %c0_60] : memref<16x16x288xbf16, #tpu.memory_space<vmem>>, vector<16x16x288xbf16>
    %35 = vector.shape_cast %34 : vector<16x16x288xbf16> to vector<256x288xbf16>
    %c0_61 = arith.constant 0 : index
    %c0_62 = arith.constant 0 : index
    %36 = vector.load %arg4[%c0_61, %c0_62] : memref<288x32xbf16, #tpu.memory_space<vmem>>, vector<288x32xbf16>
    %cst_63 = arith.constant dense<0.000000e+00> : vector<256x32xf32>
    %37 = tpu.matmul %35, %36, %cst_63 {dimension_numbers = #tpu.dot_dimension_numbers<[1], [0], [0], [1], [0, 0, 1, 1], [], []>} : vector<256x288xbf16>, vector<288x32xbf16>, vector<256x32xf32> -> vector<256x32xf32>
    %c0_64 = arith.constant 0 : index
    %c0_65 = arith.constant 0 : index
    %38 = vector.load %arg5[%c0_64, %c0_65] : memref<1x32xf32, #tpu.memory_space<vmem>>, vector<1x32xf32>
    %39 = vector.broadcast %38 : vector<1x32xf32> to vector<256x32xf32>
    %40 = arith.mulf %37, %39 : vector<256x32xf32>
    %c0_66 = arith.constant 0 : index
    %c0_67 = arith.constant 0 : index
    %41 = vector.load %arg6[%c0_66, %c0_67] : memref<1x32xf32, #tpu.memory_space<vmem>>, vector<1x32xf32>
    %42 = vector.broadcast %41 : vector<1x32xf32> to vector<256x32xf32>
    %43 = arith.addf %40, %42 : vector<256x32xf32>
    %cst_68 = arith.constant 0.000000e+00 : f32
    %44 = vector.broadcast %cst_68 : f32 to vector<256x32xf32>
    %45 = arith.maximumf %43, %44 : vector<256x32xf32>
    %46 = vector.shape_cast %45 : vector<256x32xf32> to vector<1x16x16x32xf32>
    %47 = arith.truncf %46 : vector<1x16x16x32xf32> to vector<1x16x16x32xbf16>
    %c0_69 = arith.constant 0 : index
    %c0_70 = arith.constant 0 : index
    %c0_71 = arith.constant 0 : index
    %c0_72 = arith.constant 0 : index
    %48 = vector.load %arg7[%c0_69, %c0_70, %c0_71, %c0_72] : memref<1x16x16x32xbf16, #tpu.memory_space<vmem>>, vector<1x16x16x32xbf16>
    tpu.vector_store %arg7[%c0_69, %c0_70, %c0_71, %c0_72], %47 {strides = array<i32>} : memref<1x16x16x32xbf16, #tpu.memory_space<vmem>>, vector<1x16x16x32xbf16>,
    return
  }
  func.func @transform_0(%arg0: i32) -> (i32, i32, i32, i32) {
    %c0_i32 = arith.constant 0 : i32
    %c0_i32_0 = arith.constant 0 : i32
    %c0_i32_1 = arith.constant 0 : i32
    %c0_i32_2 = arith.constant 0 : i32
    return %arg0, %c0_i32, %c0_i32_0, %c0_i32_1 : i32, i32, i32, i32
  }
  func.func @transform_1(%arg0: i32) -> (i32, i32) {
    %c0_i32 = arith.constant 0 : i32
    %c0_i32_0 = arith.constant 0 : i32
    %c0_i32_1 = arith.constant 0 : i32
    return %c0_i32, %c0_i32_0 : i32, i32
  }
  func.func @transform_2(%arg0: i32) -> (i32, i32) {
    %c0_i32 = arith.constant 0 : i32
    %c0_i32_0 = arith.constant 0 : i32
    %c0_i32_1 = arith.constant 0 : i32
    return %c0_i32, %c0_i32_0 : i32, i32
  }
  func.func @transform_3(%arg0: i32) -> (i32, i32) {
    %c0_i32 = arith.constant 0 : i32
    %c0_i32_0 = arith.constant 0 : i32
    %c0_i32_1 = arith.constant 0 : i32
    return %c0_i32, %c0_i32_0 : i32, i32
  }
  func.func @transform_4(%arg0: i32) -> (i32, i32) {
    %c0_i32 = arith.constant 0 : i32
    %c0_i32_0 = arith.constant 0 : i32
    %c0_i32_1 = arith.constant 0 : i32
    return %c0_i32, %c0_i32_0 : i32, i32
  }
  func.func @transform_5(%arg0: i32) -> (i32, i32) {
    %c0_i32 = arith.constant 0 : i32
    %c0_i32_0 = arith.constant 0 : i32
    %c0_i32_1 = arith.constant 0 : i32
    return %c0_i32, %c0_i32_0 : i32, i32
  }
  func.func @transform_6(%arg0: i32) -> (i32, i32, i32, i32) {
    %c0_i32 = arith.constant 0 : i32
    %c0_i32_0 = arith.constant 0 : i32
    %c0_i32_1 = arith.constant 0 : i32
    %c0_i32_2 = arith.constant 0 : i32
    return %arg0, %c0_i32, %c0_i32_0, %c0_i32_1 : i32, i32, i32, i32
  }
}

module attributes {stable_mosaic.version = 11 : i64} {
  func.func @kernel(%arg0: i32, %arg1: memref<1x16x16x32xbf16, #tpu.memory_space<vmem>>, %arg2: memref<288x32xbf16, #tpu.memory_space<vmem>>, %arg3: memref<1x16x16x32xf32, #tpu.memory_space<vmem>>, %arg4: memref<1x16x16x32xf32, #tpu.memory_space<vmem>>, %arg5: memref<18x18x32xbf16, #tpu.memory_space<vmem>>, %arg6: memref<16x16x288xbf16, #tpu.memory_space<vmem>>) attributes {dimension_semantics = [#tpu.dimension_semantics<parallel>], iteration_bounds = array<i64: 2>, scalar_prefetch = 0 : i64, scratch_operands = 2 : i64, tpu.core_type = #tpu.core_type<tc>, window_params = [{transform_indices = @transform_0, window_bounds = array<i64: 1, 16, 16, 32>}, {pipeline_mode = #tpu.pipeline_mode<synchronous>, transform_indices = @transform_1, window_bounds = array<i64: 288, 32>}, {transform_indices = @transform_2, window_bounds = array<i64: 1, 16, 16, 32>}, {transform_indices = @transform_3, window_bounds = array<i64: 1, 16, 16, 32>}]} {
    %cst = arith.constant 0.000000e+00 : bf16
    %0 = vector.broadcast %cst : bf16 to vector<18x18x32xbf16>
    %c0 = arith.constant 0 : index
    %c0_0 = arith.constant 0 : index
    %c0_1 = arith.constant 0 : index
    %1 = vector.load %arg5[%c0, %c0_0, %c0_1] : memref<18x18x32xbf16, #tpu.memory_space<vmem>>, vector<18x18x32xbf16>
    tpu.vector_store %arg5[%c0, %c0_0, %c0_1], %0 {strides = array<i32>} : memref<18x18x32xbf16, #tpu.memory_space<vmem>>, vector<18x18x32xbf16>,
    %c0_2 = arith.constant 0 : index
    %c0_3 = arith.constant 0 : index
    %c0_4 = arith.constant 0 : index
    %c0_5 = arith.constant 0 : index
    %2 = vector.load %arg1[%c0_2, %c0_3, %c0_4, %c0_5] : memref<1x16x16x32xbf16, #tpu.memory_space<vmem>>, vector<1x16x16x32xbf16>
    %3 = vector.shape_cast %2 : vector<1x16x16x32xbf16> to vector<16x16x32xbf16>
    %c1 = arith.constant 1 : index
    %c1_6 = arith.constant 1 : index
    %c0_7 = arith.constant 0 : index
    %4 = vector.load %arg5[%c1, %c1_6, %c0_7] : memref<18x18x32xbf16, #tpu.memory_space<vmem>>, vector<16x16x32xbf16>
    tpu.vector_store %arg5[%c1, %c1_6, %c0_7], %3 {strides = array<i32>} : memref<18x18x32xbf16, #tpu.memory_space<vmem>>, vector<16x16x32xbf16>,
    %c0_8 = arith.constant 0 : index
    %c0_9 = arith.constant 0 : index
    %c0_10 = arith.constant 0 : index
    %5 = vector.load %arg5[%c0_8, %c0_9, %c0_10] : memref<18x18x32xbf16, #tpu.memory_space<vmem>>, vector<16x16x32xbf16>
    %c0_11 = arith.constant 0 : index
    %c0_12 = arith.constant 0 : index
    %c0_13 = arith.constant 0 : index
    %6 = vector.load %arg6[%c0_11, %c0_12, %c0_13] : memref<16x16x288xbf16, #tpu.memory_space<vmem>>, vector<16x16x32xbf16>
    tpu.vector_store %arg6[%c0_11, %c0_12, %c0_13], %5 {strides = array<i32>} : memref<16x16x288xbf16, #tpu.memory_space<vmem>>, vector<16x16x32xbf16>,
    %c0_14 = arith.constant 0 : index
    %c1_15 = arith.constant 1 : index
    %c0_16 = arith.constant 0 : index
    %7 = vector.load %arg5[%c0_14, %c1_15, %c0_16] : memref<18x18x32xbf16, #tpu.memory_space<vmem>>, vector<16x16x32xbf16>
    %c0_17 = arith.constant 0 : index
    %c0_18 = arith.constant 0 : index
    %c32 = arith.constant 32 : index
    %8 = vector.load %arg6[%c0_17, %c0_18, %c32] : memref<16x16x288xbf16, #tpu.memory_space<vmem>>, vector<16x16x32xbf16>
    tpu.vector_store %arg6[%c0_17, %c0_18, %c32], %7 {strides = array<i32>} : memref<16x16x288xbf16, #tpu.memory_space<vmem>>, vector<16x16x32xbf16>,
    %c0_19 = arith.constant 0 : index
    %c2 = arith.constant 2 : index
    %c0_20 = arith.constant 0 : index
    %9 = vector.load %arg5[%c0_19, %c2, %c0_20] : memref<18x18x32xbf16, #tpu.memory_space<vmem>>, vector<16x16x32xbf16>
    %c0_21 = arith.constant 0 : index
    %c0_22 = arith.constant 0 : index
    %c64 = arith.constant 64 : index
    %10 = vector.load %arg6[%c0_21, %c0_22, %c64] : memref<16x16x288xbf16, #tpu.memory_space<vmem>>, vector<16x16x32xbf16>
    tpu.vector_store %arg6[%c0_21, %c0_22, %c64], %9 {strides = array<i32>} : memref<16x16x288xbf16, #tpu.memory_space<vmem>>, vector<16x16x32xbf16>,
    %c1_23 = arith.constant 1 : index
    %c0_24 = arith.constant 0 : index
    %c0_25 = arith.constant 0 : index
    %11 = vector.load %arg5[%c1_23, %c0_24, %c0_25] : memref<18x18x32xbf16, #tpu.memory_space<vmem>>, vector<16x16x32xbf16>
    %c0_26 = arith.constant 0 : index
    %c0_27 = arith.constant 0 : index
    %c96 = arith.constant 96 : index
    %12 = vector.load %arg6[%c0_26, %c0_27, %c96] : memref<16x16x288xbf16, #tpu.memory_space<vmem>>, vector<16x16x32xbf16>
    tpu.vector_store %arg6[%c0_26, %c0_27, %c96], %11 {strides = array<i32>} : memref<16x16x288xbf16, #tpu.memory_space<vmem>>, vector<16x16x32xbf16>,
    %c1_28 = arith.constant 1 : index
    %c1_29 = arith.constant 1 : index
    %c0_30 = arith.constant 0 : index
    %13 = vector.load %arg5[%c1_28, %c1_29, %c0_30] : memref<18x18x32xbf16, #tpu.memory_space<vmem>>, vector<16x16x32xbf16>
    %c0_31 = arith.constant 0 : index
    %c0_32 = arith.constant 0 : index
    %c128 = arith.constant 128 : index
    %14 = vector.load %arg6[%c0_31, %c0_32, %c128] : memref<16x16x288xbf16, #tpu.memory_space<vmem>>, vector<16x16x32xbf16>
    tpu.vector_store %arg6[%c0_31, %c0_32, %c128], %13 {strides = array<i32>} : memref<16x16x288xbf16, #tpu.memory_space<vmem>>, vector<16x16x32xbf16>,
    %c1_33 = arith.constant 1 : index
    %c2_34 = arith.constant 2 : index
    %c0_35 = arith.constant 0 : index
    %15 = vector.load %arg5[%c1_33, %c2_34, %c0_35] : memref<18x18x32xbf16, #tpu.memory_space<vmem>>, vector<16x16x32xbf16>
    %c0_36 = arith.constant 0 : index
    %c0_37 = arith.constant 0 : index
    %c160 = arith.constant 160 : index
    %16 = vector.load %arg6[%c0_36, %c0_37, %c160] : memref<16x16x288xbf16, #tpu.memory_space<vmem>>, vector<16x16x32xbf16>
    tpu.vector_store %arg6[%c0_36, %c0_37, %c160], %15 {strides = array<i32>} : memref<16x16x288xbf16, #tpu.memory_space<vmem>>, vector<16x16x32xbf16>,
    %c2_38 = arith.constant 2 : index
    %c0_39 = arith.constant 0 : index
    %c0_40 = arith.constant 0 : index
    %17 = vector.load %arg5[%c2_38, %c0_39, %c0_40] : memref<18x18x32xbf16, #tpu.memory_space<vmem>>, vector<16x16x32xbf16>
    %c0_41 = arith.constant 0 : index
    %c0_42 = arith.constant 0 : index
    %c192 = arith.constant 192 : index
    %18 = vector.load %arg6[%c0_41, %c0_42, %c192] : memref<16x16x288xbf16, #tpu.memory_space<vmem>>, vector<16x16x32xbf16>
    tpu.vector_store %arg6[%c0_41, %c0_42, %c192], %17 {strides = array<i32>} : memref<16x16x288xbf16, #tpu.memory_space<vmem>>, vector<16x16x32xbf16>,
    %c2_43 = arith.constant 2 : index
    %c1_44 = arith.constant 1 : index
    %c0_45 = arith.constant 0 : index
    %19 = vector.load %arg5[%c2_43, %c1_44, %c0_45] : memref<18x18x32xbf16, #tpu.memory_space<vmem>>, vector<16x16x32xbf16>
    %c0_46 = arith.constant 0 : index
    %c0_47 = arith.constant 0 : index
    %c224 = arith.constant 224 : index
    %20 = vector.load %arg6[%c0_46, %c0_47, %c224] : memref<16x16x288xbf16, #tpu.memory_space<vmem>>, vector<16x16x32xbf16>
    tpu.vector_store %arg6[%c0_46, %c0_47, %c224], %19 {strides = array<i32>} : memref<16x16x288xbf16, #tpu.memory_space<vmem>>, vector<16x16x32xbf16>,
    %c2_48 = arith.constant 2 : index
    %c2_49 = arith.constant 2 : index
    %c0_50 = arith.constant 0 : index
    %21 = vector.load %arg5[%c2_48, %c2_49, %c0_50] : memref<18x18x32xbf16, #tpu.memory_space<vmem>>, vector<16x16x32xbf16>
    %c0_51 = arith.constant 0 : index
    %c0_52 = arith.constant 0 : index
    %c256 = arith.constant 256 : index
    %22 = vector.load %arg6[%c0_51, %c0_52, %c256] : memref<16x16x288xbf16, #tpu.memory_space<vmem>>, vector<16x16x32xbf16>
    tpu.vector_store %arg6[%c0_51, %c0_52, %c256], %21 {strides = array<i32>} : memref<16x16x288xbf16, #tpu.memory_space<vmem>>, vector<16x16x32xbf16>,
    %c0_53 = arith.constant 0 : index
    %c0_54 = arith.constant 0 : index
    %c0_55 = arith.constant 0 : index
    %23 = vector.load %arg6[%c0_53, %c0_54, %c0_55] : memref<16x16x288xbf16, #tpu.memory_space<vmem>>, vector<16x16x288xbf16>
    %24 = vector.shape_cast %23 : vector<16x16x288xbf16> to vector<256x288xbf16>
    %c0_56 = arith.constant 0 : index
    %c0_57 = arith.constant 0 : index
    %25 = vector.load %arg2[%c0_56, %c0_57] : memref<288x32xbf16, #tpu.memory_space<vmem>>, vector<288x32xbf16>
    %cst_58 = arith.constant dense<0.000000e+00> : vector<256x32xf32>
    %26 = tpu.matmul %24, %25, %cst_58 {dimension_numbers = #tpu.dot_dimension_numbers<[1], [0], [0], [1], [0, 0, 1, 1], [], []>} : vector<256x288xbf16>, vector<288x32xbf16>, vector<256x32xf32> -> vector<256x32xf32>
    %c0_59 = arith.constant 0 : index
    %c0_60 = arith.constant 0 : index
    %c0_61 = arith.constant 0 : index
    %c0_62 = arith.constant 0 : index
    %27 = vector.load %arg3[%c0_59, %c0_60, %c0_61, %c0_62] : memref<1x16x16x32xf32, #tpu.memory_space<vmem>>, vector<1x16x16x32xf32>
    %28 = vector.shape_cast %27 : vector<1x16x16x32xf32> to vector<16x16x32xf32>
    %29 = vector.shape_cast %28 : vector<16x16x32xf32> to vector<256x32xf32>
    %30 = arith.addf %26, %29 : vector<256x32xf32>
    %31 = vector.shape_cast %30 : vector<256x32xf32> to vector<1x16x16x32xf32>
    %c0_63 = arith.constant 0 : index
    %c0_64 = arith.constant 0 : index
    %c0_65 = arith.constant 0 : index
    %c0_66 = arith.constant 0 : index
    %32 = vector.load %arg4[%c0_63, %c0_64, %c0_65, %c0_66] : memref<1x16x16x32xf32, #tpu.memory_space<vmem>>, vector<1x16x16x32xf32>
    tpu.vector_store %arg4[%c0_63, %c0_64, %c0_65, %c0_66], %31 {strides = array<i32>} : memref<1x16x16x32xf32, #tpu.memory_space<vmem>>, vector<1x16x16x32xf32>,
    return
  }
  func.func @transform_0(%arg0: i32) -> (i32, i32, i32, i32) {
    %c0_i32 = arith.constant 0 : i32
    %c0_i32_0 = arith.constant 0 : i32
    %c0_i32_1 = arith.constant 0 : i32
    %c0_i32_2 = arith.constant 0 : i32
    return %arg0, %c0_i32, %c0_i32_0, %c0_i32_1 : i32, i32, i32, i32
  }
  func.func @transform_1(%arg0: i32) -> (i32, i32) {
    %c0_i32 = arith.constant 0 : i32
    %c0_i32_0 = arith.constant 0 : i32
    %c0_i32_1 = arith.constant 0 : i32
    return %c0_i32, %c0_i32_0 : i32, i32
  }
  func.func @transform_2(%arg0: i32) -> (i32, i32, i32, i32) {
    %c0_i32 = arith.constant 0 : i32
    %c0_i32_0 = arith.constant 0 : i32
    %c0_i32_1 = arith.constant 0 : i32
    %c0_i32_2 = arith.constant 0 : i32
    return %arg0, %c0_i32, %c0_i32_0, %c0_i32_1 : i32, i32, i32, i32
  }
  func.func @transform_3(%arg0: i32) -> (i32, i32, i32, i32) {
    %c0_i32 = arith.constant 0 : i32
    %c0_i32_0 = arith.constant 0 : i32
    %c0_i32_1 = arith.constant 0 : i32
    %c0_i32_2 = arith.constant 0 : i32
    return %arg0, %c0_i32, %c0_i32_0, %c0_i32_1 : i32, i32, i32, i32
  }
}

</mosaic_0001>

<llo_original>
// kernel: wide_basic_forward.3
$region0: #{wide_basic_forward.3}
  #allocation0 [shape = 'u32[]', space=smem, size = 0x4, offset = 0x4, fixed_abs, tag = 'smem constant byte address 0x4 - core index']
  #allocation1 [shape = 'u32[144,128]{1,0:T(1,128)}', space=vmem, size = 0x12000, scoped, tag = 'internal scratch']
  #allocation2 [shape = 'bf16[18,18,32]{2,1,0:T(8,128)(2,1)}', space=vmem, size = 0x1b000, scoped, tag = 'scratch operand']
  #allocation3 [shape = 'bf16[16,16,288]{2,1,0:T(16,128)(2,1)}', space=vmem, size = 0x30000, scoped, tag = 'scratch operand']
  %s0 = inlined_call_operand.vmem [shape: bf16[2,16,16,32], index: 0, kind: input, shape index: {}]
  %s1 = inlined_call_operand.vmem [shape: bf16[288,32], index: 1, kind: input, shape index: {}]
  %s2 = inlined_call_operand.vmem [shape: f32[2,16,16,32], index: 2, kind: input, shape index: {}]
  %s3 = inlined_call_operand.hbm [shape: f32[2,16,16,32], index: 3, kind: output, shape index: {}]
  %s4 = sld [smem:[#allocation0]]
  $region45: #{wide_basic_forward.3} parent=0
    _
  %s6 = ssub.s32 1, %s4
  %s7 = scalar_select 0, %s6, %s4
  $region1: #{wide_basic_forward.3} parent=0
    #allocation4 [shape = 'u8[262144]{0}', space=vmem, size = 0x40000, scoped, tag = 'output window, operand 0']
    #allocation5 [shape = 's32[2]{0}', space=sflag, size = 0x8, scoped, tag = 'scoped memory for wide_basic_forward.3']
    %8 = vsyncpa [#allocation5], 0
    %s9 = scalar_lea.sflag [#allocation5], 1
    %10 = vsyncpa %s9, 0
    loop: start=0, step=1, limit=4
    $region2: #{wide_basic_forward.3} parent=1 // loop_pre_header
      _
    $region3: #{wide_basic_forward.3} parent=1 // loop_header
      %s12 = sphi 0, %s16
      %p13 = scmp.ge.s32.totalorder %s12, 4
      %s22 = sphi 0, %s24
      %s25 = sphi 0, %s22
      %s26 = sphi 0, %s25
      %s42 = sphi 0, %s26
      %s46 = sphi 0, %s46
      %s48 = sphi 0, %s46
      %s49 = sphi 0, %s48
      %s63 = sphi 0, %s49
      %s69 = sphi 0, %s71
      %s72 = sphi 0, %s69
      %s73 = sphi 0, %s72
      %s89 = sphi 0, %s73
      %s95 = sphi 0, %s97
      %s98 = sphi 0, %s95
      %s99 = sphi 0, %s98
      %s115 = sphi 0, %s99
    $region4: #{wide_basic_forward.3} parent=1 // loop_header_branch
      %15 = sbr.rel (%p13) target = $region8
    $region5: #{wide_basic_forward.3} parent=1 // loop_body
      %s17 = ssub.s32 %s12, 1
      %s18 = ssub.s32 %s12, 2
      %s19 = sadd.s32 %s12, 1
      %s20 = ssub.s32 %s12, %s19
      %p21 = scmp.eq.s32.totalorder %s20, 0
      %s23 = sadd.s32 %s22, 1
      %s24 = scalar_select %p21, %s22, %s23
      %p27 = pneg %p21
      %p28 = scmp.eq.s32.totalorder %s12, 1
      %p29 = por %p27, %p28
      %p30 = scmp.ne.s32.totalorder %s22, %s25
      %p31 = scmp.eq.s32.totalorder %s12, 0
      %p32 = por %p30, %p31
      %p33 = scmp.ne.s32.totalorder %s22, %s25
      %p34 = scmp.eq.s32.totalorder %s17, 1
      %p35 = por %p33, %p34
      %p36 = scmp.ne.s32.totalorder %s25, %s26
      %p37 = scmp.eq.s32.totalorder %s17, 0
      %p38 = por %p36, %p37
      %p39 = scmp.ne.s32.totalorder %s25, %s26
      %p40 = scmp.eq.s32.totalorder %s18, 1
      %p41 = por %p39, %p40
      %p43 = scmp.ne.s32.totalorder %s26, %s42
      %p44 = scmp.eq.s32.totalorder %s18, 0
      %p45 = por %p43, %p44
      %s47 = sadd.s32 %s46, 1
      %p50 = scmp.eq.s32.totalorder %s12, 1
      %p51 = scmp.ne.s32.totalorder %s46, %s48
      %p52 = scmp.eq.s32.totalorder %s12, 0
      %p53 = por %p51, %p52
      %p54 = scmp.ne.s32.totalorder %s46, %s48
      %p55 = scmp.eq.s32.totalorder %s17, 1
      %p56 = por %p54, %p55
      %p57 = scmp.ne.s32.totalorder %s48, %s49
      %p58 = scmp.eq.s32.totalorder %s17, 0
      %p59 = por %p57, %p58
      %p60 = scmp.ne.s32.totalorder %s48, %s49
      %p61 = scmp.eq.s32.totalorder %s18, 1
      %p62 = por %p60, %p61
      %p64 = scmp.ne.s32.totalorder %s49, %s63
      %p65 = scmp.eq.s32.totalorder %s18, 0
      %p66 = por %p64, %p65
      %s67 = ssub.s32 %s12, %s19
      %p68 = scmp.eq.s32.totalorder %s67, 0
      %s70 = sadd.s32 %s69, 1
      %s71 = scalar_select %p68, %s69, %s70
      %p74 = pneg %p68
      %p75 = scmp.eq.s32.totalorder %s12, 1
      %p76 = por %p74, %p75
      %p77 = scmp.ne.s32.totalorder %s69, %s72
      %p78 = scmp.eq.s32.totalorder %s12, 0
      %p79 = por %p77, %p78
      %p80 = scmp.ne.s32.totalorder %s69, %s72
      %p81 = scmp.eq.s32.totalorder %s17, 1
      %p82 = por %p80, %p81
      %p83 = scmp.ne.s32.totalorder %s72, %s73
      %p84 = scmp.eq.s32.totalorder %s17, 0
      %p85 = por %p83, %p84
      %p86 = scmp.ne.s32.totalorder %s72, %s73
      %p87 = scmp.eq.s32.totalorder %s18, 1
      %p88 = por %p86, %p87
      %p90 = scmp.ne.s32.totalorder %s73, %s89
      %p91 = scmp.eq.s32.totalorder %s18, 0
      %p92 = por %p90, %p91
      %s93 = ssub.s32 %s12, %s19
      %p94 = scmp.eq.s32.totalorder %s93, 0
      %s96 = sadd.s32 %s95, 1
      %s97 = scalar_select %p94, %s95, %s96
      %p100 = pneg %p94
      %p101 = scmp.eq.s32.totalorder %s12, 1
      %p102 = por %p100, %p101
      %p103 = scmp.ne.s32.totalorder %s95, %s98
      %p104 = scmp.eq.s32.totalorder %s12, 0
      %p105 = por %p103, %p104
      %p106 = scmp.ne.s32.totalorder %s95, %s98
      %p107 = scmp.eq.s32.totalorder %s17, 1
      %p108 = por %p106, %p107
      %p109 = scmp.ne.s32.totalorder %s98, %s99
      %p110 = scmp.eq.s32.totalorder %s17, 0
      %p111 = por %p109, %p110
      %p112 = scmp.ne.s32.totalorder %s98, %s99
      %p113 = scmp.eq.s32.totalorder %s18, 1
      %p114 = por %p112, %p113
      %p116 = scmp.ne.s32.totalorder %s99, %s115
      %p117 = scmp.eq.s32.totalorder %s18, 0
      %p118 = por %p116, %p117
      %p119 = scmp.le.s32.totalorder 1, %s12
      %p120 = scmp.lt.s32.totalorder %s12, 3
      %p121 = pnand %p119, %p120
      %p122 = pneg %p121
      // Predicated region
      $region9: #{wide_basic_forward.3} parent=5 // pred_check
        _
      $region10: #{wide_basic_forward.3} parent=5 // pred_check_branch
        %124 = sbr.rel (%p121) target = $region12
      $region11: #{wide_basic_forward.3} parent=5 // pred_region
        %s125 = ssub.s32 %s12, 1
        // Predicated region
        $region13: #{wide_basic_forward.3} parent=11 // pred_check
          %p126 = pneg %p59
        $region14: #{wide_basic_forward.3} parent=11 // pred_check_branch
          %128 = sbr.rel (%p126) target = $region16
        $region15: #{wide_basic_forward.3} parent=11 // pred_region
          _
        $region16: #{wide_basic_forward.3} parent=11 // pred_fallthru
          _
      $region12: #{wide_basic_forward.3} parent=5 // pred_fallthru
        _
      %p129 = scmp.lt.s32.totalorder %s12, 2
      // Predicated region
      $region17: #{wide_basic_forward.3} parent=5 // pred_check
        %p130 = pneg %p129
      $region18: #{wide_basic_forward.3} parent=5 // pred_check_branch
        %132 = sbr.rel (%p130) target = $region20
      $region19: #{wide_basic_forward.3} parent=5 // pred_region
        // Predicated region
        $region21: #{wide_basic_forward.3} parent=19 // pred_check
          %p133 = pneg %p32
        $region22: #{wide_basic_forward.3} parent=19 // pred_check_branch
          %135 = sbr.rel (%p133) target = $region24
        $region23: #{wide_basic_forward.3} parent=19 // pred_region
          %p136 = scmp.lt.s32.totalorder %s12, 1
          %s137 = scalar_select %p136, %s12, 1
          %s138 = smul.addr %s137, 32
          %s139 = smul.addr %s138, 4
          %s140 = scalar_lea.vmem %s0, %s139
        $region24: #{wide_basic_forward.3} parent=19 // pred_fallthru
          _
        // Predicated region
        $region25: #{wide_basic_forward.3} parent=19 // pred_check
          %p141 = pneg %p79
        $region26: #{wide_basic_forward.3} parent=19 // pred_check_branch
          %143 = sbr.rel (%p141) target = $region28
        $region27: #{wide_basic_forward.3} parent=19 // pred_region
          %p144 = scmp.lt.s32.totalorder %s12, 1
          %s145 = scalar_select %p144, %s12, 1
          %s146 = smul.addr %s145, 32
          %s147 = smul.addr %s146, 8
          %s148 = scalar_lea.vmem %s2, %s147
        $region28: #{wide_basic_forward.3} parent=19 // pred_fallthru
          _
      $region20: #{wide_basic_forward.3} parent=5 // pred_fallthru
        _
      %p149 = scmp.le.s32.totalorder 1, %s12
      %p150 = scmp.lt.s32.totalorder %s12, 3
      %p151 = pnand %p149, %p150
      %p152 = pneg %p151
      // Predicated region
      $region29: #{wide_basic_forward.3} parent=5 // pred_check
        _
      $region30: #{wide_basic_forward.3} parent=5 // pred_check_branch
        %154 = sbr.rel (%p151) target = $region32
      $region31: #{wide_basic_forward.3} parent=5 // pred_region
        %s155 = ssub.s32 %s12, 1
        %p156 = scmp.lt.s32.totalorder %s17, 1
        %s157 = scalar_select %p156, %s17, 1
        %s158 = smul.addr %s157, 32
        %s159 = smul.addr %s158, 4
        %s160 = scalar_lea.vmem %s0, %s159
        %p161 = pneg %p38
        %p162 = pneg %p35
        %p163 = pneg %p59
        %p164 = pneg %p56
        %p165 = scmp.lt.s32.totalorder %s17, 1
        %s166 = scalar_select %p165, %s17, 1
        %s167 = smul.addr %s166, 32
        %s168 = smul.addr %s167, 8
        %s169 = scalar_lea.vmem %s2, %s168
        %p170 = pneg %p85
        %p171 = pneg %p82
        %p172 = pneg %p111
        %p173 = pneg %p108
        %s174 = sand.u32 %s98, 1
        %s175 = scalar_lea.sflag [#allocation5], %s174
        %s176 = sand.u32 %s98, 1
        %s177 = smul.addr %s176, 256
        %s178 = scalar_lea.vmem [#allocation4], %s177
        %p179 = scmp.lt.s32.totalorder %s17, 1
        %s180 = scalar_select %p179, %s17, 1
        %s181 = smul.addr %s180, 32
        %s182 = smul.addr %s181, 4
        %s183 = scalar_lea.vmem %s0, %s182
        %p184 = scmp.lt.s32.totalorder %s17, 1
        %s185 = scalar_select %p184, %s17, 1
        %s186 = smul.addr %s185, 32
        %s187 = smul.addr %s186, 8
        %s188 = scalar_lea.vmem %s2, %s187
        %vm190 = vcmask 257024
        %191 = vst.msk [vmem:[#allocation2] sm:$0xf] %vm190, 0
        %192 = vst.msk [vmem:[#allocation2 + $0x4] sm:$0xf] %vm190, 0
        %vm193 = vcmask 253952
        %194 = vst.msk [vmem:[#allocation2 + $0x8] sm:$0x1] %vm193, 0
        %195 = vst.msk [vmem:[#allocation2 + $0xc] sm:$0xf] %vm190, 0
        %196 = vst.msk [vmem:[#allocation2 + $0x10] sm:$0xf] %vm190, 0
        %197 = vst.msk [vmem:[#allocation2 + $0x14] sm:$0x1] %vm193, 0
        %198 = vst.msk [vmem:[#allocation2 + $0x18] sm:$0xf] %vm190, 0
        %199 = vst.msk [vmem:[#allocation2 + $0x1c] sm:$0xf] %vm190, 0
        %200 = vst.msk [vmem:[#allocation2 + $0x20] sm:$0x1] %vm193, 0
        %201 = vst.msk [vmem:[#allocation2 + $0x24] sm:$0xf] %vm190, 0
        %202 = vst.msk [vmem:[#allocation2 + $0x28] sm:$0xf] %vm190, 0
        %203 = vst.msk [vmem:[#allocation2 + $0x2c] sm:$0x1] %vm193, 0
        %204 = vst.msk [vmem:[#allocation2 + $0x30] sm:$0xf] %vm190, 0
        %205 = vst.msk [vmem:[#allocation2 + $0x34] sm:$0xf] %vm190, 0
        %206 = vst.msk [vmem:[#allocation2 + $0x38] sm:$0x1] %vm193, 0
        %207 = vst.msk [vmem:[#allocation2 + $0x3c] sm:$0xf] %vm190, 0
        %208 = vst.msk [vmem:[#allocation2 + $0x40] sm:$0xf] %vm190, 0
        %209 = vst.msk [vmem:[#allocation2 + $0x44] sm:$0x1] %vm193, 0
        %210 = vst.msk [vmem:[#allocation2 + $0x48] sm:$0xf] %vm190, 0
        %211 = vst.msk [vmem:[#allocation2 + $0x4c] sm:$0xf] %vm190, 0
        %212 = vst.msk [vmem:[#allocation2 + $0x50] sm:$0x1] %vm193, 0
        %213 = vst.msk [vmem:[#allocation2 + $0x54] sm:$0xf] %vm190, 0
        %214 = vst.msk [vmem:[#allocation2 + $0x58] sm:$0xf] %vm190, 0
        %215 = vst.msk [vmem:[#allocation2 + $0x5c] sm:$0x1] %vm193, 0
        %216 = vst.msk [vmem:[#allocation2 + $0x60] sm:$0xf] %vm190, 0
        %217 = vst.msk [vmem:[#allocation2 + $0x64] sm:$0xf] %vm190, 0
        %218 = vst.msk [vmem:[#allocation2 + $0x68] sm:$0x1] %vm193, 0
        %219 = vst.msk [vmem:[#allocation2 + $0x6c] sm:$0xf] %vm190, 0
        %220 = vst.msk [vmem:[#allocation2 + $0x70] sm:$0xf] %vm190, 0
        %221 = vst.msk [vmem:[#allocation2 + $0x74] sm:$0x1] %vm193, 0
        %222 = vst.msk [vmem:[#allocation2 + $0x78] sm:$0xf] %vm190, 0
        %223 = vst.msk [vmem:[#allocation2 + $0x7c] sm:$0xf] %vm190, 0
        %224 = vst.msk [vmem:[#allocation2 + $0x80] sm:$0x1] %vm193, 0
        %225 = vst.msk [vmem:[#allocation2 + $0x84] sm:$0xf] %vm190, 0
        %226 = vst.msk [vmem:[#allocation2 + $0x88] sm:$0xf] %vm190, 0
        %227 = vst.msk [vmem:[#allocation2 + $0x8c] sm:$0x1] %vm193, 0
        %228 = vst.msk [vmem:[#allocation2 + $0x90] sm:$0xf] %vm190, 0
        %229 = vst.msk [vmem:[#allocation2 + $0x94] sm:$0xf] %vm190, 0
        %230 = vst.msk [vmem:[#allocation2 + $0x98] sm:$0x1] %vm193, 0
        %231 = vst.msk [vmem:[#allocation2 + $0x9c] sm:$0xf] %vm190, 0
        %232 = vst.msk [vmem:[#allocation2 + $0xa0] sm:$0xf] %vm190, 0
        %233 = vst.msk [vmem:[#allocation2 + $0xa4] sm:$0x1] %vm193, 0
        %234 = vst.msk [vmem:[#allocation2 + $0xa8] sm:$0xf] %vm190, 0
        %235 = vst.msk [vmem:[#allocation2 + $0xac] sm:$0xf] %vm190, 0
        %236 = vst.msk [vmem:[#allocation2 + $0xb0] sm:$0x1] %vm193, 0
        %237 = vst.msk [vmem:[#allocation2 + $0xb4] sm:$0xf] %vm190, 0
        %238 = vst.msk [vmem:[#allocation2 + $0xb8] sm:$0xf] %vm190, 0
        %239 = vst.msk [vmem:[#allocation2 + $0xbc] sm:$0x1] %vm193, 0
        %240 = vst.msk [vmem:[#allocation2 + $0xc0] sm:$0xf] %vm190, 0
        %241 = vst.msk [vmem:[#allocation2 + $0xc4] sm:$0xf] %vm190, 0
        %242 = vst.msk [vmem:[#allocation2 + $0xc8] sm:$0x1] %vm193, 0
        %243 = vst.msk [vmem:[#allocation2 + $0xcc] sm:$0xf] %vm190, 0
        %244 = vst.msk [vmem:[#allocation2 + $0xd0] sm:$0xf] %vm190, 0
        %245 = vst.msk [vmem:[#allocation2 + $0xd4] sm:$0x1] %vm193, 0
        %v246 = vld [vmem:[%s183] sm:$0xf]
        %v247 = vld [vmem:[%s183 + $0x4] sm:$0xf]
        %v248 = vld [vmem:[%s183 + $0x8] sm:$0xf]
        %v249 = vld [vmem:[%s183 + $0xc] sm:$0xf]
        %v250 = vld [vmem:[%s183 + $0x10] sm:$0xf]
        %v251 = vld [vmem:[%s183 + $0x14] sm:$0xf]
        %v252 = vld [vmem:[%s183 + $0x18] sm:$0xf]
        %v253 = vld [vmem:[%s183 + $0x1c] sm:$0xf]
        %v254 = vld [vmem:[%s183 + $0x20] sm:$0xf]
        %v255 = vld [vmem:[%s183 + $0x24] sm:$0xf]
        %v256 = vld [vmem:[%s183 + $0x28] sm:$0xf]
        %v257 = vld [vmem:[%s183 + $0x2c] sm:$0xf]
        %v258 = vld [vmem:[%s183 + $0x30] sm:$0xf]
        %v259 = vld [vmem:[%s183 + $0x34] sm:$0xf]
        %v260 = vld [vmem:[%s183 + $0x38] sm:$0xf]
        %v261 = vld [vmem:[%s183 + $0x3c] sm:$0xf]
        %v262 = vld [vmem:[%s183 + $0x40] sm:$0xf]
        %v263 = vld [vmem:[%s183 + $0x44] sm:$0xf]
        %v264 = vld [vmem:[%s183 + $0x48] sm:$0xf]
        %v265 = vld [vmem:[%s183 + $0x4c] sm:$0xf]
        %v266 = vld [vmem:[%s183 + $0x50] sm:$0xf]
        %v267 = vld [vmem:[%s183 + $0x54] sm:$0xf]
        %v268 = vld [vmem:[%s183 + $0x58] sm:$0xf]
        %v269 = vld [vmem:[%s183 + $0x5c] sm:$0xf]
        %v270 = vld [vmem:[%s183 + $0x60] sm:$0xf]
        %v271 = vld [vmem:[%s183 + $0x64] sm:$0xf]
        %v272 = vld [vmem:[%s183 + $0x68] sm:$0xf]
        %v273 = vld [vmem:[%s183 + $0x6c] sm:$0xf]
        %v274 = vld [vmem:[%s183 + $0x70] sm:$0xf]
        %v275 = vld [vmem:[%s183 + $0x74] sm:$0xf]
        %v276 = vld [vmem:[%s183 + $0x78] sm:$0xf]
        %v277 = vld [vmem:[%s183 + $0x7c] sm:$0xf]
        %vm278 = vsmask.f32 256
        %vm279 = vsmask.f32 4368
        %vm280 = vmor %vm278, %vm279
        %v282 = vshrl.u32 %v246, 16
        %v284 = vrot.slane %v282, 7
        %v285 = vshll.u32 %v246, 16
        %v287 = vor.u32 %v284, %v285
        %v288 = vrot.slane %v284, 4
        %v290 = vshrl.u32 %v247, 16
        %v292 = vrot.slane %v290, 7
        %v293 = vshll.u32 %v247, 16
        %v295 = vor.u32 %v292, %v293
        %v296 = vsel %vm280, %v288, %v295
        %v297 = vrot.slane %v292, 4
        %v299 = vshrl.u32 %v248, 16
        %v301 = vrot.slane %v299, 7
        %v302 = vshll.u32 %v248, 16
        %v304 = vor.u32 %v301, %v302
        %v305 = vrot.slane %v301, 4
        %v307 = vshrl.u32 %v249, 16
        %v309 = vrot.slane %v307, 7
        %v310 = vshll.u32 %v249, 16
        %v312 = vor.u32 %v309, %v310
        %v313 = vsel %vm280, %v305, %v312
        %v314 = vrot.slane %v309, 4
        %v316 = vshrl.u32 %v250, 16
        %v318 = vrot.slane %v316, 7
        %v319 = vshll.u32 %v250, 16
        %v321 = vor.u32 %v318, %v319
        %v322 = vrot.slane %v318, 4
        %v324 = vshrl.u32 %v251, 16
        %v326 = vrot.slane %v324, 7
        %v327 = vshll.u32 %v251, 16
        %v329 = vor.u32 %v326, %v327
        %v330 = vsel %vm280, %v322, %v329
        %v331 = vrot.slane %v326, 4
        %v333 = vshrl.u32 %v252, 16
        %v335 = vrot.slane %v333, 7
        %v336 = vshll.u32 %v252, 16
        %v338 = vor.u32 %v335, %v336
        %v339 = vrot.slane %v335, 4
        %v341 = vshrl.u32 %v253, 16
        %v343 = vrot.slane %v341, 7
        %v344 = vshll.u32 %v253, 16
        %v346 = vor.u32 %v343, %v344
        %v347 = vsel %vm280, %v339, %v346
        %v348 = vrot.slane %v343, 4
        %v350 = vshrl.u32 %v254, 16
        %v352 = vrot.slane %v350, 7
        %v353 = vshll.u32 %v254, 16
        %v355 = vor.u32 %v352, %v353
        %v356 = vrot.slane %v352, 4
        %v358 = vshrl.u32 %v255, 16
        %v360 = vrot.slane %v358, 7
        %v361 = vshll.u32 %v255, 16
        %v363 = vor.u32 %v360, %v361
        %v364 = vsel %vm280, %v356, %v363
        %v365 = vrot.slane %v360, 4
        %v367 = vshrl.u32 %v256, 16
        %v369 = vrot.slane %v367, 7
        %v370 = vshll.u32 %v256, 16
        %v372 = vor.u32 %v369, %v370
        %v373 = vrot.slane %v369, 4
        %v375 = vshrl.u32 %v257, 16
        %v377 = vrot.slane %v375, 7
        %v378 = vshll.u32 %v257, 16
        %v380 = vor.u32 %v377, %v378
        %v381 = vsel %vm280, %v373, %v380
        %v382 = vrot.slane %v377, 4
        %v384 = vshrl.u32 %v258, 16
        %v386 = vrot.slane %v384, 7
        %v387 = vshll.u32 %v258, 16
        %v389 = vor.u32 %v386, %v387
        %v390 = vrot.slane %v386, 4
        %v392 = vshrl.u32 %v259, 16
        %v394 = vrot.slane %v392, 7
        %v395 = vshll.u32 %v259, 16
        %v397 = vor.u32 %v394, %v395
        %v398 = vsel %vm280, %v390, %v397
        %v399 = vrot.slane %v394, 4
        %v401 = vshrl.u32 %v260, 16
        %v403 = vrot.slane %v401, 7
        %v404 = vshll.u32 %v260, 16
        %v406 = vor.u32 %v403, %v404
        %v407 = vrot.slane %v403, 4
        %v409 = vshrl.u32 %v261, 16
        %v411 = vrot.slane %v409, 7
        %v412 = vshll.u32 %v261, 16
        %v414 = vor.u32 %v411, %v412
        %v415 = vsel %vm280, %v407, %v414
        %v416 = vrot.slane %v411, 4
        %v418 = vshrl.u32 %v262, 16
        %v420 = vrot.slane %v418, 7
        %v421 = vshll.u32 %v262, 16
        %v423 = vor.u32 %v420, %v421
        %v424 = vrot.slane %v420, 4
        %v426 = vshrl.u32 %v263, 16
        %v428 = vrot.slane %v426, 7
        %v429 = vshll.u32 %v263, 16
        %v431 = vor.u32 %v428, %v429
        %v432 = vsel %vm280, %v424, %v431
        %v433 = vrot.slane %v428, 4
        %v435 = vshrl.u32 %v264, 16
        %v437 = vrot.slane %v435, 7
        %v438 = vshll.u32 %v264, 16
        %v440 = vor.u32 %v437, %v438
        %v441 = vrot.slane %v437, 4
        %v443 = vshrl.u32 %v265, 16
        %v445 = vrot.slane %v443, 7
        %v446 = vshll.u32 %v265, 16
        %v448 = vor.u32 %v445, %v446
        %v449 = vsel %vm280, %v441, %v448
        %v450 = vrot.slane %v445, 4
        %v452 = vshrl.u32 %v266, 16
        %v454 = vrot.slane %v452, 7
        %v455 = vshll.u32 %v266, 16
        %v457 = vor.u32 %v454, %v455
        %v458 = vrot.slane %v454, 4
        %v460 = vshrl.u32 %v267, 16
        %v462 = vrot.slane %v460, 7
        %v463 = vshll.u32 %v267, 16
        %v465 = vor.u32 %v462, %v463
        %v466 = vsel %vm280, %v458, %v465
        %v467 = vrot.slane %v462, 4
        %v469 = vshrl.u32 %v268, 16
        %v471 = vrot.slane %v469, 7
        %v472 = vshll.u32 %v268, 16
        %v474 = vor.u32 %v471, %v472
        %v475 = vrot.slane %v471, 4
        %v477 = vshrl.u32 %v269, 16
        %v479 = vrot.slane %v477, 7
        %v480 = vshll.u32 %v269, 16
        %v482 = vor.u32 %v479, %v480
        %v483 = vsel %vm280, %v475, %v482
        %v484 = vrot.slane %v479, 4
        %v486 = vshrl.u32 %v270, 16
        %v488 = vrot.slane %v486, 7
        %v489 = vshll.u32 %v270, 16
        %v491 = vor.u32 %v488, %v489
        %v492 = vrot.slane %v488, 4
        %v494 = vshrl.u32 %v271, 16
        %v496 = vrot.slane %v494, 7
        %v497 = vshll.u32 %v271, 16
        %v499 = vor.u32 %v496, %v497
        %v500 = vsel %vm280, %v492, %v499
        %v501 = vrot.slane %v496, 4
        %v503 = vshrl.u32 %v272, 16
        %v505 = vrot.slane %v503, 7
        %v506 = vshll.u32 %v272, 16
        %v508 = vor.u32 %v505, %v506
        %v509 = vrot.slane %v505, 4
        %v511 = vshrl.u32 %v273, 16
        %v513 = vrot.slane %v511, 7
        %v514 = vshll.u32 %v273, 16
        %v516 = vor.u32 %v513, %v514
        %v517 = vsel %vm280, %v509, %v516
        %v518 = vrot.slane %v513, 4
        %v520 = vshrl.u32 %v274, 16
        %v522 = vrot.slane %v520, 7
        %v523 = vshll.u32 %v274, 16
        %v525 = vor.u32 %v522, %v523
        %v526 = vrot.slane %v522, 4
        %v528 = vshrl.u32 %v275, 16
        %v530 = vrot.slane %v528, 7
        %v531 = vshll.u32 %v275, 16
        %v533 = vor.u32 %v530, %v531
        %v534 = vsel %vm280, %v526, %v533
        %v535 = vrot.slane %v530, 4
        %v537 = vshrl.u32 %v276, 16
        %v539 = vrot.slane %v537, 7
        %v540 = vshll.u32 %v276, 16
        %v542 = vor.u32 %v539, %v540
        %v543 = vrot.slane %v539, 4
        %v545 = vshrl.u32 %v277, 16
        %v547 = vrot.slane %v545, 7
        %v548 = vshll.u32 %v277, 16
        %v550 = vor.u32 %v547, %v548
        %v551 = vsel %vm280, %v543, %v550
        %v552 = vrot.slane %v547, 4
        %s601 = scalar_lea.vmem [#allocation2], 12
        %vm602 = vcmask 257024
        %vm603 = vsmask.f32 7938
        %vm604 = vmand %vm602, %vm603
        %v605 = vld [vmem:[%s601] sm:$0xf]
        %v606 = vsel %vm604, %v287, %v605
        %607 = vst [vmem:[%s601] sm:$0xf] %v606
        %608 = vst.msk [vmem:[%s601 + $0x4] sm:$0xf] %vm190, %v296
        %vm609 = vcmask 253952
        %vm610 = vmand %vm609, %vm278
        %v611 = vld [vmem:[%s601 + $0x8] sm:$0x1]
        %v612 = vsel %vm610, %v297, %v611
        %613 = vst [vmem:[%s601 + $0x8] sm:$0x1] %v612
        %v614 = vld [vmem:[%s601 + $0xc] sm:$0xf]
        %v615 = vsel %vm604, %v304, %v614
        %616 = vst [vmem:[%s601 + $0xc] sm:$0xf] %v615
        %617 = vst.msk [vmem:[%s601 + $0x10] sm:$0xf] %vm190, %v313
        %v618 = vld [vmem:[%s601 + $0x14] sm:$0x1]
        %v619 = vsel %vm610, %v314, %v618
        %620 = vst [vmem:[%s601 + $0x14] sm:$0x1] %v619
        %v621 = vld [vmem:[%s601 + $0x18] sm:$0xf]
        %v622 = vsel %vm604, %v321, %v621
        %623 = vst [vmem:[%s601 + $0x18] sm:$0xf] %v622
        %624 = vst.msk [vmem:[%s601 + $0x1c] sm:$0xf] %vm190, %v330
        %v625 = vld [vmem:[%s601 + $0x20] sm:$0x1]
        %v626 = vsel %vm610, %v331, %v625
        %627 = vst [vmem:[%s601 + $0x20] sm:$0x1] %v626
        %v628 = vld [vmem:[%s601 + $0x24] sm:$0xf]
        %v629 = vsel %vm604, %v338, %v628
        %630 = vst [vmem:[%s601 + $0x24] sm:$0xf] %v629
        %631 = vst.msk [vmem:[%s601 + $0x28] sm:$0xf] %vm190, %v347
        %v632 = vld [vmem:[%s601 + $0x2c] sm:$0x1]
        %v633 = vsel %vm610, %v348, %v632
        %634 = vst [vmem:[%s601 + $0x2c] sm:$0x1] %v633
        %v635 = vld [vmem:[%s601 + $0x30] sm:$0xf]
        %v636 = vsel %vm604, %v355, %v635
        %637 = vst [vmem:[%s601 + $0x30] sm:$0xf] %v636
        %638 = vst.msk [vmem:[%s601 + $0x34] sm:$0xf] %vm190, %v364
        %v639 = vld [vmem:[%s601 + $0x38] sm:$0x1]
        %v640 = vsel %vm610, %v365, %v639
        %641 = vst [vmem:[%s601 + $0x38] sm:$0x1] %v640
        %v642 = vld [vmem:[%s601 + $0x3c] sm:$0xf]
        %v643 = vsel %vm604, %v372, %v642
        %644 = vst [vmem:[%s601 + $0x3c] sm:$0xf] %v643
        %645 = vst.msk [vmem:[%s601 + $0x40] sm:$0xf] %vm190, %v381
        %v646 = vld [vmem:[%s601 + $0x44] sm:$0x1]
        %v647 = vsel %vm610, %v382, %v646
        %648 = vst [vmem:[%s601 + $0x44] sm:$0x1] %v647
        %v649 = vld [vmem:[%s601 + $0x48] sm:$0xf]
        %v650 = vsel %vm604, %v389, %v649
        %651 = vst [vmem:[%s601 + $0x48] sm:$0xf] %v650
        %652 = vst.msk [vmem:[%s601 + $0x4c] sm:$0xf] %vm190, %v398
        %v653 = vld [vmem:[%s601 + $0x50] sm:$0x1]
        %v654 = vsel %vm610, %v399, %v653
        %655 = vst [vmem:[%s601 + $0x50] sm:$0x1] %v654
        %v656 = vld [vmem:[%s601 + $0x54] sm:$0xf]
        %v657 = vsel %vm604, %v406, %v656
        %658 = vst [vmem:[%s601 + $0x54] sm:$0xf] %v657
        %659 = vst.msk [vmem:[%s601 + $0x58] sm:$0xf] %vm190, %v415
        %v660 = vld [vmem:[%s601 + $0x5c] sm:$0x1]
        %v661 = vsel %vm610, %v416, %v660
        %662 = vst [vmem:[%s601 + $0x5c] sm:$0x1] %v661
        %v663 = vld [vmem:[%s601 + $0x60] sm:$0xf]
        %v664 = vsel %vm604, %v423, %v663
        %665 = vst [vmem:[%s601 + $0x60] sm:$0xf] %v664
        %666 = vst.msk [vmem:[%s601 + $0x64] sm:$0xf] %vm190, %v432
        %v667 = vld [vmem:[%s601 + $0x68] sm:$0x1]
        %v668 = vsel %vm610, %v433, %v667
        %669 = vst [vmem:[%s601 + $0x68] sm:$0x1] %v668
        %v670 = vld [vmem:[%s601 + $0x6c] sm:$0xf]
        %v671 = vsel %vm604, %v440, %v670
        %672 = vst [vmem:[%s601 + $0x6c] sm:$0xf] %v671
        %673 = vst.msk [vmem:[%s601 + $0x70] sm:$0xf] %vm190, %v449
        %v674 = vld [vmem:[%s601 + $0x74] sm:$0x1]
        %v675 = vsel %vm610, %v450, %v674
        %676 = vst [vmem:[%s601 + $0x74] sm:$0x1] %v675
        %v677 = vld [vmem:[%s601 + $0x78] sm:$0xf]
        %v678 = vsel %vm604, %v457, %v677
        %679 = vst [vmem:[%s601 + $0x78] sm:$0xf] %v678
        %680 = vst.msk [vmem:[%s601 + $0x7c] sm:$0xf] %vm190, %v466
        %v681 = vld [vmem:[%s601 + $0x80] sm:$0x1]
        %v682 = vsel %vm610, %v467, %v681
        %683 = vst [vmem:[%s601 + $0x80] sm:$0x1] %v682
        %v684 = vld [vmem:[%s601 + $0x84] sm:$0xf]
        %v685 = vsel %vm604, %v474, %v684
        %686 = vst [vmem:[%s601 + $0x84] sm:$0xf] %v685
        %687 = vst.msk [vmem:[%s601 + $0x88] sm:$0xf] %vm190, %v483
        %v688 = vld [vmem:[%s601 + $0x8c] sm:$0x1]
        %v689 = vsel %vm610, %v484, %v688
        %690 = vst [vmem:[%s601 + $0x8c] sm:$0x1] %v689
        %v691 = vld [vmem:[%s601 + $0x90] sm:$0xf]
        %v692 = vsel %vm604, %v491, %v691
        %693 = vst [vmem:[%s601 + $0x90] sm:$0xf] %v692
        %694 = vst.msk [vmem:[%s601 + $0x94] sm:$0xf] %vm190, %v500
        %v695 = vld [vmem:[%s601 + $0x98] sm:$0x1]
        %v696 = vsel %vm610, %v501, %v695
        %697 = vst [vmem:[%s601 + $0x98] sm:$0x1] %v696
        %v698 = vld [vmem:[%s601 + $0x9c] sm:$0xf]
        %v699 = vsel %vm604, %v508, %v698
        %700 = vst [vmem:[%s601 + $0x9c] sm:$0xf] %v699
        %701 = vst.msk [vmem:[%s601 + $0xa0] sm:$0xf] %vm190, %v517
        %v702 = vld [vmem:[%s601 + $0xa4] sm:$0x1]
        %v703 = vsel %vm610, %v518, %v702
        %704 = vst [vmem:[%s601 + $0xa4] sm:$0x1] %v703
        %v705 = vld [vmem:[%s601 + $0xa8] sm:$0xf]
        %v706 = vsel %vm604, %v525, %v705
        %707 = vst [vmem:[%s601 + $0xa8] sm:$0xf] %v706
        %708 = vst.msk [vmem:[%s601 + $0xac] sm:$0xf] %vm190, %v534
        %v709 = vld [vmem:[%s601 + $0xb0] sm:$0x1]
        %v710 = vsel %vm610, %v535, %v709
        %711 = vst [vmem:[%s601 + $0xb0] sm:$0x1] %v710
        %v712 = vld [vmem:[%s601 + $0xb4] sm:$0xf]
        %v713 = vsel %vm604, %v542, %v712
        %714 = vst [vmem:[%s601 + $0xb4] sm:$0xf] %v713
        %715 = vst.msk [vmem:[%s601 + $0xb8] sm:$0xf] %vm190, %v551
        %v716 = vld [vmem:[%s601 + $0xbc] sm:$0x1]
        %v717 = vsel %vm610, %v552, %v716
        %718 = vst [vmem:[%s601 + $0xbc] sm:$0x1] %v717
        %v719 = vld [vmem:[#allocation2] sm:$0xf]
        %v720 = vld [vmem:[#allocation2 + $0x4] sm:$0xf]
        %v721 = vld [vmem:[#allocation2 + $0xc] sm:$0xf]
        %v722 = vld [vmem:[#allocation2 + $0x10] sm:$0xf]
        %v723 = vld [vmem:[#allocation2 + $0x18] sm:$0xf]
        %v724 = vld [vmem:[#allocation2 + $0x1c] sm:$0xf]
        %v725 = vld [vmem:[#allocation2 + $0x24] sm:$0xf]
        %v726 = vld [vmem:[#allocation2 + $0x28] sm:$0xf]
        %v727 = vld [vmem:[#allocation2 + $0x30] sm:$0xf]
        %v728 = vld [vmem:[#allocation2 + $0x34] sm:$0xf]
        %v729 = vld [vmem:[#allocation2 + $0x3c] sm:$0xf]
        %v730 = vld [vmem:[#allocation2 + $0x40] sm:$0xf]
        %v731 = vld [vmem:[#allocation2 + $0x48] sm:$0xf]
        %v732 = vld [vmem:[#allocation2 + $0x4c] sm:$0xf]
        %v733 = vld [vmem:[#allocation2 + $0x54] sm:$0xf]
        %v734 = vld [vmem:[#allocation2 + $0x58] sm:$0xf]
        %v735 = vld [vmem:[#allocation2 + $0x60] sm:$0xf]
        %v736 = vld [vmem:[#allocation2 + $0x64] sm:$0xf]
        %v737 = vld [vmem:[#allocation2 + $0x6c] sm:$0xf]
        %v738 = vld [vmem:[#allocation2 + $0x70] sm:$0xf]
        %v739 = vld [vmem:[#allocation2 + $0x78] sm:$0xf]
        %v740 = vld [vmem:[#allocation2 + $0x7c] sm:$0xf]
        %v741 = vld [vmem:[#allocation2 + $0x84] sm:$0xf]
        %v742 = vld [vmem:[#allocation2 + $0x88] sm:$0xf]
        %v743 = vld [vmem:[#allocation2 + $0x90] sm:$0xf]
        %v744 = vld [vmem:[#allocation2 + $0x94] sm:$0xf]
        %v745 = vld [vmem:[#allocation2 + $0x9c] sm:$0xf]
        %v746 = vld [vmem:[#allocation2 + $0xa0] sm:$0xf]
        %v747 = vld [vmem:[#allocation2 + $0xa8] sm:$0xf]
        %v748 = vld [vmem:[#allocation2 + $0xac] sm:$0xf]
        %v749 = vld [vmem:[#allocation2 + $0xb4] sm:$0xf]
        %v750 = vld [vmem:[#allocation2 + $0xb8] sm:$0xf]
        %v783 = vunpack.c.l.b16 %v719
        %v784 = vunpack.c.l.b16 %v720
        %v785 = vunpack.c.l.b16 %v721
        %v786 = vunpack.c.l.b16 %v722
        %v787 = vunpack.c.l.b16 %v723
        %v788 = vunpack.c.l.b16 %v724
        %v789 = vunpack.c.l.b16 %v725
        %v790 = vunpack.c.l.b16 %v726
        %v791 = vunpack.c.l.b16 %v727
        %v792 = vunpack.c.l.b16 %v728
        %v793 = vunpack.c.l.b16 %v729
        %v794 = vunpack.c.l.b16 %v730
        %v795 = vunpack.c.l.b16 %v731
        %v796 = vunpack.c.l.b16 %v732
        %v797 = vunpack.c.l.b16 %v733
        %v798 = vunpack.c.l.b16 %v734
        %v799 = vunpack.c.l.b16 %v735
        %v800 = vunpack.c.l.b16 %v736
        %v801 = vunpack.c.l.b16 %v737
        %v802 = vunpack.c.l.b16 %v738
        %v803 = vunpack.c.l.b16 %v739
        %v804 = vunpack.c.l.b16 %v740
        %v805 = vunpack.c.l.b16 %v741
        %v806 = vunpack.c.l.b16 %v742
        %v807 = vunpack.c.l.b16 %v743
        %v808 = vunpack.c.l.b16 %v744
        %v809 = vunpack.c.l.b16 %v745
        %v810 = vunpack.c.l.b16 %v746
        %v811 = vunpack.c.l.b16 %v747
        %v812 = vunpack.c.l.b16 %v748
        %v813 = vunpack.c.l.b16 %v749
        %v814 = vunpack.c.l.b16 %v750
        %v815 = vpack.c.b16 %v784, %v783
        %v816 = vpack.c.b16 %v786, %v785
        %v817 = vpack.c.b16 %v788, %v787
        %v818 = vpack.c.b16 %v790, %v789
        %v819 = vpack.c.b16 %v792, %v791
        %v820 = vpack.c.b16 %v794, %v793
        %v821 = vpack.c.b16 %v796, %v795
        %v822 = vpack.c.b16 %v798, %v797
        %v823 = vpack.c.b16 %v800, %v799
        %v824 = vpack.c.b16 %v802, %v801
        %v825 = vpack.c.b16 %v804, %v803
        %v826 = vpack.c.b16 %v806, %v805
        %v827 = vpack.c.b16 %v808, %v807
        %v828 = vpack.c.b16 %v810, %v809
        %v829 = vpack.c.b16 %v812, %v811
        %v830 = vpack.c.b16 %v814, %v813
        %vm847 = vcmask 261120
        %848 = vst.msk [vmem:[#allocation3] sm:$0xff] %vm847, %v815
        %849 = vst.msk [vmem:[#allocation3 + $0x18] sm:$0xff] %vm847, %v816
        %850 = vst.msk [vmem:[#allocation3 + $0x30] sm:$0xff] %vm847, %v817
        %851 = vst.msk [vmem:[#allocation3 + $0x48] sm:$0xff] %vm847, %v818
        %852 = vst.msk [vmem:[#allocation3 + $0x60] sm:$0xff] %vm847, %v819
        %853 = vst.msk [vmem:[#allocation3 + $0x78] sm:$0xff] %vm847, %v820
        %854 = vst.msk [vmem:[#allocation3 + $0x90] sm:$0xff] %vm847, %v821
        %855 = vst.msk [vmem:[#allocation3 + $0xa8] sm:$0xff] %vm847, %v822
        %856 = vst.msk [vmem:[#allocation3 + $0xc0] sm:$0xff] %vm847, %v823
        %857 = vst.msk [vmem:[#allocation3 + $0xd8] sm:$0xff] %vm847, %v824
        %858 = vst.msk [vmem:[#allocation3 + $0xf0] sm:$0xff] %vm847, %v825
        %859 = vst.msk [vmem:[#allocation3 + $0x108] sm:$0xff] %vm847, %v826
        %860 = vst.msk [vmem:[#allocation3 + $0x120] sm:$0xff] %vm847, %v827
        %861 = vst.msk [vmem:[#allocation3 + $0x138] sm:$0xff] %vm847, %v828
        %862 = vst.msk [vmem:[#allocation3 + $0x150] sm:$0xff] %vm847, %v829
        %863 = vst.msk [vmem:[#allocation3 + $0x168] sm:$0xff] %vm847, %v830
        %v864 = vld [vmem:[#allocation2] sm:$0xf]
        %v865 = vld [vmem:[#allocation2 + $0x4] sm:$0xf]
        %v866 = vld [vmem:[#allocation2 + $0x8] sm:$0x1]
        %v867 = vld [vmem:[#allocation2 + $0xc] sm:$0xf]
        %v868 = vld [vmem:[#allocation2 + $0x10] sm:$0xf]
        %v869 = vld [vmem:[#allocation2 + $0x14] sm:$0x1]
        %v870 = vld [vmem:[#allocation2 + $0x18] sm:$0xf]
        %v871 = vld [vmem:[#allocation2 + $0x1c] sm:$0xf]
        %v872 = vld [vmem:[#allocation2 + $0x20] sm:$0x1]
        %v873 = vld [vmem:[#allocation2 + $0x24] sm:$0xf]
        %v874 = vld [vmem:[#allocation2 + $0x28] sm:$0xf]
        %v875 = vld [vmem:[#allocation2 + $0x2c] sm:$0x1]
        %v876 = vld [vmem:[#allocation2 + $0x30] sm:$0xf]
        %v877 = vld [vmem:[#allocation2 + $0x34] sm:$0xf]
        %v878 = vld [vmem:[#allocation2 + $0x38] sm:$0x1]
        %v879 = vld [vmem:[#allocation2 + $0x3c] sm:$0xf]
        %v880 = vld [vmem:[#allocation2 + $0x40] sm:$0xf]
        %v881 = vld [vmem:[#allocation2 + $0x44] sm:$0x1]
        %v882 = vld [vmem:[#allocation2 + $0x48] sm:$0xf]
        %v883 = vld [vmem:[#allocation2 + $0x4c] sm:$0xf]
        %v884 = vld [vmem:[#allocation2 + $0x50] sm:$0x1]
        %v885 = vld [vmem:[#allocation2 + $0x54] sm:$0xf]
        %v886 = vld [vmem:[#allocation2 + $0x58] sm:$0xf]
        %v887 = vld [vmem:[#allocation2 + $0x5c] sm:$0x1]
        %v888 = vld [vmem:[#allocation2 + $0x60] sm:$0xf]
        %v889 = vld [vmem:[#allocation2 + $0x64] sm:$0xf]
        %v890 = vld [vmem:[#allocation2 + $0x68] sm:$0x1]
        %v891 = vld [vmem:[#allocation2 + $0x6c] sm:$0xf]
        %v892 = vld [vmem:[#allocation2 + $0x70] sm:$0xf]
        %v893 = vld [vmem:[#allocation2 + $0x74] sm:$0x1]
        %v894 = vld [vmem:[#allocation2 + $0x78] sm:$0xf]
        %v895 = vld [vmem:[#allocation2 + $0x7c] sm:$0xf]
        %v896 = vld [vmem:[#allocation2 + $0x80] sm:$0x1]
        %v897 = vld [vmem:[#allocation2 + $0x84] sm:$0xf]
        %v898 = vld [vmem:[#allocation2 + $0x88] sm:$0xf]
        %v899 = vld [vmem:[#allocation2 + $0x8c] sm:$0x1]
        %v900 = vld [vmem:[#allocation2 + $0x90] sm:$0xf]
        %v901 = vld [vmem:[#allocation2 + $0x94] sm:$0xf]
        %v902 = vld [vmem:[#allocation2 + $0x98] sm:$0x1]
        %v903 = vld [vmem:[#allocation2 + $0x9c] sm:$0xf]
        %v904 = vld [vmem:[#allocation2 + $0xa0] sm:$0xf]
        %v905 = vld [vmem:[#allocation2 + $0xa4] sm:$0x1]
        %v906 = vld [vmem:[#allocation2 + $0xa8] sm:$0xf]
        %v907 = vld [vmem:[#allocation2 + $0xac] sm:$0xf]
        %v908 = vld [vmem:[#allocation2 + $0xb0] sm:$0x1]
        %v909 = vld [vmem:[#allocation2 + $0xb4] sm:$0xf]
        %v910 = vld [vmem:[#allocation2 + $0xb8] sm:$0xf]
        %v911 = vld [vmem:[#allocation2 + $0xbc] sm:$0x1]
        %v960 = vunpack.c.l.b16 %v864
        %v961 = vunpack.c.l.b16 %v865
        %v962 = vunpack.c.l.b16 %v866
        %v963 = vunpack.c.l.b16 %v867
        %v964 = vunpack.c.l.b16 %v868
        %v965 = vunpack.c.l.b16 %v869
        %v966 = vunpack.c.l.b16 %v870
        %v967 = vunpack.c.l.b16 %v871
        %v968 = vunpack.c.l.b16 %v872
        %v969 = vunpack.c.l.b16 %v873
        %v970 = vunpack.c.l.b16 %v874
        %v971 = vunpack.c.l.b16 %v875
        %v972 = vunpack.c.l.b16 %v876
        %v973 = vunpack.c.l.b16 %v877
        %v974 = vunpack.c.l.b16 %v878
        %v975 = vunpack.c.l.b16 %v879
        %v976 = vunpack.c.l.b16 %v880
        %v977 = vunpack.c.l.b16 %v881
        %v978 = vunpack.c.l.b16 %v882
        %v979 = vunpack.c.l.b16 %v883
        %v980 = vunpack.c.l.b16 %v884
        %v981 = vunpack.c.l.b16 %v885
        %v982 = vunpack.c.l.b16 %v886
        %v983 = vunpack.c.l.b16 %v887
        %v984 = vunpack.c.l.b16 %v888
        %v985 = vunpack.c.l.b16 %v889
        %v986 = vunpack.c.l.b16 %v890
        %v987 = vunpack.c.l.b16 %v891
        %v988 = vunpack.c.l.b16 %v892
        %v989 = vunpack.c.l.b16 %v893
        %v990 = vunpack.c.l.b16 %v894
        %v991 = vunpack.c.l.b16 %v895
        %v992 = vunpack.c.l.b16 %v896
        %v993 = vunpack.c.l.b16 %v897
        %v994 = vunpack.c.l.b16 %v898
        %v995 = vunpack.c.l.b16 %v899
        %v996 = vunpack.c.l.b16 %v900
        %v997 = vunpack.c.l.b16 %v901
        %v998 = vunpack.c.l.b16 %v902
        %v999 = vunpack.c.l.b16 %v903
        %v1000 = vunpack.c.l.b16 %v904
        %v1001 = vunpack.c.l.b16 %v905
        %v1002 = vunpack.c.l.b16 %v906
        %v1003 = vunpack.c.l.b16 %v907
        %v1004 = vunpack.c.l.b16 %v908
        %v1005 = vunpack.c.l.b16 %v909
        %v1006 = vunpack.c.l.b16 %v910
        %v1007 = vunpack.c.l.b16 %v911
        %v1008 = vpack.c.b16 %v961, %v960
        %v1009 = vpack.c.b16 %v962, %v962
        %v1010 = vpack.c.b16 %v964, %v963
        %v1011 = vpack.c.b16 %v965, %v965
        %v1012 = vpack.c.b16 %v967, %v966
        %v1013 = vpack.c.b16 %v968, %v968
        %v1014 = vpack.c.b16 %v970, %v969
        %v1015 = vpack.c.b16 %v971, %v971
        %v1016 = vpack.c.b16 %v973, %v972
        %v1017 = vpack.c.b16 %v974, %v974
        %v1018 = vpack.c.b16 %v976, %v975
        %v1019 = vpack.c.b16 %v977, %v977
        %v1020 = vpack.c.b16 %v979, %v978
        %v1021 = vpack.c.b16 %v980, %v980
        %v1022 = vpack.c.b16 %v982, %v981
        %v1023 = vpack.c.b16 %v983, %v983
        %v1024 = vpack.c.b16 %v985, %v984
        %v1025 = vpack.c.b16 %v986, %v986
        %v1026 = vpack.c.b16 %v988, %v987
        %v1027 = vpack.c.b16 %v989, %v989
        %v1028 = vpack.c.b16 %v991, %v990
        %v1029 = vpack.c.b16 %v992, %v992
        %v1030 = vpack.c.b16 %v994, %v993
        %v1031 = vpack.c.b16 %v995, %v995
        %v1032 = vpack.c.b16 %v997, %v996
        %v1033 = vpack.c.b16 %v998, %v998
        %v1034 = vpack.c.b16 %v1000, %v999
        %v1035 = vpack.c.b16 %v1001, %v1001
        %v1036 = vpack.c.b16 %v1003, %v1002
        %v1037 = vpack.c.b16 %v1004, %v1004
        %v1038 = vpack.c.b16 %v1006, %v1005
        %v1039 = vpack.c.b16 %v1007, %v1007
        %vm1040 = vsmask.f32 7424
        %v1042 = vshrl.u32 %v1008, 16
        %v1044 = vshll.u32 %v1008, 16
        %v1046 = vrot.slane %v1044, 1
        %v1047 = vor.u32 %v1042, %v1046
        %v1049 = vshll.u32 %v1009, 16
        %v1051 = vrot.slane %v1049, 1
        %v1052 = vsel %vm1040, %v1047, %v1051
        %v1054 = vshrl.u32 %v1010, 16
        %v1056 = vshll.u32 %v1010, 16
        %v1058 = vrot.slane %v1056, 1
        %v1059 = vor.u32 %v1054, %v1058
        %v1061 = vshll.u32 %v1011, 16
        %v1063 = vrot.slane %v1061, 1
        %v1064 = vsel %vm1040, %v1059, %v1063
        %v1066 = vshrl.u32 %v1012, 16
        %v1068 = vshll.u32 %v1012, 16
        %v1070 = vrot.slane %v1068, 1
        %v1071 = vor.u32 %v1066, %v1070
        %v1073 = vshll.u32 %v1013, 16
        %v1075 = vrot.slane %v1073, 1
        %v1076 = vsel %vm1040, %v1071, %v1075
        %v1078 = vshrl.u32 %v1014, 16
        %v1080 = vshll.u32 %v1014, 16
        %v1082 = vrot.slane %v1080, 1
        %v1083 = vor.u32 %v1078, %v1082
        %v1085 = vshll.u32 %v1015, 16
        %v1087 = vrot.slane %v1085, 1
        %v1088 = vsel %vm1040, %v1083, %v1087
        %v1090 = vshrl.u32 %v1016, 16
        %v1092 = vshll.u32 %v1016, 16
        %v1094 = vrot.slane %v1092, 1
        %v1095 = vor.u32 %v1090, %v1094
        %v1097 = vshll.u32 %v1017, 16
        %v1099 = vrot.slane %v1097, 1
        %v1100 = vsel %vm1040, %v1095, %v1099
        %v1102 = vshrl.u32 %v1018, 16
        %v1104 = vshll.u32 %v1018, 16
        %v1106 = vrot.slane %v1104, 1
        %v1107 = vor.u32 %v1102, %v1106
        %v1109 = vshll.u32 %v1019, 16
        %v1111 = vrot.slane %v1109, 1
        %v1112 = vsel %vm1040, %v1107, %v1111
        %v1114 = vshrl.u32 %v1020, 16
        %v1116 = vshll.u32 %v1020, 16
        %v1118 = vrot.slane %v1116, 1
        %v1119 = vor.u32 %v1114, %v1118
        %v1121 = vshll.u32 %v1021, 16
        %v1123 = vrot.slane %v1121, 1
        %v1124 = vsel %vm1040, %v1119, %v1123
        %v1126 = vshrl.u32 %v1022, 16
        %v1128 = vshll.u32 %v1022, 16
        %v1130 = vrot.slane %v1128, 1
        %v1131 = vor.u32 %v1126, %v1130
        %v1133 = vshll.u32 %v1023, 16
        %v1135 = vrot.slane %v1133, 1
        %v1136 = vsel %vm1040, %v1131, %v1135
        %v1138 = vshrl.u32 %v1024, 16
        %v1140 = vshll.u32 %v1024, 16
        %v1142 = vrot.slane %v1140, 1
        %v1143 = vor.u32 %v1138, %v1142
        %v1145 = vshll.u32 %v1025, 16
        %v1147 = vrot.slane %v1145, 1
        %v1148 = vsel %vm1040, %v1143, %v1147
        %v1150 = vshrl.u32 %v1026, 16
        %v1152 = vshll.u32 %v1026, 16
        %v1154 = vrot.slane %v1152, 1
        %v1155 = vor.u32 %v1150, %v1154
        %v1157 = vshll.u32 %v1027, 16
        %v1159 = vrot.slane %v1157, 1
        %v1160 = vsel %vm1040, %v1155, %v1159
        %v1162 = vshrl.u32 %v1028, 16
        %v1164 = vshll.u32 %v1028, 16
        %v1166 = vrot.slane %v1164, 1
        %v1167 = vor.u32 %v1162, %v1166
        %v1169 = vshll.u32 %v1029, 16
        %v1171 = vrot.slane %v1169, 1
        %v1172 = vsel %vm1040, %v1167, %v1171
        %v1174 = vshrl.u32 %v1030, 16
        %v1176 = vshll.u32 %v1030, 16
        %v1178 = vrot.slane %v1176, 1
        %v1179 = vor.u32 %v1174, %v1178
        %v1181 = vshll.u32 %v1031, 16
        %v1183 = vrot.slane %v1181, 1
        %v1184 = vsel %vm1040, %v1179, %v1183
        %v1186 = vshrl.u32 %v1032, 16
        %v1188 = vshll.u32 %v1032, 16
        %v1190 = vrot.slane %v1188, 1
        %v1191 = vor.u32 %v1186, %v1190
        %v1193 = vshll.u32 %v1033, 16
        %v1195 = vrot.slane %v1193, 1
        %v1196 = vsel %vm1040, %v1191, %v1195
        %v1198 = vshrl.u32 %v1034, 16
        %v1200 = vshll.u32 %v1034, 16
        %v1202 = vrot.slane %v1200, 1
        %v1203 = vor.u32 %v1198, %v1202
        %v1205 = vshll.u32 %v1035, 16
        %v1207 = vrot.slane %v1205, 1
        %v1208 = vsel %vm1040, %v1203, %v1207
        %v1210 = vshrl.u32 %v1036, 16
        %v1212 = vshll.u32 %v1036, 16
        %v1214 = vrot.slane %v1212, 1
        %v1215 = vor.u32 %v1210, %v1214
        %v1217 = vshll.u32 %v1037, 16
        %v1219 = vrot.slane %v1217, 1
        %v1220 = vsel %vm1040, %v1215, %v1219
        %v1222 = vshrl.u32 %v1038, 16
        %v1224 = vshll.u32 %v1038, 16
        %v1226 = vrot.slane %v1224, 1
        %v1227 = vor.u32 %v1222, %v1226
        %v1229 = vshll.u32 %v1039, 16
        %v1231 = vrot.slane %v1229, 1
        %v1232 = vsel %vm1040, %v1227, %v1231
        %1233 = vrot.lane.b32.xlu0 %v1052, 32
        %v1234 = vpop.permute.xlu0 %1233
        %1235 = vrot.lane.b32.xlu0 %v1064, 32
        %v1236 = vpop.permute.xlu0 %1235
        %1237 = vrot.lane.b32.xlu0 %v1076, 32
        %v1238 = vpop.permute.xlu0 %1237
        %1239 = vrot.lane.b32.xlu0 %v1088, 32
        %v1240 = vpop.permute.xlu0 %1239
        %1241 = vrot.lane.b32.xlu0 %v1100, 32
        %v1242 = vpop.permute.xlu0 %1241
        %1243 = vrot.lane.b32.xlu0 %v1112, 32
        %v1244 = vpop.permute.xlu0 %1243
        %1245 = vrot.lane.b32.xlu0 %v1124, 32
        %v1246 = vpop.permute.xlu0 %1245
        %1247 = vrot.lane.b32.xlu0 %v1136, 32
        %v1248 = vpop.permute.xlu0 %1247
        %1249 = vrot.lane.b32.xlu0 %v1148, 32
        %v1250 = vpop.permute.xlu0 %1249
        %1251 = vrot.lane.b32.xlu0 %v1160, 32
        %v1252 = vpop.permute.xlu0 %1251
        %1253 = vrot.lane.b32.xlu0 %v1172, 32
        %v1254 = vpop.permute.xlu0 %1253
        %1255 = vrot.lane.b32.xlu0 %v1184, 32
        %v1256 = vpop.permute.xlu0 %1255
        %1257 = vrot.lane.b32.xlu0 %v1196, 32
        %v1258 = vpop.permute.xlu0 %1257
        %1259 = vrot.lane.b32.xlu0 %v1208, 32
        %v1260 = vpop.permute.xlu0 %1259
        %1261 = vrot.lane.b32.xlu0 %v1220, 32
        %v1262 = vpop.permute.xlu0 %1261
        %1263 = vrot.lane.b32.xlu0 %v1232, 32
        %v1264 = vpop.permute.xlu0 %1263
        %vm1281 = vcmask 523520
        %1282 = vst.msk [vmem:[#allocation3] sm:$0xff] %vm1281, %v1234
        %1283 = vst.msk [vmem:[#allocation3 + $0x18] sm:$0xff] %vm1281, %v1236
        %1284 = vst.msk [vmem:[#allocation3 + $0x30] sm:$0xff] %vm1281, %v1238
        %1285 = vst.msk [vmem:[#allocation3 + $0x48] sm:$0xff] %vm1281, %v1240
        %1286 = vst.msk [vmem:[#allocation3 + $0x60] sm:$0xff] %vm1281, %v1242
        %1287 = vst.msk [vmem:[#allocation3 + $0x78] sm:$0xff] %vm1281, %v1244
        %1288 = vst.msk [vmem:[#allocation3 + $0x90] sm:$0xff] %vm1281, %v1246
        %1289 = vst.msk [vmem:[#allocation3 + $0xa8] sm:$0xff] %vm1281, %v1248
        %1290 = vst.msk [vmem:[#allocation3 + $0xc0] sm:$0xff] %vm1281, %v1250
        %1291 = vst.msk [vmem:[#allocation3 + $0xd8] sm:$0xff] %vm1281, %v1252
        %1292 = vst.msk [vmem:[#allocation3 + $0xf0] sm:$0xff] %vm1281, %v1254
        %1293 = vst.msk [vmem:[#allocation3 + $0x108] sm:$0xff] %vm1281, %v1256
        %1294 = vst.msk [vmem:[#allocation3 + $0x120] sm:$0xff] %vm1281, %v1258
        %1295 = vst.msk [vmem:[#allocation3 + $0x138] sm:$0xff] %vm1281, %v1260
        %1296 = vst.msk [vmem:[#allocation3 + $0x150] sm:$0xff] %vm1281, %v1262
        %1297 = vst.msk [vmem:[#allocation3 + $0x168] sm:$0xff] %vm1281, %v1264
        %v1298 = vld [vmem:[#allocation2] sm:$0xe]
        %v1299 = vld [vmem:[#allocation2 + $0x4] sm:$0xf]
        %v1300 = vld [vmem:[#allocation2 + $0x8] sm:$0x1]
        %v1301 = vld [vmem:[#allocation2 + $0xc] sm:$0xe]
        %v1302 = vld [vmem:[#allocation2 + $0x10] sm:$0xf]
        %v1303 = vld [vmem:[#allocation2 + $0x14] sm:$0x1]
        %v1304 = vld [vmem:[#allocation2 + $0x18] sm:$0xe]
        %v1305 = vld [vmem:[#allocation2 + $0x1c] sm:$0xf]
        %v1306 = vld [vmem:[#allocation2 + $0x20] sm:$0x1]
        %v1307 = vld [vmem:[#allocation2 + $0x24] sm:$0xe]
        %v1308 = vld [vmem:[#allocation2 + $0x28] sm:$0xf]
        %v1309 = vld [vmem:[#allocation2 + $0x2c] sm:$0x1]
        %v1310 = vld [vmem:[#allocation2 + $0x30] sm:$0xe]
        %v1311 = vld [vmem:[#allocation2 + $0x34] sm:$0xf]
        %v1312 = vld [vmem:[#allocation2 + $0x38] sm:$0x1]
        %v1313 = vld [vmem:[#allocation2 + $0x3c] sm:$0xe]
        %v1314 = vld [vmem:[#allocation2 + $0x40] sm:$0xf]
        %v1315 = vld [vmem:[#allocation2 + $0x44] sm:$0x1]
        %v1316 = vld [vmem:[#allocation2 + $0x48] sm:$0xe]
        %v1317 = vld [vmem:[#allocation2 + $0x4c] sm:$0xf]
        %v1318 = vld [vmem:[#allocation2 + $0x50] sm:$0x1]
        %v1319 = vld [vmem:[#allocation2 + $0x54] sm:$0xe]
        %v1320 = vld [vmem:[#allocation2 + $0x58] sm:$0xf]
        %v1321 = vld [vmem:[#allocation2 + $0x5c] sm:$0x1]
        %v1322 = vld [vmem:[#allocation2 + $0x60] sm:$0xe]
        %v1323 = vld [vmem:[#allocation2 + $0x64] sm:$0xf]
        %v1324 = vld [vmem:[#allocation2 + $0x68] sm:$0x1]
        %v1325 = vld [vmem:[#allocation2 + $0x6c] sm:$0xe]
        %v1326 = vld [vmem:[#allocation2 + $0x70] sm:$0xf]
        %v1327 = vld [vmem:[#allocation2 + $0x74] sm:$0x1]
        %v1328 = vld [vmem:[#allocation2 + $0x78] sm:$0xe]
        %v1329 = vld [vmem:[#allocation2 + $0x7c] sm:$0xf]
        %v1330 = vld [vmem:[#allocation2 + $0x80] sm:$0x1]
        %v1331 = vld [vmem:[#allocation2 + $0x84] sm:$0xe]
        %v1332 = vld [vmem:[#allocation2 + $0x88] sm:$0xf]
        %v1333 = vld [vmem:[#allocation2 + $0x8c] sm:$0x1]
        %v1334 = vld [vmem:[#allocation2 + $0x90] sm:$0xe]
        %v1335 = vld [vmem:[#allocation2 + $0x94] sm:$0xf]
        %v1336 = vld [vmem:[#allocation2 + $0x98] sm:$0x1]
        %v1337 = vld [vmem:[#allocation2 + $0x9c] sm:$0xe]
        %v1338 = vld [vmem:[#allocation2 + $0xa0] sm:$0xf]
        %v1339 = vld [vmem:[#allocation2 + $0xa4] sm:$0x1]
        %v1340 = vld [vmem:[#allocation2 + $0xa8] sm:$0xe]
        %v1341 = vld [vmem:[#allocation2 + $0xac] sm:$0xf]
        %v1342 = vld [vmem:[#allocation2 + $0xb0] sm:$0x1]
        %v1343 = vld [vmem:[#allocation2 + $0xb4] sm:$0xe]
        %v1344 = vld [vmem:[#allocation2 + $0xb8] sm:$0xf]
        %v1345 = vld [vmem:[#allocation2 + $0xbc] sm:$0x1]
        %v1394 = vunpack.c.l.b16 %v1298
        %v1395 = vunpack.c.l.b16 %v1299
        %v1396 = vunpack.c.l.b16 %v1300
        %v1397 = vunpack.c.l.b16 %v1301
        %v1398 = vunpack.c.l.b16 %v1302
        %v1399 = vunpack.c.l.b16 %v1303
        %v1400 = vunpack.c.l.b16 %v1304
        %v1401 = vunpack.c.l.b16 %v1305
        %v1402 = vunpack.c.l.b16 %v1306
        %v1403 = vunpack.c.l.b16 %v1307
        %v1404 = vunpack.c.l.b16 %v1308
        %v1405 = vunpack.c.l.b16 %v1309
        %v1406 = vunpack.c.l.b16 %v1310
        %v1407 = vunpack.c.l.b16 %v1311
        %v1408 = vunpack.c.l.b16 %v1312
        %v1409 = vunpack.c.l.b16 %v1313
        %v1410 = vunpack.c.l.b16 %v1314
        %v1411 = vunpack.c.l.b16 %v1315
        %v1412 = vunpack.c.l.b16 %v1316
        %v1413 = vunpack.c.l.b16 %v1317
        %v1414 = vunpack.c.l.b16 %v1318
        %v1415 = vunpack.c.l.b16 %v1319
        %v1416 = vunpack.c.l.b16 %v1320
        %v1417 = vunpack.c.l.b16 %v1321
        %v1418 = vunpack.c.l.b16 %v1322
        %v1419 = vunpack.c.l.b16 %v1323
        %v1420 = vunpack.c.l.b16 %v1324
        %v1421 = vunpack.c.l.b16 %v1325
        %v1422 = vunpack.c.l.b16 %v1326
        %v1423 = vunpack.c.l.b16 %v1327
        %v1424 = vunpack.c.l.b16 %v1328
        %v1425 = vunpack.c.l.b16 %v1329
        %v1426 = vunpack.c.l.b16 %v1330
        %v1427 = vunpack.c.l.b16 %v1331
        %v1428 = vunpack.c.l.b16 %v1332
        %v1429 = vunpack.c.l.b16 %v1333
        %v1430 = vunpack.c.l.b16 %v1334
        %v1431 = vunpack.c.l.b16 %v1335
        %v1432 = vunpack.c.l.b16 %v1336
        %v1433 = vunpack.c.l.b16 %v1337
        %v1434 = vunpack.c.l.b16 %v1338
        %v1435 = vunpack.c.l.b16 %v1339
        %v1436 = vunpack.c.l.b16 %v1340
        %v1437 = vunpack.c.l.b16 %v1341
        %v1438 = vunpack.c.l.b16 %v1342
        %v1439 = vunpack.c.l.b16 %v1343
        %v1440 = vunpack.c.l.b16 %v1344
        %v1441 = vunpack.c.l.b16 %v1345
        %v1442 = vpack.c.b16 %v1395, %v1394
        %v1443 = vpack.c.b16 %v1396, %v1396
        %v1444 = vpack.c.b16 %v1398, %v1397
        %v1445 = vpack.c.b16 %v1399, %v1399
        %v1446 = vpack.c.b16 %v1401, %v1400
        %v1447 = vpack.c.b16 %v1402, %v1402
        %v1448 = vpack.c.b16 %v1404, %v1403
        %v1449 = vpack.c.b16 %v1405, %v1405
        %v1450 = vpack.c.b16 %v1407, %v1406
        %v1451 = vpack.c.b16 %v1408, %v1408
        %v1452 = vpack.c.b16 %v1410, %v1409
        %v1453 = vpack.c.b16 %v1411, %v1411
        %v1454 = vpack.c.b16 %v1413, %v1412
        %v1455 = vpack.c.b16 %v1414, %v1414
        %v1456 = vpack.c.b16 %v1416, %v1415
        %v1457 = vpack.c.b16 %v1417, %v1417
        %v1458 = vpack.c.b16 %v1419, %v1418
        %v1459 = vpack.c.b16 %v1420, %v1420
        %v1460 = vpack.c.b16 %v1422, %v1421
        %v1461 = vpack.c.b16 %v1423, %v1423
        %v1462 = vpack.c.b16 %v1425, %v1424
        %v1463 = vpack.c.b16 %v1426, %v1426
        %v1464 = vpack.c.b16 %v1428, %v1427
        %v1465 = vpack.c.b16 %v1429, %v1429
        %v1466 = vpack.c.b16 %v1431, %v1430
        %v1467 = vpack.c.b16 %v1432, %v1432
        %v1468 = vpack.c.b16 %v1434, %v1433
        %v1469 = vpack.c.b16 %v1435, %v1435
        %v1470 = vpack.c.b16 %v1437, %v1436
        %v1471 = vpack.c.b16 %v1438, %v1438
        %v1472 = vpack.c.b16 %v1440, %v1439
        %v1473 = vpack.c.b16 %v1441, %v1441
        %vm1474 = vcmask 1046528
        %v1475 = vrot.slane %v1442, 1
        %v1476 = vrot.slane %v1443, 1
        %v1477 = vsel %vm1474, %v1475, %v1476
        %v1478 = vrot.slane %v1444, 1
        %v1479 = vrot.slane %v1445, 1
        %v1480 = vsel %vm1474, %v1478, %v1479
        %v1481 = vrot.slane %v1446, 1
        %v1482 = vrot.slane %v1447, 1
        %v1483 = vsel %vm1474, %v1481, %v1482
        %v1484 = vrot.slane %v1448, 1
        %v1485 = vrot.slane %v1449, 1
        %v1486 = vsel %vm1474, %v1484, %v1485
        %v1487 = vrot.slane %v1450, 1
        %v1488 = vrot.slane %v1451, 1
        %v1489 = vsel %vm1474, %v1487, %v1488
        %v1490 = vrot.slane %v1452, 1
        %v1491 = vrot.slane %v1453, 1
        %v1492 = vsel %vm1474, %v1490, %v1491
        %v1493 = vrot.slane %v1454, 1
        %v1494 = vrot.slane %v1455, 1
        %v1495 = vsel %vm1474, %v1493, %v1494
        %v1496 = vrot.slane %v1456, 1
        %v1497 = vrot.slane %v1457, 1
        %v1498 = vsel %vm1474, %v1496, %v1497
        %v1499 = vrot.slane %v1458, 1
        %v1500 = vrot.slane %v1459, 1
        %v1501 = vsel %vm1474, %v1499, %v1500
        %v1502 = vrot.slane %v1460, 1
        %v1503 = vrot.slane %v1461, 1
        %v1504 = vsel %vm1474, %v1502, %v1503
        %v1505 = vrot.slane %v1462, 1
        %v1506 = vrot.slane %v1463, 1
        %v1507 = vsel %vm1474, %v1505, %v1506
        %v1508 = vrot.slane %v1464, 1
        %v1509 = vrot.slane %v1465, 1
        %v1510 = vsel %vm1474, %v1508, %v1509
        %v1511 = vrot.slane %v1466, 1
        %v1512 = vrot.slane %v1467, 1
        %v1513 = vsel %vm1474, %v1511, %v1512
        %v1514 = vrot.slane %v1468, 1
        %v1515 = vrot.slane %v1469, 1
        %v1516 = vsel %vm1474, %v1514, %v1515
        %v1517 = vrot.slane %v1470, 1
        %v1518 = vrot.slane %v1471, 1
        %v1519 = vsel %vm1474, %v1517, %v1518
        %v1520 = vrot.slane %v1472, 1
        %v1521 = vrot.slane %v1473, 1
        %v1522 = vsel %vm1474, %v1520, %v1521
        %1523 = vrot.lane.b32.xlu0 %v1477, 64
        %v1524 = vpop.permute.xlu0 %1523
        %1525 = vrot.lane.b32.xlu0 %v1480, 64
        %v1526 = vpop.permute.xlu0 %1525
        %1527 = vrot.lane.b32.xlu0 %v1483, 64
        %v1528 = vpop.permute.xlu0 %1527
        %1529 = vrot.lane.b32.xlu0 %v1486, 64
        %v1530 = vpop.permute.xlu0 %1529
        %1531 = vrot.lane.b32.xlu0 %v1489, 64
        %v1532 = vpop.permute.xlu0 %1531
        %1533 = vrot.lane.b32.xlu0 %v1492, 64
        %v1534 = vpop.permute.xlu0 %1533
        %1535 = vrot.lane.b32.xlu0 %v1495, 64
        %v1536 = vpop.permute.xlu0 %1535
        %1537 = vrot.lane.b32.xlu0 %v1498, 64
        %v1538 = vpop.permute.xlu0 %1537
        %1539 = vrot.lane.b32.xlu0 %v1501, 64
        %v1540 = vpop.permute.xlu0 %1539
        %1541 = vrot.lane.b32.xlu0 %v1504, 64
        %v1542 = vpop.permute.xlu0 %1541
        %1543 = vrot.lane.b32.xlu0 %v1507, 64
        %v1544 = vpop.permute.xlu0 %1543
        %1545 = vrot.lane.b32.xlu0 %v1510, 64
        %v1546 = vpop.permute.xlu0 %1545
        %1547 = vrot.lane.b32.xlu0 %v1513, 64
        %v1548 = vpop.permute.xlu0 %1547
        %1549 = vrot.lane.b32.xlu0 %v1516, 64
        %v1550 = vpop.permute.xlu0 %1549
        %1551 = vrot.lane.b32.xlu0 %v1519, 64
        %v1552 = vpop.permute.xlu0 %1551
        %1553 = vrot.lane.b32.xlu0 %v1522, 64
        %v1554 = vpop.permute.xlu0 %1553
        %vm1571 = vcmask 785920
        %1572 = vst.msk [vmem:[#allocation3] sm:$0xff] %vm1571, %v1524
        %1573 = vst.msk [vmem:[#allocation3 + $0x18] sm:$0xff] %vm1571, %v1526
        %1574 = vst.msk [vmem:[#allocation3 + $0x30] sm:$0xff] %vm1571, %v1528
        %1575 = vst.msk [vmem:[#allocation3 + $0x48] sm:$0xff] %vm1571, %v1530
        %1576 = vst.msk [vmem:[#allocation3 + $0x60] sm:$0xff] %vm1571, %v1532
        %1577 = vst.msk [vmem:[#allocation3 + $0x78] sm:$0xff] %vm1571, %v1534
        %1578 = vst.msk [vmem:[#allocation3 + $0x90] sm:$0xff] %vm1571, %v1536
        %1579 = vst.msk [vmem:[#allocation3 + $0xa8] sm:$0xff] %vm1571, %v1538
        %1580 = vst.msk [vmem:[#allocation3 + $0xc0] sm:$0xff] %vm1571, %v1540
        %1581 = vst.msk [vmem:[#allocation3 + $0xd8] sm:$0xff] %vm1571, %v1542
        %1582 = vst.msk [vmem:[#allocation3 + $0xf0] sm:$0xff] %vm1571, %v1544
        %1583 = vst.msk [vmem:[#allocation3 + $0x108] sm:$0xff] %vm1571, %v1546
        %1584 = vst.msk [vmem:[#allocation3 + $0x120] sm:$0xff] %vm1571, %v1548
        %1585 = vst.msk [vmem:[#allocation3 + $0x138] sm:$0xff] %vm1571, %v1550
        %1586 = vst.msk [vmem:[#allocation3 + $0x150] sm:$0xff] %vm1571, %v1552
        %1587 = vst.msk [vmem:[#allocation3 + $0x168] sm:$0xff] %vm1571, %v1554
        %v1588 = vld [vmem:[%s601] sm:$0xf]
        %v1589 = vld [vmem:[%s601 + $0x4] sm:$0xf]
        %v1590 = vld [vmem:[%s601 + $0xc] sm:$0xf]
        %v1591 = vld [vmem:[%s601 + $0x10] sm:$0xf]
        %v1592 = vld [vmem:[%s601 + $0x18] sm:$0xf]
        %v1593 = vld [vmem:[%s601 + $0x1c] sm:$0xf]
        %v1594 = vld [vmem:[%s601 + $0x24] sm:$0xf]
        %v1595 = vld [vmem:[%s601 + $0x28] sm:$0xf]
        %v1596 = vld [vmem:[%s601 + $0x30] sm:$0xf]
        %v1597 = vld [vmem:[%s601 + $0x34] sm:$0xf]
        %v1598 = vld [vmem:[%s601 + $0x3c] sm:$0xf]
        %v1599 = vld [vmem:[%s601 + $0x40] sm:$0xf]
        %v1600 = vld [vmem:[%s601 + $0x48] sm:$0xf]
        %v1601 = vld [vmem:[%s601 + $0x4c] sm:$0xf]
        %v1602 = vld [vmem:[%s601 + $0x54] sm:$0xf]
        %v1603 = vld [vmem:[%s601 + $0x58] sm:$0xf]
        %v1604 = vld [vmem:[%s601 + $0x60] sm:$0xf]
        %v1605 = vld [vmem:[%s601 + $0x64] sm:$0xf]
        %v1606 = vld [vmem:[%s601 + $0x6c] sm:$0xf]
        %v1607 = vld [vmem:[%s601 + $0x70] sm:$0xf]
        %v1608 = vld [vmem:[%s601 + $0x78] sm:$0xf]
        %v1609 = vld [vmem:[%s601 + $0x7c] sm:$0xf]
        %v1610 = vld [vmem:[%s601 + $0x84] sm:$0xf]
        %v1611 = vld [vmem:[%s601 + $0x88] sm:$0xf]
        %v1612 = vld [vmem:[%s601 + $0x90] sm:$0xf]
        %v1613 = vld [vmem:[%s601 + $0x94] sm:$0xf]
        %v1614 = vld [vmem:[%s601 + $0x9c] sm:$0xf]
        %v1615 = vld [vmem:[%s601 + $0xa0] sm:$0xf]
        %v1616 = vld [vmem:[%s601 + $0xa8] sm:$0xf]
        %v1617 = vld [vmem:[%s601 + $0xac] sm:$0xf]
        %v1618 = vld [vmem:[%s601 + $0xb4] sm:$0xf]
        %v1619 = vld [vmem:[%s601 + $0xb8] sm:$0xf]
        %v1652 = vunpack.c.l.b16 %v1588
        %v1653 = vunpack.c.l.b16 %v1589
        %v1654 = vunpack.c.l.b16 %v1590
        %v1655 = vunpack.c.l.b16 %v1591
        %v1656 = vunpack.c.l.b16 %v1592
        %v1657 = vunpack.c.l.b16 %v1593
        %v1658 = vunpack.c.l.b16 %v1594
        %v1659 = vunpack.c.l.b16 %v1595
        %v1660 = vunpack.c.l.b16 %v1596
        %v1661 = vunpack.c.l.b16 %v1597
        %v1662 = vunpack.c.l.b16 %v1598
        %v1663 = vunpack.c.l.b16 %v1599
        %v1664 = vunpack.c.l.b16 %v1600
        %v1665 = vunpack.c.l.b16 %v1601
        %v1666 = vunpack.c.l.b16 %v1602
        %v1667 = vunpack.c.l.b16 %v1603
        %v1668 = vunpack.c.l.b16 %v1604
        %v1669 = vunpack.c.l.b16 %v1605
        %v1670 = vunpack.c.l.b16 %v1606
        %v1671 = vunpack.c.l.b16 %v1607
        %v1672 = vunpack.c.l.b16 %v1608
        %v1673 = vunpack.c.l.b16 %v1609
        %v1674 = vunpack.c.l.b16 %v1610
        %v1675 = vunpack.c.l.b16 %v1611
        %v1676 = vunpack.c.l.b16 %v1612
        %v1677 = vunpack.c.l.b16 %v1613
        %v1678 = vunpack.c.l.b16 %v1614
        %v1679 = vunpack.c.l.b16 %v1615
        %v1680 = vunpack.c.l.b16 %v1616
        %v1681 = vunpack.c.l.b16 %v1617
        %v1682 = vunpack.c.l.b16 %v1618
        %v1683 = vunpack.c.l.b16 %v1619
        %v1684 = vpack.c.b16 %v1653, %v1652
        %v1685 = vpack.c.b16 %v1655, %v1654
        %v1686 = vpack.c.b16 %v1657, %v1656
        %v1687 = vpack.c.b16 %v1659, %v1658
        %v1688 = vpack.c.b16 %v1661, %v1660
        %v1689 = vpack.c.b16 %v1663, %v1662
        %v1690 = vpack.c.b16 %v1665, %v1664
        %v1691 = vpack.c.b16 %v1667, %v1666
        %v1692 = vpack.c.b16 %v1669, %v1668
        %v1693 = vpack.c.b16 %v1671, %v1670
        %v1694 = vpack.c.b16 %v1673, %v1672
        %v1695 = vpack.c.b16 %v1675, %v1674
        %v1696 = vpack.c.b16 %v1677, %v1676
        %v1697 = vpack.c.b16 %v1679, %v1678
        %v1698 = vpack.c.b16 %v1681, %v1680
        %v1699 = vpack.c.b16 %v1683, %v1682
        %1700 = vrot.lane.b32.xlu0 %v1684, 96
        %v1701 = vpop.permute.xlu0 %1700
        %1702 = vrot.lane.b32.xlu0 %v1685, 96
        %v1703 = vpop.permute.xlu0 %1702
        %1704 = vrot.lane.b32.xlu0 %v1686, 96
        %v1705 = vpop.permute.xlu0 %1704
        %1706 = vrot.lane.b32.xlu0 %v1687, 96
        %v1707 = vpop.permute.xlu0 %1706
        %1708 = vrot.lane.b32.xlu0 %v1688, 96
        %v1709 = vpop.permute.xlu0 %1708
        %1710 = vrot.lane.b32.xlu0 %v1689, 96
        %v1711 = vpop.permute.xlu0 %1710
        %1712 = vrot.lane.b32.xlu0 %v1690, 96
        %v1713 = vpop.permute.xlu0 %1712
        %1714 = vrot.lane.b32.xlu0 %v1691, 96
        %v1715 = vpop.permute.xlu0 %1714
        %1716 = vrot.lane.b32.xlu0 %v1692, 96
        %v1717 = vpop.permute.xlu0 %1716
        %1718 = vrot.lane.b32.xlu0 %v1693, 96
        %v1719 = vpop.permute.xlu0 %1718
        %1720 = vrot.lane.b32.xlu0 %v1694, 96
        %v1721 = vpop.permute.xlu0 %1720
        %1722 = vrot.lane.b32.xlu0 %v1695, 96
        %v1723 = vpop.permute.xlu0 %1722
        %1724 = vrot.lane.b32.xlu0 %v1696, 96
        %v1725 = vpop.permute.xlu0 %1724
        %1726 = vrot.lane.b32.xlu0 %v1697, 96
        %v1727 = vpop.permute.xlu0 %1726
        %1728 = vrot.lane.b32.xlu0 %v1698, 96
        %v1729 = vpop.permute.xlu0 %1728
        %1730 = vrot.lane.b32.xlu0 %v1699, 96
        %v1731 = vpop.permute.xlu0 %1730
        %vm1748 = vcmask 1048320
        %1749 = vst.msk [vmem:[#allocation3] sm:$0xff] %vm1748, %v1701
        %1750 = vst.msk [vmem:[#allocation3 + $0x18] sm:$0xff] %vm1748, %v1703
        %1751 = vst.msk [vmem:[#allocation3 + $0x30] sm:$0xff] %vm1748, %v1705
        %1752 = vst.msk [vmem:[#allocation3 + $0x48] sm:$0xff] %vm1748, %v1707
        %1753 = vst.msk [vmem:[#allocation3 + $0x60] sm:$0xff] %vm1748, %v1709
        %1754 = vst.msk [vmem:[#allocation3 + $0x78] sm:$0xff] %vm1748, %v1711
        %1755 = vst.msk [vmem:[#allocation3 + $0x90] sm:$0xff] %vm1748, %v1713
        %1756 = vst.msk [vmem:[#allocation3 + $0xa8] sm:$0xff] %vm1748, %v1715
        %1757 = vst.msk [vmem:[#allocation3 + $0xc0] sm:$0xff] %vm1748, %v1717
        %1758 = vst.msk [vmem:[#allocation3 + $0xd8] sm:$0xff] %vm1748, %v1719
        %1759 = vst.msk [vmem:[#allocation3 + $0xf0] sm:$0xff] %vm1748, %v1721
        %1760 = vst.msk [vmem:[#allocation3 + $0x108] sm:$0xff] %vm1748, %v1723
        %1761 = vst.msk [vmem:[#allocation3 + $0x120] sm:$0xff] %vm1748, %v1725
        %1762 = vst.msk [vmem:[#allocation3 + $0x138] sm:$0xff] %vm1748, %v1727
        %1763 = vst.msk [vmem:[#allocation3 + $0x150] sm:$0xff] %vm1748, %v1729
        %1764 = vst.msk [vmem:[#allocation3 + $0x168] sm:$0xff] %vm1748, %v1731
        %v1765 = vld [vmem:[%s601] sm:$0xf]
        %v1766 = vld [vmem:[%s601 + $0x4] sm:$0xf]
        %v1767 = vld [vmem:[%s601 + $0x8] sm:$0x1]
        %v1768 = vld [vmem:[%s601 + $0xc] sm:$0xf]
        %v1769 = vld [vmem:[%s601 + $0x10] sm:$0xf]
        %v1770 = vld [vmem:[%s601 + $0x14] sm:$0x1]
        %v1771 = vld [vmem:[%s601 + $0x18] sm:$0xf]
        %v1772 = vld [vmem:[%s601 + $0x1c] sm:$0xf]
        %v1773 = vld [vmem:[%s601 + $0x20] sm:$0x1]
        %v1774 = vld [vmem:[%s601 + $0x24] sm:$0xf]
        %v1775 = vld [vmem:[%s601 + $0x28] sm:$0xf]
        %v1776 = vld [vmem:[%s601 + $0x2c] sm:$0x1]
        %v1777 = vld [vmem:[%s601 + $0x30] sm:$0xf]
        %v1778 = vld [vmem:[%s601 + $0x34] sm:$0xf]
        %v1779 = vld [vmem:[%s601 + $0x38] sm:$0x1]
        %v1780 = vld [vmem:[%s601 + $0x3c] sm:$0xf]
        %v1781 = vld [vmem:[%s601 + $0x40] sm:$0xf]
        %v1782 = vld [vmem:[%s601 + $0x44] sm:$0x1]
        %v1783 = vld [vmem:[%s601 + $0x48] sm:$0xf]
        %v1784 = vld [vmem:[%s601 + $0x4c] sm:$0xf]
        %v1785 = vld [vmem:[%s601 + $0x50] sm:$0x1]
        %v1786 = vld [vmem:[%s601 + $0x54] sm:$0xf]
        %v1787 = vld [vmem:[%s601 + $0x58] sm:$0xf]
        %v1788 = vld [vmem:[%s601 + $0x5c] sm:$0x1]
        %v1789 = vld [vmem:[%s601 + $0x60] sm:$0xf]
        %v1790 = vld [vmem:[%s601 + $0x64] sm:$0xf]
        %v1791 = vld [vmem:[%s601 + $0x68] sm:$0x1]
        %v1792 = vld [vmem:[%s601 + $0x6c] sm:$0xf]
        %v1793 = vld [vmem:[%s601 + $0x70] sm:$0xf]
        %v1794 = vld [vmem:[%s601 + $0x74] sm:$0x1]
        %v1795 = vld [vmem:[%s601 + $0x78] sm:$0xf]
        %v1796 = vld [vmem:[%s601 + $0x7c] sm:$0xf]
        %v1797 = vld [vmem:[%s601 + $0x80] sm:$0x1]
        %v1798 = vld [vmem:[%s601 + $0x84] sm:$0xf]
        %v1799 = vld [vmem:[%s601 + $0x88] sm:$0xf]
        %v1800 = vld [vmem:[%s601 + $0x8c] sm:$0x1]
        %v1801 = vld [vmem:[%s601 + $0x90] sm:$0xf]
        %v1802 = vld [vmem:[%s601 + $0x94] sm:$0xf]
        %v1803 = vld [vmem:[%s601 + $0x98] sm:$0x1]
        %v1804 = vld [vmem:[%s601 + $0x9c] sm:$0xf]
        %v1805 = vld [vmem:[%s601 + $0xa0] sm:$0xf]
        %v1806 = vld [vmem:[%s601 + $0xa4] sm:$0x1]
        %v1807 = vld [vmem:[%s601 + $0xa8] sm:$0xf]
        %v1808 = vld [vmem:[%s601 + $0xac] sm:$0xf]
        %v1809 = vld [vmem:[%s601 + $0xb0] sm:$0x1]
        %v1810 = vld [vmem:[%s601 + $0xb4] sm:$0xf]
        %v1811 = vld [vmem:[%s601 + $0xb8] sm:$0xf]
        %v1812 = vld [vmem:[%s601 + $0xbc] sm:$0x1]
        %v1861 = vunpack.c.l.b16 %v1765
        %v1862 = vunpack.c.l.b16 %v1766
        %v1863 = vunpack.c.l.b16 %v1767
        %v1864 = vunpack.c.l.b16 %v1768
        %v1865 = vunpack.c.l.b16 %v1769
        %v1866 = vunpack.c.l.b16 %v1770
        %v1867 = vunpack.c.l.b16 %v1771
        %v1868 = vunpack.c.l.b16 %v1772
        %v1869 = vunpack.c.l.b16 %v1773
        %v1870 = vunpack.c.l.b16 %v1774
        %v1871 = vunpack.c.l.b16 %v1775
        %v1872 = vunpack.c.l.b16 %v1776
        %v1873 = vunpack.c.l.b16 %v1777
        %v1874 = vunpack.c.l.b16 %v1778
        %v1875 = vunpack.c.l.b16 %v1779
        %v1876 = vunpack.c.l.b16 %v1780
        %v1877 = vunpack.c.l.b16 %v1781
        %v1878 = vunpack.c.l.b16 %v1782
        %v1879 = vunpack.c.l.b16 %v1783
        %v1880 = vunpack.c.l.b16 %v1784
        %v1881 = vunpack.c.l.b16 %v1785
        %v1882 = vunpack.c.l.b16 %v1786
        %v1883 = vunpack.c.l.b16 %v1787
        %v1884 = vunpack.c.l.b16 %v1788
        %v1885 = vunpack.c.l.b16 %v1789
        %v1886 = vunpack.c.l.b16 %v1790
        %v1887 = vunpack.c.l.b16 %v1791
        %v1888 = vunpack.c.l.b16 %v1792
        %v1889 = vunpack.c.l.b16 %v1793
        %v1890 = vunpack.c.l.b16 %v1794
        %v1891 = vunpack.c.l.b16 %v1795
        %v1892 = vunpack.c.l.b16 %v1796
        %v1893 = vunpack.c.l.b16 %v1797
        %v1894 = vunpack.c.l.b16 %v1798
        %v1895 = vunpack.c.l.b16 %v1799
        %v1896 = vunpack.c.l.b16 %v1800
        %v1897 = vunpack.c.l.b16 %v1801
        %v1898 = vunpack.c.l.b16 %v1802
        %v1899 = vunpack.c.l.b16 %v1803
        %v1900 = vunpack.c.l.b16 %v1804
        %v1901 = vunpack.c.l.b16 %v1805
        %v1902 = vunpack.c.l.b16 %v1806
        %v1903 = vunpack.c.l.b16 %v1807
        %v1904 = vunpack.c.l.b16 %v1808
        %v1905 = vunpack.c.l.b16 %v1809
        %v1906 = vunpack.c.l.b16 %v1810
        %v1907 = vunpack.c.l.b16 %v1811
        %v1908 = vunpack.c.l.b16 %v1812
        %v1909 = vpack.c.b16 %v1862, %v1861
        %v1910 = vpack.c.b16 %v1863, %v1863
        %v1911 = vpack.c.b16 %v1865, %v1864
        %v1912 = vpack.c.b16 %v1866, %v1866
        %v1913 = vpack.c.b16 %v1868, %v1867
        %v1914 = vpack.c.b16 %v1869, %v1869
        %v1915 = vpack.c.b16 %v1871, %v1870
        %v1916 = vpack.c.b16 %v1872, %v1872
        %v1917 = vpack.c.b16 %v1874, %v1873
        %v1918 = vpack.c.b16 %v1875, %v1875
        %v1919 = vpack.c.b16 %v1877, %v1876
        %v1920 = vpack.c.b16 %v1878, %v1878
        %v1921 = vpack.c.b16 %v1880, %v1879
        %v1922 = vpack.c.b16 %v1881, %v1881
        %v1923 = vpack.c.b16 %v1883, %v1882
        %v1924 = vpack.c.b16 %v1884, %v1884
        %v1925 = vpack.c.b16 %v1886, %v1885
        %v1926 = vpack.c.b16 %v1887, %v1887
        %v1927 = vpack.c.b16 %v1889, %v1888
        %v1928 = vpack.c.b16 %v1890, %v1890
        %v1929 = vpack.c.b16 %v1892, %v1891
        %v1930 = vpack.c.b16 %v1893, %v1893
        %v1931 = vpack.c.b16 %v1895, %v1894
        %v1932 = vpack.c.b16 %v1896, %v1896
        %v1933 = vpack.c.b16 %v1898, %v1897
        %v1934 = vpack.c.b16 %v1899, %v1899
        %v1935 = vpack.c.b16 %v1901, %v1900
        %v1936 = vpack.c.b16 %v1902, %v1902
        %v1937 = vpack.c.b16 %v1904, %v1903
        %v1938 = vpack.c.b16 %v1905, %v1905
        %v1939 = vpack.c.b16 %v1907, %v1906
        %v1940 = vpack.c.b16 %v1908, %v1908
        %v1942 = vshrl.u32 %v1909, 16
        %v1944 = vshll.u32 %v1909, 16
        %v1946 = vrot.slane %v1944, 1
        %v1947 = vor.u32 %v1942, %v1946
        %v1949 = vshll.u32 %v1910, 16
        %v1951 = vrot.slane %v1949, 1
        %v1952 = vsel %vm1040, %v1947, %v1951
        %v1954 = vshrl.u32 %v1911, 16
        %v1956 = vshll.u32 %v1911, 16
        %v1958 = vrot.slane %v1956, 1
        %v1959 = vor.u32 %v1954, %v1958
        %v1961 = vshll.u32 %v1912, 16
        %v1963 = vrot.slane %v1961, 1
        %v1964 = vsel %vm1040, %v1959, %v1963
        %v1966 = vshrl.u32 %v1913, 16
        %v1968 = vshll.u32 %v1913, 16
        %v1970 = vrot.slane %v1968, 1
        %v1971 = vor.u32 %v1966, %v1970
        %v1973 = vshll.u32 %v1914, 16
        %v1975 = vrot.slane %v1973, 1
        %v1976 = vsel %vm1040, %v1971, %v1975
        %v1978 = vshrl.u32 %v1915, 16
        %v1980 = vshll.u32 %v1915, 16
        %v1982 = vrot.slane %v1980, 1
        %v1983 = vor.u32 %v1978, %v1982
        %v1985 = vshll.u32 %v1916, 16
        %v1987 = vrot.slane %v1985, 1
        %v1988 = vsel %vm1040, %v1983, %v1987
        %v1990 = vshrl.u32 %v1917, 16
        %v1992 = vshll.u32 %v1917, 16
        %v1994 = vrot.slane %v1992, 1
        %v1995 = vor.u32 %v1990, %v1994
        %v1997 = vshll.u32 %v1918, 16
        %v1999 = vrot.slane %v1997, 1
        %v2000 = vsel %vm1040, %v1995, %v1999
        %v2002 = vshrl.u32 %v1919, 16
        %v2004 = vshll.u32 %v1919, 16
        %v2006 = vrot.slane %v2004, 1
        %v2007 = vor.u32 %v2002, %v2006
        %v2009 = vshll.u32 %v1920, 16
        %v2011 = vrot.slane %v2009, 1
        %v2012 = vsel %vm1040, %v2007, %v2011
        %v2014 = vshrl.u32 %v1921, 16
        %v2016 = vshll.u32 %v1921, 16
        %v2018 = vrot.slane %v2016, 1
        %v2019 = vor.u32 %v2014, %v2018
        %v2021 = vshll.u32 %v1922, 16
        %v2023 = vrot.slane %v2021, 1
        %v2024 = vsel %vm1040, %v2019, %v2023
        %v2026 = vshrl.u32 %v1923, 16
        %v2028 = vshll.u32 %v1923, 16
        %v2030 = vrot.slane %v2028, 1
        %v2031 = vor.u32 %v2026, %v2030
        %v2033 = vshll.u32 %v1924, 16
        %v2035 = vrot.slane %v2033, 1
        %v2036 = vsel %vm1040, %v2031, %v2035
        %v2038 = vshrl.u32 %v1925, 16
        %v2040 = vshll.u32 %v1925, 16
        %v2042 = vrot.slane %v2040, 1
        %v2043 = vor.u32 %v2038, %v2042
        %v2045 = vshll.u32 %v1926, 16
        %v2047 = vrot.slane %v2045, 1
        %v2048 = vsel %vm1040, %v2043, %v2047
        %v2050 = vshrl.u32 %v1927, 16
        %v2052 = vshll.u32 %v1927, 16
        %v2054 = vrot.slane %v2052, 1
        %v2055 = vor.u32 %v2050, %v2054
        %v2057 = vshll.u32 %v1928, 16
        %v2059 = vrot.slane %v2057, 1
        %v2060 = vsel %vm1040, %v2055, %v2059
        %v2062 = vshrl.u32 %v1929, 16
        %v2064 = vshll.u32 %v1929, 16
        %v2066 = vrot.slane %v2064, 1
        %v2067 = vor.u32 %v2062, %v2066
        %v2069 = vshll.u32 %v1930, 16
        %v2071 = vrot.slane %v2069, 1
        %v2072 = vsel %vm1040, %v2067, %v2071
        %v2074 = vshrl.u32 %v1931, 16
        %v2076 = vshll.u32 %v1931, 16
        %v2078 = vrot.slane %v2076, 1
        %v2079 = vor.u32 %v2074, %v2078
        %v2081 = vshll.u32 %v1932, 16
        %v2083 = vrot.slane %v2081, 1
        %v2084 = vsel %vm1040, %v2079, %v2083
        %v2086 = vshrl.u32 %v1933, 16
        %v2088 = vshll.u32 %v1933, 16
        %v2090 = vrot.slane %v2088, 1
        %v2091 = vor.u32 %v2086, %v2090
        %v2093 = vshll.u32 %v1934, 16
        %v2095 = vrot.slane %v2093, 1
        %v2096 = vsel %vm1040, %v2091, %v2095
        %v2098 = vshrl.u32 %v1935, 16
        %v2100 = vshll.u32 %v1935, 16
        %v2102 = vrot.slane %v2100, 1
        %v2103 = vor.u32 %v2098, %v2102
        %v2105 = vshll.u32 %v1936, 16
        %v2107 = vrot.slane %v2105, 1
        %v2108 = vsel %vm1040, %v2103, %v2107
        %v2110 = vshrl.u32 %v1937, 16
        %v2112 = vshll.u32 %v1937, 16
        %v2114 = vrot.slane %v2112, 1
        %v2115 = vor.u32 %v2110, %v2114
        %v2117 = vshll.u32 %v1938, 16
        %v2119 = vrot.slane %v2117, 1
        %v2120 = vsel %vm1040, %v2115, %v2119
        %v2122 = vshrl.u32 %v1939, 16
        %v2124 = vshll.u32 %v1939, 16
        %v2126 = vrot.slane %v2124, 1
        %v2127 = vor.u32 %v2122, %v2126
        %v2129 = vshll.u32 %v1940, 16
        %v2131 = vrot.slane %v2129, 1
        %v2132 = vsel %vm1040, %v2127, %v2131
        %2149 = vst.msk [vmem:[#allocation3 + $0x8] sm:$0xff] %vm847, %v1952
        %2150 = vst.msk [vmem:[#allocation3 + $0x20] sm:$0xff] %vm847, %v1964
        %2151 = vst.msk [vmem:[#allocation3 + $0x38] sm:$0xff] %vm847, %v1976
        %2152 = vst.msk [vmem:[#allocation3 + $0x50] sm:$0xff] %vm847, %v1988
        %2153 = vst.msk [vmem:[#allocation3 + $0x68] sm:$0xff] %vm847, %v2000
        %2154 = vst.msk [vmem:[#allocation3 + $0x80] sm:$0xff] %vm847, %v2012
        %2155 = vst.msk [vmem:[#allocation3 + $0x98] sm:$0xff] %vm847, %v2024
        %2156 = vst.msk [vmem:[#allocation3 + $0xb0] sm:$0xff] %vm847, %v2036
        %2157 = vst.msk [vmem:[#allocation3 + $0xc8] sm:$0xff] %vm847, %v2048
        %2158 = vst.msk [vmem:[#allocation3 + $0xe0] sm:$0xff] %vm847, %v2060
        %2159 = vst.msk [vmem:[#allocation3 + $0xf8] sm:$0xff] %vm847, %v2072
        %2160 = vst.msk [vmem:[#allocation3 + $0x110] sm:$0xff] %vm847, %v2084
        %2161 = vst.msk [vmem:[#allocation3 + $0x128] sm:$0xff] %vm847, %v2096
        %2162 = vst.msk [vmem:[#allocation3 + $0x140] sm:$0xff] %vm847, %v2108
        %2163 = vst.msk [vmem:[#allocation3 + $0x158] sm:$0xff] %vm847, %v2120
        %2164 = vst.msk [vmem:[#allocation3 + $0x170] sm:$0xff] %vm847, %v2132
        %v2165 = vld [vmem:[%s601] sm:$0xe]
        %v2166 = vld [vmem:[%s601 + $0x4] sm:$0xf]
        %v2167 = vld [vmem:[%s601 + $0x8] sm:$0x1]
        %v2168 = vld [vmem:[%s601 + $0xc] sm:$0xe]
        %v2169 = vld [vmem:[%s601 + $0x10] sm:$0xf]
        %v2170 = vld [vmem:[%s601 + $0x14] sm:$0x1]
        %v2171 = vld [vmem:[%s601 + $0x18] sm:$0xe]
        %v2172 = vld [vmem:[%s601 + $0x1c] sm:$0xf]
        %v2173 = vld [vmem:[%s601 + $0x20] sm:$0x1]
        %v2174 = vld [vmem:[%s601 + $0x24] sm:$0xe]
        %v2175 = vld [vmem:[%s601 + $0x28] sm:$0xf]
        %v2176 = vld [vmem:[%s601 + $0x2c] sm:$0x1]
        %v2177 = vld [vmem:[%s601 + $0x30] sm:$0xe]
        %v2178 = vld [vmem:[%s601 + $0x34] sm:$0xf]
        %v2179 = vld [vmem:[%s601 + $0x38] sm:$0x1]
        %v2180 = vld [vmem:[%s601 + $0x3c] sm:$0xe]
        %v2181 = vld [vmem:[%s601 + $0x40] sm:$0xf]
        %v2182 = vld [vmem:[%s601 + $0x44] sm:$0x1]
        %v2183 = vld [vmem:[%s601 + $0x48] sm:$0xe]
        %v2184 = vld [vmem:[%s601 + $0x4c] sm:$0xf]
        %v2185 = vld [vmem:[%s601 + $0x50] sm:$0x1]
        %v2186 = vld [vmem:[%s601 + $0x54] sm:$0xe]
        %v2187 = vld [vmem:[%s601 + $0x58] sm:$0xf]
        %v2188 = vld [vmem:[%s601 + $0x5c] sm:$0x1]
        %v2189 = vld [vmem:[%s601 + $0x60] sm:$0xe]
        %v2190 = vld [vmem:[%s601 + $0x64] sm:$0xf]
        %v2191 = vld [vmem:[%s601 + $0x68] sm:$0x1]
        %v2192 = vld [vmem:[%s601 + $0x6c] sm:$0xe]
        %v2193 = vld [vmem:[%s601 + $0x70] sm:$0xf]
        %v2194 = vld [vmem:[%s601 + $0x74] sm:$0x1]
        %v2195 = vld [vmem:[%s601 + $0x78] sm:$0xe]
        %v2196 = vld [vmem:[%s601 + $0x7c] sm:$0xf]
        %v2197 = vld [vmem:[%s601 + $0x80] sm:$0x1]
        %v2198 = vld [vmem:[%s601 + $0x84] sm:$0xe]
        %v2199 = vld [vmem:[%s601 + $0x88] sm:$0xf]
        %v2200 = vld [vmem:[%s601 + $0x8c] sm:$0x1]
        %v2201 = vld [vmem:[%s601 + $0x90] sm:$0xe]
        %v2202 = vld [vmem:[%s601 + $0x94] sm:$0xf]
        %v2203 = vld [vmem:[%s601 + $0x98] sm:$0x1]
        %v2204 = vld [vmem:[%s601 + $0x9c] sm:$0xe]
        %v2205 = vld [vmem:[%s601 + $0xa0] sm:$0xf]
        %v2206 = vld [vmem:[%s601 + $0xa4] sm:$0x1]
        %v2207 = vld [vmem:[%s601 + $0xa8] sm:$0xe]
        %v2208 = vld [vmem:[%s601 + $0xac] sm:$0xf]
        %v2209 = vld [vmem:[%s601 + $0xb0] sm:$0x1]
        %v2210 = vld [vmem:[%s601 + $0xb4] sm:$0xe]
        %v2211 = vld [vmem:[%s601 + $0xb8] sm:$0xf]
        %v2212 = vld [vmem:[%s601 + $0xbc] sm:$0x1]
        %v2261 = vunpack.c.l.b16 %v2165
        %v2262 = vunpack.c.l.b16 %v2166
        %v2263 = vunpack.c.l.b16 %v2167
        %v2264 = vunpack.c.l.b16 %v2168
        %v2265 = vunpack.c.l.b16 %v2169
        %v2266 = vunpack.c.l.b16 %v2170
        %v2267 = vunpack.c.l.b16 %v2171
        %v2268 = vunpack.c.l.b16 %v2172
        %v2269 = vunpack.c.l.b16 %v2173
        %v2270 = vunpack.c.l.b16 %v2174
        %v2271 = vunpack.c.l.b16 %v2175
        %v2272 = vunpack.c.l.b16 %v2176
        %v2273 = vunpack.c.l.b16 %v2177
        %v2274 = vunpack.c.l.b16 %v2178
        %v2275 = vunpack.c.l.b16 %v2179
        %v2276 = vunpack.c.l.b16 %v2180
        %v2277 = vunpack.c.l.b16 %v2181
        %v2278 = vunpack.c.l.b16 %v2182
        %v2279 = vunpack.c.l.b16 %v2183
        %v2280 = vunpack.c.l.b16 %v2184
        %v2281 = vunpack.c.l.b16 %v2185
        %v2282 = vunpack.c.l.b16 %v2186
        %v2283 = vunpack.c.l.b16 %v2187
        %v2284 = vunpack.c.l.b16 %v2188
        %v2285 = vunpack.c.l.b16 %v2189
        %v2286 = vunpack.c.l.b16 %v2190
        %v2287 = vunpack.c.l.b16 %v2191
        %v2288 = vunpack.c.l.b16 %v2192
        %v2289 = vunpack.c.l.b16 %v2193
        %v2290 = vunpack.c.l.b16 %v2194
        %v2291 = vunpack.c.l.b16 %v2195
        %v2292 = vunpack.c.l.b16 %v2196
        %v2293 = vunpack.c.l.b16 %v2197
        %v2294 = vunpack.c.l.b16 %v2198
        %v2295 = vunpack.c.l.b16 %v2199
        %v2296 = vunpack.c.l.b16 %v2200
        %v2297 = vunpack.c.l.b16 %v2201
        %v2298 = vunpack.c.l.b16 %v2202
        %v2299 = vunpack.c.l.b16 %v2203
        %v2300 = vunpack.c.l.b16 %v2204
        %v2301 = vunpack.c.l.b16 %v2205
        %v2302 = vunpack.c.l.b16 %v2206
        %v2303 = vunpack.c.l.b16 %v2207
        %v2304 = vunpack.c.l.b16 %v2208
        %v2305 = vunpack.c.l.b16 %v2209
        %v2306 = vunpack.c.l.b16 %v2210
        %v2307 = vunpack.c.l.b16 %v2211
        %v2308 = vunpack.c.l.b16 %v2212
        %v2309 = vpack.c.b16 %v2262, %v2261
        %v2310 = vpack.c.b16 %v2263, %v2263
        %v2311 = vpack.c.b16 %v2265, %v2264
        %v2312 = vpack.c.b16 %v2266, %v2266
        %v2313 = vpack.c.b16 %v2268, %v2267
        %v2314 = vpack.c.b16 %v2269, %v2269
        %v2315 = vpack.c.b16 %v2271, %v2270
        %v2316 = vpack.c.b16 %v2272, %v2272
        %v2317 = vpack.c.b16 %v2274, %v2273
        %v2318 = vpack.c.b16 %v2275, %v2275
        %v2319 = vpack.c.b16 %v2277, %v2276
        %v2320 = vpack.c.b16 %v2278, %v2278
        %v2321 = vpack.c.b16 %v2280, %v2279
        %v2322 = vpack.c.b16 %v2281, %v2281
        %v2323 = vpack.c.b16 %v2283, %v2282
        %v2324 = vpack.c.b16 %v2284, %v2284
        %v2325 = vpack.c.b16 %v2286, %v2285
        %v2326 = vpack.c.b16 %v2287, %v2287
        %v2327 = vpack.c.b16 %v2289, %v2288
        %v2328 = vpack.c.b16 %v2290, %v2290
        %v2329 = vpack.c.b16 %v2292, %v2291
        %v2330 = vpack.c.b16 %v2293, %v2293
        %v2331 = vpack.c.b16 %v2295, %v2294
        %v2332 = vpack.c.b16 %v2296, %v2296
        %v2333 = vpack.c.b16 %v2298, %v2297
        %v2334 = vpack.c.b16 %v2299, %v2299
        %v2335 = vpack.c.b16 %v2301, %v2300
        %v2336 = vpack.c.b16 %v2302, %v2302
        %v2337 = vpack.c.b16 %v2304, %v2303
        %v2338 = vpack.c.b16 %v2305, %v2305
        %v2339 = vpack.c.b16 %v2307, %v2306
        %v2340 = vpack.c.b16 %v2308, %v2308
        %v2341 = vrot.slane %v2309, 1
        %v2342 = vrot.slane %v2310, 1
        %v2343 = vsel %vm1474, %v2341, %v2342
        %v2344 = vrot.slane %v2311, 1
        %v2345 = vrot.slane %v2312, 1
        %v2346 = vsel %vm1474, %v2344, %v2345
        %v2347 = vrot.slane %v2313, 1
        %v2348 = vrot.slane %v2314, 1
        %v2349 = vsel %vm1474, %v2347, %v2348
        %v2350 = vrot.slane %v2315, 1
        %v2351 = vrot.slane %v2316, 1
        %v2352 = vsel %vm1474, %v2350, %v2351
        %v2353 = vrot.slane %v2317, 1
        %v2354 = vrot.slane %v2318, 1
        %v2355 = vsel %vm1474, %v2353, %v2354
        %v2356 = vrot.slane %v2319, 1
        %v2357 = vrot.slane %v2320, 1
        %v2358 = vsel %vm1474, %v2356, %v2357
        %v2359 = vrot.slane %v2321, 1
        %v2360 = vrot.slane %v2322, 1
        %v2361 = vsel %vm1474, %v2359, %v2360
        %v2362 = vrot.slane %v2323, 1
        %v2363 = vrot.slane %v2324, 1
        %v2364 = vsel %vm1474, %v2362, %v2363
        %v2365 = vrot.slane %v2325, 1
        %v2366 = vrot.slane %v2326, 1
        %v2367 = vsel %vm1474, %v2365, %v2366
        %v2368 = vrot.slane %v2327, 1
        %v2369 = vrot.slane %v2328, 1
        %v2370 = vsel %vm1474, %v2368, %v2369
        %v2371 = vrot.slane %v2329, 1
        %v2372 = vrot.slane %v2330, 1
        %v2373 = vsel %vm1474, %v2371, %v2372
        %v2374 = vrot.slane %v2331, 1
        %v2375 = vrot.slane %v2332, 1
        %v2376 = vsel %vm1474, %v2374, %v2375
        %v2377 = vrot.slane %v2333, 1
        %v2378 = vrot.slane %v2334, 1
        %v2379 = vsel %vm1474, %v2377, %v2378
        %v2380 = vrot.slane %v2335, 1
        %v2381 = vrot.slane %v2336, 1
        %v2382 = vsel %vm1474, %v2380, %v2381
        %v2383 = vrot.slane %v2337, 1
        %v2384 = vrot.slane %v2338, 1
        %v2385 = vsel %vm1474, %v2383, %v2384
        %v2386 = vrot.slane %v2339, 1
        %v2387 = vrot.slane %v2340, 1
        %v2388 = vsel %vm1474, %v2386, %v2387
        %2389 = vrot.lane.b32.xlu0 %v2343, 32
        %v2390 = vpop.permute.xlu0 %2389
        %2391 = vrot.lane.b32.xlu0 %v2346, 32
        %v2392 = vpop.permute.xlu0 %2391
        %2393 = vrot.lane.b32.xlu0 %v2349, 32
        %v2394 = vpop.permute.xlu0 %2393
        %2395 = vrot.lane.b32.xlu0 %v2352, 32
        %v2396 = vpop.permute.xlu0 %2395
        %2397 = vrot.lane.b32.xlu0 %v2355, 32
        %v2398 = vpop.permute.xlu0 %2397
        %2399 = vrot.lane.b32.xlu0 %v2358, 32
        %v2400 = vpop.permute.xlu0 %2399
        %2401 = vrot.lane.b32.xlu0 %v2361, 32
        %v2402 = vpop.permute.xlu0 %2401
        %2403 = vrot.lane.b32.xlu0 %v2364, 32
        %v2404 = vpop.permute.xlu0 %2403
        %2405 = vrot.lane.b32.xlu0 %v2367, 32
        %v2406 = vpop.permute.xlu0 %2405
        %2407 = vrot.lane.b32.xlu0 %v2370, 32
        %v2408 = vpop.permute.xlu0 %2407
        %2409 = vrot.lane.b32.xlu0 %v2373, 32
        %v2410 = vpop.permute.xlu0 %2409
        %2411 = vrot.lane.b32.xlu0 %v2376, 32
        %v2412 = vpop.permute.xlu0 %2411
        %2413 = vrot.lane.b32.xlu0 %v2379, 32
        %v2414 = vpop.permute.xlu0 %2413
        %2415 = vrot.lane.b32.xlu0 %v2382, 32
        %v2416 = vpop.permute.xlu0 %2415
        %2417 = vrot.lane.b32.xlu0 %v2385, 32
        %v2418 = vpop.permute.xlu0 %2417
        %2419 = vrot.lane.b32.xlu0 %v2388, 32
        %v2420 = vpop.permute.xlu0 %2419
        %2437 = vst.msk [vmem:[#allocation3 + $0x8] sm:$0xff] %vm1281, %v2390
        %2438 = vst.msk [vmem:[#allocation3 + $0x20] sm:$0xff] %vm1281, %v2392
        %2439 = vst.msk [vmem:[#allocation3 + $0x38] sm:$0xff] %vm1281, %v2394
        %2440 = vst.msk [vmem:[#allocation3 + $0x50] sm:$0xff] %vm1281, %v2396
        %2441 = vst.msk [vmem:[#allocation3 + $0x68] sm:$0xff] %vm1281, %v2398
        %2442 = vst.msk [vmem:[#allocation3 + $0x80] sm:$0xff] %vm1281, %v2400
        %2443 = vst.msk [vmem:[#allocation3 + $0x98] sm:$0xff] %vm1281, %v2402
        %2444 = vst.msk [vmem:[#allocation3 + $0xb0] sm:$0xff] %vm1281, %v2404
        %2445 = vst.msk [vmem:[#allocation3 + $0xc8] sm:$0xff] %vm1281, %v2406
        %2446 = vst.msk [vmem:[#allocation3 + $0xe0] sm:$0xff] %vm1281, %v2408
        %2447 = vst.msk [vmem:[#allocation3 + $0xf8] sm:$0xff] %vm1281, %v2410
        %2448 = vst.msk [vmem:[#allocation3 + $0x110] sm:$0xff] %vm1281, %v2412
        %2449 = vst.msk [vmem:[#allocation3 + $0x128] sm:$0xff] %vm1281, %v2414
        %2450 = vst.msk [vmem:[#allocation3 + $0x140] sm:$0xff] %vm1281, %v2416
        %2451 = vst.msk [vmem:[#allocation3 + $0x158] sm:$0xff] %vm1281, %v2418
        %2452 = vst.msk [vmem:[#allocation3 + $0x170] sm:$0xff] %vm1281, %v2420
        %s2453 = scalar_lea.vmem [#allocation2], 24
        %v2454 = vld [vmem:[%s2453] sm:$0xf]
        %v2455 = vld [vmem:[%s2453 + $0x4] sm:$0xf]
        %v2456 = vld [vmem:[%s2453 + $0xc] sm:$0xf]
        %v2457 = vld [vmem:[%s2453 + $0x10] sm:$0xf]
        %v2458 = vld [vmem:[%s2453 + $0x18] sm:$0xf]
        %v2459 = vld [vmem:[%s2453 + $0x1c] sm:$0xf]
        %v2460 = vld [vmem:[%s2453 + $0x24] sm:$0xf]
        %v2461 = vld [vmem:[%s2453 + $0x28] sm:$0xf]
        %v2462 = vld [vmem:[%s2453 + $0x30] sm:$0xf]
        %v2463 = vld [vmem:[%s2453 + $0x34] sm:$0xf]
        %v2464 = vld [vmem:[%s2453 + $0x3c] sm:$0xf]
        %v2465 = vld [vmem:[%s2453 + $0x40] sm:$0xf]
        %v2466 = vld [vmem:[%s2453 + $0x48] sm:$0xf]
        %v2467 = vld [vmem:[%s2453 + $0x4c] sm:$0xf]
        %v2468 = vld [vmem:[%s2453 + $0x54] sm:$0xf]
        %v2469 = vld [vmem:[%s2453 + $0x58] sm:$0xf]
        %v2470 = vld [vmem:[%s2453 + $0x60] sm:$0xf]
        %v2471 = vld [vmem:[%s2453 + $0x64] sm:$0xf]
        %v2472 = vld [vmem:[%s2453 + $0x6c] sm:$0xf]
        %v2473 = vld [vmem:[%s2453 + $0x70] sm:$0xf]
        %v2474 = vld [vmem:[%s2453 + $0x78] sm:$0xf]
        %v2475 = vld [vmem:[%s2453 + $0x7c] sm:$0xf]
        %v2476 = vld [vmem:[%s2453 + $0x84] sm:$0xf]
        %v2477 = vld [vmem:[%s2453 + $0x88] sm:$0xf]
        %v2478 = vld [vmem:[%s2453 + $0x90] sm:$0xf]
        %v2479 = vld [vmem:[%s2453 + $0x94] sm:$0xf]
        %v2480 = vld [vmem:[%s2453 + $0x9c] sm:$0xf]
        %v2481 = vld [vmem:[%s2453 + $0xa0] sm:$0xf]
        %v2482 = vld [vmem:[%s2453 + $0xa8] sm:$0xf]
        %v2483 = vld [vmem:[%s2453 + $0xac] sm:$0xf]
        %v2484 = vld [vmem:[%s2453 + $0xb4] sm:$0xf]
        %v2485 = vld [vmem:[%s2453 + $0xb8] sm:$0xf]
        %v2518 = vunpack.c.l.b16 %v2454
        %v2519 = vunpack.c.l.b16 %v2455
        %v2520 = vunpack.c.l.b16 %v2456
        %v2521 = vunpack.c.l.b16 %v2457
        %v2522 = vunpack.c.l.b16 %v2458
        %v2523 = vunpack.c.l.b16 %v2459
        %v2524 = vunpack.c.l.b16 %v2460
        %v2525 = vunpack.c.l.b16 %v2461
        %v2526 = vunpack.c.l.b16 %v2462
        %v2527 = vunpack.c.l.b16 %v2463
        %v2528 = vunpack.c.l.b16 %v2464
        %v2529 = vunpack.c.l.b16 %v2465
        %v2530 = vunpack.c.l.b16 %v2466
        %v2531 = vunpack.c.l.b16 %v2467
        %v2532 = vunpack.c.l.b16 %v2468
        %v2533 = vunpack.c.l.b16 %v2469
        %v2534 = vunpack.c.l.b16 %v2470
        %v2535 = vunpack.c.l.b16 %v2471
        %v2536 = vunpack.c.l.b16 %v2472
        %v2537 = vunpack.c.l.b16 %v2473
        %v2538 = vunpack.c.l.b16 %v2474
        %v2539 = vunpack.c.l.b16 %v2475
        %v2540 = vunpack.c.l.b16 %v2476
        %v2541 = vunpack.c.l.b16 %v2477
        %v2542 = vunpack.c.l.b16 %v2478
        %v2543 = vunpack.c.l.b16 %v2479
        %v2544 = vunpack.c.l.b16 %v2480
        %v2545 = vunpack.c.l.b16 %v2481
        %v2546 = vunpack.c.l.b16 %v2482
        %v2547 = vunpack.c.l.b16 %v2483
        %v2548 = vunpack.c.l.b16 %v2484
        %v2549 = vunpack.c.l.b16 %v2485
        %v2550 = vpack.c.b16 %v2519, %v2518
        %v2551 = vpack.c.b16 %v2521, %v2520
        %v2552 = vpack.c.b16 %v2523, %v2522
        %v2553 = vpack.c.b16 %v2525, %v2524
        %v2554 = vpack.c.b16 %v2527, %v2526
        %v2555 = vpack.c.b16 %v2529, %v2528
        %v2556 = vpack.c.b16 %v2531, %v2530
        %v2557 = vpack.c.b16 %v2533, %v2532
        %v2558 = vpack.c.b16 %v2535, %v2534
        %v2559 = vpack.c.b16 %v2537, %v2536
        %v2560 = vpack.c.b16 %v2539, %v2538
        %v2561 = vpack.c.b16 %v2541, %v2540
        %v2562 = vpack.c.b16 %v2543, %v2542
        %v2563 = vpack.c.b16 %v2545, %v2544
        %v2564 = vpack.c.b16 %v2547, %v2546
        %v2565 = vpack.c.b16 %v2549, %v2548
        %2566 = vrot.lane.b32.xlu0 %v2550, 64
        %v2567 = vpop.permute.xlu0 %2566
        %2568 = vrot.lane.b32.xlu0 %v2551, 64
        %v2569 = vpop.permute.xlu0 %2568
        %2570 = vrot.lane.b32.xlu0 %v2552, 64
        %v2571 = vpop.permute.xlu0 %2570
        %2572 = vrot.lane.b32.xlu0 %v2553, 64
        %v2573 = vpop.permute.xlu0 %2572
        %2574 = vrot.lane.b32.xlu0 %v2554, 64
        %v2575 = vpop.permute.xlu0 %2574
        %2576 = vrot.lane.b32.xlu0 %v2555, 64
        %v2577 = vpop.permute.xlu0 %2576
        %2578 = vrot.lane.b32.xlu0 %v2556, 64
        %v2579 = vpop.permute.xlu0 %2578
        %2580 = vrot.lane.b32.xlu0 %v2557, 64
        %v2581 = vpop.permute.xlu0 %2580
        %2582 = vrot.lane.b32.xlu0 %v2558, 64
        %v2583 = vpop.permute.xlu0 %2582
        %2584 = vrot.lane.b32.xlu0 %v2559, 64
        %v2585 = vpop.permute.xlu0 %2584
        %2586 = vrot.lane.b32.xlu0 %v2560, 64
        %v2587 = vpop.permute.xlu0 %2586
        %2588 = vrot.lane.b32.xlu0 %v2561, 64
        %v2589 = vpop.permute.xlu0 %2588
        %2590 = vrot.lane.b32.xlu0 %v2562, 64
        %v2591 = vpop.permute.xlu0 %2590
        %2592 = vrot.lane.b32.xlu0 %v2563, 64
        %v2593 = vpop.permute.xlu0 %2592
        %2594 = vrot.lane.b32.xlu0 %v2564, 64
        %v2595 = vpop.permute.xlu0 %2594
        %2596 = vrot.lane.b32.xlu0 %v2565, 64
        %v2597 = vpop.permute.xlu0 %2596
        %2614 = vst.msk [vmem:[#allocation3 + $0x8] sm:$0xff] %vm1571, %v2567
        %2615 = vst.msk [vmem:[#allocation3 + $0x20] sm:$0xff] %vm1571, %v2569
        %2616 = vst.msk [vmem:[#allocation3 + $0x38] sm:$0xff] %vm1571, %v2571
        %2617 = vst.msk [vmem:[#allocation3 + $0x50] sm:$0xff] %vm1571, %v2573
        %2618 = vst.msk [vmem:[#allocation3 + $0x68] sm:$0xff] %vm1571, %v2575
        %2619 = vst.msk [vmem:[#allocation3 + $0x80] sm:$0xff] %vm1571, %v2577
        %2620 = vst.msk [vmem:[#allocation3 + $0x98] sm:$0xff] %vm1571, %v2579
        %2621 = vst.msk [vmem:[#allocation3 + $0xb0] sm:$0xff] %vm1571, %v2581
        %2622 = vst.msk [vmem:[#allocation3 + $0xc8] sm:$0xff] %vm1571, %v2583
        %2623 = vst.msk [vmem:[#allocation3 + $0xe0] sm:$0xff] %vm1571, %v2585
        %2624 = vst.msk [vmem:[#allocation3 + $0xf8] sm:$0xff] %vm1571, %v2587
        %2625 = vst.msk [vmem:[#allocation3 + $0x110] sm:$0xff] %vm1571, %v2589
        %2626 = vst.msk [vmem:[#allocation3 + $0x128] sm:$0xff] %vm1571, %v2591
        %2627 = vst.msk [vmem:[#allocation3 + $0x140] sm:$0xff] %vm1571, %v2593
        %2628 = vst.msk [vmem:[#allocation3 + $0x158] sm:$0xff] %vm1571, %v2595
        %2629 = vst.msk [vmem:[#allocation3 + $0x170] sm:$0xff] %vm1571, %v2597
        %v2630 = vld [vmem:[%s2453] sm:$0xf]
        %v2631 = vld [vmem:[%s2453 + $0x4] sm:$0xf]
        %v2632 = vld [vmem:[%s2453 + $0x8] sm:$0x1]
        %v2633 = vld [vmem:[%s2453 + $0xc] sm:$0xf]
        %v2634 = vld [vmem:[%s2453 + $0x10] sm:$0xf]
        %v2635 = vld [vmem:[%s2453 + $0x14] sm:$0x1]
        %v2636 = vld [vmem:[%s2453 + $0x18] sm:$0xf]
        %v2637 = vld [vmem:[%s2453 + $0x1c] sm:$0xf]
        %v2638 = vld [vmem:[%s2453 + $0x20] sm:$0x1]
        %v2639 = vld [vmem:[%s2453 + $0x24] sm:$0xf]
        %v2640 = vld [vmem:[%s2453 + $0x28] sm:$0xf]
        %v2641 = vld [vmem:[%s2453 + $0x2c] sm:$0x1]
        %v2642 = vld [vmem:[%s2453 + $0x30] sm:$0xf]
        %v2643 = vld [vmem:[%s2453 + $0x34] sm:$0xf]
        %v2644 = vld [vmem:[%s2453 + $0x38] sm:$0x1]
        %v2645 = vld [vmem:[%s2453 + $0x3c] sm:$0xf]
        %v2646 = vld [vmem:[%s2453 + $0x40] sm:$0xf]
        %v2647 = vld [vmem:[%s2453 + $0x44] sm:$0x1]
        %v2648 = vld [vmem:[%s2453 + $0x48] sm:$0xf]
        %v2649 = vld [vmem:[%s2453 + $0x4c] sm:$0xf]
        %v2650 = vld [vmem:[%s2453 + $0x50] sm:$0x1]
        %v2651 = vld [vmem:[%s2453 + $0x54] sm:$0xf]
        %v2652 = vld [vmem:[%s2453 + $0x58] sm:$0xf]
        %v2653 = vld [vmem:[%s2453 + $0x5c] sm:$0x1]
        %v2654 = vld [vmem:[%s2453 + $0x60] sm:$0xf]
        %v2655 = vld [vmem:[%s2453 + $0x64] sm:$0xf]
        %v2656 = vld [vmem:[%s2453 + $0x68] sm:$0x1]
        %v2657 = vld [vmem:[%s2453 + $0x6c] sm:$0xf]
        %v2658 = vld [vmem:[%s2453 + $0x70] sm:$0xf]
        %v2659 = vld [vmem:[%s2453 + $0x74] sm:$0x1]
        %v2660 = vld [vmem:[%s2453 + $0x78] sm:$0xf]
        %v2661 = vld [vmem:[%s2453 + $0x7c] sm:$0xf]
        %v2662 = vld [vmem:[%s2453 + $0x80] sm:$0x1]
        %v2663 = vld [vmem:[%s2453 + $0x84] sm:$0xf]
        %v2664 = vld [vmem:[%s2453 + $0x88] sm:$0xf]
        %v2665 = vld [vmem:[%s2453 + $0x8c] sm:$0x1]
        %v2666 = vld [vmem:[%s2453 + $0x90] sm:$0xf]
        %v2667 = vld [vmem:[%s2453 + $0x94] sm:$0xf]
        %v2668 = vld [vmem:[%s2453 + $0x98] sm:$0x1]
        %v2669 = vld [vmem:[%s2453 + $0x9c] sm:$0xf]
        %v2670 = vld [vmem:[%s2453 + $0xa0] sm:$0xf]
        %v2671 = vld [vmem:[%s2453 + $0xa4] sm:$0x1]
        %v2672 = vld [vmem:[%s2453 + $0xa8] sm:$0xf]
        %v2673 = vld [vmem:[%s2453 + $0xac] sm:$0xf]
        %v2674 = vld [vmem:[%s2453 + $0xb0] sm:$0x1]
        %v2675 = vld [vmem:[%s2453 + $0xb4] sm:$0xf]
        %v2676 = vld [vmem:[%s2453 + $0xb8] sm:$0xf]
        %v2677 = vld [vmem:[%s2453 + $0xbc] sm:$0x1]
        %v2726 = vunpack.c.l.b16 %v2630
        %v2727 = vunpack.c.l.b16 %v2631
        %v2728 = vunpack.c.l.b16 %v2632
        %v2729 = vunpack.c.l.b16 %v2633
        %v2730 = vunpack.c.l.b16 %v2634
        %v2731 = vunpack.c.l.b16 %v2635
        %v2732 = vunpack.c.l.b16 %v2636
        %v2733 = vunpack.c.l.b16 %v2637
        %v2734 = vunpack.c.l.b16 %v2638
        %v2735 = vunpack.c.l.b16 %v2639
        %v2736 = vunpack.c.l.b16 %v2640
        %v2737 = vunpack.c.l.b16 %v2641
        %v2738 = vunpack.c.l.b16 %v2642
        %v2739 = vunpack.c.l.b16 %v2643
        %v2740 = vunpack.c.l.b16 %v2644
        %v2741 = vunpack.c.l.b16 %v2645
        %v2742 = vunpack.c.l.b16 %v2646
        %v2743 = vunpack.c.l.b16 %v2647
        %v2744 = vunpack.c.l.b16 %v2648
        %v2745 = vunpack.c.l.b16 %v2649
        %v2746 = vunpack.c.l.b16 %v2650
        %v2747 = vunpack.c.l.b16 %v2651
        %v2748 = vunpack.c.l.b16 %v2652
        %v2749 = vunpack.c.l.b16 %v2653
        %v2750 = vunpack.c.l.b16 %v2654
        %v2751 = vunpack.c.l.b16 %v2655
        %v2752 = vunpack.c.l.b16 %v2656
        %v2753 = vunpack.c.l.b16 %v2657
        %v2754 = vunpack.c.l.b16 %v2658
        %v2755 = vunpack.c.l.b16 %v2659
        %v2756 = vunpack.c.l.b16 %v2660
        %v2757 = vunpack.c.l.b16 %v2661
        %v2758 = vunpack.c.l.b16 %v2662
        %v2759 = vunpack.c.l.b16 %v2663
        %v2760 = vunpack.c.l.b16 %v2664
        %v2761 = vunpack.c.l.b16 %v2665
        %v2762 = vunpack.c.l.b16 %v2666
        %v2763 = vunpack.c.l.b16 %v2667
        %v2764 = vunpack.c.l.b16 %v2668
        %v2765 = vunpack.c.l.b16 %v2669
        %v2766 = vunpack.c.l.b16 %v2670
        %v2767 = vunpack.c.l.b16 %v2671
        %v2768 = vunpack.c.l.b16 %v2672
        %v2769 = vunpack.c.l.b16 %v2673
        %v2770 = vunpack.c.l.b16 %v2674
        %v2771 = vunpack.c.l.b16 %v2675
        %v2772 = vunpack.c.l.b16 %v2676
        %v2773 = vunpack.c.l.b16 %v2677
        %v2774 = vpack.c.b16 %v2727, %v2726
        %v2775 = vpack.c.b16 %v2728, %v2728
        %v2776 = vpack.c.b16 %v2730, %v2729
        %v2777 = vpack.c.b16 %v2731, %v2731
        %v2778 = vpack.c.b16 %v2733, %v2732
        %v2779 = vpack.c.b16 %v2734, %v2734
        %v2780 = vpack.c.b16 %v2736, %v2735
        %v2781 = vpack.c.b16 %v2737, %v2737
        %v2782 = vpack.c.b16 %v2739, %v2738
        %v2783 = vpack.c.b16 %v2740, %v2740
        %v2784 = vpack.c.b16 %v2742, %v2741
        %v2785 = vpack.c.b16 %v2743, %v2743
        %v2786 = vpack.c.b16 %v2745, %v2744
        %v2787 = vpack.c.b16 %v2746, %v2746
        %v2788 = vpack.c.b16 %v2748, %v2747
        %v2789 = vpack.c.b16 %v2749, %v2749
        %v2790 = vpack.c.b16 %v2751, %v2750
        %v2791 = vpack.c.b16 %v2752, %v2752
        %v2792 = vpack.c.b16 %v2754, %v2753
        %v2793 = vpack.c.b16 %v2755, %v2755
        %v2794 = vpack.c.b16 %v2757, %v2756
        %v2795 = vpack.c.b16 %v2758, %v2758
        %v2796 = vpack.c.b16 %v2760, %v2759
        %v2797 = vpack.c.b16 %v2761, %v2761
        %v2798 = vpack.c.b16 %v2763, %v2762
        %v2799 = vpack.c.b16 %v2764, %v2764
        %v2800 = vpack.c.b16 %v2766, %v2765
        %v2801 = vpack.c.b16 %v2767, %v2767
        %v2802 = vpack.c.b16 %v2769, %v2768
        %v2803 = vpack.c.b16 %v2770, %v2770
        %v2804 = vpack.c.b16 %v2772, %v2771
        %v2805 = vpack.c.b16 %v2773, %v2773
        %v2807 = vshrl.u32 %v2774, 16
        %v2809 = vshll.u32 %v2774, 16
        %v2811 = vrot.slane %v2809, 1
        %v2812 = vor.u32 %v2807, %v2811
        %v2814 = vshll.u32 %v2775, 16
        %v2816 = vrot.slane %v2814, 1
        %v2817 = vsel %vm1040, %v2812, %v2816
        %v2819 = vshrl.u32 %v2776, 16
        %v2821 = vshll.u32 %v2776, 16
        %v2823 = vrot.slane %v2821, 1
        %v2824 = vor.u32 %v2819, %v2823
        %v2826 = vshll.u32 %v2777, 16
        %v2828 = vrot.slane %v2826, 1
        %v2829 = vsel %vm1040, %v2824, %v2828
        %v2831 = vshrl.u32 %v2778, 16
        %v2833 = vshll.u32 %v2778, 16
        %v2835 = vrot.slane %v2833, 1
        %v2836 = vor.u32 %v2831, %v2835
        %v2838 = vshll.u32 %v2779, 16
        %v2840 = vrot.slane %v2838, 1
        %v2841 = vsel %vm1040, %v2836, %v2840
        %v2843 = vshrl.u32 %v2780, 16
        %v2845 = vshll.u32 %v2780, 16
        %v2847 = vrot.slane %v2845, 1
        %v2848 = vor.u32 %v2843, %v2847
        %v2850 = vshll.u32 %v2781, 16
        %v2852 = vrot.slane %v2850, 1
        %v2853 = vsel %vm1040, %v2848, %v2852
        %v2855 = vshrl.u32 %v2782, 16
        %v2857 = vshll.u32 %v2782, 16
        %v2859 = vrot.slane %v2857, 1
        %v2860 = vor.u32 %v2855, %v2859
        %v2862 = vshll.u32 %v2783, 16
        %v2864 = vrot.slane %v2862, 1
        %v2865 = vsel %vm1040, %v2860, %v2864
        %v2867 = vshrl.u32 %v2784, 16
        %v2869 = vshll.u32 %v2784, 16
        %v2871 = vrot.slane %v2869, 1
        %v2872 = vor.u32 %v2867, %v2871
        %v2874 = vshll.u32 %v2785, 16
        %v2876 = vrot.slane %v2874, 1
        %v2877 = vsel %vm1040, %v2872, %v2876
        %v2879 = vshrl.u32 %v2786, 16
        %v2881 = vshll.u32 %v2786, 16
        %v2883 = vrot.slane %v2881, 1
        %v2884 = vor.u32 %v2879, %v2883
        %v2886 = vshll.u32 %v2787, 16
        %v2888 = vrot.slane %v2886, 1
        %v2889 = vsel %vm1040, %v2884, %v2888
        %v2891 = vshrl.u32 %v2788, 16
        %v2893 = vshll.u32 %v2788, 16
        %v2895 = vrot.slane %v2893, 1
        %v2896 = vor.u32 %v2891, %v2895
        %v2898 = vshll.u32 %v2789, 16
        %v2900 = vrot.slane %v2898, 1
        %v2901 = vsel %vm1040, %v2896, %v2900
        %v2903 = vshrl.u32 %v2790, 16
        %v2905 = vshll.u32 %v2790, 16
        %v2907 = vrot.slane %v2905, 1
        %v2908 = vor.u32 %v2903, %v2907
        %v2910 = vshll.u32 %v2791, 16
        %v2912 = vrot.slane %v2910, 1
        %v2913 = vsel %vm1040, %v2908, %v2912
        %v2915 = vshrl.u32 %v2792, 16
        %v2917 = vshll.u32 %v2792, 16
        %v2919 = vrot.slane %v2917, 1
        %v2920 = vor.u32 %v2915, %v2919
        %v2922 = vshll.u32 %v2793, 16
        %v2924 = vrot.slane %v2922, 1
        %v2925 = vsel %vm1040, %v2920, %v2924
        %v2927 = vshrl.u32 %v2794, 16
        %v2929 = vshll.u32 %v2794, 16
        %v2931 = vrot.slane %v2929, 1
        %v2932 = vor.u32 %v2927, %v2931
        %v2934 = vshll.u32 %v2795, 16
        %v2936 = vrot.slane %v2934, 1
        %v2937 = vsel %vm1040, %v2932, %v2936
        %v2939 = vshrl.u32 %v2796, 16
        %v2941 = vshll.u32 %v2796, 16
        %v2943 = vrot.slane %v2941, 1
        %v2944 = vor.u32 %v2939, %v2943
        %v2946 = vshll.u32 %v2797, 16
        %v2948 = vrot.slane %v2946, 1
        %v2949 = vsel %vm1040, %v2944, %v2948
        %v2951 = vshrl.u32 %v2798, 16
        %v2953 = vshll.u32 %v2798, 16
        %v2955 = vrot.slane %v2953, 1
        %v2956 = vor.u32 %v2951, %v2955
        %v2958 = vshll.u32 %v2799, 16
        %v2960 = vrot.slane %v2958, 1
        %v2961 = vsel %vm1040, %v2956, %v2960
        %v2963 = vshrl.u32 %v2800, 16
        %v2965 = vshll.u32 %v2800, 16
        %v2967 = vrot.slane %v2965, 1
        %v2968 = vor.u32 %v2963, %v2967
        %v2970 = vshll.u32 %v2801, 16
        %v2972 = vrot.slane %v2970, 1
        %v2973 = vsel %vm1040, %v2968, %v2972
        %v2975 = vshrl.u32 %v2802, 16
        %v2977 = vshll.u32 %v2802, 16
        %v2979 = vrot.slane %v2977, 1
        %v2980 = vor.u32 %v2975, %v2979
        %v2982 = vshll.u32 %v2803, 16
        %v2984 = vrot.slane %v2982, 1
        %v2985 = vsel %vm1040, %v2980, %v2984
        %v2987 = vshrl.u32 %v2804, 16
        %v2989 = vshll.u32 %v2804, 16
        %v2991 = vrot.slane %v2989, 1
        %v2992 = vor.u32 %v2987, %v2991
        %v2994 = vshll.u32 %v2805, 16
        %v2996 = vrot.slane %v2994, 1
        %v2997 = vsel %vm1040, %v2992, %v2996
        %2998 = vrot.lane.b32.xlu0 %v2817, 96
        %v2999 = vpop.permute.xlu0 %2998
        %3000 = vrot.lane.b32.xlu0 %v2829, 96
        %v3001 = vpop.permute.xlu0 %3000
        %3002 = vrot.lane.b32.xlu0 %v2841, 96
        %v3003 = vpop.permute.xlu0 %3002
        %3004 = vrot.lane.b32.xlu0 %v2853, 96
        %v3005 = vpop.permute.xlu0 %3004
        %3006 = vrot.lane.b32.xlu0 %v2865, 96
        %v3007 = vpop.permute.xlu0 %3006
        %3008 = vrot.lane.b32.xlu0 %v2877, 96
        %v3009 = vpop.permute.xlu0 %3008
        %3010 = vrot.lane.b32.xlu0 %v2889, 96
        %v3011 = vpop.permute.xlu0 %3010
        %3012 = vrot.lane.b32.xlu0 %v2901, 96
        %v3013 = vpop.permute.xlu0 %3012
        %3014 = vrot.lane.b32.xlu0 %v2913, 96
        %v3015 = vpop.permute.xlu0 %3014
        %3016 = vrot.lane.b32.xlu0 %v2925, 96
        %v3017 = vpop.permute.xlu0 %3016
        %3018 = vrot.lane.b32.xlu0 %v2937, 96
        %v3019 = vpop.permute.xlu0 %3018
        %3020 = vrot.lane.b32.xlu0 %v2949, 96
        %v3021 = vpop.permute.xlu0 %3020
        %3022 = vrot.lane.b32.xlu0 %v2961, 96
        %v3023 = vpop.permute.xlu0 %3022
        %3024 = vrot.lane.b32.xlu0 %v2973, 96
        %v3025 = vpop.permute.xlu0 %3024
        %3026 = vrot.lane.b32.xlu0 %v2985, 96
        %v3027 = vpop.permute.xlu0 %3026
        %3028 = vrot.lane.b32.xlu0 %v2997, 96
        %v3029 = vpop.permute.xlu0 %3028
        %3046 = vst.msk [vmem:[#allocation3 + $0x8] sm:$0xff] %vm1748, %v2999
        %3047 = vst.msk [vmem:[#allocation3 + $0x20] sm:$0xff] %vm1748, %v3001
        %3048 = vst.msk [vmem:[#allocation3 + $0x38] sm:$0xff] %vm1748, %v3003
        %3049 = vst.msk [vmem:[#allocation3 + $0x50] sm:$0xff] %vm1748, %v3005
        %3050 = vst.msk [vmem:[#allocation3 + $0x68] sm:$0xff] %vm1748, %v3007
        %3051 = vst.msk [vmem:[#allocation3 + $0x80] sm:$0xff] %vm1748, %v3009
        %3052 = vst.msk [vmem:[#allocation3 + $0x98] sm:$0xff] %vm1748, %v3011
        %3053 = vst.msk [vmem:[#allocation3 + $0xb0] sm:$0xff] %vm1748, %v3013
        %3054 = vst.msk [vmem:[#allocation3 + $0xc8] sm:$0xff] %vm1748, %v3015
        %3055 = vst.msk [vmem:[#allocation3 + $0xe0] sm:$0xff] %vm1748, %v3017
        %3056 = vst.msk [vmem:[#allocation3 + $0xf8] sm:$0xff] %vm1748, %v3019
        %3057 = vst.msk [vmem:[#allocation3 + $0x110] sm:$0xff] %vm1748, %v3021
        %3058 = vst.msk [vmem:[#allocation3 + $0x128] sm:$0xff] %vm1748, %v3023
        %3059 = vst.msk [vmem:[#allocation3 + $0x140] sm:$0xff] %vm1748, %v3025
        %3060 = vst.msk [vmem:[#allocation3 + $0x158] sm:$0xff] %vm1748, %v3027
        %3061 = vst.msk [vmem:[#allocation3 + $0x170] sm:$0xff] %vm1748, %v3029
        %v3062 = vld [vmem:[%s2453] sm:$0xe]
        %v3063 = vld [vmem:[%s2453 + $0x4] sm:$0xf]
        %v3064 = vld [vmem:[%s2453 + $0x8] sm:$0x1]
        %v3065 = vld [vmem:[%s2453 + $0xc] sm:$0xe]
        %v3066 = vld [vmem:[%s2453 + $0x10] sm:$0xf]
        %v3067 = vld [vmem:[%s2453 + $0x14] sm:$0x1]
        %v3068 = vld [vmem:[%s2453 + $0x18] sm:$0xe]
        %v3069 = vld [vmem:[%s2453 + $0x1c] sm:$0xf]
        %v3070 = vld [vmem:[%s2453 + $0x20] sm:$0x1]
        %v3071 = vld [vmem:[%s2453 + $0x24] sm:$0xe]
        %v3072 = vld [vmem:[%s2453 + $0x28] sm:$0xf]
        %v3073 = vld [vmem:[%s2453 + $0x2c] sm:$0x1]
        %v3074 = vld [vmem:[%s2453 + $0x30] sm:$0xe]
        %v3075 = vld [vmem:[%s2453 + $0x34] sm:$0xf]
        %v3076 = vld [vmem:[%s2453 + $0x38] sm:$0x1]
        %v3077 = vld [vmem:[%s2453 + $0x3c] sm:$0xe]
        %v3078 = vld [vmem:[%s2453 + $0x40] sm:$0xf]
        %v3079 = vld [vmem:[%s2453 + $0x44] sm:$0x1]
        %v3080 = vld [vmem:[%s2453 + $0x48] sm:$0xe]
        %v3081 = vld [vmem:[%s2453 + $0x4c] sm:$0xf]
        %v3082 = vld [vmem:[%s2453 + $0x50] sm:$0x1]
        %v3083 = vld [vmem:[%s2453 + $0x54] sm:$0xe]
        %v3084 = vld [vmem:[%s2453 + $0x58] sm:$0xf]
        %v3085 = vld [vmem:[%s2453 + $0x5c] sm:$0x1]
        %v3086 = vld [vmem:[%s2453 + $0x60] sm:$0xe]
        %v3087 = vld [vmem:[%s2453 + $0x64] sm:$0xf]
        %v3088 = vld [vmem:[%s2453 + $0x68] sm:$0x1]
        %v3089 = vld [vmem:[%s2453 + $0x6c] sm:$0xe]
        %v3090 = vld [vmem:[%s2453 + $0x70] sm:$0xf]
        %v3091 = vld [vmem:[%s2453 + $0x74] sm:$0x1]
        %v3092 = vld [vmem:[%s2453 + $0x78] sm:$0xe]
        %v3093 = vld [vmem:[%s2453 + $0x7c] sm:$0xf]
        %v3094 = vld [vmem:[%s2453 + $0x80] sm:$0x1]
        %v3095 = vld [vmem:[%s2453 + $0x84] sm:$0xe]
        %v3096 = vld [vmem:[%s2453 + $0x88] sm:$0xf]
        %v3097 = vld [vmem:[%s2453 + $0x8c] sm:$0x1]
        %v3098 = vld [vmem:[%s2453 + $0x90] sm:$0xe]
        %v3099 = vld [vmem:[%s2453 + $0x94] sm:$0xf]
        %v3100 = vld [vmem:[%s2453 + $0x98] sm:$0x1]
        %v3101 = vld [vmem:[%s2453 + $0x9c] sm:$0xe]
        %v3102 = vld [vmem:[%s2453 + $0xa0] sm:$0xf]
        %v3103 = vld [vmem:[%s2453 + $0xa4] sm:$0x1]
        %v3104 = vld [vmem:[%s2453 + $0xa8] sm:$0xe]
        %v3105 = vld [vmem:[%s2453 + $0xac] sm:$0xf]
        %v3106 = vld [vmem:[%s2453 + $0xb0] sm:$0x1]
        %v3107 = vld [vmem:[%s2453 + $0xb4] sm:$0xe]
        %v3108 = vld [vmem:[%s2453 + $0xb8] sm:$0xf]
        %v3109 = vld [vmem:[%s2453 + $0xbc] sm:$0x1]
        %v3158 = vunpack.c.l.b16 %v3062
        %v3159 = vunpack.c.l.b16 %v3063
        %v3160 = vunpack.c.l.b16 %v3064
        %v3161 = vunpack.c.l.b16 %v3065
        %v3162 = vunpack.c.l.b16 %v3066
        %v3163 = vunpack.c.l.b16 %v3067
        %v3164 = vunpack.c.l.b16 %v3068
        %v3165 = vunpack.c.l.b16 %v3069
        %v3166 = vunpack.c.l.b16 %v3070
        %v3167 = vunpack.c.l.b16 %v3071
        %v3168 = vunpack.c.l.b16 %v3072
        %v3169 = vunpack.c.l.b16 %v3073
        %v3170 = vunpack.c.l.b16 %v3074
        %v3171 = vunpack.c.l.b16 %v3075
        %v3172 = vunpack.c.l.b16 %v3076
        %v3173 = vunpack.c.l.b16 %v3077
        %v3174 = vunpack.c.l.b16 %v3078
        %v3175 = vunpack.c.l.b16 %v3079
        %v3176 = vunpack.c.l.b16 %v3080
        %v3177 = vunpack.c.l.b16 %v3081
        %v3178 = vunpack.c.l.b16 %v3082
        %v3179 = vunpack.c.l.b16 %v3083
        %v3180 = vunpack.c.l.b16 %v3084
        %v3181 = vunpack.c.l.b16 %v3085
        %v3182 = vunpack.c.l.b16 %v3086
        %v3183 = vunpack.c.l.b16 %v3087
        %v3184 = vunpack.c.l.b16 %v3088
        %v3185 = vunpack.c.l.b16 %v3089
        %v3186 = vunpack.c.l.b16 %v3090
        %v3187 = vunpack.c.l.b16 %v3091
        %v3188 = vunpack.c.l.b16 %v3092
        %v3189 = vunpack.c.l.b16 %v3093
        %v3190 = vunpack.c.l.b16 %v3094
        %v3191 = vunpack.c.l.b16 %v3095
        %v3192 = vunpack.c.l.b16 %v3096
        %v3193 = vunpack.c.l.b16 %v3097
        %v3194 = vunpack.c.l.b16 %v3098
        %v3195 = vunpack.c.l.b16 %v3099
        %v3196 = vunpack.c.l.b16 %v3100
        %v3197 = vunpack.c.l.b16 %v3101
        %v3198 = vunpack.c.l.b16 %v3102
        %v3199 = vunpack.c.l.b16 %v3103
        %v3200 = vunpack.c.l.b16 %v3104
        %v3201 = vunpack.c.l.b16 %v3105
        %v3202 = vunpack.c.l.b16 %v3106
        %v3203 = vunpack.c.l.b16 %v3107
        %v3204 = vunpack.c.l.b16 %v3108
        %v3205 = vunpack.c.l.b16 %v3109
        %v3206 = vpack.c.b16 %v3159, %v3158
        %v3207 = vpack.c.b16 %v3160, %v3160
        %v3208 = vpack.c.b16 %v3162, %v3161
        %v3209 = vpack.c.b16 %v3163, %v3163
        %v3210 = vpack.c.b16 %v3165, %v3164
        %v3211 = vpack.c.b16 %v3166, %v3166
        %v3212 = vpack.c.b16 %v3168, %v3167
        %v3213 = vpack.c.b16 %v3169, %v3169
        %v3214 = vpack.c.b16 %v3171, %v3170
        %v3215 = vpack.c.b16 %v3172, %v3172
        %v3216 = vpack.c.b16 %v3174, %v3173
        %v3217 = vpack.c.b16 %v3175, %v3175
        %v3218 = vpack.c.b16 %v3177, %v3176
        %v3219 = vpack.c.b16 %v3178, %v3178
        %v3220 = vpack.c.b16 %v3180, %v3179
        %v3221 = vpack.c.b16 %v3181, %v3181
        %v3222 = vpack.c.b16 %v3183, %v3182
        %v3223 = vpack.c.b16 %v3184, %v3184
        %v3224 = vpack.c.b16 %v3186, %v3185
        %v3225 = vpack.c.b16 %v3187, %v3187
        %v3226 = vpack.c.b16 %v3189, %v3188
        %v3227 = vpack.c.b16 %v3190, %v3190
        %v3228 = vpack.c.b16 %v3192, %v3191
        %v3229 = vpack.c.b16 %v3193, %v3193
        %v3230 = vpack.c.b16 %v3195, %v3194
        %v3231 = vpack.c.b16 %v3196, %v3196
        %v3232 = vpack.c.b16 %v3198, %v3197
        %v3233 = vpack.c.b16 %v3199, %v3199
        %v3234 = vpack.c.b16 %v3201, %v3200
        %v3235 = vpack.c.b16 %v3202, %v3202
        %v3236 = vpack.c.b16 %v3204, %v3203
        %v3237 = vpack.c.b16 %v3205, %v3205
        %v3238 = vrot.slane %v3206, 1
        %v3239 = vrot.slane %v3207, 1
        %v3240 = vsel %vm1474, %v3238, %v3239
        %v3241 = vrot.slane %v3208, 1
        %v3242 = vrot.slane %v3209, 1
        %v3243 = vsel %vm1474, %v3241, %v3242
        %v3244 = vrot.slane %v3210, 1
        %v3245 = vrot.slane %v3211, 1
        %v3246 = vsel %vm1474, %v3244, %v3245
        %v3247 = vrot.slane %v3212, 1
        %v3248 = vrot.slane %v3213, 1
        %v3249 = vsel %vm1474, %v3247, %v3248
        %v3250 = vrot.slane %v3214, 1
        %v3251 = vrot.slane %v3215, 1
        %v3252 = vsel %vm1474, %v3250, %v3251
        %v3253 = vrot.slane %v3216, 1
        %v3254 = vrot.slane %v3217, 1
        %v3255 = vsel %vm1474, %v3253, %v3254
        %v3256 = vrot.slane %v3218, 1
        %v3257 = vrot.slane %v3219, 1
        %v3258 = vsel %vm1474, %v3256, %v3257
        %v3259 = vrot.slane %v3220, 1
        %v3260 = vrot.slane %v3221, 1
        %v3261 = vsel %vm1474, %v3259, %v3260
        %v3262 = vrot.slane %v3222, 1
        %v3263 = vrot.slane %v3223, 1
        %v3264 = vsel %vm1474, %v3262, %v3263
        %v3265 = vrot.slane %v3224, 1
        %v3266 = vrot.slane %v3225, 1
        %v3267 = vsel %vm1474, %v3265, %v3266
        %v3268 = vrot.slane %v3226, 1
        %v3269 = vrot.slane %v3227, 1
        %v3270 = vsel %vm1474, %v3268, %v3269
        %v3271 = vrot.slane %v3228, 1
        %v3272 = vrot.slane %v3229, 1
        %v3273 = vsel %vm1474, %v3271, %v3272
        %v3274 = vrot.slane %v3230, 1
        %v3275 = vrot.slane %v3231, 1
        %v3276 = vsel %vm1474, %v3274, %v3275
        %v3277 = vrot.slane %v3232, 1
        %v3278 = vrot.slane %v3233, 1
        %v3279 = vsel %vm1474, %v3277, %v3278
        %v3280 = vrot.slane %v3234, 1
        %v3281 = vrot.slane %v3235, 1
        %v3282 = vsel %vm1474, %v3280, %v3281
        %v3283 = vrot.slane %v3236, 1
        %v3284 = vrot.slane %v3237, 1
        %v3285 = vsel %vm1474, %v3283, %v3284
        %3302 = vst.msk [vmem:[#allocation3 + $0x10] sm:$0xff] %vm847, %v3240
        %3303 = vst.msk [vmem:[#allocation3 + $0x28] sm:$0xff] %vm847, %v3243
        %3304 = vst.msk [vmem:[#allocation3 + $0x40] sm:$0xff] %vm847, %v3246
        %3305 = vst.msk [vmem:[#allocation3 + $0x58] sm:$0xff] %vm847, %v3249
        %3306 = vst.msk [vmem:[#allocation3 + $0x70] sm:$0xff] %vm847, %v3252
        %3307 = vst.msk [vmem:[#allocation3 + $0x88] sm:$0xff] %vm847, %v3255
        %3308 = vst.msk [vmem:[#allocation3 + $0xa0] sm:$0xff] %vm847, %v3258
        %3309 = vst.msk [vmem:[#allocation3 + $0xb8] sm:$0xff] %vm847, %v3261
        %3310 = vst.msk [vmem:[#allocation3 + $0xd0] sm:$0xff] %vm847, %v3264
        %3311 = vst.msk [vmem:[#allocation3 + $0xe8] sm:$0xff] %vm847, %v3267
        %3312 = vst.msk [vmem:[#allocation3 + $0x100] sm:$0xff] %vm847, %v3270
        %3313 = vst.msk [vmem:[#allocation3 + $0x118] sm:$0xff] %vm847, %v3273
        %3314 = vst.msk [vmem:[#allocation3 + $0x130] sm:$0xff] %vm847, %v3276
        %3315 = vst.msk [vmem:[#allocation3 + $0x148] sm:$0xff] %vm847, %v3279
        %3316 = vst.msk [vmem:[#allocation3 + $0x160] sm:$0xff] %vm847, %v3282
        %3317 = vst.msk [vmem:[#allocation3 + $0x178] sm:$0xff] %vm847, %v3285
        %v3318 = vld [vmem:[#allocation3] sm:$0xff]
        %v3319 = vld [vmem:[#allocation3 + $0x8] sm:$0xff]
        %v3320 = vld [vmem:[#allocation3 + $0x10] sm:$0xff]
        %v3321 = vld [vmem:[#allocation3 + $0x18] sm:$0xff]
        %v3322 = vld [vmem:[#allocation3 + $0x20] sm:$0xff]
        %v3323 = vld [vmem:[#allocation3 + $0x28] sm:$0xff]
        %v3324 = vld [vmem:[#allocation3 + $0x30] sm:$0xff]
        %v3325 = vld [vmem:[#allocation3 + $0x38] sm:$0xff]
        %v3326 = vld [vmem:[#allocation3 + $0x40] sm:$0xff]
        %v3327 = vld [vmem:[#allocation3 + $0x48] sm:$0xff]
        %v3328 = vld [vmem:[#allocation3 + $0x50] sm:$0xff]
        %v3329 = vld [vmem:[#allocation3 + $0x58] sm:$0xff]
        %v3330 = vld [vmem:[#allocation3 + $0x60] sm:$0xff]
        %v3331 = vld [vmem:[#allocation3 + $0x68] sm:$0xff]
        %v3332 = vld [vmem:[#allocation3 + $0x70] sm:$0xff]
        %v3333 = vld [vmem:[#allocation3 + $0x78] sm:$0xff]
        %v3334 = vld [vmem:[#allocation3 + $0x80] sm:$0xff]
        %v3335 = vld [vmem:[#allocation3 + $0x88] sm:$0xff]
        %v3336 = vld [vmem:[#allocation3 + $0x90] sm:$0xff]
        %v3337 = vld [vmem:[#allocation3 + $0x98] sm:$0xff]
        %v3338 = vld [vmem:[#allocation3 + $0xa0] sm:$0xff]
        %v3339 = vld [vmem:[#allocation3 + $0xa8] sm:$0xff]
        %v3340 = vld [vmem:[#allocation3 + $0xb0] sm:$0xff]
        %v3341 = vld [vmem:[#allocation3 + $0xb8] sm:$0xff]
        %v3342 = vld [vmem:[#allocation3 + $0xc0] sm:$0xff]
        %v3343 = vld [vmem:[#allocation3 + $0xc8] sm:$0xff]
        %v3344 = vld [vmem:[#allocation3 + $0xd0] sm:$0xff]
        %v3345 = vld [vmem:[#allocation3 + $0xd8] sm:$0xff]
        %v3346 = vld [vmem:[#allocation3 + $0xe0] sm:$0xff]
        %v3347 = vld [vmem:[#allocation3 + $0xe8] sm:$0xff]
        %v3348 = vld [vmem:[#allocation3 + $0xf0] sm:$0xff]
        %v3349 = vld [vmem:[#allocation3 + $0xf8] sm:$0xff]
        %v3350 = vld [vmem:[#allocation3 + $0x100] sm:$0xff]
        %v3351 = vld [vmem:[#allocation3 + $0x108] sm:$0xff]
        %v3352 = vld [vmem:[#allocation3 + $0x110] sm:$0xff]
        %v3353 = vld [vmem:[#allocation3 + $0x118] sm:$0xff]
        %v3354 = vld [vmem:[#allocation3 + $0x120] sm:$0xff]
        %v3355 = vld [vmem:[#allocation3 + $0x128] sm:$0xff]
        %v3356 = vld [vmem:[#allocation3 + $0x130] sm:$0xff]
        %v3357 = vld [vmem:[#allocation3 + $0x138] sm:$0xff]
        %v3358 = vld [vmem:[#allocation3 + $0x140] sm:$0xff]
        %v3359 = vld [vmem:[#allocation3 + $0x148] sm:$0xff]
        %v3360 = vld [vmem:[#allocation3 + $0x150] sm:$0xff]
        %v3361 = vld [vmem:[#allocation3 + $0x158] sm:$0xff]
        %v3362 = vld [vmem:[#allocation3 + $0x160] sm:$0xff]
        %v3363 = vld [vmem:[#allocation3 + $0x168] sm:$0xff]
        %v3364 = vld [vmem:[#allocation3 + $0x170] sm:$0xff]
        %v3365 = vld [vmem:[#allocation3 + $0x178] sm:$0xff]
        %v3366 = vld [vmem:[%s1] sm:$0xf]
        %v3367 = vld [vmem:[%s1 + $0x4] sm:$0xf]
        %v3368 = vld [vmem:[%s1 + $0x8] sm:$0xf]
        %v3369 = vld [vmem:[%s1 + $0xc] sm:$0xf]
        %v3370 = vld [vmem:[%s1 + $0x10] sm:$0xf]
        %v3371 = vld [vmem:[%s1 + $0x14] sm:$0xf]
        %v3372 = vld [vmem:[%s1 + $0x18] sm:$0xf]
        %v3373 = vld [vmem:[%s1 + $0x1c] sm:$0xf]
        %v3374 = vld [vmem:[%s1 + $0x20] sm:$0xf]
        %v3375 = vld [vmem:[%s1 + $0x24] sm:$0xf]
        %v3376 = vld [vmem:[%s1 + $0x28] sm:$0xf]
        %v3377 = vld [vmem:[%s1 + $0x2c] sm:$0xf]
        %v3378 = vld [vmem:[%s1 + $0x30] sm:$0xf]
        %v3379 = vld [vmem:[%s1 + $0x34] sm:$0xf]
        %v3380 = vld [vmem:[%s1 + $0x38] sm:$0xf]
        %v3381 = vld [vmem:[%s1 + $0x3c] sm:$0xf]
        %v3382 = vld [vmem:[%s1 + $0x40] sm:$0xf]
        %v3383 = vld [vmem:[%s1 + $0x44] sm:$0xf]
        %v3384 = vld [vmem:[%s1 + $0x48] sm:$0xf]
        %v3385 = vld [vmem:[%s1 + $0x4c] sm:$0xf]
        %v3386 = vld [vmem:[%s1 + $0x50] sm:$0xf]
        %v3387 = vld [vmem:[%s1 + $0x54] sm:$0xf]
        %v3388 = vld [vmem:[%s1 + $0x58] sm:$0xf]
        %v3389 = vld [vmem:[%s1 + $0x5c] sm:$0xf]
        %v3390 = vld [vmem:[%s1 + $0x60] sm:$0xf]
        %v3391 = vld [vmem:[%s1 + $0x64] sm:$0xf]
        %v3392 = vld [vmem:[%s1 + $0x68] sm:$0xf]
        %v3393 = vld [vmem:[%s1 + $0x6c] sm:$0xf]
        %v3394 = vld [vmem:[%s1 + $0x70] sm:$0xf]
        %v3395 = vld [vmem:[%s1 + $0x74] sm:$0xf]
        %v3396 = vld [vmem:[%s1 + $0x78] sm:$0xf]
        %v3397 = vld [vmem:[%s1 + $0x7c] sm:$0xf]
        %v3398 = vld [vmem:[%s1 + $0x80] sm:$0xf]
        %v3399 = vld [vmem:[%s1 + $0x84] sm:$0xf]
        %v3400 = vld [vmem:[%s1 + $0x88] sm:$0xf]
        %v3401 = vld [vmem:[%s1 + $0x8c] sm:$0xf]
        %v3402 = vld [vmem:[%s188] sm:$0xff]
        %v3403 = vld [vmem:[%s188 + $0x8] sm:$0xff]
        %v3404 = vld [vmem:[%s188 + $0x10] sm:$0xff]
        %v3405 = vld [vmem:[%s188 + $0x18] sm:$0xff]
        %v3406 = vld [vmem:[%s188 + $0x20] sm:$0xff]
        %v3407 = vld [vmem:[%s188 + $0x28] sm:$0xff]
        %v3408 = vld [vmem:[%s188 + $0x30] sm:$0xff]
        %v3409 = vld [vmem:[%s188 + $0x38] sm:$0xff]
        %v3410 = vld [vmem:[%s188 + $0x40] sm:$0xff]
        %v3411 = vld [vmem:[%s188 + $0x48] sm:$0xff]
        %v3412 = vld [vmem:[%s188 + $0x50] sm:$0xff]
        %v3413 = vld [vmem:[%s188 + $0x58] sm:$0xff]
        %v3414 = vld [vmem:[%s188 + $0x60] sm:$0xff]
        %v3415 = vld [vmem:[%s188 + $0x68] sm:$0xff]
        %v3416 = vld [vmem:[%s188 + $0x70] sm:$0xff]
        %v3417 = vld [vmem:[%s188 + $0x78] sm:$0xff]
        %v3418 = vld [vmem:[%s188 + $0x80] sm:$0xff]
        %v3419 = vld [vmem:[%s188 + $0x88] sm:$0xff]
        %v3420 = vld [vmem:[%s188 + $0x90] sm:$0xff]
        %v3421 = vld [vmem:[%s188 + $0x98] sm:$0xff]
        %v3422 = vld [vmem:[%s188 + $0xa0] sm:$0xff]
        %v3423 = vld [vmem:[%s188 + $0xa8] sm:$0xff]
        %v3424 = vld [vmem:[%s188 + $0xb0] sm:$0xff]
        %v3425 = vld [vmem:[%s188 + $0xb8] sm:$0xff]
        %v3426 = vld [vmem:[%s188 + $0xc0] sm:$0xff]
        %v3427 = vld [vmem:[%s188 + $0xc8] sm:$0xff]
        %v3428 = vld [vmem:[%s188 + $0xd0] sm:$0xff]
        %v3429 = vld [vmem:[%s188 + $0xd8] sm:$0xff]
        %v3430 = vld [vmem:[%s188 + $0xe0] sm:$0xff]
        %v3431 = vld [vmem:[%s188 + $0xe8] sm:$0xff]
        %v3432 = vld [vmem:[%s188 + $0xf0] sm:$0xff]
        %v3433 = vld [vmem:[%s188 + $0xf8] sm:$0xff]
        %v3470 = vunpack.c.l.b16 %v3366
        %v3471 = vunpack.c.l.b16 %v3367
        %v3472 = vunpack.c.l.b16 %v3368
        %v3473 = vunpack.c.l.b16 %v3369
        %v3474 = vunpack.c.l.b16 %v3370
        %v3475 = vunpack.c.l.b16 %v3371
        %v3476 = vunpack.c.l.b16 %v3372
        %v3477 = vunpack.c.l.b16 %v3373
        %v3478 = vunpack.c.l.b16 %v3374
        %v3479 = vunpack.c.l.b16 %v3375
        %v3480 = vunpack.c.l.b16 %v3376
        %v3481 = vunpack.c.l.b16 %v3377
        %v3482 = vunpack.c.l.b16 %v3378
        %v3483 = vunpack.c.l.b16 %v3379
        %v3484 = vunpack.c.l.b16 %v3380
        %v3485 = vunpack.c.l.b16 %v3381
        %v3486 = vunpack.c.l.b16 %v3382
        %v3487 = vunpack.c.l.b16 %v3383
        %v3488 = vunpack.c.l.b16 %v3384
        %v3489 = vunpack.c.l.b16 %v3385
        %v3490 = vunpack.c.l.b16 %v3386
        %v3491 = vunpack.c.l.b16 %v3387
        %v3492 = vunpack.c.l.b16 %v3388
        %v3493 = vunpack.c.l.b16 %v3389
        %v3494 = vunpack.c.l.b16 %v3390
        %v3495 = vunpack.c.l.b16 %v3391
        %v3496 = vunpack.c.l.b16 %v3392
        %v3497 = vunpack.c.l.b16 %v3393
        %v3498 = vunpack.c.l.b16 %v3394
        %v3499 = vunpack.c.l.b16 %v3395
        %v3500 = vunpack.c.l.b16 %v3396
        %v3501 = vunpack.c.l.b16 %v3397
        %v3502 = vunpack.c.l.b16 %v3398
        %v3503 = vunpack.c.l.b16 %v3399
        %v3504 = vunpack.c.l.b16 %v3400
        %v3505 = vunpack.c.l.b16 %v3401
        %v3506 = vpack.c.b16 %v3471, %v3470
        %v3507 = vpack.c.b16 %v3473, %v3472
        %v3508 = vpack.c.b16 %v3475, %v3474
        %v3509 = vpack.c.b16 %v3477, %v3476
        %v3510 = vpack.c.b16 %v3479, %v3478
        %v3511 = vpack.c.b16 %v3481, %v3480
        %v3512 = vpack.c.b16 %v3483, %v3482
        %v3513 = vpack.c.b16 %v3485, %v3484
        %v3514 = vpack.c.b16 %v3487, %v3486
        %v3515 = vpack.c.b16 %v3489, %v3488
        %v3516 = vpack.c.b16 %v3491, %v3490
        %v3517 = vpack.c.b16 %v3493, %v3492
        %v3518 = vpack.c.b16 %v3495, %v3494
        %v3519 = vpack.c.b16 %v3497, %v3496
        %v3520 = vpack.c.b16 %v3499, %v3498
        %v3521 = vpack.c.b16 %v3501, %v3500
        %v3522 = vpack.c.b16 %v3503, %v3502
        %v3523 = vpack.c.b16 %v3505, %v3504
        %v3543 = vsel %vm847, %v3320, 0
        %v3546 = vsel %vm847, %v3323, 0
        %v3549 = vsel %vm847, %v3326, 0
        %v3552 = vsel %vm847, %v3329, 0
        %v3555 = vsel %vm847, %v3332, 0
        %v3558 = vsel %vm847, %v3335, 0
        %v3561 = vsel %vm847, %v3338, 0
        %v3564 = vsel %vm847, %v3341, 0
        %v3567 = vsel %vm847, %v3344, 0
        %v3570 = vsel %vm847, %v3347, 0
        %v3573 = vsel %vm847, %v3350, 0
        %v3576 = vsel %vm847, %v3353, 0
        %v3579 = vsel %vm847, %v3356, 0
        %v3582 = vsel %vm847, %v3359, 0
        %v3585 = vsel %vm847, %v3362, 0
        %v3588 = vsel %vm847, %v3365, 0
        %3590 = vmatprep.subr.bf16.mxu0 0
        %3591 = vmatpush1.bf16.msra.mxu0 %v3506
        %3592 = vmatprep.subr.bf16.mxu0 0
        %3593 = vmatpush1.bf16.msra.mxu0 %v3507
        %3594 = vmatprep.subr.bf16.mxu0 0
        %3595 = vmatpush1.bf16.msra.mxu0 %v3508
        %3596 = vmatprep.subr.bf16.mxu0 0
        %3597 = vmatpush1.bf16.msra.mxu0 %v3509
        %3598 = vmatprep.subr.bf16.mxu0 0
        %3599 = vmatpush1.bf16.msra.mxu0 %v3510
        %3600 = vmatprep.subr.bf16.mxu0 0
        %3601 = vmatpush1.bf16.msra.mxu0 %v3511
        %3602 = vmatprep.subr.bf16.mxu0 0
        %3603 = vmatpush1.bf16.msra.mxu0 %v3512
        %3604 = vmatprep.subr.bf16.mxu0 0
        %3605 = vmatpush1.bf16.msra.mxu0 %v3513
        %3606 = vmatprep.subr.bf16.mxu0 0
        %3607 = vmatpush1.bf16.msra.mxu0 %v3514
        %3608 = vmatprep.subr.bf16.mxu0 0
        %3609 = vmatpush1.bf16.msra.mxu0 %v3515
        %3610 = vmatprep.subr.bf16.mxu0 0
        %3611 = vmatpush1.bf16.msra.mxu0 %v3516
        %3612 = vmatprep.subr.bf16.mxu0 0
        %3613 = vmatpush1.bf16.msra.mxu0 %v3517
        %3614 = vmatprep.subr.bf16.mxu0 0
        %3615 = vmatpush1.bf16.msra.mxu0 %v3518
        %3616 = vmatprep.subr.bf16.mxu0 0
        %3617 = vmatpush1.bf16.msra.mxu0 %v3519
        %3618 = vmatprep.subr.bf16.mxu0 0
        %3619 = vmatpush1.bf16.msra.mxu0 %v3520
        %3620 = vmatprep.subr.bf16.mxu0 0
        %3621 = vmatpush1.bf16.msra.mxu0 %v3521
        %3622 = vmatprep.mubr.bf16.mxu0 %v3319
        %3623 = vmatmul.mubr.bf16.gmra.mrb[0].mxu0 %v3318
        %v3624 = vpop.f32.mrb[0].mxu0
        %v3625 = vadd.f32 %v3402, %v3624
        %v3626 = vpop.f32.mrb[0].mxu0
        %v3627 = vpop.f32.mrb[0].mxu0
        %v3628 = vadd.f32 %v3403, %v3627
        %v3629 = vpop.f32.mrb[0].mxu0
        %3630 = vmatprep.mubr.bf16.mxu0 %v3322
        %3631 = vmatmul.mubr.bf16.gmra.mrb[0].mxu0 %v3321
        %v3632 = vpop.f32.mrb[0].mxu0
        %v3633 = vadd.f32 %v3404, %v3632
        %v3634 = vpop.f32.mrb[0].mxu0
        %v3635 = vpop.f32.mrb[0].mxu0
        %v3636 = vadd.f32 %v3405, %v3635
        %v3637 = vpop.f32.mrb[0].mxu0
        %3638 = vmatprep.mubr.bf16.mxu0 %v3325
        %3639 = vmatmul.mubr.bf16.gmra.mrb[0].mxu0 %v3324
        %v3640 = vpop.f32.mrb[0].mxu0
        %v3641 = vadd.f32 %v3406, %v3640
        %v3642 = vpop.f32.mrb[0].mxu0
        %v3643 = vpop.f32.mrb[0].mxu0
        %v3644 = vadd.f32 %v3407, %v3643
        %v3645 = vpop.f32.mrb[0].mxu0
        %3646 = vmatprep.mubr.bf16.mxu0 %v3328
        %3647 = vmatmul.mubr.bf16.gmra.mrb[0].mxu0 %v3327
        %v3648 = vpop.f32.mrb[0].mxu0
        %v3649 = vadd.f32 %v3408, %v3648
        %v3650 = vpop.f32.mrb[0].mxu0
        %v3651 = vpop.f32.mrb[0].mxu0
        %v3652 = vadd.f32 %v3409, %v3651
        %v3653 = vpop.f32.mrb[0].mxu0
        %3654 = vmatprep.mubr.bf16.mxu0 %v3331
        %3655 = vmatmul.mubr.bf16.gmra.mrb[0].mxu0 %v3330
        %v3656 = vpop.f32.mrb[0].mxu0
        %v3657 = vadd.f32 %v3410, %v3656
        %v3658 = vpop.f32.mrb[0].mxu0
        %v3659 = vpop.f32.mrb[0].mxu0
        %v3660 = vadd.f32 %v3411, %v3659
        %v3661 = vpop.f32.mrb[0].mxu0
        %3662 = vmatprep.mubr.bf16.mxu0 %v3334
        %3663 = vmatmul.mubr.bf16.gmra.mrb[0].mxu0 %v3333
        %v3664 = vpop.f32.mrb[0].mxu0
        %v3665 = vadd.f32 %v3412, %v3664
        %v3666 = vpop.f32.mrb[0].mxu0
        %v3667 = vpop.f32.mrb[0].mxu0
        %v3668 = vadd.f32 %v3413, %v3667
        %v3669 = vpop.f32.mrb[0].mxu0
        %3670 = vmatprep.mubr.bf16.mxu0 %v3337
        %3671 = vmatmul.mubr.bf16.gmra.mrb[0].mxu0 %v3336
        %v3672 = vpop.f32.mrb[0].mxu0
        %v3673 = vadd.f32 %v3414, %v3672
        %v3674 = vpop.f32.mrb[0].mxu0
        %v3675 = vpop.f32.mrb[0].mxu0
        %v3676 = vadd.f32 %v3415, %v3675
        %v3677 = vpop.f32.mrb[0].mxu0
        %3678 = vmatprep.mubr.bf16.mxu0 %v3340
        %3679 = vmatmul.mubr.bf16.gmra.mrb[0].mxu0 %v3339
        %v3680 = vpop.f32.mrb[0].mxu0
        %v3681 = vadd.f32 %v3416, %v3680
        %v3682 = vpop.f32.mrb[0].mxu0
        %v3683 = vpop.f32.mrb[0].mxu0
        %v3684 = vadd.f32 %v3417, %v3683
        %v3685 = vpop.f32.mrb[0].mxu0
        %3686 = vmatprep.mubr.bf16.mxu0 %v3343
        %3687 = vmatmul.mubr.bf16.gmra.mrb[0].mxu0 %v3342
        %v3688 = vpop.f32.mrb[0].mxu0
        %v3689 = vadd.f32 %v3418, %v3688
        %v3690 = vpop.f32.mrb[0].mxu0
        %v3691 = vpop.f32.mrb[0].mxu0
        %v3692 = vadd.f32 %v3419, %v3691
        %v3693 = vpop.f32.mrb[0].mxu0
        %3694 = vmatprep.mubr.bf16.mxu0 %v3346
        %3695 = vmatmul.mubr.bf16.gmra.mrb[0].mxu0 %v3345
        %v3696 = vpop.f32.mrb[0].mxu0
        %v3697 = vadd.f32 %v3420, %v3696
        %v3698 = vpop.f32.mrb[0].mxu0
        %v3699 = vpop.f32.mrb[0].mxu0
        %v3700 = vadd.f32 %v3421, %v3699
        %v3701 = vpop.f32.mrb[0].mxu0
        %3702 = vmatprep.mubr.bf16.mxu0 %v3349
        %3703 = vmatmul.mubr.bf16.gmra.mrb[0].mxu0 %v3348
        %v3704 = vpop.f32.mrb[0].mxu0
        %v3705 = vadd.f32 %v3422, %v3704
        %v3706 = vpop.f32.mrb[0].mxu0
        %v3707 = vpop.f32.mrb[0].mxu0
        %v3708 = vadd.f32 %v3423, %v3707
        %v3709 = vpop.f32.mrb[0].mxu0
        %3710 = vmatprep.mubr.bf16.mxu0 %v3352
        %3711 = vmatmul.mubr.bf16.gmra.mrb[0].mxu0 %v3351
        %v3712 = vpop.f32.mrb[0].mxu0
        %v3713 = vadd.f32 %v3424, %v3712
        %v3714 = vpop.f32.mrb[0].mxu0
        %v3715 = vpop.f32.mrb[0].mxu0
        %v3716 = vadd.f32 %v3425, %v3715
        %v3717 = vpop.f32.mrb[0].mxu0
        %3718 = vmatprep.mubr.bf16.mxu0 %v3355
        %3719 = vmatmul.mubr.bf16.gmra.mrb[0].mxu0 %v3354
        %v3720 = vpop.f32.mrb[0].mxu0
        %v3721 = vadd.f32 %v3426, %v3720
        %v3722 = vpop.f32.mrb[0].mxu0
        %v3723 = vpop.f32.mrb[0].mxu0
        %v3724 = vadd.f32 %v3427, %v3723
        %v3725 = vpop.f32.mrb[0].mxu0
        %3726 = vmatprep.mubr.bf16.mxu0 %v3358
        %3727 = vmatmul.mubr.bf16.gmra.mrb[0].mxu0 %v3357
        %v3728 = vpop.f32.mrb[0].mxu0
        %v3729 = vadd.f32 %v3428, %v3728
        %v3730 = vpop.f32.mrb[0].mxu0
        %v3731 = vpop.f32.mrb[0].mxu0
        %v3732 = vadd.f32 %v3429, %v3731
        %v3733 = vpop.f32.mrb[0].mxu0
        %3734 = vmatprep.mubr.bf16.mxu0 %v3361
        %3735 = vmatmul.mubr.bf16.gmra.mrb[0].mxu0 %v3360
        %v3736 = vpop.f32.mrb[0].mxu0
        %v3737 = vadd.f32 %v3430, %v3736
        %v3738 = vpop.f32.mrb[0].mxu0
        %v3739 = vpop.f32.mrb[0].mxu0
        %v3740 = vadd.f32 %v3431, %v3739
        %v3741 = vpop.f32.mrb[0].mxu0
        %3742 = vmatprep.mubr.bf16.mxu0 %v3364
        %3743 = vmatmul.mubr.bf16.gmra.mrb[0].mxu0 %v3363
        %v3744 = vpop.f32.mrb[0].mxu0
        %v3745 = vadd.f32 %v3432, %v3744
        %v3746 = vpop.f32.mrb[0].mxu0
        %v3747 = vpop.f32.mrb[0].mxu0
        %v3748 = vadd.f32 %v3433, %v3747
        %v3749 = vpop.f32.mrb[0].mxu0
        %3750 = vdwg.mxu0
        %3751 = vmatprep.subr.bf16.mxu0 0
        %3752 = vmatpush1.bf16.msra.mxu0 %v3522
        %3753 = vmatprep.subr.bf16.mxu0 0
        %3754 = vmatpush1.bf16.msra.mxu0 %v3523
        %3755 = vmatprep.subr.bf16.mxu0 0
        %3756 = vmatpush1.bf16.msra.mxu0 0
        %3757 = vmatprep.subr.bf16.mxu0 0
        %3758 = vmatpush1.bf16.msra.mxu0 0
        %3759 = vmatprep.subr.bf16.mxu0 0
        %3760 = vmatpush1.bf16.msra.mxu0 0
        %3761 = vmatprep.subr.bf16.mxu0 0
        %3762 = vmatpush1.bf16.msra.mxu0 0
        %3763 = vmatprep.subr.bf16.mxu0 0
        %3764 = vmatpush1.bf16.msra.mxu0 0
        %3765 = vmatprep.subr.bf16.mxu0 0
        %3766 = vmatpush1.bf16.msra.mxu0 0
        %3767 = vmatprep.subr.bf16.mxu0 0
        %3768 = vmatpush1.bf16.msra.mxu0 0
        %3769 = vmatprep.subr.bf16.mxu0 0
        %3770 = vmatpush1.bf16.msra.mxu0 0
        %3771 = vmatprep.subr.bf16.mxu0 0
        %3772 = vmatpush1.bf16.msra.mxu0 0
        %3773 = vmatprep.subr.bf16.mxu0 0
        %3774 = vmatpush1.bf16.msra.mxu0 0
        %3775 = vmatprep.subr.bf16.mxu0 0
        %3776 = vmatpush1.bf16.msra.mxu0 0
        %3777 = vmatprep.subr.bf16.mxu0 0
        %3778 = vmatpush1.bf16.msra.mxu0 0
        %3779 = vmatprep.subr.bf16.mxu0 0
        %3780 = vmatpush1.bf16.msra.mxu0 0
        %3781 = vmatprep.subr.bf16.mxu0 0
        %3782 = vmatpush1.bf16.msra.mxu0 0
        %3783 = vmatprep.mubr.bf16.mxu0 0
        %3784 = vmatmul.mubr.bf16.gmra.mrb[0].mxu0 %v3543
        %v3785 = vpop.f32.mrb[0].mxu0
        %v3786 = vadd.f32 %v3625, %v3785
        %v3787 = vpop.f32.mrb[0].mxu0
        %v3788 = vpop.f32.mrb[0].mxu0
        %v3789 = vadd.f32 %v3628, %v3788
        %v3790 = vpop.f32.mrb[0].mxu0
        %3791 = vmatprep.mubr.bf16.mxu0 0
        %3792 = vmatmul.mubr.bf16.gmra.mrb[0].mxu0 %v3546
        %v3793 = vpop.f32.mrb[0].mxu0
        %v3794 = vadd.f32 %v3633, %v3793
        %v3795 = vpop.f32.mrb[0].mxu0
        %v3796 = vpop.f32.mrb[0].mxu0
        %v3797 = vadd.f32 %v3636, %v3796
        %v3798 = vpop.f32.mrb[0].mxu0
        %3799 = vmatprep.mubr.bf16.mxu0 0
        %3800 = vmatmul.mubr.bf16.gmra.mrb[0].mxu0 %v3549
        %v3801 = vpop.f32.mrb[0].mxu0
        %v3802 = vadd.f32 %v3641, %v3801
        %v3803 = vpop.f32.mrb[0].mxu0
        %v3804 = vpop.f32.mrb[0].mxu0
        %v3805 = vadd.f32 %v3644, %v3804
        %v3806 = vpop.f32.mrb[0].mxu0
        %3807 = vmatprep.mubr.bf16.mxu0 0
        %3808 = vmatmul.mubr.bf16.gmra.mrb[0].mxu0 %v3552
        %v3809 = vpop.f32.mrb[0].mxu0
        %v3810 = vadd.f32 %v3649, %v3809
        %v3811 = vpop.f32.mrb[0].mxu0
        %v3812 = vpop.f32.mrb[0].mxu0
        %v3813 = vadd.f32 %v3652, %v3812
        %v3814 = vpop.f32.mrb[0].mxu0
        %3815 = vmatprep.mubr.bf16.mxu0 0
        %3816 = vmatmul.mubr.bf16.gmra.mrb[0].mxu0 %v3555
        %v3817 = vpop.f32.mrb[0].mxu0
        %v3818 = vadd.f32 %v3657, %v3817
        %v3819 = vpop.f32.mrb[0].mxu0
        %v3820 = vpop.f32.mrb[0].mxu0
        %v3821 = vadd.f32 %v3660, %v3820
        %v3822 = vpop.f32.mrb[0].mxu0
        %3823 = vmatprep.mubr.bf16.mxu0 0
        %3824 = vmatmul.mubr.bf16.gmra.mrb[0].mxu0 %v3558
        %v3825 = vpop.f32.mrb[0].mxu0
        %v3826 = vadd.f32 %v3665, %v3825
        %v3827 = vpop.f32.mrb[0].mxu0
        %v3828 = vpop.f32.mrb[0].mxu0
        %v3829 = vadd.f32 %v3668, %v3828
        %v3830 = vpop.f32.mrb[0].mxu0
        %3831 = vmatprep.mubr.bf16.mxu0 0
        %3832 = vmatmul.mubr.bf16.gmra.mrb[0].mxu0 %v3561
        %v3833 = vpop.f32.mrb[0].mxu0
        %v3834 = vadd.f32 %v3673, %v3833
        %v3835 = vpop.f32.mrb[0].mxu0
        %v3836 = vpop.f32.mrb[0].mxu0
        %v3837 = vadd.f32 %v3676, %v3836
        %v3838 = vpop.f32.mrb[0].mxu0
        %3839 = vmatprep.mubr.bf16.mxu0 0
        %3840 = vmatmul.mubr.bf16.gmra.mrb[0].mxu0 %v3564
        %v3841 = vpop.f32.mrb[0].mxu0
        %v3842 = vadd.f32 %v3681, %v3841
        %v3843 = vpop.f32.mrb[0].mxu0
        %v3844 = vpop.f32.mrb[0].mxu0
        %v3845 = vadd.f32 %v3684, %v3844
        %v3846 = vpop.f32.mrb[0].mxu0
        %3847 = vmatprep.mubr.bf16.mxu0 0
        %3848 = vmatmul.mubr.bf16.gmra.mrb[0].mxu0 %v3567
        %v3849 = vpop.f32.mrb[0].mxu0
        %v3850 = vadd.f32 %v3689, %v3849
        %v3851 = vpop.f32.mrb[0].mxu0
        %v3852 = vpop.f32.mrb[0].mxu0
        %v3853 = vadd.f32 %v3692, %v3852
        %v3854 = vpop.f32.mrb[0].mxu0
        %3855 = vmatprep.mubr.bf16.mxu0 0
        %3856 = vmatmul.mubr.bf16.gmra.mrb[0].mxu0 %v3570
        %v3857 = vpop.f32.mrb[0].mxu0
        %v3858 = vadd.f32 %v3697, %v3857
        %v3859 = vpop.f32.mrb[0].mxu0
        %v3860 = vpop.f32.mrb[0].mxu0
        %v3861 = vadd.f32 %v3700, %v3860
        %v3862 = vpop.f32.mrb[0].mxu0
        %3863 = vmatprep.mubr.bf16.mxu0 0
        %3864 = vmatmul.mubr.bf16.gmra.mrb[0].mxu0 %v3573
        %v3865 = vpop.f32.mrb[0].mxu0
        %v3866 = vadd.f32 %v3705, %v3865
        %v3867 = vpop.f32.mrb[0].mxu0
        %v3868 = vpop.f32.mrb[0].mxu0
        %v3869 = vadd.f32 %v3708, %v3868
        %v3870 = vpop.f32.mrb[0].mxu0
        %3871 = vmatprep.mubr.bf16.mxu0 0
        %3872 = vmatmul.mubr.bf16.gmra.mrb[0].mxu0 %v3576
        %v3873 = vpop.f32.mrb[0].mxu0
        %v3874 = vadd.f32 %v3713, %v3873
        %v3875 = vpop.f32.mrb[0].mxu0
        %v3876 = vpop.f32.mrb[0].mxu0
        %v3877 = vadd.f32 %v3716, %v3876
        %v3878 = vpop.f32.mrb[0].mxu0
        %3879 = vmatprep.mubr.bf16.mxu0 0
        %3880 = vmatmul.mubr.bf16.gmra.mrb[0].mxu0 %v3579
        %v3881 = vpop.f32.mrb[0].mxu0
        %v3882 = vadd.f32 %v3721, %v3881
        %v3883 = vpop.f32.mrb[0].mxu0
        %v3884 = vpop.f32.mrb[0].mxu0
        %v3885 = vadd.f32 %v3724, %v3884
        %v3886 = vpop.f32.mrb[0].mxu0
        %3887 = vmatprep.mubr.bf16.mxu0 0
        %3888 = vmatmul.mubr.bf16.gmra.mrb[0].mxu0 %v3582
        %v3889 = vpop.f32.mrb[0].mxu0
        %v3890 = vadd.f32 %v3729, %v3889
        %v3891 = vpop.f32.mrb[0].mxu0
        %v3892 = vpop.f32.mrb[0].mxu0
        %v3893 = vadd.f32 %v3732, %v3892
        %v3894 = vpop.f32.mrb[0].mxu0
        %3895 = vmatprep.mubr.bf16.mxu0 0
        %3896 = vmatmul.mubr.bf16.gmra.mrb[0].mxu0 %v3585
        %v3897 = vpop.f32.mrb[0].mxu0
        %v3898 = vadd.f32 %v3737, %v3897
        %v3899 = vpop.f32.mrb[0].mxu0
        %v3900 = vpop.f32.mrb[0].mxu0
        %v3901 = vadd.f32 %v3740, %v3900
        %v3902 = vpop.f32.mrb[0].mxu0
        %3903 = vmatprep.mubr.bf16.mxu0 0
        %3904 = vmatmul.mubr.bf16.gmra.mrb[0].mxu0 %v3588
        %v3905 = vpop.f32.mrb[0].mxu0
        %v3906 = vadd.f32 %v3745, %v3905
        %v3907 = vpop.f32.mrb[0].mxu0
        %v3908 = vpop.f32.mrb[0].mxu0
        %v3909 = vadd.f32 %v3748, %v3908
        %v3910 = vpop.f32.mrb[0].mxu0
        %3911 = vdwg.mxu0
        %3912 = vst.msk [vmem:[%s178] sm:$0xff] %vm847, %v3786
        %3913 = vst.msk [vmem:[%s178 + $0x8] sm:$0xff] %vm847, %v3789
        %3914 = vst.msk [vmem:[%s178 + $0x10] sm:$0xff] %vm847, %v3794
        %3915 = vst.msk [vmem:[%s178 + $0x18] sm:$0xff] %vm847, %v3797
        %3916 = vst.msk [vmem:[%s178 + $0x20] sm:$0xff] %vm847, %v3802
        %3917 = vst.msk [vmem:[%s178 + $0x28] sm:$0xff] %vm847, %v3805
        %3918 = vst.msk [vmem:[%s178 + $0x30] sm:$0xff] %vm847, %v3810
        %3919 = vst.msk [vmem:[%s178 + $0x38] sm:$0xff] %vm847, %v3813
        %3920 = vst.msk [vmem:[%s178 + $0x40] sm:$0xff] %vm847, %v3818
        %3921 = vst.msk [vmem:[%s178 + $0x48] sm:$0xff] %vm847, %v3821
        %3922 = vst.msk [vmem:[%s178 + $0x50] sm:$0xff] %vm847, %v3826
        %3923 = vst.msk [vmem:[%s178 + $0x58] sm:$0xff] %vm847, %v3829
        %3924 = vst.msk [vmem:[%s178 + $0x60] sm:$0xff] %vm847, %v3834
        %3925 = vst.msk [vmem:[%s178 + $0x68] sm:$0xff] %vm847, %v3837
        %3926 = vst.msk [vmem:[%s178 + $0x70] sm:$0xff] %vm847, %v3842
        %3927 = vst.msk [vmem:[%s178 + $0x78] sm:$0xff] %vm847, %v3845
        %3928 = vst.msk [vmem:[%s178 + $0x80] sm:$0xff] %vm847, %v3850
        %3929 = vst.msk [vmem:[%s178 + $0x88] sm:$0xff] %vm847, %v3853
        %3930 = vst.msk [vmem:[%s178 + $0x90] sm:$0xff] %vm847, %v3858
        %3931 = vst.msk [vmem:[%s178 + $0x98] sm:$0xff] %vm847, %v3861
        %3932 = vst.msk [vmem:[%s178 + $0xa0] sm:$0xff] %vm847, %v3866
        %3933 = vst.msk [vmem:[%s178 + $0xa8] sm:$0xff] %vm847, %v3869
        %3934 = vst.msk [vmem:[%s178 + $0xb0] sm:$0xff] %vm847, %v3874
        %3935 = vst.msk [vmem:[%s178 + $0xb8] sm:$0xff] %vm847, %v3877
        %3936 = vst.msk [vmem:[%s178 + $0xc0] sm:$0xff] %vm847, %v3882
        %3937 = vst.msk [vmem:[%s178 + $0xc8] sm:$0xff] %vm847, %v3885
        %3938 = vst.msk [vmem:[%s178 + $0xd0] sm:$0xff] %vm847, %v3890
        %3939 = vst.msk [vmem:[%s178 + $0xd8] sm:$0xff] %vm847, %v3893
        %3940 = vst.msk [vmem:[%s178 + $0xe0] sm:$0xff] %vm847, %v3898
        %3941 = vst.msk [vmem:[%s178 + $0xe8] sm:$0xff] %vm847, %v3901
        %3942 = vst.msk [vmem:[%s178 + $0xf0] sm:$0xff] %vm847, %v3906
        %3943 = vst.msk [vmem:[%s178 + $0xf8] sm:$0xff] %vm847, %v3909
        %s3944 = sand.u32 %s98, 1
        %s3945 = scalar_lea.sflag [#allocation5], %s3944
        %s3946 = sand.u32 %s98, 1
        %s3947 = smul.addr %s3946, 256
        %s3948 = scalar_lea.vmem [#allocation4], %s3947
        // Predicated region
        $region33: #{wide_basic_forward.3} parent=31 // pred_check
          %p3949 = pneg %p108
        $region34: #{wide_basic_forward.3} parent=31 // pred_check_branch
          %3951 = sbr.rel (%p3949) target = $region36
        $region35: #{wide_basic_forward.3} parent=31 // pred_region
          %s3953 = ssub.s32 4096, 4096
          %3954 = vsyncadd %s3945, %s3953
          %s3955 = smul.addr %s17, 32
          %s3956 = smul.addr %s3955, 128
          %s3957 = scalar_lea.hbm %s3, %s3956
          %s3958 = sshll.u32 %s3948, 4
          %s3959 = int_to_ptr.vmem [resolvable:$true] %s3958
          %3964 = dma.vmem_to_hbm [thread:$0]  %s3959, 4096, %s3957, %s3945, 128, 128, 8
        $region36: #{wide_basic_forward.3} parent=31 // pred_fallthru
          _
      $region32: #{wide_basic_forward.3} parent=5 // pred_fallthru
        _
      %p3965 = scmp.le.s32.totalorder 2, %s12
      // Predicated region
      $region37: #{wide_basic_forward.3} parent=5 // pred_check
        %p3966 = pneg %p3965
      $region38: #{wide_basic_forward.3} parent=5 // pred_check_branch
        %3968 = sbr.rel (%p3966) target = $region40
      $region39: #{wide_basic_forward.3} parent=5 // pred_region
        %s3969 = ssub.s32 %s12, 2
        // Predicated region
        $region41: #{wide_basic_forward.3} parent=39 // pred_check
          %p3970 = pneg %p114
        $region42: #{wide_basic_forward.3} parent=39 // pred_check_branch
          %3972 = sbr.rel (%p3970) target = $region44
        $region43: #{wide_basic_forward.3} parent=39 // pred_region
          %s3973 = sand.u32 %s99, 1
          %s3974 = scalar_lea.sflag [#allocation5], %s3973
          %s3975 = sand.u32 %s99, 1
          %s3976 = smul.addr %s3975, 256
          %s3977 = scalar_lea.vmem [#allocation4], %s3976
          %3978 = dma.done %s3974, 4096
        $region44: #{wide_basic_forward.3} parent=39 // pred_fallthru
          _
      $region40: #{wide_basic_forward.3} parent=5 // pred_fallthru
        _
    $region6: #{wide_basic_forward.3} parent=1 // loop_footer
      %s16 = sadd.s32 1, %s12
    $region7: #{wide_basic_forward.3} parent=1 // loop_footer_branch
      %11 = sbr.rel target = $region3
    $region8: #{wide_basic_forward.3} parent=1 // loop_exit
      _
    %3979 = vsyncpa [#allocation5], 1
    %s3980 = scalar_lea.sflag [#allocation5], 1
    %3981 = vsyncpa %s3980, 1

// kernel: wide_basic_forward.2
$region0: #{wide_basic_forward.2}
  #allocation0 [shape = 'u32[]', space=smem, size = 0x4, offset = 0x4, fixed_abs, tag = 'smem constant byte address 0x4 - core index']
  #allocation1 [shape = 'u32[144,128]{1,0:T(1,128)}', space=vmem, size = 0x12000, scoped, tag = 'internal scratch']
  #allocation2 [shape = 'bf16[18,18,32]{2,1,0:T(8,128)(2,1)}', space=vmem, size = 0x1b000, scoped, tag = 'scratch operand']
  #allocation3 [shape = 'bf16[16,16,288]{2,1,0:T(16,128)(2,1)}', space=vmem, size = 0x30000, scoped, tag = 'scratch operand']
  %s0 = inlined_call_operand.hbm [shape: f32[2,16,16,32], index: 0, kind: input, shape index: {}]
  %s1 = inlined_call_operand.vmem [shape: f32[1,32], index: 1, kind: input, shape index: {}]
  %s2 = inlined_call_operand.vmem [shape: f32[1,32], index: 2, kind: input, shape index: {}]
  %s3 = inlined_call_operand.vmem [shape: bf16[288,32], index: 3, kind: input, shape index: {}]
  %s4 = inlined_call_operand.vmem [shape: f32[1,32], index: 4, kind: input, shape index: {}]
  %s5 = inlined_call_operand.vmem [shape: f32[1,32], index: 5, kind: input, shape index: {}]
  %s6 = inlined_call_operand.vmem [shape: bf16[2,16,16,32], index: 6, kind: output, shape index: {}]
  %s7 = sld [smem:[#allocation0]]
  $region61: #{wide_basic_forward.2} parent=0
    _
  %s9 = ssub.s32 1, %s7
  %s10 = scalar_select 0, %s9, %s7
  $region1: #{wide_basic_forward.2} parent=0
    #allocation4 [shape = 'u8[262144]{0}', space=vmem, size = 0x40000, scoped, tag = 'input window, operand 0']
    #allocation5 [shape = 's32[2]{0}', space=sflag, size = 0x8, scoped, tag = 'scoped memory for wide_basic_forward.2']
    %11 = vsyncpa [#allocation5], 0
    %s12 = scalar_lea.sflag [#allocation5], 1
    %13 = vsyncpa %s12, 0
    loop: start=0, step=1, limit=4
    $region2: #{wide_basic_forward.2} parent=1 // loop_pre_header
      _
    $region3: #{wide_basic_forward.2} parent=1 // loop_header
      %s15 = sphi 0, %s19
      %p16 = scmp.ge.s32.totalorder %s15, 4
      %s25 = sphi 0, %s27
      %s28 = sphi 0, %s25
      %s29 = sphi 0, %s28
      %s45 = sphi 0, %s29
      %s49 = sphi 0, %s49
      %s51 = sphi 0, %s49
      %s52 = sphi 0, %s51
      %s66 = sphi 0, %s52
      %s70 = sphi 0, %s70
      %s72 = sphi 0, %s70
      %s73 = sphi 0, %s72
      %s87 = sphi 0, %s73
      %s91 = sphi 0, %s91
      %s93 = sphi 0, %s91
      %s94 = sphi 0, %s93
      %s108 = sphi 0, %s94
      %s112 = sphi 0, %s112
      %s114 = sphi 0, %s112
      %s115 = sphi 0, %s114
      %s129 = sphi 0, %s115
      %s133 = sphi 0, %s133
      %s135 = sphi 0, %s133
      %s136 = sphi 0, %s135
      %s150 = sphi 0, %s136
      %s156 = sphi 0, %s158
      %s159 = sphi 0, %s156
      %s160 = sphi 0, %s159
      %s176 = sphi 0, %s160
    $region4: #{wide_basic_forward.2} parent=1 // loop_header_branch
      %18 = sbr.rel (%p16) target = $region8
    $region5: #{wide_basic_forward.2} parent=1 // loop_body
      %s20 = ssub.s32 %s15, 1
      %s21 = ssub.s32 %s15, 2
      %s22 = sadd.s32 %s15, 1
      %s23 = ssub.s32 %s15, %s22
      %p24 = scmp.eq.s32.totalorder %s23, 0
      %s26 = sadd.s32 %s25, 1
      %s27 = scalar_select %p24, %s25, %s26
      %p30 = pneg %p24
      %p31 = scmp.eq.s32.totalorder %s15, 1
      %p32 = por %p30, %p31
      %p33 = scmp.ne.s32.totalorder %s25, %s28
      %p34 = scmp.eq.s32.totalorder %s15, 0
      %p35 = por %p33, %p34
      %p36 = scmp.ne.s32.totalorder %s25, %s28
      %p37 = scmp.eq.s32.totalorder %s20, 1
      %p38 = por %p36, %p37
      %p39 = scmp.ne.s32.totalorder %s28, %s29
      %p40 = scmp.eq.s32.totalorder %s20, 0
      %p41 = por %p39, %p40
      %p42 = scmp.ne.s32.totalorder %s28, %s29
      %p43 = scmp.eq.s32.totalorder %s21, 1
      %p44 = por %p42, %p43
      %p46 = scmp.ne.s32.totalorder %s29, %s45
      %p47 = scmp.eq.s32.totalorder %s21, 0
      %p48 = por %p46, %p47
      %s50 = sadd.s32 %s49, 1
      %p53 = scmp.eq.s32.totalorder %s15, 1
      %p54 = scmp.ne.s32.totalorder %s49, %s51
      %p55 = scmp.eq.s32.totalorder %s15, 0
      %p56 = por %p54, %p55
      %p57 = scmp.ne.s32.totalorder %s49, %s51
      %p58 = scmp.eq.s32.totalorder %s20, 1
      %p59 = por %p57, %p58
      %p60 = scmp.ne.s32.totalorder %s51, %s52
      %p61 = scmp.eq.s32.totalorder %s20, 0
      %p62 = por %p60, %p61
      %p63 = scmp.ne.s32.totalorder %s51, %s52
      %p64 = scmp.eq.s32.totalorder %s21, 1
      %p65 = por %p63, %p64
      %p67 = scmp.ne.s32.totalorder %s52, %s66
      %p68 = scmp.eq.s32.totalorder %s21, 0
      %p69 = por %p67, %p68
      %s71 = sadd.s32 %s70, 1
      %p74 = scmp.eq.s32.totalorder %s15, 1
      %p75 = scmp.ne.s32.totalorder %s70, %s72
      %p76 = scmp.eq.s32.totalorder %s15, 0
      %p77 = por %p75, %p76
      %p78 = scmp.ne.s32.totalorder %s70, %s72
      %p79 = scmp.eq.s32.totalorder %s20, 1
      %p80 = por %p78, %p79
      %p81 = scmp.ne.s32.totalorder %s72, %s73
      %p82 = scmp.eq.s32.totalorder %s20, 0
      %p83 = por %p81, %p82
      %p84 = scmp.ne.s32.totalorder %s72, %s73
      %p85 = scmp.eq.s32.totalorder %s21, 1
      %p86 = por %p84, %p85
      %p88 = scmp.ne.s32.totalorder %s73, %s87
      %p89 = scmp.eq.s32.totalorder %s21, 0
      %p90 = por %p88, %p89
      %s92 = sadd.s32 %s91, 1
      %p95 = scmp.eq.s32.totalorder %s15, 1
      %p96 = scmp.ne.s32.totalorder %s91, %s93
      %p97 = scmp.eq.s32.totalorder %s15, 0
      %p98 = por %p96, %p97
      %p99 = scmp.ne.s32.totalorder %s91, %s93
      %p100 = scmp.eq.s32.totalorder %s20, 1
      %p101 = por %p99, %p100
      %p102 = scmp.ne.s32.totalorder %s93, %s94
      %p103 = scmp.eq.s32.totalorder %s20, 0
      %p104 = por %p102, %p103
      %p105 = scmp.ne.s32.totalorder %s93, %s94
      %p106 = scmp.eq.s32.totalorder %s21, 1
      %p107 = por %p105, %p106
      %p109 = scmp.ne.s32.totalorder %s94, %s108
      %p110 = scmp.eq.s32.totalorder %s21, 0
      %p111 = por %p109, %p110
      %s113 = sadd.s32 %s112, 1
      %p116 = scmp.eq.s32.totalorder %s15, 1
      %p117 = scmp.ne.s32.totalorder %s112, %s114
      %p118 = scmp.eq.s32.totalorder %s15, 0
      %p119 = por %p117, %p118
      %p120 = scmp.ne.s32.totalorder %s112, %s114
      %p121 = scmp.eq.s32.totalorder %s20, 1
      %p122 = por %p120, %p121
      %p123 = scmp.ne.s32.totalorder %s114, %s115
      %p124 = scmp.eq.s32.totalorder %s20, 0
      %p125 = por %p123, %p124
      %p126 = scmp.ne.s32.totalorder %s114, %s115
      %p127 = scmp.eq.s32.totalorder %s21, 1
      %p128 = por %p126, %p127
      %p130 = scmp.ne.s32.totalorder %s115, %s129
      %p131 = scmp.eq.s32.totalorder %s21, 0
      %p132 = por %p130, %p131
      %s134 = sadd.s32 %s133, 1
      %p137 = scmp.eq.s32.totalorder %s15, 1
      %p138 = scmp.ne.s32.totalorder %s133, %s135
      %p139 = scmp.eq.s32.totalorder %s15, 0
      %p140 = por %p138, %p139
      %p141 = scmp.ne.s32.totalorder %s133, %s135
      %p142 = scmp.eq.s32.totalorder %s20, 1
      %p143 = por %p141, %p142
      %p144 = scmp.ne.s32.totalorder %s135, %s136
      %p145 = scmp.eq.s32.totalorder %s20, 0
      %p146 = por %p144, %p145
      %p147 = scmp.ne.s32.totalorder %s135, %s136
      %p148 = scmp.eq.s32.totalorder %s21, 1
      %p149 = por %p147, %p148
      %p151 = scmp.ne.s32.totalorder %s136, %s150
      %p152 = scmp.eq.s32.totalorder %s21, 0
      %p153 = por %p151, %p152
      %s154 = ssub.s32 %s15, %s22
      %p155 = scmp.eq.s32.totalorder %s154, 0
      %s157 = sadd.s32 %s156, 1
      %s158 = scalar_select %p155, %s156, %s157
      %p161 = pneg %p155
      %p162 = scmp.eq.s32.totalorder %s15, 1
      %p163 = por %p161, %p162
      %p164 = scmp.ne.s32.totalorder %s156, %s159
      %p165 = scmp.eq.s32.totalorder %s15, 0
      %p166 = por %p164, %p165
      %p167 = scmp.ne.s32.totalorder %s156, %s159
      %p168 = scmp.eq.s32.totalorder %s20, 1
      %p169 = por %p167, %p168
      %p170 = scmp.ne.s32.totalorder %s159, %s160
      %p171 = scmp.eq.s32.totalorder %s20, 0
      %p172 = por %p170, %p171
      %p173 = scmp.ne.s32.totalorder %s159, %s160
      %p174 = scmp.eq.s32.totalorder %s21, 1
      %p175 = por %p173, %p174
      %p177 = scmp.ne.s32.totalorder %s160, %s176
      %p178 = scmp.eq.s32.totalorder %s21, 0
      %p179 = por %p177, %p178
      %p180 = scmp.le.s32.totalorder 1, %s15
      %p181 = scmp.lt.s32.totalorder %s15, 3
      %p182 = pnand %p180, %p181
      %p183 = pneg %p182
      // Predicated region
      $region9: #{wide_basic_forward.2} parent=5 // pred_check
        _
      $region10: #{wide_basic_forward.2} parent=5 // pred_check_branch
        %185 = sbr.rel (%p182) target = $region12
      $region11: #{wide_basic_forward.2} parent=5 // pred_region
        %s186 = ssub.s32 %s15, 1
        // Predicated region
        $region13: #{wide_basic_forward.2} parent=11 // pred_check
          %p187 = pneg %p62
        $region14: #{wide_basic_forward.2} parent=11 // pred_check_branch
          %189 = sbr.rel (%p187) target = $region16
        $region15: #{wide_basic_forward.2} parent=11 // pred_region
          _
        $region16: #{wide_basic_forward.2} parent=11 // pred_fallthru
          _
        // Predicated region
        $region17: #{wide_basic_forward.2} parent=11 // pred_check
          %p190 = pneg %p83
        $region18: #{wide_basic_forward.2} parent=11 // pred_check_branch
          %192 = sbr.rel (%p190) target = $region20
        $region19: #{wide_basic_forward.2} parent=11 // pred_region
          _
        $region20: #{wide_basic_forward.2} parent=11 // pred_fallthru
          _
        // Predicated region
        $region21: #{wide_basic_forward.2} parent=11 // pred_check
          %p193 = pneg %p104
        $region22: #{wide_basic_forward.2} parent=11 // pred_check_branch
          %195 = sbr.rel (%p193) target = $region24
        $region23: #{wide_basic_forward.2} parent=11 // pred_region
          _
        $region24: #{wide_basic_forward.2} parent=11 // pred_fallthru
          _
        // Predicated region
        $region25: #{wide_basic_forward.2} parent=11 // pred_check
          %p196 = pneg %p125
        $region26: #{wide_basic_forward.2} parent=11 // pred_check_branch
          %198 = sbr.rel (%p196) target = $region28
        $region27: #{wide_basic_forward.2} parent=11 // pred_region
          _
        $region28: #{wide_basic_forward.2} parent=11 // pred_fallthru
          _
        // Predicated region
        $region29: #{wide_basic_forward.2} parent=11 // pred_check
          %p199 = pneg %p146
        $region30: #{wide_basic_forward.2} parent=11 // pred_check_branch
          %201 = sbr.rel (%p199) target = $region32
        $region31: #{wide_basic_forward.2} parent=11 // pred_region
          _
        $region32: #{wide_basic_forward.2} parent=11 // pred_fallthru
          _
      $region12: #{wide_basic_forward.2} parent=5 // pred_fallthru
        _
      %p202 = scmp.lt.s32.totalorder %s15, 2
      // Predicated region
      $region33: #{wide_basic_forward.2} parent=5 // pred_check
        %p203 = pneg %p202
      $region34: #{wide_basic_forward.2} parent=5 // pred_check_branch
        %205 = sbr.rel (%p203) target = $region36
      $region35: #{wide_basic_forward.2} parent=5 // pred_region
        // Predicated region
        $region37: #{wide_basic_forward.2} parent=35 // pred_check
          %p206 = pneg %p35
        $region38: #{wide_basic_forward.2} parent=35 // pred_check_branch
          %208 = sbr.rel (%p206) target = $region40
        $region39: #{wide_basic_forward.2} parent=35 // pred_region
          %s209 = sand.u32 %s25, 1
          %s210 = scalar_lea.sflag [#allocation5], %s209
          %s211 = sand.u32 %s25, 1
          %s212 = smul.addr %s211, 256
          %s213 = scalar_lea.vmem [#allocation4], %s212
          %s215 = ssub.s32 4096, 4096
          %216 = vsyncadd %s210, %s215
          %s217 = smul.addr %s15, 32
          %s218 = smul.addr %s217, 128
          %s219 = scalar_lea.hbm %s0, %s218
          %s220 = sshll.u32 %s213, 4
          %s221 = int_to_ptr.vmem [resolvable:$true] %s220
          %226 = dma.hbm_to_vmem [thread:$0]  %s219, 4096, %s221, %s210, 128, 128, 8
        $region40: #{wide_basic_forward.2} parent=35 // pred_fallthru
          _
      $region36: #{wide_basic_forward.2} parent=5 // pred_fallthru
        _
      %p227 = scmp.le.s32.totalorder 1, %s15
      %p228 = scmp.lt.s32.totalorder %s15, 3
      %p229 = pnand %p227, %p228
      %p230 = pneg %p229
      // Predicated region
      $region41: #{wide_basic_forward.2} parent=5 // pred_check
        _
      $region42: #{wide_basic_forward.2} parent=5 // pred_check_branch
        %232 = sbr.rel (%p229) target = $region44
      $region43: #{wide_basic_forward.2} parent=5 // pred_region
        %s233 = ssub.s32 %s15, 1
        %s234 = sand.u32 %s28, 1
        %s235 = scalar_lea.sflag [#allocation5], %s234
        %s236 = sand.u32 %s28, 1
        %s237 = smul.addr %s236, 256
        %s238 = scalar_lea.vmem [#allocation4], %s237
        // Predicated region
        $region45: #{wide_basic_forward.2} parent=43 // pred_check
          %p239 = pneg %p41
        $region46: #{wide_basic_forward.2} parent=43 // pred_check_branch
          %241 = sbr.rel (%p239) target = $region48
        $region47: #{wide_basic_forward.2} parent=43 // pred_region
          %242 = dma.done %s235, 4096
        $region48: #{wide_basic_forward.2} parent=43 // pred_fallthru
          _
        %s243 = sand.u32 %s28, 1
        %s244 = scalar_lea.sflag [#allocation5], %s243
        %s245 = sand.u32 %s28, 1
        %s246 = smul.addr %s245, 256
        %s247 = scalar_lea.vmem [#allocation4], %s246
        %p248 = pneg %p41
        %p249 = pneg %p38
        %p250 = pneg %p62
        %p251 = pneg %p59
        %p252 = pneg %p83
        %p253 = pneg %p80
        %p254 = pneg %p104
        %p255 = pneg %p101
        %p256 = pneg %p125
        %p257 = pneg %p122
        %p258 = pneg %p146
        %p259 = pneg %p143
        %p260 = pneg %p172
        %p261 = pneg %p169
        %p262 = scmp.lt.s32.totalorder %s20, 1
        %s263 = scalar_select %p262, %s20, 1
        %s264 = smul.addr %s263, 32
        %s265 = smul.addr %s264, 4
        %s266 = scalar_lea.vmem %s6, %s265
        %p267 = scmp.lt.s32.totalorder %s20, 1
        %s268 = scalar_select %p267, %s20, 1
        %s269 = smul.addr %s268, 32
        %s270 = smul.addr %s269, 4
        %s271 = scalar_lea.vmem %s6, %s270
        %vm273 = vcmask 257024
        %274 = vst.msk [vmem:[#allocation2] sm:$0xf] %vm273, 0
        %275 = vst.msk [vmem:[#allocation2 + $0x4] sm:$0xf] %vm273, 0
        %vm276 = vcmask 253952
        %277 = vst.msk [vmem:[#allocation2 + $0x8] sm:$0x1] %vm276, 0
        %278 = vst.msk [vmem:[#allocation2 + $0xc] sm:$0xf] %vm273, 0
        %279 = vst.msk [vmem:[#allocation2 + $0x10] sm:$0xf] %vm273, 0
        %280 = vst.msk [vmem:[#allocation2 + $0x14] sm:$0x1] %vm276, 0
        %281 = vst.msk [vmem:[#allocation2 + $0x18] sm:$0xf] %vm273, 0
        %282 = vst.msk [vmem:[#allocation2 + $0x1c] sm:$0xf] %vm273, 0
        %283 = vst.msk [vmem:[#allocation2 + $0x20] sm:$0x1] %vm276, 0
        %284 = vst.msk [vmem:[#allocation2 + $0x24] sm:$0xf] %vm273, 0
        %285 = vst.msk [vmem:[#allocation2 + $0x28] sm:$0xf] %vm273, 0
        %286 = vst.msk [vmem:[#allocation2 + $0x2c] sm:$0x1] %vm276, 0
        %287 = vst.msk [vmem:[#allocation2 + $0x30] sm:$0xf] %vm273, 0
        %288 = vst.msk [vmem:[#allocation2 + $0x34] sm:$0xf] %vm273, 0
        %289 = vst.msk [vmem:[#allocation2 + $0x38] sm:$0x1] %vm276, 0
        %290 = vst.msk [vmem:[#allocation2 + $0x3c] sm:$0xf] %vm273, 0
        %291 = vst.msk [vmem:[#allocation2 + $0x40] sm:$0xf] %vm273, 0
        %292 = vst.msk [vmem:[#allocation2 + $0x44] sm:$0x1] %vm276, 0
        %293 = vst.msk [vmem:[#allocation2 + $0x48] sm:$0xf] %vm273, 0
        %294 = vst.msk [vmem:[#allocation2 + $0x4c] sm:$0xf] %vm273, 0
        %295 = vst.msk [vmem:[#allocation2 + $0x50] sm:$0x1] %vm276, 0
        %296 = vst.msk [vmem:[#allocation2 + $0x54] sm:$0xf] %vm273, 0
        %297 = vst.msk [vmem:[#allocation2 + $0x58] sm:$0xf] %vm273, 0
        %298 = vst.msk [vmem:[#allocation2 + $0x5c] sm:$0x1] %vm276, 0
        %299 = vst.msk [vmem:[#allocation2 + $0x60] sm:$0xf] %vm273, 0
        %300 = vst.msk [vmem:[#allocation2 + $0x64] sm:$0xf] %vm273, 0
        %301 = vst.msk [vmem:[#allocation2 + $0x68] sm:$0x1] %vm276, 0
        %302 = vst.msk [vmem:[#allocation2 + $0x6c] sm:$0xf] %vm273, 0
        %303 = vst.msk [vmem:[#allocation2 + $0x70] sm:$0xf] %vm273, 0
        %304 = vst.msk [vmem:[#allocation2 + $0x74] sm:$0x1] %vm276, 0
        %305 = vst.msk [vmem:[#allocation2 + $0x78] sm:$0xf] %vm273, 0
        %306 = vst.msk [vmem:[#allocation2 + $0x7c] sm:$0xf] %vm273, 0
        %307 = vst.msk [vmem:[#allocation2 + $0x80] sm:$0x1] %vm276, 0
        %308 = vst.msk [vmem:[#allocation2 + $0x84] sm:$0xf] %vm273, 0
        %309 = vst.msk [vmem:[#allocation2 + $0x88] sm:$0xf] %vm273, 0
        %310 = vst.msk [vmem:[#allocation2 + $0x8c] sm:$0x1] %vm276, 0
        %311 = vst.msk [vmem:[#allocation2 + $0x90] sm:$0xf] %vm273, 0
        %312 = vst.msk [vmem:[#allocation2 + $0x94] sm:$0xf] %vm273, 0
        %313 = vst.msk [vmem:[#allocation2 + $0x98] sm:$0x1] %vm276, 0
        %314 = vst.msk [vmem:[#allocation2 + $0x9c] sm:$0xf] %vm273, 0
        %315 = vst.msk [vmem:[#allocation2 + $0xa0] sm:$0xf] %vm273, 0
        %316 = vst.msk [vmem:[#allocation2 + $0xa4] sm:$0x1] %vm276, 0
        %317 = vst.msk [vmem:[#allocation2 + $0xa8] sm:$0xf] %vm273, 0
        %318 = vst.msk [vmem:[#allocation2 + $0xac] sm:$0xf] %vm273, 0
        %319 = vst.msk [vmem:[#allocation2 + $0xb0] sm:$0x1] %vm276, 0
        %320 = vst.msk [vmem:[#allocation2 + $0xb4] sm:$0xf] %vm273, 0
        %321 = vst.msk [vmem:[#allocation2 + $0xb8] sm:$0xf] %vm273, 0
        %322 = vst.msk [vmem:[#allocation2 + $0xbc] sm:$0x1] %vm276, 0
        %323 = vst.msk [vmem:[#allocation2 + $0xc0] sm:$0xf] %vm273, 0
        %324 = vst.msk [vmem:[#allocation2 + $0xc4] sm:$0xf] %vm273, 0
        %325 = vst.msk [vmem:[#allocation2 + $0xc8] sm:$0x1] %vm276, 0
        %326 = vst.msk [vmem:[#allocation2 + $0xcc] sm:$0xf] %vm273, 0
        %327 = vst.msk [vmem:[#allocation2 + $0xd0] sm:$0xf] %vm273, 0
        %328 = vst.msk [vmem:[#allocation2 + $0xd4] sm:$0x1] %vm276, 0
        %v329 = vld [vmem:[%s238] sm:$0xff]
        %v330 = vld [vmem:[%s238 + $0x8] sm:$0xff]
        %v331 = vld [vmem:[%s238 + $0x10] sm:$0xff]
        %v332 = vld [vmem:[%s238 + $0x18] sm:$0xff]
        %v333 = vld [vmem:[%s238 + $0x20] sm:$0xff]
        %v334 = vld [vmem:[%s238 + $0x28] sm:$0xff]
        %v335 = vld [vmem:[%s238 + $0x30] sm:$0xff]
        %v336 = vld [vmem:[%s238 + $0x38] sm:$0xff]
        %v337 = vld [vmem:[%s238 + $0x40] sm:$0xff]
        %v338 = vld [vmem:[%s238 + $0x48] sm:$0xff]
        %v339 = vld [vmem:[%s238 + $0x50] sm:$0xff]
        %v340 = vld [vmem:[%s238 + $0x58] sm:$0xff]
        %v341 = vld [vmem:[%s238 + $0x60] sm:$0xff]
        %v342 = vld [vmem:[%s238 + $0x68] sm:$0xff]
        %v343 = vld [vmem:[%s238 + $0x70] sm:$0xff]
        %v344 = vld [vmem:[%s238 + $0x78] sm:$0xff]
        %v345 = vld [vmem:[%s238 + $0x80] sm:$0xff]
        %v346 = vld [vmem:[%s238 + $0x88] sm:$0xff]
        %v347 = vld [vmem:[%s238 + $0x90] sm:$0xff]
        %v348 = vld [vmem:[%s238 + $0x98] sm:$0xff]
        %v349 = vld [vmem:[%s238 + $0xa0] sm:$0xff]
        %v350 = vld [vmem:[%s238 + $0xa8] sm:$0xff]
        %v351 = vld [vmem:[%s238 + $0xb0] sm:$0xff]
        %v352 = vld [vmem:[%s238 + $0xb8] sm:$0xff]
        %v353 = vld [vmem:[%s238 + $0xc0] sm:$0xff]
        %v354 = vld [vmem:[%s238 + $0xc8] sm:$0xff]
        %v355 = vld [vmem:[%s238 + $0xd0] sm:$0xff]
        %v356 = vld [vmem:[%s238 + $0xd8] sm:$0xff]
        %v357 = vld [vmem:[%s238 + $0xe0] sm:$0xff]
        %v358 = vld [vmem:[%s238 + $0xe8] sm:$0xff]
        %v359 = vld [vmem:[%s238 + $0xf0] sm:$0xff]
        %v360 = vld [vmem:[%s238 + $0xf8] sm:$0xff]
        %v361 = vld [vmem:[%s1] sm:$0x1]
        %v363 = vlaneseq
        %v364 = vshrl.u32 %v363, 7
        %v365 = vsub.s32 0, %v364
        %v366 = vrot.slane %v361, %v365
        %v368 = vmul.f32 %v329, %v366
        %v369 = vmul.f32 %v330, %v366
        %v370 = vmul.f32 %v331, %v366
        %v371 = vmul.f32 %v332, %v366
        %v372 = vmul.f32 %v333, %v366
        %v373 = vmul.f32 %v334, %v366
        %v374 = vmul.f32 %v335, %v366
        %v375 = vmul.f32 %v336, %v366
        %v376 = vmul.f32 %v337, %v366
        %v377 = vmul.f32 %v338, %v366
        %v378 = vmul.f32 %v339, %v366
        %v379 = vmul.f32 %v340, %v366
        %v380 = vmul.f32 %v341, %v366
        %v381 = vmul.f32 %v342, %v366
        %v382 = vmul.f32 %v343, %v366
        %v383 = vmul.f32 %v344, %v366
        %v384 = vmul.f32 %v345, %v366
        %v385 = vmul.f32 %v346, %v366
        %v386 = vmul.f32 %v347, %v366
        %v387 = vmul.f32 %v348, %v366
        %v388 = vmul.f32 %v349, %v366
        %v389 = vmul.f32 %v350, %v366
        %v390 = vmul.f32 %v351, %v366
        %v391 = vmul.f32 %v352, %v366
        %v392 = vmul.f32 %v353, %v366
        %v393 = vmul.f32 %v354, %v366
        %v394 = vmul.f32 %v355, %v366
        %v395 = vmul.f32 %v356, %v366
        %v396 = vmul.f32 %v357, %v366
        %v397 = vmul.f32 %v358, %v366
        %v398 = vmul.f32 %v359, %v366
        %v399 = vmul.f32 %v360, %v366
        %v400 = vld [vmem:[%s2] sm:$0x1]
        %v402 = vlaneseq
        %v403 = vshrl.u32 %v402, 7
        %v404 = vsub.s32 0, %v403
        %v405 = vrot.slane %v400, %v404
        %v407 = vadd.f32 %v368, %v405
        %v408 = vadd.f32 %v369, %v405
        %v409 = vadd.f32 %v370, %v405
        %v410 = vadd.f32 %v371, %v405
        %v411 = vadd.f32 %v372, %v405
        %v412 = vadd.f32 %v373, %v405
        %v413 = vadd.f32 %v374, %v405
        %v414 = vadd.f32 %v375, %v405
        %v415 = vadd.f32 %v376, %v405
        %v416 = vadd.f32 %v377, %v405
        %v417 = vadd.f32 %v378, %v405
        %v418 = vadd.f32 %v379, %v405
        %v419 = vadd.f32 %v380, %v405
        %v420 = vadd.f32 %v381, %v405
        %v421 = vadd.f32 %v382, %v405
        %v422 = vadd.f32 %v383, %v405
        %v423 = vadd.f32 %v384, %v405
        %v424 = vadd.f32 %v385, %v405
        %v425 = vadd.f32 %v386, %v405
        %v426 = vadd.f32 %v387, %v405
        %v427 = vadd.f32 %v388, %v405
        %v428 = vadd.f32 %v389, %v405
        %v429 = vadd.f32 %v390, %v405
        %v430 = vadd.f32 %v391, %v405
        %v431 = vadd.f32 %v392, %v405
        %v432 = vadd.f32 %v393, %v405
        %v433 = vadd.f32 %v394, %v405
        %v434 = vadd.f32 %v395, %v405
        %v435 = vadd.f32 %v396, %v405
        %v436 = vadd.f32 %v397, %v405
        %v437 = vadd.f32 %v398, %v405
        %v438 = vadd.f32 %v399, %v405
        %v439 = vmax.f32 %v407, 0.0
        %v440 = vmax.f32 %v408, 0.0
        %v441 = vmax.f32 %v409, 0.0
        %v442 = vmax.f32 %v410, 0.0
        %v443 = vmax.f32 %v411, 0.0
        %v444 = vmax.f32 %v412, 0.0
        %v445 = vmax.f32 %v413, 0.0
        %v446 = vmax.f32 %v414, 0.0
        %v447 = vmax.f32 %v415, 0.0
        %v448 = vmax.f32 %v416, 0.0
        %v449 = vmax.f32 %v417, 0.0
        %v450 = vmax.f32 %v418, 0.0
        %v451 = vmax.f32 %v419, 0.0
        %v452 = vmax.f32 %v420, 0.0
        %v453 = vmax.f32 %v421, 0.0
        %v454 = vmax.f32 %v422, 0.0
        %v455 = vmax.f32 %v423, 0.0
        %v456 = vmax.f32 %v424, 0.0
        %v457 = vmax.f32 %v425, 0.0
        %v458 = vmax.f32 %v426, 0.0
        %v459 = vmax.f32 %v427, 0.0
        %v460 = vmax.f32 %v428, 0.0
        %v461 = vmax.f32 %v429, 0.0
        %v462 = vmax.f32 %v430, 0.0
        %v463 = vmax.f32 %v431, 0.0
        %v464 = vmax.f32 %v432, 0.0
        %v465 = vmax.f32 %v433, 0.0
        %v466 = vmax.f32 %v434, 0.0
        %v467 = vmax.f32 %v435, 0.0
        %v468 = vmax.f32 %v436, 0.0
        %v469 = vmax.f32 %v437, 0.0
        %v470 = vmax.f32 %v438, 0.0
        %v471 = vpack.c.bf16 %v440, %v439
        %v472 = vpack.c.bf16 %v442, %v441
        %v473 = vpack.c.bf16 %v444, %v443
        %v474 = vpack.c.bf16 %v446, %v445
        %v475 = vpack.c.bf16 %v448, %v447
        %v476 = vpack.c.bf16 %v450, %v449
        %v477 = vpack.c.bf16 %v452, %v451
        %v478 = vpack.c.bf16 %v454, %v453
        %v479 = vpack.c.bf16 %v456, %v455
        %v480 = vpack.c.bf16 %v458, %v457
        %v481 = vpack.c.bf16 %v460, %v459
        %v482 = vpack.c.bf16 %v462, %v461
        %v483 = vpack.c.bf16 %v464, %v463
        %v484 = vpack.c.bf16 %v466, %v465
        %v485 = vpack.c.bf16 %v468, %v467
        %v486 = vpack.c.bf16 %v470, %v469
        %v503 = vunpack.c.l.b16 %v471
        %v504 = vunpack.c.h.b16 %v471
        %v505 = vunpack.c.l.b16 %v472
        %v506 = vunpack.c.h.b16 %v472
        %v507 = vunpack.c.l.b16 %v473
        %v508 = vunpack.c.h.b16 %v473
        %v509 = vunpack.c.l.b16 %v474
        %v510 = vunpack.c.h.b16 %v474
        %v511 = vunpack.c.l.b16 %v475
        %v512 = vunpack.c.h.b16 %v475
        %v513 = vunpack.c.l.b16 %v476
        %v514 = vunpack.c.h.b16 %v476
        %v515 = vunpack.c.l.b16 %v477
        %v516 = vunpack.c.h.b16 %v477
        %v517 = vunpack.c.l.b16 %v478
        %v518 = vunpack.c.h.b16 %v478
        %v519 = vunpack.c.l.b16 %v479
        %v520 = vunpack.c.h.b16 %v479
        %v521 = vunpack.c.l.b16 %v480
        %v522 = vunpack.c.h.b16 %v480
        %v523 = vunpack.c.l.b16 %v481
        %v524 = vunpack.c.h.b16 %v481
        %v525 = vunpack.c.l.b16 %v482
        %v526 = vunpack.c.h.b16 %v482
        %v527 = vunpack.c.l.b16 %v483
        %v528 = vunpack.c.h.b16 %v483
        %v529 = vunpack.c.l.b16 %v484
        %v530 = vunpack.c.h.b16 %v484
        %v531 = vunpack.c.l.b16 %v485
        %v532 = vunpack.c.h.b16 %v485
        %v533 = vunpack.c.l.b16 %v486
        %v534 = vunpack.c.h.b16 %v486
        %v535 = vpack.c.b16 %v503, %v503
        %v536 = vpack.c.b16 %v504, %v504
        %v537 = vpack.c.b16 %v505, %v505
        %v538 = vpack.c.b16 %v506, %v506
        %v539 = vpack.c.b16 %v507, %v507
        %v540 = vpack.c.b16 %v508, %v508
        %v541 = vpack.c.b16 %v509, %v509
        %v542 = vpack.c.b16 %v510, %v510
        %v543 = vpack.c.b16 %v511, %v511
        %v544 = vpack.c.b16 %v512, %v512
        %v545 = vpack.c.b16 %v513, %v513
        %v546 = vpack.c.b16 %v514, %v514
        %v547 = vpack.c.b16 %v515, %v515
        %v548 = vpack.c.b16 %v516, %v516
        %v549 = vpack.c.b16 %v517, %v517
        %v550 = vpack.c.b16 %v518, %v518
        %v551 = vpack.c.b16 %v519, %v519
        %v552 = vpack.c.b16 %v520, %v520
        %v553 = vpack.c.b16 %v521, %v521
        %v554 = vpack.c.b16 %v522, %v522
        %v555 = vpack.c.b16 %v523, %v523
        %v556 = vpack.c.b16 %v524, %v524
        %v557 = vpack.c.b16 %v525, %v525
        %v558 = vpack.c.b16 %v526, %v526
        %v559 = vpack.c.b16 %v527, %v527
        %v560 = vpack.c.b16 %v528, %v528
        %v561 = vpack.c.b16 %v529, %v529
        %v562 = vpack.c.b16 %v530, %v530
        %v563 = vpack.c.b16 %v531, %v531
        %v564 = vpack.c.b16 %v532, %v532
        %v565 = vpack.c.b16 %v533, %v533
        %v566 = vpack.c.b16 %v534, %v534
        %vm567 = vsmask.f32 256
        %vm568 = vsmask.f32 4368
        %vm569 = vmor %vm567, %vm568
        %v571 = vshrl.u32 %v535, 16
        %v573 = vrot.slane %v571, 7
        %v574 = vshll.u32 %v535, 16
        %v576 = vor.u32 %v573, %v574
        %v577 = vrot.slane %v573, 4
        %v579 = vshrl.u32 %v536, 16
        %v581 = vrot.slane %v579, 7
        %v582 = vshll.u32 %v536, 16
        %v584 = vor.u32 %v581, %v582
        %v585 = vsel %vm569, %v577, %v584
        %v586 = vrot.slane %v581, 4
        %v588 = vshrl.u32 %v537, 16
        %v590 = vrot.slane %v588, 7
        %v591 = vshll.u32 %v537, 16
        %v593 = vor.u32 %v590, %v591
        %v594 = vrot.slane %v590, 4
        %v596 = vshrl.u32 %v538, 16
        %v598 = vrot.slane %v596, 7
        %v599 = vshll.u32 %v538, 16
        %v601 = vor.u32 %v598, %v599
        %v602 = vsel %vm569, %v594, %v601
        %v603 = vrot.slane %v598, 4
        %v605 = vshrl.u32 %v539, 16
        %v607 = vrot.slane %v605, 7
        %v608 = vshll.u32 %v539, 16
        %v610 = vor.u32 %v607, %v608
        %v611 = vrot.slane %v607, 4
        %v613 = vshrl.u32 %v540, 16
        %v615 = vrot.slane %v613, 7
        %v616 = vshll.u32 %v540, 16
        %v618 = vor.u32 %v615, %v616
        %v619 = vsel %vm569, %v611, %v618
        %v620 = vrot.slane %v615, 4
        %v622 = vshrl.u32 %v541, 16
        %v624 = vrot.slane %v622, 7
        %v625 = vshll.u32 %v541, 16
        %v627 = vor.u32 %v624, %v625
        %v628 = vrot.slane %v624, 4
        %v630 = vshrl.u32 %v542, 16
        %v632 = vrot.slane %v630, 7
        %v633 = vshll.u32 %v542, 16
        %v635 = vor.u32 %v632, %v633
        %v636 = vsel %vm569, %v628, %v635
        %v637 = vrot.slane %v632, 4
        %v639 = vshrl.u32 %v543, 16
        %v641 = vrot.slane %v639, 7
        %v642 = vshll.u32 %v543, 16
        %v644 = vor.u32 %v641, %v642
        %v645 = vrot.slane %v641, 4
        %v647 = vshrl.u32 %v544, 16
        %v649 = vrot.slane %v647, 7
        %v650 = vshll.u32 %v544, 16
        %v652 = vor.u32 %v649, %v650
        %v653 = vsel %vm569, %v645, %v652
        %v654 = vrot.slane %v649, 4
        %v656 = vshrl.u32 %v545, 16
        %v658 = vrot.slane %v656, 7
        %v659 = vshll.u32 %v545, 16
        %v661 = vor.u32 %v658, %v659
        %v662 = vrot.slane %v658, 4
        %v664 = vshrl.u32 %v546, 16
        %v666 = vrot.slane %v664, 7
        %v667 = vshll.u32 %v546, 16
        %v669 = vor.u32 %v666, %v667
        %v670 = vsel %vm569, %v662, %v669
        %v671 = vrot.slane %v666, 4
        %v673 = vshrl.u32 %v547, 16
        %v675 = vrot.slane %v673, 7
        %v676 = vshll.u32 %v547, 16
        %v678 = vor.u32 %v675, %v676
        %v679 = vrot.slane %v675, 4
        %v681 = vshrl.u32 %v548, 16
        %v683 = vrot.slane %v681, 7
        %v684 = vshll.u32 %v548, 16
        %v686 = vor.u32 %v683, %v684
        %v687 = vsel %vm569, %v679, %v686
        %v688 = vrot.slane %v683, 4
        %v690 = vshrl.u32 %v549, 16
        %v692 = vrot.slane %v690, 7
        %v693 = vshll.u32 %v549, 16
        %v695 = vor.u32 %v692, %v693
        %v696 = vrot.slane %v692, 4
        %v698 = vshrl.u32 %v550, 16
        %v700 = vrot.slane %v698, 7
        %v701 = vshll.u32 %v550, 16
        %v703 = vor.u32 %v700, %v701
        %v704 = vsel %vm569, %v696, %v703
        %v705 = vrot.slane %v700, 4
        %v707 = vshrl.u32 %v551, 16
        %v709 = vrot.slane %v707, 7
        %v710 = vshll.u32 %v551, 16
        %v712 = vor.u32 %v709, %v710
        %v713 = vrot.slane %v709, 4
        %v715 = vshrl.u32 %v552, 16
        %v717 = vrot.slane %v715, 7
        %v718 = vshll.u32 %v552, 16
        %v720 = vor.u32 %v717, %v718
        %v721 = vsel %vm569, %v713, %v720
        %v722 = vrot.slane %v717, 4
        %v724 = vshrl.u32 %v553, 16
        %v726 = vrot.slane %v724, 7
        %v727 = vshll.u32 %v553, 16
        %v729 = vor.u32 %v726, %v727
        %v730 = vrot.slane %v726, 4
        %v732 = vshrl.u32 %v554, 16
        %v734 = vrot.slane %v732, 7
        %v735 = vshll.u32 %v554, 16
        %v737 = vor.u32 %v734, %v735
        %v738 = vsel %vm569, %v730, %v737
        %v739 = vrot.slane %v734, 4
        %v741 = vshrl.u32 %v555, 16
        %v743 = vrot.slane %v741, 7
        %v744 = vshll.u32 %v555, 16
        %v746 = vor.u32 %v743, %v744
        %v747 = vrot.slane %v743, 4
        %v749 = vshrl.u32 %v556, 16
        %v751 = vrot.slane %v749, 7
        %v752 = vshll.u32 %v556, 16
        %v754 = vor.u32 %v751, %v752
        %v755 = vsel %vm569, %v747, %v754
        %v756 = vrot.slane %v751, 4
        %v758 = vshrl.u32 %v557, 16
        %v760 = vrot.slane %v758, 7
        %v761 = vshll.u32 %v557, 16
        %v763 = vor.u32 %v760, %v761
        %v764 = vrot.slane %v760, 4
        %v766 = vshrl.u32 %v558, 16
        %v768 = vrot.slane %v766, 7
        %v769 = vshll.u32 %v558, 16
        %v771 = vor.u32 %v768, %v769
        %v772 = vsel %vm569, %v764, %v771
        %v773 = vrot.slane %v768, 4
        %v775 = vshrl.u32 %v559, 16
        %v777 = vrot.slane %v775, 7
        %v778 = vshll.u32 %v559, 16
        %v780 = vor.u32 %v777, %v778
        %v781 = vrot.slane %v777, 4
        %v783 = vshrl.u32 %v560, 16
        %v785 = vrot.slane %v783, 7
        %v786 = vshll.u32 %v560, 16
        %v788 = vor.u32 %v785, %v786
        %v789 = vsel %vm569, %v781, %v788
        %v790 = vrot.slane %v785, 4
        %v792 = vshrl.u32 %v561, 16
        %v794 = vrot.slane %v792, 7
        %v795 = vshll.u32 %v561, 16
        %v797 = vor.u32 %v794, %v795
        %v798 = vrot.slane %v794, 4
        %v800 = vshrl.u32 %v562, 16
        %v802 = vrot.slane %v800, 7
        %v803 = vshll.u32 %v562, 16
        %v805 = vor.u32 %v802, %v803
        %v806 = vsel %vm569, %v798, %v805
        %v807 = vrot.slane %v802, 4
        %v809 = vshrl.u32 %v563, 16
        %v811 = vrot.slane %v809, 7
        %v812 = vshll.u32 %v563, 16
        %v814 = vor.u32 %v811, %v812
        %v815 = vrot.slane %v811, 4
        %v817 = vshrl.u32 %v564, 16
        %v819 = vrot.slane %v817, 7
        %v820 = vshll.u32 %v564, 16
        %v822 = vor.u32 %v819, %v820
        %v823 = vsel %vm569, %v815, %v822
        %v824 = vrot.slane %v819, 4
        %v826 = vshrl.u32 %v565, 16
        %v828 = vrot.slane %v826, 7
        %v829 = vshll.u32 %v565, 16
        %v831 = vor.u32 %v828, %v829
        %v832 = vrot.slane %v828, 4
        %v834 = vshrl.u32 %v566, 16
        %v836 = vrot.slane %v834, 7
        %v837 = vshll.u32 %v566, 16
        %v839 = vor.u32 %v836, %v837
        %v840 = vsel %vm569, %v832, %v839
        %v841 = vrot.slane %v836, 4
        %s890 = scalar_lea.vmem [#allocation2], 12
        %vm891 = vcmask 257024
        %vm892 = vsmask.f32 7938
        %vm893 = vmand %vm891, %vm892
        %v894 = vld [vmem:[%s890] sm:$0xf]
        %v895 = vsel %vm893, %v576, %v894
        %896 = vst [vmem:[%s890] sm:$0xf] %v895
        %897 = vst.msk [vmem:[%s890 + $0x4] sm:$0xf] %vm273, %v585
        %vm898 = vcmask 253952
        %vm899 = vmand %vm898, %vm567
        %v900 = vld [vmem:[%s890 + $0x8] sm:$0x1]
        %v901 = vsel %vm899, %v586, %v900
        %902 = vst [vmem:[%s890 + $0x8] sm:$0x1] %v901
        %v903 = vld [vmem:[%s890 + $0xc] sm:$0xf]
        %v904 = vsel %vm893, %v593, %v903
        %905 = vst [vmem:[%s890 + $0xc] sm:$0xf] %v904
        %906 = vst.msk [vmem:[%s890 + $0x10] sm:$0xf] %vm273, %v602
        %v907 = vld [vmem:[%s890 + $0x14] sm:$0x1]
        %v908 = vsel %vm899, %v603, %v907
        %909 = vst [vmem:[%s890 + $0x14] sm:$0x1] %v908
        %v910 = vld [vmem:[%s890 + $0x18] sm:$0xf]
        %v911 = vsel %vm893, %v610, %v910
        %912 = vst [vmem:[%s890 + $0x18] sm:$0xf] %v911
        %913 = vst.msk [vmem:[%s890 + $0x1c] sm:$0xf] %vm273, %v619
        %v914 = vld [vmem:[%s890 + $0x20] sm:$0x1]
        %v915 = vsel %vm899, %v620, %v914
        %916 = vst [vmem:[%s890 + $0x20] sm:$0x1] %v915
        %v917 = vld [vmem:[%s890 + $0x24] sm:$0xf]
        %v918 = vsel %vm893, %v627, %v917
        %919 = vst [vmem:[%s890 + $0x24] sm:$0xf] %v918
        %920 = vst.msk [vmem:[%s890 + $0x28] sm:$0xf] %vm273, %v636
        %v921 = vld [vmem:[%s890 + $0x2c] sm:$0x1]
        %v922 = vsel %vm899, %v637, %v921
        %923 = vst [vmem:[%s890 + $0x2c] sm:$0x1] %v922
        %v924 = vld [vmem:[%s890 + $0x30] sm:$0xf]
        %v925 = vsel %vm893, %v644, %v924
        %926 = vst [vmem:[%s890 + $0x30] sm:$0xf] %v925
        %927 = vst.msk [vmem:[%s890 + $0x34] sm:$0xf] %vm273, %v653
        %v928 = vld [vmem:[%s890 + $0x38] sm:$0x1]
        %v929 = vsel %vm899, %v654, %v928
        %930 = vst [vmem:[%s890 + $0x38] sm:$0x1] %v929
        %v931 = vld [vmem:[%s890 + $0x3c] sm:$0xf]
        %v932 = vsel %vm893, %v661, %v931
        %933 = vst [vmem:[%s890 + $0x3c] sm:$0xf] %v932
        %934 = vst.msk [vmem:[%s890 + $0x40] sm:$0xf] %vm273, %v670
        %v935 = vld [vmem:[%s890 + $0x44] sm:$0x1]
        %v936 = vsel %vm899, %v671, %v935
        %937 = vst [vmem:[%s890 + $0x44] sm:$0x1] %v936
        %v938 = vld [vmem:[%s890 + $0x48] sm:$0xf]
        %v939 = vsel %vm893, %v678, %v938
        %940 = vst [vmem:[%s890 + $0x48] sm:$0xf] %v939
        %941 = vst.msk [vmem:[%s890 + $0x4c] sm:$0xf] %vm273, %v687
        %v942 = vld [vmem:[%s890 + $0x50] sm:$0x1]
        %v943 = vsel %vm899, %v688, %v942
        %944 = vst [vmem:[%s890 + $0x50] sm:$0x1] %v943
        %v945 = vld [vmem:[%s890 + $0x54] sm:$0xf]
        %v946 = vsel %vm893, %v695, %v945
        %947 = vst [vmem:[%s890 + $0x54] sm:$0xf] %v946
        %948 = vst.msk [vmem:[%s890 + $0x58] sm:$0xf] %vm273, %v704
        %v949 = vld [vmem:[%s890 + $0x5c] sm:$0x1]
        %v950 = vsel %vm899, %v705, %v949
        %951 = vst [vmem:[%s890 + $0x5c] sm:$0x1] %v950
        %v952 = vld [vmem:[%s890 + $0x60] sm:$0xf]
        %v953 = vsel %vm893, %v712, %v952
        %954 = vst [vmem:[%s890 + $0x60] sm:$0xf] %v953
        %955 = vst.msk [vmem:[%s890 + $0x64] sm:$0xf] %vm273, %v721
        %v956 = vld [vmem:[%s890 + $0x68] sm:$0x1]
        %v957 = vsel %vm899, %v722, %v956
        %958 = vst [vmem:[%s890 + $0x68] sm:$0x1] %v957
        %v959 = vld [vmem:[%s890 + $0x6c] sm:$0xf]
        %v960 = vsel %vm893, %v729, %v959
        %961 = vst [vmem:[%s890 + $0x6c] sm:$0xf] %v960
        %962 = vst.msk [vmem:[%s890 + $0x70] sm:$0xf] %vm273, %v738
        %v963 = vld [vmem:[%s890 + $0x74] sm:$0x1]
        %v964 = vsel %vm899, %v739, %v963
        %965 = vst [vmem:[%s890 + $0x74] sm:$0x1] %v964
        %v966 = vld [vmem:[%s890 + $0x78] sm:$0xf]
        %v967 = vsel %vm893, %v746, %v966
        %968 = vst [vmem:[%s890 + $0x78] sm:$0xf] %v967
        %969 = vst.msk [vmem:[%s890 + $0x7c] sm:$0xf] %vm273, %v755
        %v970 = vld [vmem:[%s890 + $0x80] sm:$0x1]
        %v971 = vsel %vm899, %v756, %v970
        %972 = vst [vmem:[%s890 + $0x80] sm:$0x1] %v971
        %v973 = vld [vmem:[%s890 + $0x84] sm:$0xf]
        %v974 = vsel %vm893, %v763, %v973
        %975 = vst [vmem:[%s890 + $0x84] sm:$0xf] %v974
        %976 = vst.msk [vmem:[%s890 + $0x88] sm:$0xf] %vm273, %v772
        %v977 = vld [vmem:[%s890 + $0x8c] sm:$0x1]
        %v978 = vsel %vm899, %v773, %v977
        %979 = vst [vmem:[%s890 + $0x8c] sm:$0x1] %v978
        %v980 = vld [vmem:[%s890 + $0x90] sm:$0xf]
        %v981 = vsel %vm893, %v780, %v980
        %982 = vst [vmem:[%s890 + $0x90] sm:$0xf] %v981
        %983 = vst.msk [vmem:[%s890 + $0x94] sm:$0xf] %vm273, %v789
        %v984 = vld [vmem:[%s890 + $0x98] sm:$0x1]
        %v985 = vsel %vm899, %v790, %v984
        %986 = vst [vmem:[%s890 + $0x98] sm:$0x1] %v985
        %v987 = vld [vmem:[%s890 + $0x9c] sm:$0xf]
        %v988 = vsel %vm893, %v797, %v987
        %989 = vst [vmem:[%s890 + $0x9c] sm:$0xf] %v988
        %990 = vst.msk [vmem:[%s890 + $0xa0] sm:$0xf] %vm273, %v806
        %v991 = vld [vmem:[%s890 + $0xa4] sm:$0x1]
        %v992 = vsel %vm899, %v807, %v991
        %993 = vst [vmem:[%s890 + $0xa4] sm:$0x1] %v992
        %v994 = vld [vmem:[%s890 + $0xa8] sm:$0xf]
        %v995 = vsel %vm893, %v814, %v994
        %996 = vst [vmem:[%s890 + $0xa8] sm:$0xf] %v995
        %997 = vst.msk [vmem:[%s890 + $0xac] sm:$0xf] %vm273, %v823
        %v998 = vld [vmem:[%s890 + $0xb0] sm:$0x1]
        %v999 = vsel %vm899, %v824, %v998
        %1000 = vst [vmem:[%s890 + $0xb0] sm:$0x1] %v999
        %v1001 = vld [vmem:[%s890 + $0xb4] sm:$0xf]
        %v1002 = vsel %vm893, %v831, %v1001
        %1003 = vst [vmem:[%s890 + $0xb4] sm:$0xf] %v1002
        %1004 = vst.msk [vmem:[%s890 + $0xb8] sm:$0xf] %vm273, %v840
        %v1005 = vld [vmem:[%s890 + $0xbc] sm:$0x1]
        %v1006 = vsel %vm899, %v841, %v1005
        %1007 = vst [vmem:[%s890 + $0xbc] sm:$0x1] %v1006
        %v1008 = vld [vmem:[#allocation2] sm:$0xf]
        %v1009 = vld [vmem:[#allocation2 + $0x4] sm:$0xf]
        %v1010 = vld [vmem:[#allocation2 + $0xc] sm:$0xf]
        %v1011 = vld [vmem:[#allocation2 + $0x10] sm:$0xf]
        %v1012 = vld [vmem:[#allocation2 + $0x18] sm:$0xf]
        %v1013 = vld [vmem:[#allocation2 + $0x1c] sm:$0xf]
        %v1014 = vld [vmem:[#allocation2 + $0x24] sm:$0xf]
        %v1015 = vld [vmem:[#allocation2 + $0x28] sm:$0xf]
        %v1016 = vld [vmem:[#allocation2 + $0x30] sm:$0xf]
        %v1017 = vld [vmem:[#allocation2 + $0x34] sm:$0xf]
        %v1018 = vld [vmem:[#allocation2 + $0x3c] sm:$0xf]
        %v1019 = vld [vmem:[#allocation2 + $0x40] sm:$0xf]
        %v1020 = vld [vmem:[#allocation2 + $0x48] sm:$0xf]
        %v1021 = vld [vmem:[#allocation2 + $0x4c] sm:$0xf]
        %v1022 = vld [vmem:[#allocation2 + $0x54] sm:$0xf]
        %v1023 = vld [vmem:[#allocation2 + $0x58] sm:$0xf]
        %v1024 = vld [vmem:[#allocation2 + $0x60] sm:$0xf]
        %v1025 = vld [vmem:[#allocation2 + $0x64] sm:$0xf]
        %v1026 = vld [vmem:[#allocation2 + $0x6c] sm:$0xf]
        %v1027 = vld [vmem:[#allocation2 + $0x70] sm:$0xf]
        %v1028 = vld [vmem:[#allocation2 + $0x78] sm:$0xf]
        %v1029 = vld [vmem:[#allocation2 + $0x7c] sm:$0xf]
        %v1030 = vld [vmem:[#allocation2 + $0x84] sm:$0xf]
        %v1031 = vld [vmem:[#allocation2 + $0x88] sm:$0xf]
        %v1032 = vld [vmem:[#allocation2 + $0x90] sm:$0xf]
        %v1033 = vld [vmem:[#allocation2 + $0x94] sm:$0xf]
        %v1034 = vld [vmem:[#allocation2 + $0x9c] sm:$0xf]
        %v1035 = vld [vmem:[#allocation2 + $0xa0] sm:$0xf]
        %v1036 = vld [vmem:[#allocation2 + $0xa8] sm:$0xf]
        %v1037 = vld [vmem:[#allocation2 + $0xac] sm:$0xf]
        %v1038 = vld [vmem:[#allocation2 + $0xb4] sm:$0xf]
        %v1039 = vld [vmem:[#allocation2 + $0xb8] sm:$0xf]
        %v1072 = vunpack.c.l.b16 %v1008
        %v1073 = vunpack.c.l.b16 %v1009
        %v1074 = vunpack.c.l.b16 %v1010
        %v1075 = vunpack.c.l.b16 %v1011
        %v1076 = vunpack.c.l.b16 %v1012
        %v1077 = vunpack.c.l.b16 %v1013
        %v1078 = vunpack.c.l.b16 %v1014
        %v1079 = vunpack.c.l.b16 %v1015
        %v1080 = vunpack.c.l.b16 %v1016
        %v1081 = vunpack.c.l.b16 %v1017
        %v1082 = vunpack.c.l.b16 %v1018
        %v1083 = vunpack.c.l.b16 %v1019
        %v1084 = vunpack.c.l.b16 %v1020
        %v1085 = vunpack.c.l.b16 %v1021
        %v1086 = vunpack.c.l.b16 %v1022
        %v1087 = vunpack.c.l.b16 %v1023
        %v1088 = vunpack.c.l.b16 %v1024
        %v1089 = vunpack.c.l.b16 %v1025
        %v1090 = vunpack.c.l.b16 %v1026
        %v1091 = vunpack.c.l.b16 %v1027
        %v1092 = vunpack.c.l.b16 %v1028
        %v1093 = vunpack.c.l.b16 %v1029
        %v1094 = vunpack.c.l.b16 %v1030
        %v1095 = vunpack.c.l.b16 %v1031
        %v1096 = vunpack.c.l.b16 %v1032
        %v1097 = vunpack.c.l.b16 %v1033
        %v1098 = vunpack.c.l.b16 %v1034
        %v1099 = vunpack.c.l.b16 %v1035
        %v1100 = vunpack.c.l.b16 %v1036
        %v1101 = vunpack.c.l.b16 %v1037
        %v1102 = vunpack.c.l.b16 %v1038
        %v1103 = vunpack.c.l.b16 %v1039
        %v1104 = vpack.c.b16 %v1073, %v1072
        %v1105 = vpack.c.b16 %v1075, %v1074
        %v1106 = vpack.c.b16 %v1077, %v1076
        %v1107 = vpack.c.b16 %v1079, %v1078
        %v1108 = vpack.c.b16 %v1081, %v1080
        %v1109 = vpack.c.b16 %v1083, %v1082
        %v1110 = vpack.c.b16 %v1085, %v1084
        %v1111 = vpack.c.b16 %v1087, %v1086
        %v1112 = vpack.c.b16 %v1089, %v1088
        %v1113 = vpack.c.b16 %v1091, %v1090
        %v1114 = vpack.c.b16 %v1093, %v1092
        %v1115 = vpack.c.b16 %v1095, %v1094
        %v1116 = vpack.c.b16 %v1097, %v1096
        %v1117 = vpack.c.b16 %v1099, %v1098
        %v1118 = vpack.c.b16 %v1101, %v1100
        %v1119 = vpack.c.b16 %v1103, %v1102
        %vm1136 = vcmask 261120
        %1137 = vst.msk [vmem:[#allocation3] sm:$0xff] %vm1136, %v1104
        %1138 = vst.msk [vmem:[#allocation3 + $0x18] sm:$0xff] %vm1136, %v1105
        %1139 = vst.msk [vmem:[#allocation3 + $0x30] sm:$0xff] %vm1136, %v1106
        %1140 = vst.msk [vmem:[#allocation3 + $0x48] sm:$0xff] %vm1136, %v1107
        %1141 = vst.msk [vmem:[#allocation3 + $0x60] sm:$0xff] %vm1136, %v1108
        %1142 = vst.msk [vmem:[#allocation3 + $0x78] sm:$0xff] %vm1136, %v1109
        %1143 = vst.msk [vmem:[#allocation3 + $0x90] sm:$0xff] %vm1136, %v1110
        %1144 = vst.msk [vmem:[#allocation3 + $0xa8] sm:$0xff] %vm1136, %v1111
        %1145 = vst.msk [vmem:[#allocation3 + $0xc0] sm:$0xff] %vm1136, %v1112
        %1146 = vst.msk [vmem:[#allocation3 + $0xd8] sm:$0xff] %vm1136, %v1113
        %1147 = vst.msk [vmem:[#allocation3 + $0xf0] sm:$0xff] %vm1136, %v1114
        %1148 = vst.msk [vmem:[#allocation3 + $0x108] sm:$0xff] %vm1136, %v1115
        %1149 = vst.msk [vmem:[#allocation3 + $0x120] sm:$0xff] %vm1136, %v1116
        %1150 = vst.msk [vmem:[#allocation3 + $0x138] sm:$0xff] %vm1136, %v1117
        %1151 = vst.msk [vmem:[#allocation3 + $0x150] sm:$0xff] %vm1136, %v1118
        %1152 = vst.msk [vmem:[#allocation3 + $0x168] sm:$0xff] %vm1136, %v1119
        %v1153 = vld [vmem:[#allocation2] sm:$0xf]
        %v1154 = vld [vmem:[#allocation2 + $0x4] sm:$0xf]
        %v1155 = vld [vmem:[#allocation2 + $0x8] sm:$0x1]
        %v1156 = vld [vmem:[#allocation2 + $0xc] sm:$0xf]
        %v1157 = vld [vmem:[#allocation2 + $0x10] sm:$0xf]
        %v1158 = vld [vmem:[#allocation2 + $0x14] sm:$0x1]
        %v1159 = vld [vmem:[#allocation2 + $0x18] sm:$0xf]
        %v1160 = vld [vmem:[#allocation2 + $0x1c] sm:$0xf]
        %v1161 = vld [vmem:[#allocation2 + $0x20] sm:$0x1]
        %v1162 = vld [vmem:[#allocation2 + $0x24] sm:$0xf]
        %v1163 = vld [vmem:[#allocation2 + $0x28] sm:$0xf]
        %v1164 = vld [vmem:[#allocation2 + $0x2c] sm:$0x1]
        %v1165 = vld [vmem:[#allocation2 + $0x30] sm:$0xf]
        %v1166 = vld [vmem:[#allocation2 + $0x34] sm:$0xf]
        %v1167 = vld [vmem:[#allocation2 + $0x38] sm:$0x1]
        %v1168 = vld [vmem:[#allocation2 + $0x3c] sm:$0xf]
        %v1169 = vld [vmem:[#allocation2 + $0x40] sm:$0xf]
        %v1170 = vld [vmem:[#allocation2 + $0x44] sm:$0x1]
        %v1171 = vld [vmem:[#allocation2 + $0x48] sm:$0xf]
        %v1172 = vld [vmem:[#allocation2 + $0x4c] sm:$0xf]
        %v1173 = vld [vmem:[#allocation2 + $0x50] sm:$0x1]
        %v1174 = vld [vmem:[#allocation2 + $0x54] sm:$0xf]
        %v1175 = vld [vmem:[#allocation2 + $0x58] sm:$0xf]
        %v1176 = vld [vmem:[#allocation2 + $0x5c] sm:$0x1]
        %v1177 = vld [vmem:[#allocation2 + $0x60] sm:$0xf]
        %v1178 = vld [vmem:[#allocation2 + $0x64] sm:$0xf]
        %v1179 = vld [vmem:[#allocation2 + $0x68] sm:$0x1]
        %v1180 = vld [vmem:[#allocation2 + $0x6c] sm:$0xf]
        %v1181 = vld [vmem:[#allocation2 + $0x70] sm:$0xf]
        %v1182 = vld [vmem:[#allocation2 + $0x74] sm:$0x1]
        %v1183 = vld [vmem:[#allocation2 + $0x78] sm:$0xf]
        %v1184 = vld [vmem:[#allocation2 + $0x7c] sm:$0xf]
        %v1185 = vld [vmem:[#allocation2 + $0x80] sm:$0x1]
        %v1186 = vld [vmem:[#allocation2 + $0x84] sm:$0xf]
        %v1187 = vld [vmem:[#allocation2 + $0x88] sm:$0xf]
        %v1188 = vld [vmem:[#allocation2 + $0x8c] sm:$0x1]
        %v1189 = vld [vmem:[#allocation2 + $0x90] sm:$0xf]
        %v1190 = vld [vmem:[#allocation2 + $0x94] sm:$0xf]
        %v1191 = vld [vmem:[#allocation2 + $0x98] sm:$0x1]
        %v1192 = vld [vmem:[#allocation2 + $0x9c] sm:$0xf]
        %v1193 = vld [vmem:[#allocation2 + $0xa0] sm:$0xf]
        %v1194 = vld [vmem:[#allocation2 + $0xa4] sm:$0x1]
        %v1195 = vld [vmem:[#allocation2 + $0xa8] sm:$0xf]
        %v1196 = vld [vmem:[#allocation2 + $0xac] sm:$0xf]
        %v1197 = vld [vmem:[#allocation2 + $0xb0] sm:$0x1]
        %v1198 = vld [vmem:[#allocation2 + $0xb4] sm:$0xf]
        %v1199 = vld [vmem:[#allocation2 + $0xb8] sm:$0xf]
        %v1200 = vld [vmem:[#allocation2 + $0xbc] sm:$0x1]
        %v1249 = vunpack.c.l.b16 %v1153
        %v1250 = vunpack.c.l.b16 %v1154
        %v1251 = vunpack.c.l.b16 %v1155
        %v1252 = vunpack.c.l.b16 %v1156
        %v1253 = vunpack.c.l.b16 %v1157
        %v1254 = vunpack.c.l.b16 %v1158
        %v1255 = vunpack.c.l.b16 %v1159
        %v1256 = vunpack.c.l.b16 %v1160
        %v1257 = vunpack.c.l.b16 %v1161
        %v1258 = vunpack.c.l.b16 %v1162
        %v1259 = vunpack.c.l.b16 %v1163
        %v1260 = vunpack.c.l.b16 %v1164
        %v1261 = vunpack.c.l.b16 %v1165
        %v1262 = vunpack.c.l.b16 %v1166
        %v1263 = vunpack.c.l.b16 %v1167
        %v1264 = vunpack.c.l.b16 %v1168
        %v1265 = vunpack.c.l.b16 %v1169
        %v1266 = vunpack.c.l.b16 %v1170
        %v1267 = vunpack.c.l.b16 %v1171
        %v1268 = vunpack.c.l.b16 %v1172
        %v1269 = vunpack.c.l.b16 %v1173
        %v1270 = vunpack.c.l.b16 %v1174
        %v1271 = vunpack.c.l.b16 %v1175
        %v1272 = vunpack.c.l.b16 %v1176
        %v1273 = vunpack.c.l.b16 %v1177
        %v1274 = vunpack.c.l.b16 %v1178
        %v1275 = vunpack.c.l.b16 %v1179
        %v1276 = vunpack.c.l.b16 %v1180
        %v1277 = vunpack.c.l.b16 %v1181
        %v1278 = vunpack.c.l.b16 %v1182
        %v1279 = vunpack.c.l.b16 %v1183
        %v1280 = vunpack.c.l.b16 %v1184
        %v1281 = vunpack.c.l.b16 %v1185
        %v1282 = vunpack.c.l.b16 %v1186
        %v1283 = vunpack.c.l.b16 %v1187
        %v1284 = vunpack.c.l.b16 %v1188
        %v1285 = vunpack.c.l.b16 %v1189
        %v1286 = vunpack.c.l.b16 %v1190
        %v1287 = vunpack.c.l.b16 %v1191
        %v1288 = vunpack.c.l.b16 %v1192
        %v1289 = vunpack.c.l.b16 %v1193
        %v1290 = vunpack.c.l.b16 %v1194
        %v1291 = vunpack.c.l.b16 %v1195
        %v1292 = vunpack.c.l.b16 %v1196
        %v1293 = vunpack.c.l.b16 %v1197
        %v1294 = vunpack.c.l.b16 %v1198
        %v1295 = vunpack.c.l.b16 %v1199
        %v1296 = vunpack.c.l.b16 %v1200
        %v1297 = vpack.c.b16 %v1250, %v1249
        %v1298 = vpack.c.b16 %v1251, %v1251
        %v1299 = vpack.c.b16 %v1253, %v1252
        %v1300 = vpack.c.b16 %v1254, %v1254
        %v1301 = vpack.c.b16 %v1256, %v1255
        %v1302 = vpack.c.b16 %v1257, %v1257
        %v1303 = vpack.c.b16 %v1259, %v1258
        %v1304 = vpack.c.b16 %v1260, %v1260
        %v1305 = vpack.c.b16 %v1262, %v1261
        %v1306 = vpack.c.b16 %v1263, %v1263
        %v1307 = vpack.c.b16 %v1265, %v1264
        %v1308 = vpack.c.b16 %v1266, %v1266
        %v1309 = vpack.c.b16 %v1268, %v1267
        %v1310 = vpack.c.b16 %v1269, %v1269
        %v1311 = vpack.c.b16 %v1271, %v1270
        %v1312 = vpack.c.b16 %v1272, %v1272
        %v1313 = vpack.c.b16 %v1274, %v1273
        %v1314 = vpack.c.b16 %v1275, %v1275
        %v1315 = vpack.c.b16 %v1277, %v1276
        %v1316 = vpack.c.b16 %v1278, %v1278
        %v1317 = vpack.c.b16 %v1280, %v1279
        %v1318 = vpack.c.b16 %v1281, %v1281
        %v1319 = vpack.c.b16 %v1283, %v1282
        %v1320 = vpack.c.b16 %v1284, %v1284
        %v1321 = vpack.c.b16 %v1286, %v1285
        %v1322 = vpack.c.b16 %v1287, %v1287
        %v1323 = vpack.c.b16 %v1289, %v1288
        %v1324 = vpack.c.b16 %v1290, %v1290
        %v1325 = vpack.c.b16 %v1292, %v1291
        %v1326 = vpack.c.b16 %v1293, %v1293
        %v1327 = vpack.c.b16 %v1295, %v1294
        %v1328 = vpack.c.b16 %v1296, %v1296
        %vm1329 = vsmask.f32 7424
        %v1331 = vshrl.u32 %v1297, 16
        %v1333 = vshll.u32 %v1297, 16
        %v1335 = vrot.slane %v1333, 1
        %v1336 = vor.u32 %v1331, %v1335
        %v1338 = vshll.u32 %v1298, 16
        %v1340 = vrot.slane %v1338, 1
        %v1341 = vsel %vm1329, %v1336, %v1340
        %v1343 = vshrl.u32 %v1299, 16
        %v1345 = vshll.u32 %v1299, 16
        %v1347 = vrot.slane %v1345, 1
        %v1348 = vor.u32 %v1343, %v1347
        %v1350 = vshll.u32 %v1300, 16
        %v1352 = vrot.slane %v1350, 1
        %v1353 = vsel %vm1329, %v1348, %v1352
        %v1355 = vshrl.u32 %v1301, 16
        %v1357 = vshll.u32 %v1301, 16
        %v1359 = vrot.slane %v1357, 1
        %v1360 = vor.u32 %v1355, %v1359
        %v1362 = vshll.u32 %v1302, 16
        %v1364 = vrot.slane %v1362, 1
        %v1365 = vsel %vm1329, %v1360, %v1364
        %v1367 = vshrl.u32 %v1303, 16
        %v1369 = vshll.u32 %v1303, 16
        %v1371 = vrot.slane %v1369, 1
        %v1372 = vor.u32 %v1367, %v1371
        %v1374 = vshll.u32 %v1304, 16
        %v1376 = vrot.slane %v1374, 1
        %v1377 = vsel %vm1329, %v1372, %v1376
        %v1379 = vshrl.u32 %v1305, 16
        %v1381 = vshll.u32 %v1305, 16
        %v1383 = vrot.slane %v1381, 1
        %v1384 = vor.u32 %v1379, %v1383
        %v1386 = vshll.u32 %v1306, 16
        %v1388 = vrot.slane %v1386, 1
        %v1389 = vsel %vm1329, %v1384, %v1388
        %v1391 = vshrl.u32 %v1307, 16
        %v1393 = vshll.u32 %v1307, 16
        %v1395 = vrot.slane %v1393, 1
        %v1396 = vor.u32 %v1391, %v1395
        %v1398 = vshll.u32 %v1308, 16
        %v1400 = vrot.slane %v1398, 1
        %v1401 = vsel %vm1329, %v1396, %v1400
        %v1403 = vshrl.u32 %v1309, 16
        %v1405 = vshll.u32 %v1309, 16
        %v1407 = vrot.slane %v1405, 1
        %v1408 = vor.u32 %v1403, %v1407
        %v1410 = vshll.u32 %v1310, 16
        %v1412 = vrot.slane %v1410, 1
        %v1413 = vsel %vm1329, %v1408, %v1412
        %v1415 = vshrl.u32 %v1311, 16
        %v1417 = vshll.u32 %v1311, 16
        %v1419 = vrot.slane %v1417, 1
        %v1420 = vor.u32 %v1415, %v1419
        %v1422 = vshll.u32 %v1312, 16
        %v1424 = vrot.slane %v1422, 1
        %v1425 = vsel %vm1329, %v1420, %v1424
        %v1427 = vshrl.u32 %v1313, 16
        %v1429 = vshll.u32 %v1313, 16
        %v1431 = vrot.slane %v1429, 1
        %v1432 = vor.u32 %v1427, %v1431
        %v1434 = vshll.u32 %v1314, 16
        %v1436 = vrot.slane %v1434, 1
        %v1437 = vsel %vm1329, %v1432, %v1436
        %v1439 = vshrl.u32 %v1315, 16
        %v1441 = vshll.u32 %v1315, 16
        %v1443 = vrot.slane %v1441, 1
        %v1444 = vor.u32 %v1439, %v1443
        %v1446 = vshll.u32 %v1316, 16
        %v1448 = vrot.slane %v1446, 1
        %v1449 = vsel %vm1329, %v1444, %v1448
        %v1451 = vshrl.u32 %v1317, 16
        %v1453 = vshll.u32 %v1317, 16
        %v1455 = vrot.slane %v1453, 1
        %v1456 = vor.u32 %v1451, %v1455
        %v1458 = vshll.u32 %v1318, 16
        %v1460 = vrot.slane %v1458, 1
        %v1461 = vsel %vm1329, %v1456, %v1460
        %v1463 = vshrl.u32 %v1319, 16
        %v1465 = vshll.u32 %v1319, 16
        %v1467 = vrot.slane %v1465, 1
        %v1468 = vor.u32 %v1463, %v1467
        %v1470 = vshll.u32 %v1320, 16
        %v1472 = vrot.slane %v1470, 1
        %v1473 = vsel %vm1329, %v1468, %v1472
        %v1475 = vshrl.u32 %v1321, 16
        %v1477 = vshll.u32 %v1321, 16
        %v1479 = vrot.slane %v1477, 1
        %v1480 = vor.u32 %v1475, %v1479
        %v1482 = vshll.u32 %v1322, 16
        %v1484 = vrot.slane %v1482, 1
        %v1485 = vsel %vm1329, %v1480, %v1484
        %v1487 = vshrl.u32 %v1323, 16
        %v1489 = vshll.u32 %v1323, 16
        %v1491 = vrot.slane %v1489, 1
        %v1492 = vor.u32 %v1487, %v1491
        %v1494 = vshll.u32 %v1324, 16
        %v1496 = vrot.slane %v1494, 1
        %v1497 = vsel %vm1329, %v1492, %v1496
        %v1499 = vshrl.u32 %v1325, 16
        %v1501 = vshll.u32 %v1325, 16
        %v1503 = vrot.slane %v1501, 1
        %v1504 = vor.u32 %v1499, %v1503
        %v1506 = vshll.u32 %v1326, 16
        %v1508 = vrot.slane %v1506, 1
        %v1509 = vsel %vm1329, %v1504, %v1508
        %v1511 = vshrl.u32 %v1327, 16
        %v1513 = vshll.u32 %v1327, 16
        %v1515 = vrot.slane %v1513, 1
        %v1516 = vor.u32 %v1511, %v1515
        %v1518 = vshll.u32 %v1328, 16
        %v1520 = vrot.slane %v1518, 1
        %v1521 = vsel %vm1329, %v1516, %v1520
        %1522 = vrot.lane.b32.xlu0 %v1341, 32
        %v1523 = vpop.permute.xlu0 %1522
        %1524 = vrot.lane.b32.xlu0 %v1353, 32
        %v1525 = vpop.permute.xlu0 %1524
        %1526 = vrot.lane.b32.xlu0 %v1365, 32
        %v1527 = vpop.permute.xlu0 %1526
        %1528 = vrot.lane.b32.xlu0 %v1377, 32
        %v1529 = vpop.permute.xlu0 %1528
        %1530 = vrot.lane.b32.xlu0 %v1389, 32
        %v1531 = vpop.permute.xlu0 %1530
        %1532 = vrot.lane.b32.xlu0 %v1401, 32
        %v1533 = vpop.permute.xlu0 %1532
        %1534 = vrot.lane.b32.xlu0 %v1413, 32
        %v1535 = vpop.permute.xlu0 %1534
        %1536 = vrot.lane.b32.xlu0 %v1425, 32
        %v1537 = vpop.permute.xlu0 %1536
        %1538 = vrot.lane.b32.xlu0 %v1437, 32
        %v1539 = vpop.permute.xlu0 %1538
        %1540 = vrot.lane.b32.xlu0 %v1449, 32
        %v1541 = vpop.permute.xlu0 %1540
        %1542 = vrot.lane.b32.xlu0 %v1461, 32
        %v1543 = vpop.permute.xlu0 %1542
        %1544 = vrot.lane.b32.xlu0 %v1473, 32
        %v1545 = vpop.permute.xlu0 %1544
        %1546 = vrot.lane.b32.xlu0 %v1485, 32
        %v1547 = vpop.permute.xlu0 %1546
        %1548 = vrot.lane.b32.xlu0 %v1497, 32
        %v1549 = vpop.permute.xlu0 %1548
        %1550 = vrot.lane.b32.xlu0 %v1509, 32
        %v1551 = vpop.permute.xlu0 %1550
        %1552 = vrot.lane.b32.xlu0 %v1521, 32
        %v1553 = vpop.permute.xlu0 %1552
        %vm1570 = vcmask 523520
        %1571 = vst.msk [vmem:[#allocation3] sm:$0xff] %vm1570, %v1523
        %1572 = vst.msk [vmem:[#allocation3 + $0x18] sm:$0xff] %vm1570, %v1525
        %1573 = vst.msk [vmem:[#allocation3 + $0x30] sm:$0xff] %vm1570, %v1527
        %1574 = vst.msk [vmem:[#allocation3 + $0x48] sm:$0xff] %vm1570, %v1529
        %1575 = vst.msk [vmem:[#allocation3 + $0x60] sm:$0xff] %vm1570, %v1531
        %1576 = vst.msk [vmem:[#allocation3 + $0x78] sm:$0xff] %vm1570, %v1533
        %1577 = vst.msk [vmem:[#allocation3 + $0x90] sm:$0xff] %vm1570, %v1535
        %1578 = vst.msk [vmem:[#allocation3 + $0xa8] sm:$0xff] %vm1570, %v1537
        %1579 = vst.msk [vmem:[#allocation3 + $0xc0] sm:$0xff] %vm1570, %v1539
        %1580 = vst.msk [vmem:[#allocation3 + $0xd8] sm:$0xff] %vm1570, %v1541
        %1581 = vst.msk [vmem:[#allocation3 + $0xf0] sm:$0xff] %vm1570, %v1543
        %1582 = vst.msk [vmem:[#allocation3 + $0x108] sm:$0xff] %vm1570, %v1545
        %1583 = vst.msk [vmem:[#allocation3 + $0x120] sm:$0xff] %vm1570, %v1547
        %1584 = vst.msk [vmem:[#allocation3 + $0x138] sm:$0xff] %vm1570, %v1549
        %1585 = vst.msk [vmem:[#allocation3 + $0x150] sm:$0xff] %vm1570, %v1551
        %1586 = vst.msk [vmem:[#allocation3 + $0x168] sm:$0xff] %vm1570, %v1553
        %v1587 = vld [vmem:[#allocation2] sm:$0xe]
        %v1588 = vld [vmem:[#allocation2 + $0x4] sm:$0xf]
        %v1589 = vld [vmem:[#allocation2 + $0x8] sm:$0x1]
        %v1590 = vld [vmem:[#allocation2 + $0xc] sm:$0xe]
        %v1591 = vld [vmem:[#allocation2 + $0x10] sm:$0xf]
        %v1592 = vld [vmem:[#allocation2 + $0x14] sm:$0x1]
        %v1593 = vld [vmem:[#allocation2 + $0x18] sm:$0xe]
        %v1594 = vld [vmem:[#allocation2 + $0x1c] sm:$0xf]
        %v1595 = vld [vmem:[#allocation2 + $0x20] sm:$0x1]
        %v1596 = vld [vmem:[#allocation2 + $0x24] sm:$0xe]
        %v1597 = vld [vmem:[#allocation2 + $0x28] sm:$0xf]
        %v1598 = vld [vmem:[#allocation2 + $0x2c] sm:$0x1]
        %v1599 = vld [vmem:[#allocation2 + $0x30] sm:$0xe]
        %v1600 = vld [vmem:[#allocation2 + $0x34] sm:$0xf]
        %v1601 = vld [vmem:[#allocation2 + $0x38] sm:$0x1]
        %v1602 = vld [vmem:[#allocation2 + $0x3c] sm:$0xe]
        %v1603 = vld [vmem:[#allocation2 + $0x40] sm:$0xf]
        %v1604 = vld [vmem:[#allocation2 + $0x44] sm:$0x1]
        %v1605 = vld [vmem:[#allocation2 + $0x48] sm:$0xe]
        %v1606 = vld [vmem:[#allocation2 + $0x4c] sm:$0xf]
        %v1607 = vld [vmem:[#allocation2 + $0x50] sm:$0x1]
        %v1608 = vld [vmem:[#allocation2 + $0x54] sm:$0xe]
        %v1609 = vld [vmem:[#allocation2 + $0x58] sm:$0xf]
        %v1610 = vld [vmem:[#allocation2 + $0x5c] sm:$0x1]
        %v1611 = vld [vmem:[#allocation2 + $0x60] sm:$0xe]
        %v1612 = vld [vmem:[#allocation2 + $0x64] sm:$0xf]
        %v1613 = vld [vmem:[#allocation2 + $0x68] sm:$0x1]
        %v1614 = vld [vmem:[#allocation2 + $0x6c] sm:$0xe]
        %v1615 = vld [vmem:[#allocation2 + $0x70] sm:$0xf]
        %v1616 = vld [vmem:[#allocation2 + $0x74] sm:$0x1]
        %v1617 = vld [vmem:[#allocation2 + $0x78] sm:$0xe]
        %v1618 = vld [vmem:[#allocation2 + $0x7c] sm:$0xf]
        %v1619 = vld [vmem:[#allocation2 + $0x80] sm:$0x1]
        %v1620 = vld [vmem:[#allocation2 + $0x84] sm:$0xe]
        %v1621 = vld [vmem:[#allocation2 + $0x88] sm:$0xf]
        %v1622 = vld [vmem:[#allocation2 + $0x8c] sm:$0x1]
        %v1623 = vld [vmem:[#allocation2 + $0x90] sm:$0xe]
        %v1624 = vld [vmem:[#allocation2 + $0x94] sm:$0xf]
        %v1625 = vld [vmem:[#allocation2 + $0x98] sm:$0x1]
        %v1626 = vld [vmem:[#allocation2 + $0x9c] sm:$0xe]
        %v1627 = vld [vmem:[#allocation2 + $0xa0] sm:$0xf]
        %v1628 = vld [vmem:[#allocation2 + $0xa4] sm:$0x1]
        %v1629 = vld [vmem:[#allocation2 + $0xa8] sm:$0xe]
        %v1630 = vld [vmem:[#allocation2 + $0xac] sm:$0xf]
        %v1631 = vld [vmem:[#allocation2 + $0xb0] sm:$0x1]
        %v1632 = vld [vmem:[#allocation2 + $0xb4] sm:$0xe]
        %v1633 = vld [vmem:[#allocation2 + $0xb8] sm:$0xf]
        %v1634 = vld [vmem:[#allocation2 + $0xbc] sm:$0x1]
        %v1683 = vunpack.c.l.b16 %v1587
        %v1684 = vunpack.c.l.b16 %v1588
        %v1685 = vunpack.c.l.b16 %v1589
        %v1686 = vunpack.c.l.b16 %v1590
        %v1687 = vunpack.c.l.b16 %v1591
        %v1688 = vunpack.c.l.b16 %v1592
        %v1689 = vunpack.c.l.b16 %v1593
        %v1690 = vunpack.c.l.b16 %v1594
        %v1691 = vunpack.c.l.b16 %v1595
        %v1692 = vunpack.c.l.b16 %v1596
        %v1693 = vunpack.c.l.b16 %v1597
        %v1694 = vunpack.c.l.b16 %v1598
        %v1695 = vunpack.c.l.b16 %v1599
        %v1696 = vunpack.c.l.b16 %v1600
        %v1697 = vunpack.c.l.b16 %v1601
        %v1698 = vunpack.c.l.b16 %v1602
        %v1699 = vunpack.c.l.b16 %v1603
        %v1700 = vunpack.c.l.b16 %v1604
        %v1701 = vunpack.c.l.b16 %v1605
        %v1702 = vunpack.c.l.b16 %v1606
        %v1703 = vunpack.c.l.b16 %v1607
        %v1704 = vunpack.c.l.b16 %v1608
        %v1705 = vunpack.c.l.b16 %v1609
        %v1706 = vunpack.c.l.b16 %v1610
        %v1707 = vunpack.c.l.b16 %v1611
        %v1708 = vunpack.c.l.b16 %v1612
        %v1709 = vunpack.c.l.b16 %v1613
        %v1710 = vunpack.c.l.b16 %v1614
        %v1711 = vunpack.c.l.b16 %v1615
        %v1712 = vunpack.c.l.b16 %v1616
        %v1713 = vunpack.c.l.b16 %v1617
        %v1714 = vunpack.c.l.b16 %v1618
        %v1715 = vunpack.c.l.b16 %v1619
        %v1716 = vunpack.c.l.b16 %v1620
        %v1717 = vunpack.c.l.b16 %v1621
        %v1718 = vunpack.c.l.b16 %v1622
        %v1719 = vunpack.c.l.b16 %v1623
        %v1720 = vunpack.c.l.b16 %v1624
        %v1721 = vunpack.c.l.b16 %v1625
        %v1722 = vunpack.c.l.b16 %v1626
        %v1723 = vunpack.c.l.b16 %v1627
        %v1724 = vunpack.c.l.b16 %v1628
        %v1725 = vunpack.c.l.b16 %v1629
        %v1726 = vunpack.c.l.b16 %v1630
        %v1727 = vunpack.c.l.b16 %v1631
        %v1728 = vunpack.c.l.b16 %v1632
        %v1729 = vunpack.c.l.b16 %v1633
        %v1730 = vunpack.c.l.b16 %v1634
        %v1731 = vpack.c.b16 %v1684, %v1683
        %v1732 = vpack.c.b16 %v1685, %v1685
        %v1733 = vpack.c.b16 %v1687, %v1686
        %v1734 = vpack.c.b16 %v1688, %v1688
        %v1735 = vpack.c.b16 %v1690, %v1689
        %v1736 = vpack.c.b16 %v1691, %v1691
        %v1737 = vpack.c.b16 %v1693, %v1692
        %v1738 = vpack.c.b16 %v1694, %v1694
        %v1739 = vpack.c.b16 %v1696, %v1695
        %v1740 = vpack.c.b16 %v1697, %v1697
        %v1741 = vpack.c.b16 %v1699, %v1698
        %v1742 = vpack.c.b16 %v1700, %v1700
        %v1743 = vpack.c.b16 %v1702, %v1701
        %v1744 = vpack.c.b16 %v1703, %v1703
        %v1745 = vpack.c.b16 %v1705, %v1704
        %v1746 = vpack.c.b16 %v1706, %v1706
        %v1747 = vpack.c.b16 %v1708, %v1707
        %v1748 = vpack.c.b16 %v1709, %v1709
        %v1749 = vpack.c.b16 %v1711, %v1710
        %v1750 = vpack.c.b16 %v1712, %v1712
        %v1751 = vpack.c.b16 %v1714, %v1713
        %v1752 = vpack.c.b16 %v1715, %v1715
        %v1753 = vpack.c.b16 %v1717, %v1716
        %v1754 = vpack.c.b16 %v1718, %v1718
        %v1755 = vpack.c.b16 %v1720, %v1719
        %v1756 = vpack.c.b16 %v1721, %v1721
        %v1757 = vpack.c.b16 %v1723, %v1722
        %v1758 = vpack.c.b16 %v1724, %v1724
        %v1759 = vpack.c.b16 %v1726, %v1725
        %v1760 = vpack.c.b16 %v1727, %v1727
        %v1761 = vpack.c.b16 %v1729, %v1728
        %v1762 = vpack.c.b16 %v1730, %v1730
        %vm1763 = vcmask 1046528
        %v1764 = vrot.slane %v1731, 1
        %v1765 = vrot.slane %v1732, 1
        %v1766 = vsel %vm1763, %v1764, %v1765
        %v1767 = vrot.slane %v1733, 1
        %v1768 = vrot.slane %v1734, 1
        %v1769 = vsel %vm1763, %v1767, %v1768
        %v1770 = vrot.slane %v1735, 1
        %v1771 = vrot.slane %v1736, 1
        %v1772 = vsel %vm1763, %v1770, %v1771
        %v1773 = vrot.slane %v1737, 1
        %v1774 = vrot.slane %v1738, 1
        %v1775 = vsel %vm1763, %v1773, %v1774
        %v1776 = vrot.slane %v1739, 1
        %v1777 = vrot.slane %v1740, 1
        %v1778 = vsel %vm1763, %v1776, %v1777
        %v1779 = vrot.slane %v1741, 1
        %v1780 = vrot.slane %v1742, 1
        %v1781 = vsel %vm1763, %v1779, %v1780
        %v1782 = vrot.slane %v1743, 1
        %v1783 = vrot.slane %v1744, 1
        %v1784 = vsel %vm1763, %v1782, %v1783
        %v1785 = vrot.slane %v1745, 1
        %v1786 = vrot.slane %v1746, 1
        %v1787 = vsel %vm1763, %v1785, %v1786
        %v1788 = vrot.slane %v1747, 1
        %v1789 = vrot.slane %v1748, 1
        %v1790 = vsel %vm1763, %v1788, %v1789
        %v1791 = vrot.slane %v1749, 1
        %v1792 = vrot.slane %v1750, 1
        %v1793 = vsel %vm1763, %v1791, %v1792
        %v1794 = vrot.slane %v1751, 1
        %v1795 = vrot.slane %v1752, 1
        %v1796 = vsel %vm1763, %v1794, %v1795
        %v1797 = vrot.slane %v1753, 1
        %v1798 = vrot.slane %v1754, 1
        %v1799 = vsel %vm1763, %v1797, %v1798
        %v1800 = vrot.slane %v1755, 1
        %v1801 = vrot.slane %v1756, 1
        %v1802 = vsel %vm1763, %v1800, %v1801
        %v1803 = vrot.slane %v1757, 1
        %v1804 = vrot.slane %v1758, 1
        %v1805 = vsel %vm1763, %v1803, %v1804
        %v1806 = vrot.slane %v1759, 1
        %v1807 = vrot.slane %v1760, 1
        %v1808 = vsel %vm1763, %v1806, %v1807
        %v1809 = vrot.slane %v1761, 1
        %v1810 = vrot.slane %v1762, 1
        %v1811 = vsel %vm1763, %v1809, %v1810
        %1812 = vrot.lane.b32.xlu0 %v1766, 64
        %v1813 = vpop.permute.xlu0 %1812
        %1814 = vrot.lane.b32.xlu0 %v1769, 64
        %v1815 = vpop.permute.xlu0 %1814
        %1816 = vrot.lane.b32.xlu0 %v1772, 64
        %v1817 = vpop.permute.xlu0 %1816
        %1818 = vrot.lane.b32.xlu0 %v1775, 64
        %v1819 = vpop.permute.xlu0 %1818
        %1820 = vrot.lane.b32.xlu0 %v1778, 64
        %v1821 = vpop.permute.xlu0 %1820
        %1822 = vrot.lane.b32.xlu0 %v1781, 64
        %v1823 = vpop.permute.xlu0 %1822
        %1824 = vrot.lane.b32.xlu0 %v1784, 64
        %v1825 = vpop.permute.xlu0 %1824
        %1826 = vrot.lane.b32.xlu0 %v1787, 64
        %v1827 = vpop.permute.xlu0 %1826
        %1828 = vrot.lane.b32.xlu0 %v1790, 64
        %v1829 = vpop.permute.xlu0 %1828
        %1830 = vrot.lane.b32.xlu0 %v1793, 64
        %v1831 = vpop.permute.xlu0 %1830
        %1832 = vrot.lane.b32.xlu0 %v1796, 64
        %v1833 = vpop.permute.xlu0 %1832
        %1834 = vrot.lane.b32.xlu0 %v1799, 64
        %v1835 = vpop.permute.xlu0 %1834
        %1836 = vrot.lane.b32.xlu0 %v1802, 64
        %v1837 = vpop.permute.xlu0 %1836
        %1838 = vrot.lane.b32.xlu0 %v1805, 64
        %v1839 = vpop.permute.xlu0 %1838
        %1840 = vrot.lane.b32.xlu0 %v1808, 64
        %v1841 = vpop.permute.xlu0 %1840
        %1842 = vrot.lane.b32.xlu0 %v1811, 64
        %v1843 = vpop.permute.xlu0 %1842
        %vm1860 = vcmask 785920
        %1861 = vst.msk [vmem:[#allocation3] sm:$0xff] %vm1860, %v1813
        %1862 = vst.msk [vmem:[#allocation3 + $0x18] sm:$0xff] %vm1860, %v1815
        %1863 = vst.msk [vmem:[#allocation3 + $0x30] sm:$0xff] %vm1860, %v1817
        %1864 = vst.msk [vmem:[#allocation3 + $0x48] sm:$0xff] %vm1860, %v1819
        %1865 = vst.msk [vmem:[#allocation3 + $0x60] sm:$0xff] %vm1860, %v1821
        %1866 = vst.msk [vmem:[#allocation3 + $0x78] sm:$0xff] %vm1860, %v1823
        %1867 = vst.msk [vmem:[#allocation3 + $0x90] sm:$0xff] %vm1860, %v1825
        %1868 = vst.msk [vmem:[#allocation3 + $0xa8] sm:$0xff] %vm1860, %v1827
        %1869 = vst.msk [vmem:[#allocation3 + $0xc0] sm:$0xff] %vm1860, %v1829
        %1870 = vst.msk [vmem:[#allocation3 + $0xd8] sm:$0xff] %vm1860, %v1831
        %1871 = vst.msk [vmem:[#allocation3 + $0xf0] sm:$0xff] %vm1860, %v1833
        %1872 = vst.msk [vmem:[#allocation3 + $0x108] sm:$0xff] %vm1860, %v1835
        %1873 = vst.msk [vmem:[#allocation3 + $0x120] sm:$0xff] %vm1860, %v1837
        %1874 = vst.msk [vmem:[#allocation3 + $0x138] sm:$0xff] %vm1860, %v1839
        %1875 = vst.msk [vmem:[#allocation3 + $0x150] sm:$0xff] %vm1860, %v1841
        %1876 = vst.msk [vmem:[#allocation3 + $0x168] sm:$0xff] %vm1860, %v1843
        %v1877 = vld [vmem:[%s890] sm:$0xf]
        %v1878 = vld [vmem:[%s890 + $0x4] sm:$0xf]
        %v1879 = vld [vmem:[%s890 + $0xc] sm:$0xf]
        %v1880 = vld [vmem:[%s890 + $0x10] sm:$0xf]
        %v1881 = vld [vmem:[%s890 + $0x18] sm:$0xf]
        %v1882 = vld [vmem:[%s890 + $0x1c] sm:$0xf]
        %v1883 = vld [vmem:[%s890 + $0x24] sm:$0xf]
        %v1884 = vld [vmem:[%s890 + $0x28] sm:$0xf]
        %v1885 = vld [vmem:[%s890 + $0x30] sm:$0xf]
        %v1886 = vld [vmem:[%s890 + $0x34] sm:$0xf]
        %v1887 = vld [vmem:[%s890 + $0x3c] sm:$0xf]
        %v1888 = vld [vmem:[%s890 + $0x40] sm:$0xf]
        %v1889 = vld [vmem:[%s890 + $0x48] sm:$0xf]
        %v1890 = vld [vmem:[%s890 + $0x4c] sm:$0xf]
        %v1891 = vld [vmem:[%s890 + $0x54] sm:$0xf]
        %v1892 = vld [vmem:[%s890 + $0x58] sm:$0xf]
        %v1893 = vld [vmem:[%s890 + $0x60] sm:$0xf]
        %v1894 = vld [vmem:[%s890 + $0x64] sm:$0xf]
        %v1895 = vld [vmem:[%s890 + $0x6c] sm:$0xf]
        %v1896 = vld [vmem:[%s890 + $0x70] sm:$0xf]
        %v1897 = vld [vmem:[%s890 + $0x78] sm:$0xf]
        %v1898 = vld [vmem:[%s890 + $0x7c] sm:$0xf]
        %v1899 = vld [vmem:[%s890 + $0x84] sm:$0xf]
        %v1900 = vld [vmem:[%s890 + $0x88] sm:$0xf]
        %v1901 = vld [vmem:[%s890 + $0x90] sm:$0xf]
        %v1902 = vld [vmem:[%s890 + $0x94] sm:$0xf]
        %v1903 = vld [vmem:[%s890 + $0x9c] sm:$0xf]
        %v1904 = vld [vmem:[%s890 + $0xa0] sm:$0xf]
        %v1905 = vld [vmem:[%s890 + $0xa8] sm:$0xf]
        %v1906 = vld [vmem:[%s890 + $0xac] sm:$0xf]
        %v1907 = vld [vmem:[%s890 + $0xb4] sm:$0xf]
        %v1908 = vld [vmem:[%s890 + $0xb8] sm:$0xf]
        %v1941 = vunpack.c.l.b16 %v1877
        %v1942 = vunpack.c.l.b16 %v1878
        %v1943 = vunpack.c.l.b16 %v1879
        %v1944 = vunpack.c.l.b16 %v1880
        %v1945 = vunpack.c.l.b16 %v1881
        %v1946 = vunpack.c.l.b16 %v1882
        %v1947 = vunpack.c.l.b16 %v1883
        %v1948 = vunpack.c.l.b16 %v1884
        %v1949 = vunpack.c.l.b16 %v1885
        %v1950 = vunpack.c.l.b16 %v1886
        %v1951 = vunpack.c.l.b16 %v1887
        %v1952 = vunpack.c.l.b16 %v1888
        %v1953 = vunpack.c.l.b16 %v1889
        %v1954 = vunpack.c.l.b16 %v1890
        %v1955 = vunpack.c.l.b16 %v1891
        %v1956 = vunpack.c.l.b16 %v1892
        %v1957 = vunpack.c.l.b16 %v1893
        %v1958 = vunpack.c.l.b16 %v1894
        %v1959 = vunpack.c.l.b16 %v1895
        %v1960 = vunpack.c.l.b16 %v1896
        %v1961 = vunpack.c.l.b16 %v1897
        %v1962 = vunpack.c.l.b16 %v1898
        %v1963 = vunpack.c.l.b16 %v1899
        %v1964 = vunpack.c.l.b16 %v1900
        %v1965 = vunpack.c.l.b16 %v1901
        %v1966 = vunpack.c.l.b16 %v1902
        %v1967 = vunpack.c.l.b16 %v1903
        %v1968 = vunpack.c.l.b16 %v1904
        %v1969 = vunpack.c.l.b16 %v1905
        %v1970 = vunpack.c.l.b16 %v1906
        %v1971 = vunpack.c.l.b16 %v1907
        %v1972 = vunpack.c.l.b16 %v1908
        %v1973 = vpack.c.b16 %v1942, %v1941
        %v1974 = vpack.c.b16 %v1944, %v1943
        %v1975 = vpack.c.b16 %v1946, %v1945
        %v1976 = vpack.c.b16 %v1948, %v1947
        %v1977 = vpack.c.b16 %v1950, %v1949
        %v1978 = vpack.c.b16 %v1952, %v1951
        %v1979 = vpack.c.b16 %v1954, %v1953
        %v1980 = vpack.c.b16 %v1956, %v1955
        %v1981 = vpack.c.b16 %v1958, %v1957
        %v1982 = vpack.c.b16 %v1960, %v1959
        %v1983 = vpack.c.b16 %v1962, %v1961
        %v1984 = vpack.c.b16 %v1964, %v1963
        %v1985 = vpack.c.b16 %v1966, %v1965
        %v1986 = vpack.c.b16 %v1968, %v1967
        %v1987 = vpack.c.b16 %v1970, %v1969
        %v1988 = vpack.c.b16 %v1972, %v1971
        %1989 = vrot.lane.b32.xlu0 %v1973, 96
        %v1990 = vpop.permute.xlu0 %1989
        %1991 = vrot.lane.b32.xlu0 %v1974, 96
        %v1992 = vpop.permute.xlu0 %1991
        %1993 = vrot.lane.b32.xlu0 %v1975, 96
        %v1994 = vpop.permute.xlu0 %1993
        %1995 = vrot.lane.b32.xlu0 %v1976, 96
        %v1996 = vpop.permute.xlu0 %1995
        %1997 = vrot.lane.b32.xlu0 %v1977, 96
        %v1998 = vpop.permute.xlu0 %1997
        %1999 = vrot.lane.b32.xlu0 %v1978, 96
        %v2000 = vpop.permute.xlu0 %1999
        %2001 = vrot.lane.b32.xlu0 %v1979, 96
        %v2002 = vpop.permute.xlu0 %2001
        %2003 = vrot.lane.b32.xlu0 %v1980, 96
        %v2004 = vpop.permute.xlu0 %2003
        %2005 = vrot.lane.b32.xlu0 %v1981, 96
        %v2006 = vpop.permute.xlu0 %2005
        %2007 = vrot.lane.b32.xlu0 %v1982, 96
        %v2008 = vpop.permute.xlu0 %2007
        %2009 = vrot.lane.b32.xlu0 %v1983, 96
        %v2010 = vpop.permute.xlu0 %2009
        %2011 = vrot.lane.b32.xlu0 %v1984, 96
        %v2012 = vpop.permute.xlu0 %2011
        %2013 = vrot.lane.b32.xlu0 %v1985, 96
        %v2014 = vpop.permute.xlu0 %2013
        %2015 = vrot.lane.b32.xlu0 %v1986, 96
        %v2016 = vpop.permute.xlu0 %2015
        %2017 = vrot.lane.b32.xlu0 %v1987, 96
        %v2018 = vpop.permute.xlu0 %2017
        %2019 = vrot.lane.b32.xlu0 %v1988, 96
        %v2020 = vpop.permute.xlu0 %2019
        %vm2037 = vcmask 1048320
        %2038 = vst.msk [vmem:[#allocation3] sm:$0xff] %vm2037, %v1990
        %2039 = vst.msk [vmem:[#allocation3 + $0x18] sm:$0xff] %vm2037, %v1992
        %2040 = vst.msk [vmem:[#allocation3 + $0x30] sm:$0xff] %vm2037, %v1994
        %2041 = vst.msk [vmem:[#allocation3 + $0x48] sm:$0xff] %vm2037, %v1996
        %2042 = vst.msk [vmem:[#allocation3 + $0x60] sm:$0xff] %vm2037, %v1998
        %2043 = vst.msk [vmem:[#allocation3 + $0x78] sm:$0xff] %vm2037, %v2000
        %2044 = vst.msk [vmem:[#allocation3 + $0x90] sm:$0xff] %vm2037, %v2002
        %2045 = vst.msk [vmem:[#allocation3 + $0xa8] sm:$0xff] %vm2037, %v2004
        %2046 = vst.msk [vmem:[#allocation3 + $0xc0] sm:$0xff] %vm2037, %v2006
        %2047 = vst.msk [vmem:[#allocation3 + $0xd8] sm:$0xff] %vm2037, %v2008
        %2048 = vst.msk [vmem:[#allocation3 + $0xf0] sm:$0xff] %vm2037, %v2010
        %2049 = vst.msk [vmem:[#allocation3 + $0x108] sm:$0xff] %vm2037, %v2012
        %2050 = vst.msk [vmem:[#allocation3 + $0x120] sm:$0xff] %vm2037, %v2014
        %2051 = vst.msk [vmem:[#allocation3 + $0x138] sm:$0xff] %vm2037, %v2016
        %2052 = vst.msk [vmem:[#allocation3 + $0x150] sm:$0xff] %vm2037, %v2018
        %2053 = vst.msk [vmem:[#allocation3 + $0x168] sm:$0xff] %vm2037, %v2020
        %v2054 = vld [vmem:[%s890] sm:$0xf]
        %v2055 = vld [vmem:[%s890 + $0x4] sm:$0xf]
        %v2056 = vld [vmem:[%s890 + $0x8] sm:$0x1]
        %v2057 = vld [vmem:[%s890 + $0xc] sm:$0xf]
        %v2058 = vld [vmem:[%s890 + $0x10] sm:$0xf]
        %v2059 = vld [vmem:[%s890 + $0x14] sm:$0x1]
        %v2060 = vld [vmem:[%s890 + $0x18] sm:$0xf]
        %v2061 = vld [vmem:[%s890 + $0x1c] sm:$0xf]
        %v2062 = vld [vmem:[%s890 + $0x20] sm:$0x1]
        %v2063 = vld [vmem:[%s890 + $0x24] sm:$0xf]
        %v2064 = vld [vmem:[%s890 + $0x28] sm:$0xf]
        %v2065 = vld [vmem:[%s890 + $0x2c] sm:$0x1]
        %v2066 = vld [vmem:[%s890 + $0x30] sm:$0xf]
        %v2067 = vld [vmem:[%s890 + $0x34] sm:$0xf]
        %v2068 = vld [vmem:[%s890 + $0x38] sm:$0x1]
        %v2069 = vld [vmem:[%s890 + $0x3c] sm:$0xf]
        %v2070 = vld [vmem:[%s890 + $0x40] sm:$0xf]
        %v2071 = vld [vmem:[%s890 + $0x44] sm:$0x1]
        %v2072 = vld [vmem:[%s890 + $0x48] sm:$0xf]
        %v2073 = vld [vmem:[%s890 + $0x4c] sm:$0xf]
        %v2074 = vld [vmem:[%s890 + $0x50] sm:$0x1]
        %v2075 = vld [vmem:[%s890 + $0x54] sm:$0xf]
        %v2076 = vld [vmem:[%s890 + $0x58] sm:$0xf]
        %v2077 = vld [vmem:[%s890 + $0x5c] sm:$0x1]
        %v2078 = vld [vmem:[%s890 + $0x60] sm:$0xf]
        %v2079 = vld [vmem:[%s890 + $0x64] sm:$0xf]
        %v2080 = vld [vmem:[%s890 + $0x68] sm:$0x1]
        %v2081 = vld [vmem:[%s890 + $0x6c] sm:$0xf]
        %v2082 = vld [vmem:[%s890 + $0x70] sm:$0xf]
        %v2083 = vld [vmem:[%s890 + $0x74] sm:$0x1]
        %v2084 = vld [vmem:[%s890 + $0x78] sm:$0xf]
        %v2085 = vld [vmem:[%s890 + $0x7c] sm:$0xf]
        %v2086 = vld [vmem:[%s890 + $0x80] sm:$0x1]
        %v2087 = vld [vmem:[%s890 + $0x84] sm:$0xf]
        %v2088 = vld [vmem:[%s890 + $0x88] sm:$0xf]
        %v2089 = vld [vmem:[%s890 + $0x8c] sm:$0x1]
        %v2090 = vld [vmem:[%s890 + $0x90] sm:$0xf]
        %v2091 = vld [vmem:[%s890 + $0x94] sm:$0xf]
        %v2092 = vld [vmem:[%s890 + $0x98] sm:$0x1]
        %v2093 = vld [vmem:[%s890 + $0x9c] sm:$0xf]
        %v2094 = vld [vmem:[%s890 + $0xa0] sm:$0xf]
        %v2095 = vld [vmem:[%s890 + $0xa4] sm:$0x1]
        %v2096 = vld [vmem:[%s890 + $0xa8] sm:$0xf]
        %v2097 = vld [vmem:[%s890 + $0xac] sm:$0xf]
        %v2098 = vld [vmem:[%s890 + $0xb0] sm:$0x1]
        %v2099 = vld [vmem:[%s890 + $0xb4] sm:$0xf]
        %v2100 = vld [vmem:[%s890 + $0xb8] sm:$0xf]
        %v2101 = vld [vmem:[%s890 + $0xbc] sm:$0x1]
        %v2150 = vunpack.c.l.b16 %v2054
        %v2151 = vunpack.c.l.b16 %v2055
        %v2152 = vunpack.c.l.b16 %v2056
        %v2153 = vunpack.c.l.b16 %v2057
        %v2154 = vunpack.c.l.b16 %v2058
        %v2155 = vunpack.c.l.b16 %v2059
        %v2156 = vunpack.c.l.b16 %v2060
        %v2157 = vunpack.c.l.b16 %v2061
        %v2158 = vunpack.c.l.b16 %v2062
        %v2159 = vunpack.c.l.b16 %v2063
        %v2160 = vunpack.c.l.b16 %v2064
        %v2161 = vunpack.c.l.b16 %v2065
        %v2162 = vunpack.c.l.b16 %v2066
        %v2163 = vunpack.c.l.b16 %v2067
        %v2164 = vunpack.c.l.b16 %v2068
        %v2165 = vunpack.c.l.b16 %v2069
        %v2166 = vunpack.c.l.b16 %v2070
        %v2167 = vunpack.c.l.b16 %v2071
        %v2168 = vunpack.c.l.b16 %v2072
        %v2169 = vunpack.c.l.b16 %v2073
        %v2170 = vunpack.c.l.b16 %v2074
        %v2171 = vunpack.c.l.b16 %v2075
        %v2172 = vunpack.c.l.b16 %v2076
        %v2173 = vunpack.c.l.b16 %v2077
        %v2174 = vunpack.c.l.b16 %v2078
        %v2175 = vunpack.c.l.b16 %v2079
        %v2176 = vunpack.c.l.b16 %v2080
        %v2177 = vunpack.c.l.b16 %v2081
        %v2178 = vunpack.c.l.b16 %v2082
        %v2179 = vunpack.c.l.b16 %v2083
        %v2180 = vunpack.c.l.b16 %v2084
        %v2181 = vunpack.c.l.b16 %v2085
        %v2182 = vunpack.c.l.b16 %v2086
        %v2183 = vunpack.c.l.b16 %v2087
        %v2184 = vunpack.c.l.b16 %v2088
        %v2185 = vunpack.c.l.b16 %v2089
        %v2186 = vunpack.c.l.b16 %v2090
        %v2187 = vunpack.c.l.b16 %v2091
        %v2188 = vunpack.c.l.b16 %v2092
        %v2189 = vunpack.c.l.b16 %v2093
        %v2190 = vunpack.c.l.b16 %v2094
        %v2191 = vunpack.c.l.b16 %v2095
        %v2192 = vunpack.c.l.b16 %v2096
        %v2193 = vunpack.c.l.b16 %v2097
        %v2194 = vunpack.c.l.b16 %v2098
        %v2195 = vunpack.c.l.b16 %v2099
        %v2196 = vunpack.c.l.b16 %v2100
        %v2197 = vunpack.c.l.b16 %v2101
        %v2198 = vpack.c.b16 %v2151, %v2150
        %v2199 = vpack.c.b16 %v2152, %v2152
        %v2200 = vpack.c.b16 %v2154, %v2153
        %v2201 = vpack.c.b16 %v2155, %v2155
        %v2202 = vpack.c.b16 %v2157, %v2156
        %v2203 = vpack.c.b16 %v2158, %v2158
        %v2204 = vpack.c.b16 %v2160, %v2159
        %v2205 = vpack.c.b16 %v2161, %v2161
        %v2206 = vpack.c.b16 %v2163, %v2162
        %v2207 = vpack.c.b16 %v2164, %v2164
        %v2208 = vpack.c.b16 %v2166, %v2165
        %v2209 = vpack.c.b16 %v2167, %v2167
        %v2210 = vpack.c.b16 %v2169, %v2168
        %v2211 = vpack.c.b16 %v2170, %v2170
        %v2212 = vpack.c.b16 %v2172, %v2171
        %v2213 = vpack.c.b16 %v2173, %v2173
        %v2214 = vpack.c.b16 %v2175, %v2174
        %v2215 = vpack.c.b16 %v2176, %v2176
        %v2216 = vpack.c.b16 %v2178, %v2177
        %v2217 = vpack.c.b16 %v2179, %v2179
        %v2218 = vpack.c.b16 %v2181, %v2180
        %v2219 = vpack.c.b16 %v2182, %v2182
        %v2220 = vpack.c.b16 %v2184, %v2183
        %v2221 = vpack.c.b16 %v2185, %v2185
        %v2222 = vpack.c.b16 %v2187, %v2186
        %v2223 = vpack.c.b16 %v2188, %v2188
        %v2224 = vpack.c.b16 %v2190, %v2189
        %v2225 = vpack.c.b16 %v2191, %v2191
        %v2226 = vpack.c.b16 %v2193, %v2192
        %v2227 = vpack.c.b16 %v2194, %v2194
        %v2228 = vpack.c.b16 %v2196, %v2195
        %v2229 = vpack.c.b16 %v2197, %v2197
        %v2231 = vshrl.u32 %v2198, 16
        %v2233 = vshll.u32 %v2198, 16
        %v2235 = vrot.slane %v2233, 1
        %v2236 = vor.u32 %v2231, %v2235
        %v2238 = vshll.u32 %v2199, 16
        %v2240 = vrot.slane %v2238, 1
        %v2241 = vsel %vm1329, %v2236, %v2240
        %v2243 = vshrl.u32 %v2200, 16
        %v2245 = vshll.u32 %v2200, 16
        %v2247 = vrot.slane %v2245, 1
        %v2248 = vor.u32 %v2243, %v2247
        %v2250 = vshll.u32 %v2201, 16
        %v2252 = vrot.slane %v2250, 1
        %v2253 = vsel %vm1329, %v2248, %v2252
        %v2255 = vshrl.u32 %v2202, 16
        %v2257 = vshll.u32 %v2202, 16
        %v2259 = vrot.slane %v2257, 1
        %v2260 = vor.u32 %v2255, %v2259
        %v2262 = vshll.u32 %v2203, 16
        %v2264 = vrot.slane %v2262, 1
        %v2265 = vsel %vm1329, %v2260, %v2264
        %v2267 = vshrl.u32 %v2204, 16
        %v2269 = vshll.u32 %v2204, 16
        %v2271 = vrot.slane %v2269, 1
        %v2272 = vor.u32 %v2267, %v2271
        %v2274 = vshll.u32 %v2205, 16
        %v2276 = vrot.slane %v2274, 1
        %v2277 = vsel %vm1329, %v2272, %v2276
        %v2279 = vshrl.u32 %v2206, 16
        %v2281 = vshll.u32 %v2206, 16
        %v2283 = vrot.slane %v2281, 1
        %v2284 = vor.u32 %v2279, %v2283
        %v2286 = vshll.u32 %v2207, 16
        %v2288 = vrot.slane %v2286, 1
        %v2289 = vsel %vm1329, %v2284, %v2288
        %v2291 = vshrl.u32 %v2208, 16
        %v2293 = vshll.u32 %v2208, 16
        %v2295 = vrot.slane %v2293, 1
        %v2296 = vor.u32 %v2291, %v2295
        %v2298 = vshll.u32 %v2209, 16
        %v2300 = vrot.slane %v2298, 1
        %v2301 = vsel %vm1329, %v2296, %v2300
        %v2303 = vshrl.u32 %v2210, 16
        %v2305 = vshll.u32 %v2210, 16
        %v2307 = vrot.slane %v2305, 1
        %v2308 = vor.u32 %v2303, %v2307
        %v2310 = vshll.u32 %v2211, 16
        %v2312 = vrot.slane %v2310, 1
        %v2313 = vsel %vm1329, %v2308, %v2312
        %v2315 = vshrl.u32 %v2212, 16
        %v2317 = vshll.u32 %v2212, 16
        %v2319 = vrot.slane %v2317, 1
        %v2320 = vor.u32 %v2315, %v2319
        %v2322 = vshll.u32 %v2213, 16
        %v2324 = vrot.slane %v2322, 1
        %v2325 = vsel %vm1329, %v2320, %v2324
        %v2327 = vshrl.u32 %v2214, 16
        %v2329 = vshll.u32 %v2214, 16
        %v2331 = vrot.slane %v2329, 1
        %v2332 = vor.u32 %v2327, %v2331
        %v2334 = vshll.u32 %v2215, 16
        %v2336 = vrot.slane %v2334, 1
        %v2337 = vsel %vm1329, %v2332, %v2336
        %v2339 = vshrl.u32 %v2216, 16
        %v2341 = vshll.u32 %v2216, 16
        %v2343 = vrot.slane %v2341, 1
        %v2344 = vor.u32 %v2339, %v2343
        %v2346 = vshll.u32 %v2217, 16
        %v2348 = vrot.slane %v2346, 1
        %v2349 = vsel %vm1329, %v2344, %v2348
        %v2351 = vshrl.u32 %v2218, 16
        %v2353 = vshll.u32 %v2218, 16
        %v2355 = vrot.slane %v2353, 1
        %v2356 = vor.u32 %v2351, %v2355
        %v2358 = vshll.u32 %v2219, 16
        %v2360 = vrot.slane %v2358, 1
        %v2361 = vsel %vm1329, %v2356, %v2360
        %v2363 = vshrl.u32 %v2220, 16
        %v2365 = vshll.u32 %v2220, 16
        %v2367 = vrot.slane %v2365, 1
        %v2368 = vor.u32 %v2363, %v2367
        %v2370 = vshll.u32 %v2221, 16
        %v2372 = vrot.slane %v2370, 1
        %v2373 = vsel %vm1329, %v2368, %v2372
        %v2375 = vshrl.u32 %v2222, 16
        %v2377 = vshll.u32 %v2222, 16
        %v2379 = vrot.slane %v2377, 1
        %v2380 = vor.u32 %v2375, %v2379
        %v2382 = vshll.u32 %v2223, 16
        %v2384 = vrot.slane %v2382, 1
        %v2385 = vsel %vm1329, %v2380, %v2384
        %v2387 = vshrl.u32 %v2224, 16
        %v2389 = vshll.u32 %v2224, 16
        %v2391 = vrot.slane %v2389, 1
        %v2392 = vor.u32 %v2387, %v2391
        %v2394 = vshll.u32 %v2225, 16
        %v2396 = vrot.slane %v2394, 1
        %v2397 = vsel %vm1329, %v2392, %v2396
        %v2399 = vshrl.u32 %v2226, 16
        %v2401 = vshll.u32 %v2226, 16
        %v2403 = vrot.slane %v2401, 1
        %v2404 = vor.u32 %v2399, %v2403
        %v2406 = vshll.u32 %v2227, 16
        %v2408 = vrot.slane %v2406, 1
        %v2409 = vsel %vm1329, %v2404, %v2408
        %v2411 = vshrl.u32 %v2228, 16
        %v2413 = vshll.u32 %v2228, 16
        %v2415 = vrot.slane %v2413, 1
        %v2416 = vor.u32 %v2411, %v2415
        %v2418 = vshll.u32 %v2229, 16
        %v2420 = vrot.slane %v2418, 1
        %v2421 = vsel %vm1329, %v2416, %v2420
        %2438 = vst.msk [vmem:[#allocation3 + $0x8] sm:$0xff] %vm1136, %v2241
        %2439 = vst.msk [vmem:[#allocation3 + $0x20] sm:$0xff] %vm1136, %v2253
        %2440 = vst.msk [vmem:[#allocation3 + $0x38] sm:$0xff] %vm1136, %v2265
        %2441 = vst.msk [vmem:[#allocation3 + $0x50] sm:$0xff] %vm1136, %v2277
        %2442 = vst.msk [vmem:[#allocation3 + $0x68] sm:$0xff] %vm1136, %v2289
        %2443 = vst.msk [vmem:[#allocation3 + $0x80] sm:$0xff] %vm1136, %v2301
        %2444 = vst.msk [vmem:[#allocation3 + $0x98] sm:$0xff] %vm1136, %v2313
        %2445 = vst.msk [vmem:[#allocation3 + $0xb0] sm:$0xff] %vm1136, %v2325
        %2446 = vst.msk [vmem:[#allocation3 + $0xc8] sm:$0xff] %vm1136, %v2337
        %2447 = vst.msk [vmem:[#allocation3 + $0xe0] sm:$0xff] %vm1136, %v2349
        %2448 = vst.msk [vmem:[#allocation3 + $0xf8] sm:$0xff] %vm1136, %v2361
        %2449 = vst.msk [vmem:[#allocation3 + $0x110] sm:$0xff] %vm1136, %v2373
        %2450 = vst.msk [vmem:[#allocation3 + $0x128] sm:$0xff] %vm1136, %v2385
        %2451 = vst.msk [vmem:[#allocation3 + $0x140] sm:$0xff] %vm1136, %v2397
        %2452 = vst.msk [vmem:[#allocation3 + $0x158] sm:$0xff] %vm1136, %v2409
        %2453 = vst.msk [vmem:[#allocation3 + $0x170] sm:$0xff] %vm1136, %v2421
        %v2454 = vld [vmem:[%s890] sm:$0xe]
        %v2455 = vld [vmem:[%s890 + $0x4] sm:$0xf]
        %v2456 = vld [vmem:[%s890 + $0x8] sm:$0x1]
        %v2457 = vld [vmem:[%s890 + $0xc] sm:$0xe]
        %v2458 = vld [vmem:[%s890 + $0x10] sm:$0xf]
        %v2459 = vld [vmem:[%s890 + $0x14] sm:$0x1]
        %v2460 = vld [vmem:[%s890 + $0x18] sm:$0xe]
        %v2461 = vld [vmem:[%s890 + $0x1c] sm:$0xf]
        %v2462 = vld [vmem:[%s890 + $0x20] sm:$0x1]
        %v2463 = vld [vmem:[%s890 + $0x24] sm:$0xe]
        %v2464 = vld [vmem:[%s890 + $0x28] sm:$0xf]
        %v2465 = vld [vmem:[%s890 + $0x2c] sm:$0x1]
        %v2466 = vld [vmem:[%s890 + $0x30] sm:$0xe]
        %v2467 = vld [vmem:[%s890 + $0x34] sm:$0xf]
        %v2468 = vld [vmem:[%s890 + $0x38] sm:$0x1]
        %v2469 = vld [vmem:[%s890 + $0x3c] sm:$0xe]
        %v2470 = vld [vmem:[%s890 + $0x40] sm:$0xf]
        %v2471 = vld [vmem:[%s890 + $0x44] sm:$0x1]
        %v2472 = vld [vmem:[%s890 + $0x48] sm:$0xe]
        %v2473 = vld [vmem:[%s890 + $0x4c] sm:$0xf]
        %v2474 = vld [vmem:[%s890 + $0x50] sm:$0x1]
        %v2475 = vld [vmem:[%s890 + $0x54] sm:$0xe]
        %v2476 = vld [vmem:[%s890 + $0x58] sm:$0xf]
        %v2477 = vld [vmem:[%s890 + $0x5c] sm:$0x1]
        %v2478 = vld [vmem:[%s890 + $0x60] sm:$0xe]
        %v2479 = vld [vmem:[%s890 + $0x64] sm:$0xf]
        %v2480 = vld [vmem:[%s890 + $0x68] sm:$0x1]
        %v2481 = vld [vmem:[%s890 + $0x6c] sm:$0xe]
        %v2482 = vld [vmem:[%s890 + $0x70] sm:$0xf]
        %v2483 = vld [vmem:[%s890 + $0x74] sm:$0x1]
        %v2484 = vld [vmem:[%s890 + $0x78] sm:$0xe]
        %v2485 = vld [vmem:[%s890 + $0x7c] sm:$0xf]
        %v2486 = vld [vmem:[%s890 + $0x80] sm:$0x1]
        %v2487 = vld [vmem:[%s890 + $0x84] sm:$0xe]
        %v2488 = vld [vmem:[%s890 + $0x88] sm:$0xf]
        %v2489 = vld [vmem:[%s890 + $0x8c] sm:$0x1]
        %v2490 = vld [vmem:[%s890 + $0x90] sm:$0xe]
        %v2491 = vld [vmem:[%s890 + $0x94] sm:$0xf]
        %v2492 = vld [vmem:[%s890 + $0x98] sm:$0x1]
        %v2493 = vld [vmem:[%s890 + $0x9c] sm:$0xe]
        %v2494 = vld [vmem:[%s890 + $0xa0] sm:$0xf]
        %v2495 = vld [vmem:[%s890 + $0xa4] sm:$0x1]
        %v2496 = vld [vmem:[%s890 + $0xa8] sm:$0xe]
        %v2497 = vld [vmem:[%s890 + $0xac] sm:$0xf]
        %v2498 = vld [vmem:[%s890 + $0xb0] sm:$0x1]
        %v2499 = vld [vmem:[%s890 + $0xb4] sm:$0xe]
        %v2500 = vld [vmem:[%s890 + $0xb8] sm:$0xf]
        %v2501 = vld [vmem:[%s890 + $0xbc] sm:$0x1]
        %v2550 = vunpack.c.l.b16 %v2454
        %v2551 = vunpack.c.l.b16 %v2455
        %v2552 = vunpack.c.l.b16 %v2456
        %v2553 = vunpack.c.l.b16 %v2457
        %v2554 = vunpack.c.l.b16 %v2458
        %v2555 = vunpack.c.l.b16 %v2459
        %v2556 = vunpack.c.l.b16 %v2460
        %v2557 = vunpack.c.l.b16 %v2461
        %v2558 = vunpack.c.l.b16 %v2462
        %v2559 = vunpack.c.l.b16 %v2463
        %v2560 = vunpack.c.l.b16 %v2464
        %v2561 = vunpack.c.l.b16 %v2465
        %v2562 = vunpack.c.l.b16 %v2466
        %v2563 = vunpack.c.l.b16 %v2467
        %v2564 = vunpack.c.l.b16 %v2468
        %v2565 = vunpack.c.l.b16 %v2469
        %v2566 = vunpack.c.l.b16 %v2470
        %v2567 = vunpack.c.l.b16 %v2471
        %v2568 = vunpack.c.l.b16 %v2472
        %v2569 = vunpack.c.l.b16 %v2473
        %v2570 = vunpack.c.l.b16 %v2474
        %v2571 = vunpack.c.l.b16 %v2475
        %v2572 = vunpack.c.l.b16 %v2476
        %v2573 = vunpack.c.l.b16 %v2477
        %v2574 = vunpack.c.l.b16 %v2478
        %v2575 = vunpack.c.l.b16 %v2479
        %v2576 = vunpack.c.l.b16 %v2480
        %v2577 = vunpack.c.l.b16 %v2481
        %v2578 = vunpack.c.l.b16 %v2482
        %v2579 = vunpack.c.l.b16 %v2483
        %v2580 = vunpack.c.l.b16 %v2484
        %v2581 = vunpack.c.l.b16 %v2485
        %v2582 = vunpack.c.l.b16 %v2486
        %v2583 = vunpack.c.l.b16 %v2487
        %v2584 = vunpack.c.l.b16 %v2488
        %v2585 = vunpack.c.l.b16 %v2489
        %v2586 = vunpack.c.l.b16 %v2490
        %v2587 = vunpack.c.l.b16 %v2491
        %v2588 = vunpack.c.l.b16 %v2492
        %v2589 = vunpack.c.l.b16 %v2493
        %v2590 = vunpack.c.l.b16 %v2494
        %v2591 = vunpack.c.l.b16 %v2495
        %v2592 = vunpack.c.l.b16 %v2496
        %v2593 = vunpack.c.l.b16 %v2497
        %v2594 = vunpack.c.l.b16 %v2498
        %v2595 = vunpack.c.l.b16 %v2499
        %v2596 = vunpack.c.l.b16 %v2500
        %v2597 = vunpack.c.l.b16 %v2501
        %v2598 = vpack.c.b16 %v2551, %v2550
        %v2599 = vpack.c.b16 %v2552, %v2552
        %v2600 = vpack.c.b16 %v2554, %v2553
        %v2601 = vpack.c.b16 %v2555, %v2555
        %v2602 = vpack.c.b16 %v2557, %v2556
        %v2603 = vpack.c.b16 %v2558, %v2558
        %v2604 = vpack.c.b16 %v2560, %v2559
        %v2605 = vpack.c.b16 %v2561, %v2561
        %v2606 = vpack.c.b16 %v2563, %v2562
        %v2607 = vpack.c.b16 %v2564, %v2564
        %v2608 = vpack.c.b16 %v2566, %v2565
        %v2609 = vpack.c.b16 %v2567, %v2567
        %v2610 = vpack.c.b16 %v2569, %v2568
        %v2611 = vpack.c.b16 %v2570, %v2570
        %v2612 = vpack.c.b16 %v2572, %v2571
        %v2613 = vpack.c.b16 %v2573, %v2573
        %v2614 = vpack.c.b16 %v2575, %v2574
        %v2615 = vpack.c.b16 %v2576, %v2576
        %v2616 = vpack.c.b16 %v2578, %v2577
        %v2617 = vpack.c.b16 %v2579, %v2579
        %v2618 = vpack.c.b16 %v2581, %v2580
        %v2619 = vpack.c.b16 %v2582, %v2582
        %v2620 = vpack.c.b16 %v2584, %v2583
        %v2621 = vpack.c.b16 %v2585, %v2585
        %v2622 = vpack.c.b16 %v2587, %v2586
        %v2623 = vpack.c.b16 %v2588, %v2588
        %v2624 = vpack.c.b16 %v2590, %v2589
        %v2625 = vpack.c.b16 %v2591, %v2591
        %v2626 = vpack.c.b16 %v2593, %v2592
        %v2627 = vpack.c.b16 %v2594, %v2594
        %v2628 = vpack.c.b16 %v2596, %v2595
        %v2629 = vpack.c.b16 %v2597, %v2597
        %v2630 = vrot.slane %v2598, 1
        %v2631 = vrot.slane %v2599, 1
        %v2632 = vsel %vm1763, %v2630, %v2631
        %v2633 = vrot.slane %v2600, 1
        %v2634 = vrot.slane %v2601, 1
        %v2635 = vsel %vm1763, %v2633, %v2634
        %v2636 = vrot.slane %v2602, 1
        %v2637 = vrot.slane %v2603, 1
        %v2638 = vsel %vm1763, %v2636, %v2637
        %v2639 = vrot.slane %v2604, 1
        %v2640 = vrot.slane %v2605, 1
        %v2641 = vsel %vm1763, %v2639, %v2640
        %v2642 = vrot.slane %v2606, 1
        %v2643 = vrot.slane %v2607, 1
        %v2644 = vsel %vm1763, %v2642, %v2643
        %v2645 = vrot.slane %v2608, 1
        %v2646 = vrot.slane %v2609, 1
        %v2647 = vsel %vm1763, %v2645, %v2646
        %v2648 = vrot.slane %v2610, 1
        %v2649 = vrot.slane %v2611, 1
        %v2650 = vsel %vm1763, %v2648, %v2649
        %v2651 = vrot.slane %v2612, 1
        %v2652 = vrot.slane %v2613, 1
        %v2653 = vsel %vm1763, %v2651, %v2652
        %v2654 = vrot.slane %v2614, 1
        %v2655 = vrot.slane %v2615, 1
        %v2656 = vsel %vm1763, %v2654, %v2655
        %v2657 = vrot.slane %v2616, 1
        %v2658 = vrot.slane %v2617, 1
        %v2659 = vsel %vm1763, %v2657, %v2658
        %v2660 = vrot.slane %v2618, 1
        %v2661 = vrot.slane %v2619, 1
        %v2662 = vsel %vm1763, %v2660, %v2661
        %v2663 = vrot.slane %v2620, 1
        %v2664 = vrot.slane %v2621, 1
        %v2665 = vsel %vm1763, %v2663, %v2664
        %v2666 = vrot.slane %v2622, 1
        %v2667 = vrot.slane %v2623, 1
        %v2668 = vsel %vm1763, %v2666, %v2667
        %v2669 = vrot.slane %v2624, 1
        %v2670 = vrot.slane %v2625, 1
        %v2671 = vsel %vm1763, %v2669, %v2670
        %v2672 = vrot.slane %v2626, 1
        %v2673 = vrot.slane %v2627, 1
        %v2674 = vsel %vm1763, %v2672, %v2673
        %v2675 = vrot.slane %v2628, 1
        %v2676 = vrot.slane %v2629, 1
        %v2677 = vsel %vm1763, %v2675, %v2676
        %2678 = vrot.lane.b32.xlu0 %v2632, 32
        %v2679 = vpop.permute.xlu0 %2678
        %2680 = vrot.lane.b32.xlu0 %v2635, 32
        %v2681 = vpop.permute.xlu0 %2680
        %2682 = vrot.lane.b32.xlu0 %v2638, 32
        %v2683 = vpop.permute.xlu0 %2682
        %2684 = vrot.lane.b32.xlu0 %v2641, 32
        %v2685 = vpop.permute.xlu0 %2684
        %2686 = vrot.lane.b32.xlu0 %v2644, 32
        %v2687 = vpop.permute.xlu0 %2686
        %2688 = vrot.lane.b32.xlu0 %v2647, 32
        %v2689 = vpop.permute.xlu0 %2688
        %2690 = vrot.lane.b32.xlu0 %v2650, 32
        %v2691 = vpop.permute.xlu0 %2690
        %2692 = vrot.lane.b32.xlu0 %v2653, 32
        %v2693 = vpop.permute.xlu0 %2692
        %2694 = vrot.lane.b32.xlu0 %v2656, 32
        %v2695 = vpop.permute.xlu0 %2694
        %2696 = vrot.lane.b32.xlu0 %v2659, 32
        %v2697 = vpop.permute.xlu0 %2696
        %2698 = vrot.lane.b32.xlu0 %v2662, 32
        %v2699 = vpop.permute.xlu0 %2698
        %2700 = vrot.lane.b32.xlu0 %v2665, 32
        %v2701 = vpop.permute.xlu0 %2700
        %2702 = vrot.lane.b32.xlu0 %v2668, 32
        %v2703 = vpop.permute.xlu0 %2702
        %2704 = vrot.lane.b32.xlu0 %v2671, 32
        %v2705 = vpop.permute.xlu0 %2704
        %2706 = vrot.lane.b32.xlu0 %v2674, 32
        %v2707 = vpop.permute.xlu0 %2706
        %2708 = vrot.lane.b32.xlu0 %v2677, 32
        %v2709 = vpop.permute.xlu0 %2708
        %2726 = vst.msk [vmem:[#allocation3 + $0x8] sm:$0xff] %vm1570, %v2679
        %2727 = vst.msk [vmem:[#allocation3 + $0x20] sm:$0xff] %vm1570, %v2681
        %2728 = vst.msk [vmem:[#allocation3 + $0x38] sm:$0xff] %vm1570, %v2683
        %2729 = vst.msk [vmem:[#allocation3 + $0x50] sm:$0xff] %vm1570, %v2685
        %2730 = vst.msk [vmem:[#allocation3 + $0x68] sm:$0xff] %vm1570, %v2687
        %2731 = vst.msk [vmem:[#allocation3 + $0x80] sm:$0xff] %vm1570, %v2689
        %2732 = vst.msk [vmem:[#allocation3 + $0x98] sm:$0xff] %vm1570, %v2691
        %2733 = vst.msk [vmem:[#allocation3 + $0xb0] sm:$0xff] %vm1570, %v2693
        %2734 = vst.msk [vmem:[#allocation3 + $0xc8] sm:$0xff] %vm1570, %v2695
        %2735 = vst.msk [vmem:[#allocation3 + $0xe0] sm:$0xff] %vm1570, %v2697
        %2736 = vst.msk [vmem:[#allocation3 + $0xf8] sm:$0xff] %vm1570, %v2699
        %2737 = vst.msk [vmem:[#allocation3 + $0x110] sm:$0xff] %vm1570, %v2701
        %2738 = vst.msk [vmem:[#allocation3 + $0x128] sm:$0xff] %vm1570, %v2703
        %2739 = vst.msk [vmem:[#allocation3 + $0x140] sm:$0xff] %vm1570, %v2705
        %2740 = vst.msk [vmem:[#allocation3 + $0x158] sm:$0xff] %vm1570, %v2707
        %2741 = vst.msk [vmem:[#allocation3 + $0x170] sm:$0xff] %vm1570, %v2709
        %s2742 = scalar_lea.vmem [#allocation2], 24
        %v2743 = vld [vmem:[%s2742] sm:$0xf]
        %v2744 = vld [vmem:[%s2742 + $0x4] sm:$0xf]
        %v2745 = vld [vmem:[%s2742 + $0xc] sm:$0xf]
        %v2746 = vld [vmem:[%s2742 + $0x10] sm:$0xf]
        %v2747 = vld [vmem:[%s2742 + $0x18] sm:$0xf]
        %v2748 = vld [vmem:[%s2742 + $0x1c] sm:$0xf]
        %v2749 = vld [vmem:[%s2742 + $0x24] sm:$0xf]
        %v2750 = vld [vmem:[%s2742 + $0x28] sm:$0xf]
        %v2751 = vld [vmem:[%s2742 + $0x30] sm:$0xf]
        %v2752 = vld [vmem:[%s2742 + $0x34] sm:$0xf]
        %v2753 = vld [vmem:[%s2742 + $0x3c] sm:$0xf]
        %v2754 = vld [vmem:[%s2742 + $0x40] sm:$0xf]
        %v2755 = vld [vmem:[%s2742 + $0x48] sm:$0xf]
        %v2756 = vld [vmem:[%s2742 + $0x4c] sm:$0xf]
        %v2757 = vld [vmem:[%s2742 + $0x54] sm:$0xf]
        %v2758 = vld [vmem:[%s2742 + $0x58] sm:$0xf]
        %v2759 = vld [vmem:[%s2742 + $0x60] sm:$0xf]
        %v2760 = vld [vmem:[%s2742 + $0x64] sm:$0xf]
        %v2761 = vld [vmem:[%s2742 + $0x6c] sm:$0xf]
        %v2762 = vld [vmem:[%s2742 + $0x70] sm:$0xf]
        %v2763 = vld [vmem:[%s2742 + $0x78] sm:$0xf]
        %v2764 = vld [vmem:[%s2742 + $0x7c] sm:$0xf]
        %v2765 = vld [vmem:[%s2742 + $0x84] sm:$0xf]
        %v2766 = vld [vmem:[%s2742 + $0x88] sm:$0xf]
        %v2767 = vld [vmem:[%s2742 + $0x90] sm:$0xf]
        %v2768 = vld [vmem:[%s2742 + $0x94] sm:$0xf]
        %v2769 = vld [vmem:[%s2742 + $0x9c] sm:$0xf]
        %v2770 = vld [vmem:[%s2742 + $0xa0] sm:$0xf]
        %v2771 = vld [vmem:[%s2742 + $0xa8] sm:$0xf]
        %v2772 = vld [vmem:[%s2742 + $0xac] sm:$0xf]
        %v2773 = vld [vmem:[%s2742 + $0xb4] sm:$0xf]
        %v2774 = vld [vmem:[%s2742 + $0xb8] sm:$0xf]
        %v2807 = vunpack.c.l.b16 %v2743
        %v2808 = vunpack.c.l.b16 %v2744
        %v2809 = vunpack.c.l.b16 %v2745
        %v2810 = vunpack.c.l.b16 %v2746
        %v2811 = vunpack.c.l.b16 %v2747
        %v2812 = vunpack.c.l.b16 %v2748
        %v2813 = vunpack.c.l.b16 %v2749
        %v2814 = vunpack.c.l.b16 %v2750
        %v2815 = vunpack.c.l.b16 %v2751
        %v2816 = vunpack.c.l.b16 %v2752
        %v2817 = vunpack.c.l.b16 %v2753
        %v2818 = vunpack.c.l.b16 %v2754
        %v2819 = vunpack.c.l.b16 %v2755
        %v2820 = vunpack.c.l.b16 %v2756
        %v2821 = vunpack.c.l.b16 %v2757
        %v2822 = vunpack.c.l.b16 %v2758
        %v2823 = vunpack.c.l.b16 %v2759
        %v2824 = vunpack.c.l.b16 %v2760
        %v2825 = vunpack.c.l.b16 %v2761
        %v2826 = vunpack.c.l.b16 %v2762
        %v2827 = vunpack.c.l.b16 %v2763
        %v2828 = vunpack.c.l.b16 %v2764
        %v2829 = vunpack.c.l.b16 %v2765
        %v2830 = vunpack.c.l.b16 %v2766
        %v2831 = vunpack.c.l.b16 %v2767
        %v2832 = vunpack.c.l.b16 %v2768
        %v2833 = vunpack.c.l.b16 %v2769
        %v2834 = vunpack.c.l.b16 %v2770
        %v2835 = vunpack.c.l.b16 %v2771
        %v2836 = vunpack.c.l.b16 %v2772
        %v2837 = vunpack.c.l.b16 %v2773
        %v2838 = vunpack.c.l.b16 %v2774
        %v2839 = vpack.c.b16 %v2808, %v2807
        %v2840 = vpack.c.b16 %v2810, %v2809
        %v2841 = vpack.c.b16 %v2812, %v2811
        %v2842 = vpack.c.b16 %v2814, %v2813
        %v2843 = vpack.c.b16 %v2816, %v2815
        %v2844 = vpack.c.b16 %v2818, %v2817
        %v2845 = vpack.c.b16 %v2820, %v2819
        %v2846 = vpack.c.b16 %v2822, %v2821
        %v2847 = vpack.c.b16 %v2824, %v2823
        %v2848 = vpack.c.b16 %v2826, %v2825
        %v2849 = vpack.c.b16 %v2828, %v2827
        %v2850 = vpack.c.b16 %v2830, %v2829
        %v2851 = vpack.c.b16 %v2832, %v2831
        %v2852 = vpack.c.b16 %v2834, %v2833
        %v2853 = vpack.c.b16 %v2836, %v2835
        %v2854 = vpack.c.b16 %v2838, %v2837
        %2855 = vrot.lane.b32.xlu0 %v2839, 64
        %v2856 = vpop.permute.xlu0 %2855
        %2857 = vrot.lane.b32.xlu0 %v2840, 64
        %v2858 = vpop.permute.xlu0 %2857
        %2859 = vrot.lane.b32.xlu0 %v2841, 64
        %v2860 = vpop.permute.xlu0 %2859
        %2861 = vrot.lane.b32.xlu0 %v2842, 64
        %v2862 = vpop.permute.xlu0 %2861
        %2863 = vrot.lane.b32.xlu0 %v2843, 64
        %v2864 = vpop.permute.xlu0 %2863
        %2865 = vrot.lane.b32.xlu0 %v2844, 64
        %v2866 = vpop.permute.xlu0 %2865
        %2867 = vrot.lane.b32.xlu0 %v2845, 64
        %v2868 = vpop.permute.xlu0 %2867
        %2869 = vrot.lane.b32.xlu0 %v2846, 64
        %v2870 = vpop.permute.xlu0 %2869
        %2871 = vrot.lane.b32.xlu0 %v2847, 64
        %v2872 = vpop.permute.xlu0 %2871
        %2873 = vrot.lane.b32.xlu0 %v2848, 64
        %v2874 = vpop.permute.xlu0 %2873
        %2875 = vrot.lane.b32.xlu0 %v2849, 64
        %v2876 = vpop.permute.xlu0 %2875
        %2877 = vrot.lane.b32.xlu0 %v2850, 64
        %v2878 = vpop.permute.xlu0 %2877
        %2879 = vrot.lane.b32.xlu0 %v2851, 64
        %v2880 = vpop.permute.xlu0 %2879
        %2881 = vrot.lane.b32.xlu0 %v2852, 64
        %v2882 = vpop.permute.xlu0 %2881
        %2883 = vrot.lane.b32.xlu0 %v2853, 64
        %v2884 = vpop.permute.xlu0 %2883
        %2885 = vrot.lane.b32.xlu0 %v2854, 64
        %v2886 = vpop.permute.xlu0 %2885
        %2903 = vst.msk [vmem:[#allocation3 + $0x8] sm:$0xff] %vm1860, %v2856
        %2904 = vst.msk [vmem:[#allocation3 + $0x20] sm:$0xff] %vm1860, %v2858
        %2905 = vst.msk [vmem:[#allocation3 + $0x38] sm:$0xff] %vm1860, %v2860
        %2906 = vst.msk [vmem:[#allocation3 + $0x50] sm:$0xff] %vm1860, %v2862
        %2907 = vst.msk [vmem:[#allocation3 + $0x68] sm:$0xff] %vm1860, %v2864
        %2908 = vst.msk [vmem:[#allocation3 + $0x80] sm:$0xff] %vm1860, %v2866
        %2909 = vst.msk [vmem:[#allocation3 + $0x98] sm:$0xff] %vm1860, %v2868
        %2910 = vst.msk [vmem:[#allocation3 + $0xb0] sm:$0xff] %vm1860, %v2870
        %2911 = vst.msk [vmem:[#allocation3 + $0xc8] sm:$0xff] %vm1860, %v2872
        %2912 = vst.msk [vmem:[#allocation3 + $0xe0] sm:$0xff] %vm1860, %v2874
        %2913 = vst.msk [vmem:[#allocation3 + $0xf8] sm:$0xff] %vm1860, %v2876
        %2914 = vst.msk [vmem:[#allocation3 + $0x110] sm:$0xff] %vm1860, %v2878
        %2915 = vst.msk [vmem:[#allocation3 + $0x128] sm:$0xff] %vm1860, %v2880
        %2916 = vst.msk [vmem:[#allocation3 + $0x140] sm:$0xff] %vm1860, %v2882
        %2917 = vst.msk [vmem:[#allocation3 + $0x158] sm:$0xff] %vm1860, %v2884
        %2918 = vst.msk [vmem:[#allocation3 + $0x170] sm:$0xff] %vm1860, %v2886
        %v2919 = vld [vmem:[%s2742] sm:$0xf]
        %v2920 = vld [vmem:[%s2742 + $0x4] sm:$0xf]
        %v2921 = vld [vmem:[%s2742 + $0x8] sm:$0x1]
        %v2922 = vld [vmem:[%s2742 + $0xc] sm:$0xf]
        %v2923 = vld [vmem:[%s2742 + $0x10] sm:$0xf]
        %v2924 = vld [vmem:[%s2742 + $0x14] sm:$0x1]
        %v2925 = vld [vmem:[%s2742 + $0x18] sm:$0xf]
        %v2926 = vld [vmem:[%s2742 + $0x1c] sm:$0xf]
        %v2927 = vld [vmem:[%s2742 + $0x20] sm:$0x1]
        %v2928 = vld [vmem:[%s2742 + $0x24] sm:$0xf]
        %v2929 = vld [vmem:[%s2742 + $0x28] sm:$0xf]
        %v2930 = vld [vmem:[%s2742 + $0x2c] sm:$0x1]
        %v2931 = vld [vmem:[%s2742 + $0x30] sm:$0xf]
        %v2932 = vld [vmem:[%s2742 + $0x34] sm:$0xf]
        %v2933 = vld [vmem:[%s2742 + $0x38] sm:$0x1]
        %v2934 = vld [vmem:[%s2742 + $0x3c] sm:$0xf]
        %v2935 = vld [vmem:[%s2742 + $0x40] sm:$0xf]
        %v2936 = vld [vmem:[%s2742 + $0x44] sm:$0x1]
        %v2937 = vld [vmem:[%s2742 + $0x48] sm:$0xf]
        %v2938 = vld [vmem:[%s2742 + $0x4c] sm:$0xf]
        %v2939 = vld [vmem:[%s2742 + $0x50] sm:$0x1]
        %v2940 = vld [vmem:[%s2742 + $0x54] sm:$0xf]
        %v2941 = vld [vmem:[%s2742 + $0x58] sm:$0xf]
        %v2942 = vld [vmem:[%s2742 + $0x5c] sm:$0x1]
        %v2943 = vld [vmem:[%s2742 + $0x60] sm:$0xf]
        %v2944 = vld [vmem:[%s2742 + $0x64] sm:$0xf]
        %v2945 = vld [vmem:[%s2742 + $0x68] sm:$0x1]
        %v2946 = vld [vmem:[%s2742 + $0x6c] sm:$0xf]
        %v2947 = vld [vmem:[%s2742 + $0x70] sm:$0xf]
        %v2948 = vld [vmem:[%s2742 + $0x74] sm:$0x1]
        %v2949 = vld [vmem:[%s2742 + $0x78] sm:$0xf]
        %v2950 = vld [vmem:[%s2742 + $0x7c] sm:$0xf]
        %v2951 = vld [vmem:[%s2742 + $0x80] sm:$0x1]
        %v2952 = vld [vmem:[%s2742 + $0x84] sm:$0xf]
        %v2953 = vld [vmem:[%s2742 + $0x88] sm:$0xf]
        %v2954 = vld [vmem:[%s2742 + $0x8c] sm:$0x1]
        %v2955 = vld [vmem:[%s2742 + $0x90] sm:$0xf]
        %v2956 = vld [vmem:[%s2742 + $0x94] sm:$0xf]
        %v2957 = vld [vmem:[%s2742 + $0x98] sm:$0x1]
        %v2958 = vld [vmem:[%s2742 + $0x9c] sm:$0xf]
        %v2959 = vld [vmem:[%s2742 + $0xa0] sm:$0xf]
        %v2960 = vld [vmem:[%s2742 + $0xa4] sm:$0x1]
        %v2961 = vld [vmem:[%s2742 + $0xa8] sm:$0xf]
        %v2962 = vld [vmem:[%s2742 + $0xac] sm:$0xf]
        %v2963 = vld [vmem:[%s2742 + $0xb0] sm:$0x1]
        %v2964 = vld [vmem:[%s2742 + $0xb4] sm:$0xf]
        %v2965 = vld [vmem:[%s2742 + $0xb8] sm:$0xf]
        %v2966 = vld [vmem:[%s2742 + $0xbc] sm:$0x1]
        %v3015 = vunpack.c.l.b16 %v2919
        %v3016 = vunpack.c.l.b16 %v2920
        %v3017 = vunpack.c.l.b16 %v2921
        %v3018 = vunpack.c.l.b16 %v2922
        %v3019 = vunpack.c.l.b16 %v2923
        %v3020 = vunpack.c.l.b16 %v2924
        %v3021 = vunpack.c.l.b16 %v2925
        %v3022 = vunpack.c.l.b16 %v2926
        %v3023 = vunpack.c.l.b16 %v2927
        %v3024 = vunpack.c.l.b16 %v2928
        %v3025 = vunpack.c.l.b16 %v2929
        %v3026 = vunpack.c.l.b16 %v2930
        %v3027 = vunpack.c.l.b16 %v2931
        %v3028 = vunpack.c.l.b16 %v2932
        %v3029 = vunpack.c.l.b16 %v2933
        %v3030 = vunpack.c.l.b16 %v2934
        %v3031 = vunpack.c.l.b16 %v2935
        %v3032 = vunpack.c.l.b16 %v2936
        %v3033 = vunpack.c.l.b16 %v2937
        %v3034 = vunpack.c.l.b16 %v2938
        %v3035 = vunpack.c.l.b16 %v2939
        %v3036 = vunpack.c.l.b16 %v2940
        %v3037 = vunpack.c.l.b16 %v2941
        %v3038 = vunpack.c.l.b16 %v2942
        %v3039 = vunpack.c.l.b16 %v2943
        %v3040 = vunpack.c.l.b16 %v2944
        %v3041 = vunpack.c.l.b16 %v2945
        %v3042 = vunpack.c.l.b16 %v2946
        %v3043 = vunpack.c.l.b16 %v2947
        %v3044 = vunpack.c.l.b16 %v2948
        %v3045 = vunpack.c.l.b16 %v2949
        %v3046 = vunpack.c.l.b16 %v2950
        %v3047 = vunpack.c.l.b16 %v2951
        %v3048 = vunpack.c.l.b16 %v2952
        %v3049 = vunpack.c.l.b16 %v2953
        %v3050 = vunpack.c.l.b16 %v2954
        %v3051 = vunpack.c.l.b16 %v2955
        %v3052 = vunpack.c.l.b16 %v2956
        %v3053 = vunpack.c.l.b16 %v2957
        %v3054 = vunpack.c.l.b16 %v2958
        %v3055 = vunpack.c.l.b16 %v2959
        %v3056 = vunpack.c.l.b16 %v2960
        %v3057 = vunpack.c.l.b16 %v2961
        %v3058 = vunpack.c.l.b16 %v2962
        %v3059 = vunpack.c.l.b16 %v2963
        %v3060 = vunpack.c.l.b16 %v2964
        %v3061 = vunpack.c.l.b16 %v2965
        %v3062 = vunpack.c.l.b16 %v2966
        %v3063 = vpack.c.b16 %v3016, %v3015
        %v3064 = vpack.c.b16 %v3017, %v3017
        %v3065 = vpack.c.b16 %v3019, %v3018
        %v3066 = vpack.c.b16 %v3020, %v3020
        %v3067 = vpack.c.b16 %v3022, %v3021
        %v3068 = vpack.c.b16 %v3023, %v3023
        %v3069 = vpack.c.b16 %v3025, %v3024
        %v3070 = vpack.c.b16 %v3026, %v3026
        %v3071 = vpack.c.b16 %v3028, %v3027
        %v3072 = vpack.c.b16 %v3029, %v3029
        %v3073 = vpack.c.b16 %v3031, %v3030
        %v3074 = vpack.c.b16 %v3032, %v3032
        %v3075 = vpack.c.b16 %v3034, %v3033
        %v3076 = vpack.c.b16 %v3035, %v3035
        %v3077 = vpack.c.b16 %v3037, %v3036
        %v3078 = vpack.c.b16 %v3038, %v3038
        %v3079 = vpack.c.b16 %v3040, %v3039
        %v3080 = vpack.c.b16 %v3041, %v3041
        %v3081 = vpack.c.b16 %v3043, %v3042
        %v3082 = vpack.c.b16 %v3044, %v3044
        %v3083 = vpack.c.b16 %v3046, %v3045
        %v3084 = vpack.c.b16 %v3047, %v3047
        %v3085 = vpack.c.b16 %v3049, %v3048
        %v3086 = vpack.c.b16 %v3050, %v3050
        %v3087 = vpack.c.b16 %v3052, %v3051
        %v3088 = vpack.c.b16 %v3053, %v3053
        %v3089 = vpack.c.b16 %v3055, %v3054
        %v3090 = vpack.c.b16 %v3056, %v3056
        %v3091 = vpack.c.b16 %v3058, %v3057
        %v3092 = vpack.c.b16 %v3059, %v3059
        %v3093 = vpack.c.b16 %v3061, %v3060
        %v3094 = vpack.c.b16 %v3062, %v3062
        %v3096 = vshrl.u32 %v3063, 16
        %v3098 = vshll.u32 %v3063, 16
        %v3100 = vrot.slane %v3098, 1
        %v3101 = vor.u32 %v3096, %v3100
        %v3103 = vshll.u32 %v3064, 16
        %v3105 = vrot.slane %v3103, 1
        %v3106 = vsel %vm1329, %v3101, %v3105
        %v3108 = vshrl.u32 %v3065, 16
        %v3110 = vshll.u32 %v3065, 16
        %v3112 = vrot.slane %v3110, 1
        %v3113 = vor.u32 %v3108, %v3112
        %v3115 = vshll.u32 %v3066, 16
        %v3117 = vrot.slane %v3115, 1
        %v3118 = vsel %vm1329, %v3113, %v3117
        %v3120 = vshrl.u32 %v3067, 16
        %v3122 = vshll.u32 %v3067, 16
        %v3124 = vrot.slane %v3122, 1
        %v3125 = vor.u32 %v3120, %v3124
        %v3127 = vshll.u32 %v3068, 16
        %v3129 = vrot.slane %v3127, 1
        %v3130 = vsel %vm1329, %v3125, %v3129
        %v3132 = vshrl.u32 %v3069, 16
        %v3134 = vshll.u32 %v3069, 16
        %v3136 = vrot.slane %v3134, 1
        %v3137 = vor.u32 %v3132, %v3136
        %v3139 = vshll.u32 %v3070, 16
        %v3141 = vrot.slane %v3139, 1
        %v3142 = vsel %vm1329, %v3137, %v3141
        %v3144 = vshrl.u32 %v3071, 16
        %v3146 = vshll.u32 %v3071, 16
        %v3148 = vrot.slane %v3146, 1
        %v3149 = vor.u32 %v3144, %v3148
        %v3151 = vshll.u32 %v3072, 16
        %v3153 = vrot.slane %v3151, 1
        %v3154 = vsel %vm1329, %v3149, %v3153
        %v3156 = vshrl.u32 %v3073, 16
        %v3158 = vshll.u32 %v3073, 16
        %v3160 = vrot.slane %v3158, 1
        %v3161 = vor.u32 %v3156, %v3160
        %v3163 = vshll.u32 %v3074, 16
        %v3165 = vrot.slane %v3163, 1
        %v3166 = vsel %vm1329, %v3161, %v3165
        %v3168 = vshrl.u32 %v3075, 16
        %v3170 = vshll.u32 %v3075, 16
        %v3172 = vrot.slane %v3170, 1
        %v3173 = vor.u32 %v3168, %v3172
        %v3175 = vshll.u32 %v3076, 16
        %v3177 = vrot.slane %v3175, 1
        %v3178 = vsel %vm1329, %v3173, %v3177
        %v3180 = vshrl.u32 %v3077, 16
        %v3182 = vshll.u32 %v3077, 16
        %v3184 = vrot.slane %v3182, 1
        %v3185 = vor.u32 %v3180, %v3184
        %v3187 = vshll.u32 %v3078, 16
        %v3189 = vrot.slane %v3187, 1
        %v3190 = vsel %vm1329, %v3185, %v3189
        %v3192 = vshrl.u32 %v3079, 16
        %v3194 = vshll.u32 %v3079, 16
        %v3196 = vrot.slane %v3194, 1
        %v3197 = vor.u32 %v3192, %v3196
        %v3199 = vshll.u32 %v3080, 16
        %v3201 = vrot.slane %v3199, 1
        %v3202 = vsel %vm1329, %v3197, %v3201
        %v3204 = vshrl.u32 %v3081, 16
        %v3206 = vshll.u32 %v3081, 16
        %v3208 = vrot.slane %v3206, 1
        %v3209 = vor.u32 %v3204, %v3208
        %v3211 = vshll.u32 %v3082, 16
        %v3213 = vrot.slane %v3211, 1
        %v3214 = vsel %vm1329, %v3209, %v3213
        %v3216 = vshrl.u32 %v3083, 16
        %v3218 = vshll.u32 %v3083, 16
        %v3220 = vrot.slane %v3218, 1
        %v3221 = vor.u32 %v3216, %v3220
        %v3223 = vshll.u32 %v3084, 16
        %v3225 = vrot.slane %v3223, 1
        %v3226 = vsel %vm1329, %v3221, %v3225
        %v3228 = vshrl.u32 %v3085, 16
        %v3230 = vshll.u32 %v3085, 16
        %v3232 = vrot.slane %v3230, 1
        %v3233 = vor.u32 %v3228, %v3232
        %v3235 = vshll.u32 %v3086, 16
        %v3237 = vrot.slane %v3235, 1
        %v3238 = vsel %vm1329, %v3233, %v3237
        %v3240 = vshrl.u32 %v3087, 16
        %v3242 = vshll.u32 %v3087, 16
        %v3244 = vrot.slane %v3242, 1
        %v3245 = vor.u32 %v3240, %v3244
        %v3247 = vshll.u32 %v3088, 16
        %v3249 = vrot.slane %v3247, 1
        %v3250 = vsel %vm1329, %v3245, %v3249
        %v3252 = vshrl.u32 %v3089, 16
        %v3254 = vshll.u32 %v3089, 16
        %v3256 = vrot.slane %v3254, 1
        %v3257 = vor.u32 %v3252, %v3256
        %v3259 = vshll.u32 %v3090, 16
        %v3261 = vrot.slane %v3259, 1
        %v3262 = vsel %vm1329, %v3257, %v3261
        %v3264 = vshrl.u32 %v3091, 16
        %v3266 = vshll.u32 %v3091, 16
        %v3268 = vrot.slane %v3266, 1
        %v3269 = vor.u32 %v3264, %v3268
        %v3271 = vshll.u32 %v3092, 16
        %v3273 = vrot.slane %v3271, 1
        %v3274 = vsel %vm1329, %v3269, %v3273
        %v3276 = vshrl.u32 %v3093, 16
        %v3278 = vshll.u32 %v3093, 16
        %v3280 = vrot.slane %v3278, 1
        %v3281 = vor.u32 %v3276, %v3280
        %v3283 = vshll.u32 %v3094, 16
        %v3285 = vrot.slane %v3283, 1
        %v3286 = vsel %vm1329, %v3281, %v3285
        %3287 = vrot.lane.b32.xlu0 %v3106, 96
        %v3288 = vpop.permute.xlu0 %3287
        %3289 = vrot.lane.b32.xlu0 %v3118, 96
        %v3290 = vpop.permute.xlu0 %3289
        %3291 = vrot.lane.b32.xlu0 %v3130, 96
        %v3292 = vpop.permute.xlu0 %3291
        %3293 = vrot.lane.b32.xlu0 %v3142, 96
        %v3294 = vpop.permute.xlu0 %3293
        %3295 = vrot.lane.b32.xlu0 %v3154, 96
        %v3296 = vpop.permute.xlu0 %3295
        %3297 = vrot.lane.b32.xlu0 %v3166, 96
        %v3298 = vpop.permute.xlu0 %3297
        %3299 = vrot.lane.b32.xlu0 %v3178, 96
        %v3300 = vpop.permute.xlu0 %3299
        %3301 = vrot.lane.b32.xlu0 %v3190, 96
        %v3302 = vpop.permute.xlu0 %3301
        %3303 = vrot.lane.b32.xlu0 %v3202, 96
        %v3304 = vpop.permute.xlu0 %3303
        %3305 = vrot.lane.b32.xlu0 %v3214, 96
        %v3306 = vpop.permute.xlu0 %3305
        %3307 = vrot.lane.b32.xlu0 %v3226, 96
        %v3308 = vpop.permute.xlu0 %3307
        %3309 = vrot.lane.b32.xlu0 %v3238, 96
        %v3310 = vpop.permute.xlu0 %3309
        %3311 = vrot.lane.b32.xlu0 %v3250, 96
        %v3312 = vpop.permute.xlu0 %3311
        %3313 = vrot.lane.b32.xlu0 %v3262, 96
        %v3314 = vpop.permute.xlu0 %3313
        %3315 = vrot.lane.b32.xlu0 %v3274, 96
        %v3316 = vpop.permute.xlu0 %3315
        %3317 = vrot.lane.b32.xlu0 %v3286, 96
        %v3318 = vpop.permute.xlu0 %3317
        %3335 = vst.msk [vmem:[#allocation3 + $0x8] sm:$0xff] %vm2037, %v3288
        %3336 = vst.msk [vmem:[#allocation3 + $0x20] sm:$0xff] %vm2037, %v3290
        %3337 = vst.msk [vmem:[#allocation3 + $0x38] sm:$0xff] %vm2037, %v3292
        %3338 = vst.msk [vmem:[#allocation3 + $0x50] sm:$0xff] %vm2037, %v3294
        %3339 = vst.msk [vmem:[#allocation3 + $0x68] sm:$0xff] %vm2037, %v3296
        %3340 = vst.msk [vmem:[#allocation3 + $0x80] sm:$0xff] %vm2037, %v3298
        %3341 = vst.msk [vmem:[#allocation3 + $0x98] sm:$0xff] %vm2037, %v3300
        %3342 = vst.msk [vmem:[#allocation3 + $0xb0] sm:$0xff] %vm2037, %v3302
        %3343 = vst.msk [vmem:[#allocation3 + $0xc8] sm:$0xff] %vm2037, %v3304
        %3344 = vst.msk [vmem:[#allocation3 + $0xe0] sm:$0xff] %vm2037, %v3306
        %3345 = vst.msk [vmem:[#allocation3 + $0xf8] sm:$0xff] %vm2037, %v3308
        %3346 = vst.msk [vmem:[#allocation3 + $0x110] sm:$0xff] %vm2037, %v3310
        %3347 = vst.msk [vmem:[#allocation3 + $0x128] sm:$0xff] %vm2037, %v3312
        %3348 = vst.msk [vmem:[#allocation3 + $0x140] sm:$0xff] %vm2037, %v3314
        %3349 = vst.msk [vmem:[#allocation3 + $0x158] sm:$0xff] %vm2037, %v3316
        %3350 = vst.msk [vmem:[#allocation3 + $0x170] sm:$0xff] %vm2037, %v3318
        %v3351 = vld [vmem:[%s2742] sm:$0xe]
        %v3352 = vld [vmem:[%s2742 + $0x4] sm:$0xf]
        %v3353 = vld [vmem:[%s2742 + $0x8] sm:$0x1]
        %v3354 = vld [vmem:[%s2742 + $0xc] sm:$0xe]
        %v3355 = vld [vmem:[%s2742 + $0x10] sm:$0xf]
        %v3356 = vld [vmem:[%s2742 + $0x14] sm:$0x1]
        %v3357 = vld [vmem:[%s2742 + $0x18] sm:$0xe]
        %v3358 = vld [vmem:[%s2742 + $0x1c] sm:$0xf]
        %v3359 = vld [vmem:[%s2742 + $0x20] sm:$0x1]
        %v3360 = vld [vmem:[%s2742 + $0x24] sm:$0xe]
        %v3361 = vld [vmem:[%s2742 + $0x28] sm:$0xf]
        %v3362 = vld [vmem:[%s2742 + $0x2c] sm:$0x1]
        %v3363 = vld [vmem:[%s2742 + $0x30] sm:$0xe]
        %v3364 = vld [vmem:[%s2742 + $0x34] sm:$0xf]
        %v3365 = vld [vmem:[%s2742 + $0x38] sm:$0x1]
        %v3366 = vld [vmem:[%s2742 + $0x3c] sm:$0xe]
        %v3367 = vld [vmem:[%s2742 + $0x40] sm:$0xf]
        %v3368 = vld [vmem:[%s2742 + $0x44] sm:$0x1]
        %v3369 = vld [vmem:[%s2742 + $0x48] sm:$0xe]
        %v3370 = vld [vmem:[%s2742 + $0x4c] sm:$0xf]
        %v3371 = vld [vmem:[%s2742 + $0x50] sm:$0x1]
        %v3372 = vld [vmem:[%s2742 + $0x54] sm:$0xe]
        %v3373 = vld [vmem:[%s2742 + $0x58] sm:$0xf]
        %v3374 = vld [vmem:[%s2742 + $0x5c] sm:$0x1]
        %v3375 = vld [vmem:[%s2742 + $0x60] sm:$0xe]
        %v3376 = vld [vmem:[%s2742 + $0x64] sm:$0xf]
        %v3377 = vld [vmem:[%s2742 + $0x68] sm:$0x1]
        %v3378 = vld [vmem:[%s2742 + $0x6c] sm:$0xe]
        %v3379 = vld [vmem:[%s2742 + $0x70] sm:$0xf]
        %v3380 = vld [vmem:[%s2742 + $0x74] sm:$0x1]
        %v3381 = vld [vmem:[%s2742 + $0x78] sm:$0xe]
        %v3382 = vld [vmem:[%s2742 + $0x7c] sm:$0xf]
        %v3383 = vld [vmem:[%s2742 + $0x80] sm:$0x1]
        %v3384 = vld [vmem:[%s2742 + $0x84] sm:$0xe]
        %v3385 = vld [vmem:[%s2742 + $0x88] sm:$0xf]
        %v3386 = vld [vmem:[%s2742 + $0x8c] sm:$0x1]
        %v3387 = vld [vmem:[%s2742 + $0x90] sm:$0xe]
        %v3388 = vld [vmem:[%s2742 + $0x94] sm:$0xf]
        %v3389 = vld [vmem:[%s2742 + $0x98] sm:$0x1]
        %v3390 = vld [vmem:[%s2742 + $0x9c] sm:$0xe]
        %v3391 = vld [vmem:[%s2742 + $0xa0] sm:$0xf]
        %v3392 = vld [vmem:[%s2742 + $0xa4] sm:$0x1]
        %v3393 = vld [vmem:[%s2742 + $0xa8] sm:$0xe]
        %v3394 = vld [vmem:[%s2742 + $0xac] sm:$0xf]
        %v3395 = vld [vmem:[%s2742 + $0xb0] sm:$0x1]
        %v3396 = vld [vmem:[%s2742 + $0xb4] sm:$0xe]
        %v3397 = vld [vmem:[%s2742 + $0xb8] sm:$0xf]
        %v3398 = vld [vmem:[%s2742 + $0xbc] sm:$0x1]
        %v3447 = vunpack.c.l.b16 %v3351
        %v3448 = vunpack.c.l.b16 %v3352
        %v3449 = vunpack.c.l.b16 %v3353
        %v3450 = vunpack.c.l.b16 %v3354
        %v3451 = vunpack.c.l.b16 %v3355
        %v3452 = vunpack.c.l.b16 %v3356
        %v3453 = vunpack.c.l.b16 %v3357
        %v3454 = vunpack.c.l.b16 %v3358
        %v3455 = vunpack.c.l.b16 %v3359
        %v3456 = vunpack.c.l.b16 %v3360
        %v3457 = vunpack.c.l.b16 %v3361
        %v3458 = vunpack.c.l.b16 %v3362
        %v3459 = vunpack.c.l.b16 %v3363
        %v3460 = vunpack.c.l.b16 %v3364
        %v3461 = vunpack.c.l.b16 %v3365
        %v3462 = vunpack.c.l.b16 %v3366
        %v3463 = vunpack.c.l.b16 %v3367
        %v3464 = vunpack.c.l.b16 %v3368
        %v3465 = vunpack.c.l.b16 %v3369
        %v3466 = vunpack.c.l.b16 %v3370
        %v3467 = vunpack.c.l.b16 %v3371
        %v3468 = vunpack.c.l.b16 %v3372
        %v3469 = vunpack.c.l.b16 %v3373
        %v3470 = vunpack.c.l.b16 %v3374
        %v3471 = vunpack.c.l.b16 %v3375
        %v3472 = vunpack.c.l.b16 %v3376
        %v3473 = vunpack.c.l.b16 %v3377
        %v3474 = vunpack.c.l.b16 %v3378
        %v3475 = vunpack.c.l.b16 %v3379
        %v3476 = vunpack.c.l.b16 %v3380
        %v3477 = vunpack.c.l.b16 %v3381
        %v3478 = vunpack.c.l.b16 %v3382
        %v3479 = vunpack.c.l.b16 %v3383
        %v3480 = vunpack.c.l.b16 %v3384
        %v3481 = vunpack.c.l.b16 %v3385
        %v3482 = vunpack.c.l.b16 %v3386
        %v3483 = vunpack.c.l.b16 %v3387
        %v3484 = vunpack.c.l.b16 %v3388
        %v3485 = vunpack.c.l.b16 %v3389
        %v3486 = vunpack.c.l.b16 %v3390
        %v3487 = vunpack.c.l.b16 %v3391
        %v3488 = vunpack.c.l.b16 %v3392
        %v3489 = vunpack.c.l.b16 %v3393
        %v3490 = vunpack.c.l.b16 %v3394
        %v3491 = vunpack.c.l.b16 %v3395
        %v3492 = vunpack.c.l.b16 %v3396
        %v3493 = vunpack.c.l.b16 %v3397
        %v3494 = vunpack.c.l.b16 %v3398
        %v3495 = vpack.c.b16 %v3448, %v3447
        %v3496 = vpack.c.b16 %v3449, %v3449
        %v3497 = vpack.c.b16 %v3451, %v3450
        %v3498 = vpack.c.b16 %v3452, %v3452
        %v3499 = vpack.c.b16 %v3454, %v3453
        %v3500 = vpack.c.b16 %v3455, %v3455
        %v3501 = vpack.c.b16 %v3457, %v3456
        %v3502 = vpack.c.b16 %v3458, %v3458
        %v3503 = vpack.c.b16 %v3460, %v3459
        %v3504 = vpack.c.b16 %v3461, %v3461
        %v3505 = vpack.c.b16 %v3463, %v3462
        %v3506 = vpack.c.b16 %v3464, %v3464
        %v3507 = vpack.c.b16 %v3466, %v3465
        %v3508 = vpack.c.b16 %v3467, %v3467
        %v3509 = vpack.c.b16 %v3469, %v3468
        %v3510 = vpack.c.b16 %v3470, %v3470
        %v3511 = vpack.c.b16 %v3472, %v3471
        %v3512 = vpack.c.b16 %v3473, %v3473
        %v3513 = vpack.c.b16 %v3475, %v3474
        %v3514 = vpack.c.b16 %v3476, %v3476
        %v3515 = vpack.c.b16 %v3478, %v3477
        %v3516 = vpack.c.b16 %v3479, %v3479
        %v3517 = vpack.c.b16 %v3481, %v3480
        %v3518 = vpack.c.b16 %v3482, %v3482
        %v3519 = vpack.c.b16 %v3484, %v3483
        %v3520 = vpack.c.b16 %v3485, %v3485
        %v3521 = vpack.c.b16 %v3487, %v3486
        %v3522 = vpack.c.b16 %v3488, %v3488
        %v3523 = vpack.c.b16 %v3490, %v3489
        %v3524 = vpack.c.b16 %v3491, %v3491
        %v3525 = vpack.c.b16 %v3493, %v3492
        %v3526 = vpack.c.b16 %v3494, %v3494
        %v3527 = vrot.slane %v3495, 1
        %v3528 = vrot.slane %v3496, 1
        %v3529 = vsel %vm1763, %v3527, %v3528
        %v3530 = vrot.slane %v3497, 1
        %v3531 = vrot.slane %v3498, 1
        %v3532 = vsel %vm1763, %v3530, %v3531
        %v3533 = vrot.slane %v3499, 1
        %v3534 = vrot.slane %v3500, 1
        %v3535 = vsel %vm1763, %v3533, %v3534
        %v3536 = vrot.slane %v3501, 1
        %v3537 = vrot.slane %v3502, 1
        %v3538 = vsel %vm1763, %v3536, %v3537
        %v3539 = vrot.slane %v3503, 1
        %v3540 = vrot.slane %v3504, 1
        %v3541 = vsel %vm1763, %v3539, %v3540
        %v3542 = vrot.slane %v3505, 1
        %v3543 = vrot.slane %v3506, 1
        %v3544 = vsel %vm1763, %v3542, %v3543
        %v3545 = vrot.slane %v3507, 1
        %v3546 = vrot.slane %v3508, 1
        %v3547 = vsel %vm1763, %v3545, %v3546
        %v3548 = vrot.slane %v3509, 1
        %v3549 = vrot.slane %v3510, 1
        %v3550 = vsel %vm1763, %v3548, %v3549
        %v3551 = vrot.slane %v3511, 1
        %v3552 = vrot.slane %v3512, 1
        %v3553 = vsel %vm1763, %v3551, %v3552
        %v3554 = vrot.slane %v3513, 1
        %v3555 = vrot.slane %v3514, 1
        %v3556 = vsel %vm1763, %v3554, %v3555
        %v3557 = vrot.slane %v3515, 1
        %v3558 = vrot.slane %v3516, 1
        %v3559 = vsel %vm1763, %v3557, %v3558
        %v3560 = vrot.slane %v3517, 1
        %v3561 = vrot.slane %v3518, 1
        %v3562 = vsel %vm1763, %v3560, %v3561
        %v3563 = vrot.slane %v3519, 1
        %v3564 = vrot.slane %v3520, 1
        %v3565 = vsel %vm1763, %v3563, %v3564
        %v3566 = vrot.slane %v3521, 1
        %v3567 = vrot.slane %v3522, 1
        %v3568 = vsel %vm1763, %v3566, %v3567
        %v3569 = vrot.slane %v3523, 1
        %v3570 = vrot.slane %v3524, 1
        %v3571 = vsel %vm1763, %v3569, %v3570
        %v3572 = vrot.slane %v3525, 1
        %v3573 = vrot.slane %v3526, 1
        %v3574 = vsel %vm1763, %v3572, %v3573
        %3591 = vst.msk [vmem:[#allocation3 + $0x10] sm:$0xff] %vm1136, %v3529
        %3592 = vst.msk [vmem:[#allocation3 + $0x28] sm:$0xff] %vm1136, %v3532
        %3593 = vst.msk [vmem:[#allocation3 + $0x40] sm:$0xff] %vm1136, %v3535
        %3594 = vst.msk [vmem:[#allocation3 + $0x58] sm:$0xff] %vm1136, %v3538
        %3595 = vst.msk [vmem:[#allocation3 + $0x70] sm:$0xff] %vm1136, %v3541
        %3596 = vst.msk [vmem:[#allocation3 + $0x88] sm:$0xff] %vm1136, %v3544
        %3597 = vst.msk [vmem:[#allocation3 + $0xa0] sm:$0xff] %vm1136, %v3547
        %3598 = vst.msk [vmem:[#allocation3 + $0xb8] sm:$0xff] %vm1136, %v3550
        %3599 = vst.msk [vmem:[#allocation3 + $0xd0] sm:$0xff] %vm1136, %v3553
        %3600 = vst.msk [vmem:[#allocation3 + $0xe8] sm:$0xff] %vm1136, %v3556
        %3601 = vst.msk [vmem:[#allocation3 + $0x100] sm:$0xff] %vm1136, %v3559
        %3602 = vst.msk [vmem:[#allocation3 + $0x118] sm:$0xff] %vm1136, %v3562
        %3603 = vst.msk [vmem:[#allocation3 + $0x130] sm:$0xff] %vm1136, %v3565
        %3604 = vst.msk [vmem:[#allocation3 + $0x148] sm:$0xff] %vm1136, %v3568
        %3605 = vst.msk [vmem:[#allocation3 + $0x160] sm:$0xff] %vm1136, %v3571
        %3606 = vst.msk [vmem:[#allocation3 + $0x178] sm:$0xff] %vm1136, %v3574
        %v3607 = vld [vmem:[#allocation3] sm:$0xff]
        %v3608 = vld [vmem:[#allocation3 + $0x8] sm:$0xff]
        %v3609 = vld [vmem:[#allocation3 + $0x10] sm:$0xff]
        %v3610 = vld [vmem:[#allocation3 + $0x18] sm:$0xff]
        %v3611 = vld [vmem:[#allocation3 + $0x20] sm:$0xff]
        %v3612 = vld [vmem:[#allocation3 + $0x28] sm:$0xff]
        %v3613 = vld [vmem:[#allocation3 + $0x30] sm:$0xff]
        %v3614 = vld [vmem:[#allocation3 + $0x38] sm:$0xff]
        %v3615 = vld [vmem:[#allocation3 + $0x40] sm:$0xff]
        %v3616 = vld [vmem:[#allocation3 + $0x48] sm:$0xff]
        %v3617 = vld [vmem:[#allocation3 + $0x50] sm:$0xff]
        %v3618 = vld [vmem:[#allocation3 + $0x58] sm:$0xff]
        %v3619 = vld [vmem:[#allocation3 + $0x60] sm:$0xff]
        %v3620 = vld [vmem:[#allocation3 + $0x68] sm:$0xff]
        %v3621 = vld [vmem:[#allocation3 + $0x70] sm:$0xff]
        %v3622 = vld [vmem:[#allocation3 + $0x78] sm:$0xff]
        %v3623 = vld [vmem:[#allocation3 + $0x80] sm:$0xff]
        %v3624 = vld [vmem:[#allocation3 + $0x88] sm:$0xff]
        %v3625 = vld [vmem:[#allocation3 + $0x90] sm:$0xff]
        %v3626 = vld [vmem:[#allocation3 + $0x98] sm:$0xff]
        %v3627 = vld [vmem:[#allocation3 + $0xa0] sm:$0xff]
        %v3628 = vld [vmem:[#allocation3 + $0xa8] sm:$0xff]
        %v3629 = vld [vmem:[#allocation3 + $0xb0] sm:$0xff]
        %v3630 = vld [vmem:[#allocation3 + $0xb8] sm:$0xff]
        %v3631 = vld [vmem:[#allocation3 + $0xc0] sm:$0xff]
        %v3632 = vld [vmem:[#allocation3 + $0xc8] sm:$0xff]
        %v3633 = vld [vmem:[#allocation3 + $0xd0] sm:$0xff]
        %v3634 = vld [vmem:[#allocation3 + $0xd8] sm:$0xff]
        %v3635 = vld [vmem:[#allocation3 + $0xe0] sm:$0xff]
        %v3636 = vld [vmem:[#allocation3 + $0xe8] sm:$0xff]
        %v3637 = vld [vmem:[#allocation3 + $0xf0] sm:$0xff]
        %v3638 = vld [vmem:[#allocation3 + $0xf8] sm:$0xff]
        %v3639 = vld [vmem:[#allocation3 + $0x100] sm:$0xff]
        %v3640 = vld [vmem:[#allocation3 + $0x108] sm:$0xff]
        %v3641 = vld [vmem:[#allocation3 + $0x110] sm:$0xff]
        %v3642 = vld [vmem:[#allocation3 + $0x118] sm:$0xff]
        %v3643 = vld [vmem:[#allocation3 + $0x120] sm:$0xff]
        %v3644 = vld [vmem:[#allocation3 + $0x128] sm:$0xff]
        %v3645 = vld [vmem:[#allocation3 + $0x130] sm:$0xff]
        %v3646 = vld [vmem:[#allocation3 + $0x138] sm:$0xff]
        %v3647 = vld [vmem:[#allocation3 + $0x140] sm:$0xff]
        %v3648 = vld [vmem:[#allocation3 + $0x148] sm:$0xff]
        %v3649 = vld [vmem:[#allocation3 + $0x150] sm:$0xff]
        %v3650 = vld [vmem:[#allocation3 + $0x158] sm:$0xff]
        %v3651 = vld [vmem:[#allocation3 + $0x160] sm:$0xff]
        %v3652 = vld [vmem:[#allocation3 + $0x168] sm:$0xff]
        %v3653 = vld [vmem:[#allocation3 + $0x170] sm:$0xff]
        %v3654 = vld [vmem:[#allocation3 + $0x178] sm:$0xff]
        %v3655 = vld [vmem:[%s3] sm:$0xf]
        %v3656 = vld [vmem:[%s3 + $0x4] sm:$0xf]
        %v3657 = vld [vmem:[%s3 + $0x8] sm:$0xf]
        %v3658 = vld [vmem:[%s3 + $0xc] sm:$0xf]
        %v3659 = vld [vmem:[%s3 + $0x10] sm:$0xf]
        %v3660 = vld [vmem:[%s3 + $0x14] sm:$0xf]
        %v3661 = vld [vmem:[%s3 + $0x18] sm:$0xf]
        %v3662 = vld [vmem:[%s3 + $0x1c] sm:$0xf]
        %v3663 = vld [vmem:[%s3 + $0x20] sm:$0xf]
        %v3664 = vld [vmem:[%s3 + $0x24] sm:$0xf]
        %v3665 = vld [vmem:[%s3 + $0x28] sm:$0xf]
        %v3666 = vld [vmem:[%s3 + $0x2c] sm:$0xf]
        %v3667 = vld [vmem:[%s3 + $0x30] sm:$0xf]
        %v3668 = vld [vmem:[%s3 + $0x34] sm:$0xf]
        %v3669 = vld [vmem:[%s3 + $0x38] sm:$0xf]
        %v3670 = vld [vmem:[%s3 + $0x3c] sm:$0xf]
        %v3671 = vld [vmem:[%s3 + $0x40] sm:$0xf]
        %v3672 = vld [vmem:[%s3 + $0x44] sm:$0xf]
        %v3673 = vld [vmem:[%s3 + $0x48] sm:$0xf]
        %v3674 = vld [vmem:[%s3 + $0x4c] sm:$0xf]
        %v3675 = vld [vmem:[%s3 + $0x50] sm:$0xf]
        %v3676 = vld [vmem:[%s3 + $0x54] sm:$0xf]
        %v3677 = vld [vmem:[%s3 + $0x58] sm:$0xf]
        %v3678 = vld [vmem:[%s3 + $0x5c] sm:$0xf]
        %v3679 = vld [vmem:[%s3 + $0x60] sm:$0xf]
        %v3680 = vld [vmem:[%s3 + $0x64] sm:$0xf]
        %v3681 = vld [vmem:[%s3 + $0x68] sm:$0xf]
        %v3682 = vld [vmem:[%s3 + $0x6c] sm:$0xf]
        %v3683 = vld [vmem:[%s3 + $0x70] sm:$0xf]
        %v3684 = vld [vmem:[%s3 + $0x74] sm:$0xf]
        %v3685 = vld [vmem:[%s3 + $0x78] sm:$0xf]
        %v3686 = vld [vmem:[%s3 + $0x7c] sm:$0xf]
        %v3687 = vld [vmem:[%s3 + $0x80] sm:$0xf]
        %v3688 = vld [vmem:[%s3 + $0x84] sm:$0xf]
        %v3689 = vld [vmem:[%s3 + $0x88] sm:$0xf]
        %v3690 = vld [vmem:[%s3 + $0x8c] sm:$0xf]
        %v3727 = vunpack.c.l.b16 %v3655
        %v3728 = vunpack.c.l.b16 %v3656
        %v3729 = vunpack.c.l.b16 %v3657
        %v3730 = vunpack.c.l.b16 %v3658
        %v3731 = vunpack.c.l.b16 %v3659
        %v3732 = vunpack.c.l.b16 %v3660
        %v3733 = vunpack.c.l.b16 %v3661
        %v3734 = vunpack.c.l.b16 %v3662
        %v3735 = vunpack.c.l.b16 %v3663
        %v3736 = vunpack.c.l.b16 %v3664
        %v3737 = vunpack.c.l.b16 %v3665
        %v3738 = vunpack.c.l.b16 %v3666
        %v3739 = vunpack.c.l.b16 %v3667
        %v3740 = vunpack.c.l.b16 %v3668
        %v3741 = vunpack.c.l.b16 %v3669
        %v3742 = vunpack.c.l.b16 %v3670
        %v3743 = vunpack.c.l.b16 %v3671
        %v3744 = vunpack.c.l.b16 %v3672
        %v3745 = vunpack.c.l.b16 %v3673
        %v3746 = vunpack.c.l.b16 %v3674
        %v3747 = vunpack.c.l.b16 %v3675
        %v3748 = vunpack.c.l.b16 %v3676
        %v3749 = vunpack.c.l.b16 %v3677
        %v3750 = vunpack.c.l.b16 %v3678
        %v3751 = vunpack.c.l.b16 %v3679
        %v3752 = vunpack.c.l.b16 %v3680
        %v3753 = vunpack.c.l.b16 %v3681
        %v3754 = vunpack.c.l.b16 %v3682
        %v3755 = vunpack.c.l.b16 %v3683
        %v3756 = vunpack.c.l.b16 %v3684
        %v3757 = vunpack.c.l.b16 %v3685
        %v3758 = vunpack.c.l.b16 %v3686
        %v3759 = vunpack.c.l.b16 %v3687
        %v3760 = vunpack.c.l.b16 %v3688
        %v3761 = vunpack.c.l.b16 %v3689
        %v3762 = vunpack.c.l.b16 %v3690
        %v3763 = vpack.c.b16 %v3728, %v3727
        %v3764 = vpack.c.b16 %v3730, %v3729
        %v3765 = vpack.c.b16 %v3732, %v3731
        %v3766 = vpack.c.b16 %v3734, %v3733
        %v3767 = vpack.c.b16 %v3736, %v3735
        %v3768 = vpack.c.b16 %v3738, %v3737
        %v3769 = vpack.c.b16 %v3740, %v3739
        %v3770 = vpack.c.b16 %v3742, %v3741
        %v3771 = vpack.c.b16 %v3744, %v3743
        %v3772 = vpack.c.b16 %v3746, %v3745
        %v3773 = vpack.c.b16 %v3748, %v3747
        %v3774 = vpack.c.b16 %v3750, %v3749
        %v3775 = vpack.c.b16 %v3752, %v3751
        %v3776 = vpack.c.b16 %v3754, %v3753
        %v3777 = vpack.c.b16 %v3756, %v3755
        %v3778 = vpack.c.b16 %v3758, %v3757
        %v3779 = vpack.c.b16 %v3760, %v3759
        %v3780 = vpack.c.b16 %v3762, %v3761
        %v3800 = vsel %vm1136, %v3609, 0
        %v3803 = vsel %vm1136, %v3612, 0
        %v3806 = vsel %vm1136, %v3615, 0
        %v3809 = vsel %vm1136, %v3618, 0
        %v3812 = vsel %vm1136, %v3621, 0
        %v3815 = vsel %vm1136, %v3624, 0
        %v3818 = vsel %vm1136, %v3627, 0
        %v3821 = vsel %vm1136, %v3630, 0
        %v3824 = vsel %vm1136, %v3633, 0
        %v3827 = vsel %vm1136, %v3636, 0
        %v3830 = vsel %vm1136, %v3639, 0
        %v3833 = vsel %vm1136, %v3642, 0
        %v3836 = vsel %vm1136, %v3645, 0
        %v3839 = vsel %vm1136, %v3648, 0
        %v3842 = vsel %vm1136, %v3651, 0
        %v3845 = vsel %vm1136, %v3654, 0
        %3847 = vmatprep.subr.bf16.mxu0 0
        %3848 = vmatpush1.bf16.msra.mxu0 %v3763
        %3849 = vmatprep.subr.bf16.mxu0 0
        %3850 = vmatpush1.bf16.msra.mxu0 %v3764
        %3851 = vmatprep.subr.bf16.mxu0 0
        %3852 = vmatpush1.bf16.msra.mxu0 %v3765
        %3853 = vmatprep.subr.bf16.mxu0 0
        %3854 = vmatpush1.bf16.msra.mxu0 %v3766
        %3855 = vmatprep.subr.bf16.mxu0 0
        %3856 = vmatpush1.bf16.msra.mxu0 %v3767
        %3857 = vmatprep.subr.bf16.mxu0 0
        %3858 = vmatpush1.bf16.msra.mxu0 %v3768
        %3859 = vmatprep.subr.bf16.mxu0 0
        %3860 = vmatpush1.bf16.msra.mxu0 %v3769
        %3861 = vmatprep.subr.bf16.mxu0 0
        %3862 = vmatpush1.bf16.msra.mxu0 %v3770
        %3863 = vmatprep.subr.bf16.mxu0 0
        %3864 = vmatpush1.bf16.msra.mxu0 %v3771
        %3865 = vmatprep.subr.bf16.mxu0 0
        %3866 = vmatpush1.bf16.msra.mxu0 %v3772
        %3867 = vmatprep.subr.bf16.mxu0 0
        %3868 = vmatpush1.bf16.msra.mxu0 %v3773
        %3869 = vmatprep.subr.bf16.mxu0 0
        %3870 = vmatpush1.bf16.msra.mxu0 %v3774
        %3871 = vmatprep.subr.bf16.mxu0 0
        %3872 = vmatpush1.bf16.msra.mxu0 %v3775
        %3873 = vmatprep.subr.bf16.mxu0 0
        %3874 = vmatpush1.bf16.msra.mxu0 %v3776
        %3875 = vmatprep.subr.bf16.mxu0 0
        %3876 = vmatpush1.bf16.msra.mxu0 %v3777
        %3877 = vmatprep.subr.bf16.mxu0 0
        %3878 = vmatpush1.bf16.msra.mxu0 %v3778
        %3879 = vmatprep.mubr.bf16.mxu0 %v3608
        %3880 = vmatmul.mubr.bf16.gmra.mrb[0].mxu0 %v3607
        %v3881 = vpop.f32.mrb[0].mxu0
        %v3882 = vadd.f32 0.0, %v3881
        %v3883 = vpop.f32.mrb[0].mxu0
        %v3884 = vpop.f32.mrb[0].mxu0
        %v3885 = vadd.f32 0.0, %v3884
        %v3886 = vpop.f32.mrb[0].mxu0
        %3887 = vmatprep.mubr.bf16.mxu0 %v3611
        %3888 = vmatmul.mubr.bf16.gmra.mrb[0].mxu0 %v3610
        %v3889 = vpop.f32.mrb[0].mxu0
        %v3890 = vadd.f32 0.0, %v3889
        %v3891 = vpop.f32.mrb[0].mxu0
        %v3892 = vpop.f32.mrb[0].mxu0
        %v3893 = vadd.f32 0.0, %v3892
        %v3894 = vpop.f32.mrb[0].mxu0
        %3895 = vmatprep.mubr.bf16.mxu0 %v3614
        %3896 = vmatmul.mubr.bf16.gmra.mrb[0].mxu0 %v3613
        %v3897 = vpop.f32.mrb[0].mxu0
        %v3898 = vadd.f32 0.0, %v3897
        %v3899 = vpop.f32.mrb[0].mxu0
        %v3900 = vpop.f32.mrb[0].mxu0
        %v3901 = vadd.f32 0.0, %v3900
        %v3902 = vpop.f32.mrb[0].mxu0
        %3903 = vmatprep.mubr.bf16.mxu0 %v3617
        %3904 = vmatmul.mubr.bf16.gmra.mrb[0].mxu0 %v3616
        %v3905 = vpop.f32.mrb[0].mxu0
        %v3906 = vadd.f32 0.0, %v3905
        %v3907 = vpop.f32.mrb[0].mxu0
        %v3908 = vpop.f32.mrb[0].mxu0
        %v3909 = vadd.f32 0.0, %v3908
        %v3910 = vpop.f32.mrb[0].mxu0
        %3911 = vmatprep.mubr.bf16.mxu0 %v3620
        %3912 = vmatmul.mubr.bf16.gmra.mrb[0].mxu0 %v3619
        %v3913 = vpop.f32.mrb[0].mxu0
        %v3914 = vadd.f32 0.0, %v3913
        %v3915 = vpop.f32.mrb[0].mxu0
        %v3916 = vpop.f32.mrb[0].mxu0
        %v3917 = vadd.f32 0.0, %v3916
        %v3918 = vpop.f32.mrb[0].mxu0
        %3919 = vmatprep.mubr.bf16.mxu0 %v3623
        %3920 = vmatmul.mubr.bf16.gmra.mrb[0].mxu0 %v3622
        %v3921 = vpop.f32.mrb[0].mxu0
        %v3922 = vadd.f32 0.0, %v3921
        %v3923 = vpop.f32.mrb[0].mxu0
        %v3924 = vpop.f32.mrb[0].mxu0
        %v3925 = vadd.f32 0.0, %v3924
        %v3926 = vpop.f32.mrb[0].mxu0
        %3927 = vmatprep.mubr.bf16.mxu0 %v3626
        %3928 = vmatmul.mubr.bf16.gmra.mrb[0].mxu0 %v3625
        %v3929 = vpop.f32.mrb[0].mxu0
        %v3930 = vadd.f32 0.0, %v3929
        %v3931 = vpop.f32.mrb[0].mxu0
        %v3932 = vpop.f32.mrb[0].mxu0
        %v3933 = vadd.f32 0.0, %v3932
        %v3934 = vpop.f32.mrb[0].mxu0
        %3935 = vmatprep.mubr.bf16.mxu0 %v3629
        %3936 = vmatmul.mubr.bf16.gmra.mrb[0].mxu0 %v3628
        %v3937 = vpop.f32.mrb[0].mxu0
        %v3938 = vadd.f32 0.0, %v3937
        %v3939 = vpop.f32.mrb[0].mxu0
        %v3940 = vpop.f32.mrb[0].mxu0
        %v3941 = vadd.f32 0.0, %v3940
        %v3942 = vpop.f32.mrb[0].mxu0
        %3943 = vmatprep.mubr.bf16.mxu0 %v3632
        %3944 = vmatmul.mubr.bf16.gmra.mrb[0].mxu0 %v3631
        %v3945 = vpop.f32.mrb[0].mxu0
        %v3946 = vadd.f32 0.0, %v3945
        %v3947 = vpop.f32.mrb[0].mxu0
        %v3948 = vpop.f32.mrb[0].mxu0
        %v3949 = vadd.f32 0.0, %v3948
        %v3950 = vpop.f32.mrb[0].mxu0
        %3951 = vmatprep.mubr.bf16.mxu0 %v3635
        %3952 = vmatmul.mubr.bf16.gmra.mrb[0].mxu0 %v3634
        %v3953 = vpop.f32.mrb[0].mxu0
        %v3954 = vadd.f32 0.0, %v3953
        %v3955 = vpop.f32.mrb[0].mxu0
        %v3956 = vpop.f32.mrb[0].mxu0
        %v3957 = vadd.f32 0.0, %v3956
        %v3958 = vpop.f32.mrb[0].mxu0
        %3959 = vmatprep.mubr.bf16.mxu0 %v3638
        %3960 = vmatmul.mubr.bf16.gmra.mrb[0].mxu0 %v3637
        %v3961 = vpop.f32.mrb[0].mxu0
        %v3962 = vadd.f32 0.0, %v3961
        %v3963 = vpop.f32.mrb[0].mxu0
        %v3964 = vpop.f32.mrb[0].mxu0
        %v3965 = vadd.f32 0.0, %v3964
        %v3966 = vpop.f32.mrb[0].mxu0
        %3967 = vmatprep.mubr.bf16.mxu0 %v3641
        %3968 = vmatmul.mubr.bf16.gmra.mrb[0].mxu0 %v3640
        %v3969 = vpop.f32.mrb[0].mxu0
        %v3970 = vadd.f32 0.0, %v3969
        %v3971 = vpop.f32.mrb[0].mxu0
        %v3972 = vpop.f32.mrb[0].mxu0
        %v3973 = vadd.f32 0.0, %v3972
        %v3974 = vpop.f32.mrb[0].mxu0
        %3975 = vmatprep.mubr.bf16.mxu0 %v3644
        %3976 = vmatmul.mubr.bf16.gmra.mrb[0].mxu0 %v3643
        %v3977 = vpop.f32.mrb[0].mxu0
        %v3978 = vadd.f32 0.0, %v3977
        %v3979 = vpop.f32.mrb[0].mxu0
        %v3980 = vpop.f32.mrb[0].mxu0
        %v3981 = vadd.f32 0.0, %v3980
        %v3982 = vpop.f32.mrb[0].mxu0
        %3983 = vmatprep.mubr.bf16.mxu0 %v3647
        %3984 = vmatmul.mubr.bf16.gmra.mrb[0].mxu0 %v3646
        %v3985 = vpop.f32.mrb[0].mxu0
        %v3986 = vadd.f32 0.0, %v3985
        %v3987 = vpop.f32.mrb[0].mxu0
        %v3988 = vpop.f32.mrb[0].mxu0
        %v3989 = vadd.f32 0.0, %v3988
        %v3990 = vpop.f32.mrb[0].mxu0
        %3991 = vmatprep.mubr.bf16.mxu0 %v3650
        %3992 = vmatmul.mubr.bf16.gmra.mrb[0].mxu0 %v3649
        %v3993 = vpop.f32.mrb[0].mxu0
        %v3994 = vadd.f32 0.0, %v3993
        %v3995 = vpop.f32.mrb[0].mxu0
        %v3996 = vpop.f32.mrb[0].mxu0
        %v3997 = vadd.f32 0.0, %v3996
        %v3998 = vpop.f32.mrb[0].mxu0
        %3999 = vmatprep.mubr.bf16.mxu0 %v3653
        %4000 = vmatmul.mubr.bf16.gmra.mrb[0].mxu0 %v3652
        %v4001 = vpop.f32.mrb[0].mxu0
        %v4002 = vadd.f32 0.0, %v4001
        %v4003 = vpop.f32.mrb[0].mxu0
        %v4004 = vpop.f32.mrb[0].mxu0
        %v4005 = vadd.f32 0.0, %v4004
        %v4006 = vpop.f32.mrb[0].mxu0
        %4007 = vdwg.mxu0
        %4008 = vmatprep.subr.bf16.mxu0 0
        %4009 = vmatpush1.bf16.msra.mxu0 %v3779
        %4010 = vmatprep.subr.bf16.mxu0 0
        %4011 = vmatpush1.bf16.msra.mxu0 %v3780
        %4012 = vmatprep.subr.bf16.mxu0 0
        %4013 = vmatpush1.bf16.msra.mxu0 0
        %4014 = vmatprep.subr.bf16.mxu0 0
        %4015 = vmatpush1.bf16.msra.mxu0 0
        %4016 = vmatprep.subr.bf16.mxu0 0
        %4017 = vmatpush1.bf16.msra.mxu0 0
        %4018 = vmatprep.subr.bf16.mxu0 0
        %4019 = vmatpush1.bf16.msra.mxu0 0
        %4020 = vmatprep.subr.bf16.mxu0 0
        %4021 = vmatpush1.bf16.msra.mxu0 0
        %4022 = vmatprep.subr.bf16.mxu0 0
        %4023 = vmatpush1.bf16.msra.mxu0 0
        %4024 = vmatprep.subr.bf16.mxu0 0
        %4025 = vmatpush1.bf16.msra.mxu0 0
        %4026 = vmatprep.subr.bf16.mxu0 0
        %4027 = vmatpush1.bf16.msra.mxu0 0
        %4028 = vmatprep.subr.bf16.mxu0 0
        %4029 = vmatpush1.bf16.msra.mxu0 0
        %4030 = vmatprep.subr.bf16.mxu0 0
        %4031 = vmatpush1.bf16.msra.mxu0 0
        %4032 = vmatprep.subr.bf16.mxu0 0
        %4033 = vmatpush1.bf16.msra.mxu0 0
        %4034 = vmatprep.subr.bf16.mxu0 0
        %4035 = vmatpush1.bf16.msra.mxu0 0
        %4036 = vmatprep.subr.bf16.mxu0 0
        %4037 = vmatpush1.bf16.msra.mxu0 0
        %4038 = vmatprep.subr.bf16.mxu0 0
        %4039 = vmatpush1.bf16.msra.mxu0 0
        %4040 = vmatprep.mubr.bf16.mxu0 0
        %4041 = vmatmul.mubr.bf16.gmra.mrb[0].mxu0 %v3800
        %v4042 = vpop.f32.mrb[0].mxu0
        %v4043 = vadd.f32 %v3882, %v4042
        %v4044 = vpop.f32.mrb[0].mxu0
        %v4045 = vpop.f32.mrb[0].mxu0
        %v4046 = vadd.f32 %v3885, %v4045
        %v4047 = vpop.f32.mrb[0].mxu0
        %4048 = vmatprep.mubr.bf16.mxu0 0
        %4049 = vmatmul.mubr.bf16.gmra.mrb[0].mxu0 %v3803
        %v4050 = vpop.f32.mrb[0].mxu0
        %v4051 = vadd.f32 %v3890, %v4050
        %v4052 = vpop.f32.mrb[0].mxu0
        %v4053 = vpop.f32.mrb[0].mxu0
        %v4054 = vadd.f32 %v3893, %v4053
        %v4055 = vpop.f32.mrb[0].mxu0
        %4056 = vmatprep.mubr.bf16.mxu0 0
        %4057 = vmatmul.mubr.bf16.gmra.mrb[0].mxu0 %v3806
        %v4058 = vpop.f32.mrb[0].mxu0
        %v4059 = vadd.f32 %v3898, %v4058
        %v4060 = vpop.f32.mrb[0].mxu0
        %v4061 = vpop.f32.mrb[0].mxu0
        %v4062 = vadd.f32 %v3901, %v4061
        %v4063 = vpop.f32.mrb[0].mxu0
        %4064 = vmatprep.mubr.bf16.mxu0 0
        %4065 = vmatmul.mubr.bf16.gmra.mrb[0].mxu0 %v3809
        %v4066 = vpop.f32.mrb[0].mxu0
        %v4067 = vadd.f32 %v3906, %v4066
        %v4068 = vpop.f32.mrb[0].mxu0
        %v4069 = vpop.f32.mrb[0].mxu0
        %v4070 = vadd.f32 %v3909, %v4069
        %v4071 = vpop.f32.mrb[0].mxu0
        %4072 = vmatprep.mubr.bf16.mxu0 0
        %4073 = vmatmul.mubr.bf16.gmra.mrb[0].mxu0 %v3812
        %v4074 = vpop.f32.mrb[0].mxu0
        %v4075 = vadd.f32 %v3914, %v4074
        %v4076 = vpop.f32.mrb[0].mxu0
        %v4077 = vpop.f32.mrb[0].mxu0
        %v4078 = vadd.f32 %v3917, %v4077
        %v4079 = vpop.f32.mrb[0].mxu0
        %4080 = vmatprep.mubr.bf16.mxu0 0
        %4081 = vmatmul.mubr.bf16.gmra.mrb[0].mxu0 %v3815
        %v4082 = vpop.f32.mrb[0].mxu0
        %v4083 = vadd.f32 %v3922, %v4082
        %v4084 = vpop.f32.mrb[0].mxu0
        %v4085 = vpop.f32.mrb[0].mxu0
        %v4086 = vadd.f32 %v3925, %v4085
        %v4087 = vpop.f32.mrb[0].mxu0
        %4088 = vmatprep.mubr.bf16.mxu0 0
        %4089 = vmatmul.mubr.bf16.gmra.mrb[0].mxu0 %v3818
        %v4090 = vpop.f32.mrb[0].mxu0
        %v4091 = vadd.f32 %v3930, %v4090
        %v4092 = vpop.f32.mrb[0].mxu0
        %v4093 = vpop.f32.mrb[0].mxu0
        %v4094 = vadd.f32 %v3933, %v4093
        %v4095 = vpop.f32.mrb[0].mxu0
        %4096 = vmatprep.mubr.bf16.mxu0 0
        %4097 = vmatmul.mubr.bf16.gmra.mrb[0].mxu0 %v3821
        %v4098 = vpop.f32.mrb[0].mxu0
        %v4099 = vadd.f32 %v3938, %v4098
        %v4100 = vpop.f32.mrb[0].mxu0
        %v4101 = vpop.f32.mrb[0].mxu0
        %v4102 = vadd.f32 %v3941, %v4101
        %v4103 = vpop.f32.mrb[0].mxu0
        %4104 = vmatprep.mubr.bf16.mxu0 0
        %4105 = vmatmul.mubr.bf16.gmra.mrb[0].mxu0 %v3824
        %v4106 = vpop.f32.mrb[0].mxu0
        %v4107 = vadd.f32 %v3946, %v4106
        %v4108 = vpop.f32.mrb[0].mxu0
        %v4109 = vpop.f32.mrb[0].mxu0
        %v4110 = vadd.f32 %v3949, %v4109
        %v4111 = vpop.f32.mrb[0].mxu0
        %4112 = vmatprep.mubr.bf16.mxu0 0
        %4113 = vmatmul.mubr.bf16.gmra.mrb[0].mxu0 %v3827
        %v4114 = vpop.f32.mrb[0].mxu0
        %v4115 = vadd.f32 %v3954, %v4114
        %v4116 = vpop.f32.mrb[0].mxu0
        %v4117 = vpop.f32.mrb[0].mxu0
        %v4118 = vadd.f32 %v3957, %v4117
        %v4119 = vpop.f32.mrb[0].mxu0
        %4120 = vmatprep.mubr.bf16.mxu0 0
        %4121 = vmatmul.mubr.bf16.gmra.mrb[0].mxu0 %v3830
        %v4122 = vpop.f32.mrb[0].mxu0
        %v4123 = vadd.f32 %v3962, %v4122
        %v4124 = vpop.f32.mrb[0].mxu0
        %v4125 = vpop.f32.mrb[0].mxu0
        %v4126 = vadd.f32 %v3965, %v4125
        %v4127 = vpop.f32.mrb[0].mxu0
        %4128 = vmatprep.mubr.bf16.mxu0 0
        %4129 = vmatmul.mubr.bf16.gmra.mrb[0].mxu0 %v3833
        %v4130 = vpop.f32.mrb[0].mxu0
        %v4131 = vadd.f32 %v3970, %v4130
        %v4132 = vpop.f32.mrb[0].mxu0
        %v4133 = vpop.f32.mrb[0].mxu0
        %v4134 = vadd.f32 %v3973, %v4133
        %v4135 = vpop.f32.mrb[0].mxu0
        %4136 = vmatprep.mubr.bf16.mxu0 0
        %4137 = vmatmul.mubr.bf16.gmra.mrb[0].mxu0 %v3836
        %v4138 = vpop.f32.mrb[0].mxu0
        %v4139 = vadd.f32 %v3978, %v4138
        %v4140 = vpop.f32.mrb[0].mxu0
        %v4141 = vpop.f32.mrb[0].mxu0
        %v4142 = vadd.f32 %v3981, %v4141
        %v4143 = vpop.f32.mrb[0].mxu0
        %4144 = vmatprep.mubr.bf16.mxu0 0
        %4145 = vmatmul.mubr.bf16.gmra.mrb[0].mxu0 %v3839
        %v4146 = vpop.f32.mrb[0].mxu0
        %v4147 = vadd.f32 %v3986, %v4146
        %v4148 = vpop.f32.mrb[0].mxu0
        %v4149 = vpop.f32.mrb[0].mxu0
        %v4150 = vadd.f32 %v3989, %v4149
        %v4151 = vpop.f32.mrb[0].mxu0
        %4152 = vmatprep.mubr.bf16.mxu0 0
        %4153 = vmatmul.mubr.bf16.gmra.mrb[0].mxu0 %v3842
        %v4154 = vpop.f32.mrb[0].mxu0
        %v4155 = vadd.f32 %v3994, %v4154
        %v4156 = vpop.f32.mrb[0].mxu0
        %v4157 = vpop.f32.mrb[0].mxu0
        %v4158 = vadd.f32 %v3997, %v4157
        %v4159 = vpop.f32.mrb[0].mxu0
        %4160 = vmatprep.mubr.bf16.mxu0 0
        %4161 = vmatmul.mubr.bf16.gmra.mrb[0].mxu0 %v3845
        %v4162 = vpop.f32.mrb[0].mxu0
        %v4163 = vadd.f32 %v4002, %v4162
        %v4164 = vpop.f32.mrb[0].mxu0
        %v4165 = vpop.f32.mrb[0].mxu0
        %v4166 = vadd.f32 %v4005, %v4165
        %v4167 = vpop.f32.mrb[0].mxu0
        %4168 = vdwg.mxu0
        %v4169 = vld [vmem:[%s4] sm:$0x1]
        %v4171 = vlaneseq
        %v4172 = vshrl.u32 %v4171, 7
        %v4173 = vsub.s32 0, %v4172
        %v4174 = vrot.slane %v4169, %v4173
        %v4176 = vmul.f32 %v4043, %v4174
        %v4177 = vmul.f32 %v4046, %v4174
        %v4178 = vmul.f32 %v4051, %v4174
        %v4179 = vmul.f32 %v4054, %v4174
        %v4180 = vmul.f32 %v4059, %v4174
        %v4181 = vmul.f32 %v4062, %v4174
        %v4182 = vmul.f32 %v4067, %v4174
        %v4183 = vmul.f32 %v4070, %v4174
        %v4184 = vmul.f32 %v4075, %v4174
        %v4185 = vmul.f32 %v4078, %v4174
        %v4186 = vmul.f32 %v4083, %v4174
        %v4187 = vmul.f32 %v4086, %v4174
        %v4188 = vmul.f32 %v4091, %v4174
        %v4189 = vmul.f32 %v4094, %v4174
        %v4190 = vmul.f32 %v4099, %v4174
        %v4191 = vmul.f32 %v4102, %v4174
        %v4192 = vmul.f32 %v4107, %v4174
        %v4193 = vmul.f32 %v4110, %v4174
        %v4194 = vmul.f32 %v4115, %v4174
        %v4195 = vmul.f32 %v4118, %v4174
        %v4196 = vmul.f32 %v4123, %v4174
        %v4197 = vmul.f32 %v4126, %v4174
        %v4198 = vmul.f32 %v4131, %v4174
        %v4199 = vmul.f32 %v4134, %v4174
        %v4200 = vmul.f32 %v4139, %v4174
        %v4201 = vmul.f32 %v4142, %v4174
        %v4202 = vmul.f32 %v4147, %v4174
        %v4203 = vmul.f32 %v4150, %v4174
        %v4204 = vmul.f32 %v4155, %v4174
        %v4205 = vmul.f32 %v4158, %v4174
        %v4206 = vmul.f32 %v4163, %v4174
        %v4207 = vmul.f32 %v4166, %v4174
        %v4208 = vld [vmem:[%s5] sm:$0x1]
        %v4210 = vlaneseq
        %v4211 = vshrl.u32 %v4210, 7
        %v4212 = vsub.s32 0, %v4211
        %v4213 = vrot.slane %v4208, %v4212
        %v4215 = vadd.f32 %v4176, %v4213
        %v4216 = vadd.f32 %v4177, %v4213
        %v4217 = vadd.f32 %v4178, %v4213
        %v4218 = vadd.f32 %v4179, %v4213
        %v4219 = vadd.f32 %v4180, %v4213
        %v4220 = vadd.f32 %v4181, %v4213
        %v4221 = vadd.f32 %v4182, %v4213
        %v4222 = vadd.f32 %v4183, %v4213
        %v4223 = vadd.f32 %v4184, %v4213
        %v4224 = vadd.f32 %v4185, %v4213
        %v4225 = vadd.f32 %v4186, %v4213
        %v4226 = vadd.f32 %v4187, %v4213
        %v4227 = vadd.f32 %v4188, %v4213
        %v4228 = vadd.f32 %v4189, %v4213
        %v4229 = vadd.f32 %v4190, %v4213
        %v4230 = vadd.f32 %v4191, %v4213
        %v4231 = vadd.f32 %v4192, %v4213
        %v4232 = vadd.f32 %v4193, %v4213
        %v4233 = vadd.f32 %v4194, %v4213
        %v4234 = vadd.f32 %v4195, %v4213
        %v4235 = vadd.f32 %v4196, %v4213
        %v4236 = vadd.f32 %v4197, %v4213
        %v4237 = vadd.f32 %v4198, %v4213
        %v4238 = vadd.f32 %v4199, %v4213
        %v4239 = vadd.f32 %v4200, %v4213
        %v4240 = vadd.f32 %v4201, %v4213
        %v4241 = vadd.f32 %v4202, %v4213
        %v4242 = vadd.f32 %v4203, %v4213
        %v4243 = vadd.f32 %v4204, %v4213
        %v4244 = vadd.f32 %v4205, %v4213
        %v4245 = vadd.f32 %v4206, %v4213
        %v4246 = vadd.f32 %v4207, %v4213
        %v4247 = vmax.f32 %v4215, 0.0
        %v4248 = vmax.f32 %v4216, 0.0
        %v4249 = vmax.f32 %v4217, 0.0
        %v4250 = vmax.f32 %v4218, 0.0
        %v4251 = vmax.f32 %v4219, 0.0
        %v4252 = vmax.f32 %v4220, 0.0
        %v4253 = vmax.f32 %v4221, 0.0
        %v4254 = vmax.f32 %v4222, 0.0
        %v4255 = vmax.f32 %v4223, 0.0
        %v4256 = vmax.f32 %v4224, 0.0
        %v4257 = vmax.f32 %v4225, 0.0
        %v4258 = vmax.f32 %v4226, 0.0
        %v4259 = vmax.f32 %v4227, 0.0
        %v4260 = vmax.f32 %v4228, 0.0
        %v4261 = vmax.f32 %v4229, 0.0
        %v4262 = vmax.f32 %v4230, 0.0
        %v4263 = vmax.f32 %v4231, 0.0
        %v4264 = vmax.f32 %v4232, 0.0
        %v4265 = vmax.f32 %v4233, 0.0
        %v4266 = vmax.f32 %v4234, 0.0
        %v4267 = vmax.f32 %v4235, 0.0
        %v4268 = vmax.f32 %v4236, 0.0
        %v4269 = vmax.f32 %v4237, 0.0
        %v4270 = vmax.f32 %v4238, 0.0
        %v4271 = vmax.f32 %v4239, 0.0
        %v4272 = vmax.f32 %v4240, 0.0
        %v4273 = vmax.f32 %v4241, 0.0
        %v4274 = vmax.f32 %v4242, 0.0
        %v4275 = vmax.f32 %v4243, 0.0
        %v4276 = vmax.f32 %v4244, 0.0
        %v4277 = vmax.f32 %v4245, 0.0
        %v4278 = vmax.f32 %v4246, 0.0
        %v4279 = vpack.c.bf16 %v4248, %v4247
        %v4280 = vpack.c.bf16 %v4250, %v4249
        %v4281 = vpack.c.bf16 %v4252, %v4251
        %v4282 = vpack.c.bf16 %v4254, %v4253
        %v4283 = vpack.c.bf16 %v4256, %v4255
        %v4284 = vpack.c.bf16 %v4258, %v4257
        %v4285 = vpack.c.bf16 %v4260, %v4259
        %v4286 = vpack.c.bf16 %v4262, %v4261
        %v4287 = vpack.c.bf16 %v4264, %v4263
        %v4288 = vpack.c.bf16 %v4266, %v4265
        %v4289 = vpack.c.bf16 %v4268, %v4267
        %v4290 = vpack.c.bf16 %v4270, %v4269
        %v4291 = vpack.c.bf16 %v4272, %v4271
        %v4292 = vpack.c.bf16 %v4274, %v4273
        %v4293 = vpack.c.bf16 %v4276, %v4275
        %v4294 = vpack.c.bf16 %v4278, %v4277
        %v4311 = vunpack.c.l.b16 %v4279
        %v4312 = vunpack.c.h.b16 %v4279
        %v4313 = vunpack.c.l.b16 %v4280
        %v4314 = vunpack.c.h.b16 %v4280
        %v4315 = vunpack.c.l.b16 %v4281
        %v4316 = vunpack.c.h.b16 %v4281
        %v4317 = vunpack.c.l.b16 %v4282
        %v4318 = vunpack.c.h.b16 %v4282
        %v4319 = vunpack.c.l.b16 %v4283
        %v4320 = vunpack.c.h.b16 %v4283
        %v4321 = vunpack.c.l.b16 %v4284
        %v4322 = vunpack.c.h.b16 %v4284
        %v4323 = vunpack.c.l.b16 %v4285
        %v4324 = vunpack.c.h.b16 %v4285
        %v4325 = vunpack.c.l.b16 %v4286
        %v4326 = vunpack.c.h.b16 %v4286
        %v4327 = vunpack.c.l.b16 %v4287
        %v4328 = vunpack.c.h.b16 %v4287
        %v4329 = vunpack.c.l.b16 %v4288
        %v4330 = vunpack.c.h.b16 %v4288
        %v4331 = vunpack.c.l.b16 %v4289
        %v4332 = vunpack.c.h.b16 %v4289
        %v4333 = vunpack.c.l.b16 %v4290
        %v4334 = vunpack.c.h.b16 %v4290
        %v4335 = vunpack.c.l.b16 %v4291
        %v4336 = vunpack.c.h.b16 %v4291
        %v4337 = vunpack.c.l.b16 %v4292
        %v4338 = vunpack.c.h.b16 %v4292
        %v4339 = vunpack.c.l.b16 %v4293
        %v4340 = vunpack.c.h.b16 %v4293
        %v4341 = vunpack.c.l.b16 %v4294
        %v4342 = vunpack.c.h.b16 %v4294
        %v4343 = vpack.c.b16 %v4311, %v4311
        %v4344 = vpack.c.b16 %v4312, %v4312
        %v4345 = vpack.c.b16 %v4313, %v4313
        %v4346 = vpack.c.b16 %v4314, %v4314
        %v4347 = vpack.c.b16 %v4315, %v4315
        %v4348 = vpack.c.b16 %v4316, %v4316
        %v4349 = vpack.c.b16 %v4317, %v4317
        %v4350 = vpack.c.b16 %v4318, %v4318
        %v4351 = vpack.c.b16 %v4319, %v4319
        %v4352 = vpack.c.b16 %v4320, %v4320
        %v4353 = vpack.c.b16 %v4321, %v4321
        %v4354 = vpack.c.b16 %v4322, %v4322
        %v4355 = vpack.c.b16 %v4323, %v4323
        %v4356 = vpack.c.b16 %v4324, %v4324
        %v4357 = vpack.c.b16 %v4325, %v4325
        %v4358 = vpack.c.b16 %v4326, %v4326
        %v4359 = vpack.c.b16 %v4327, %v4327
        %v4360 = vpack.c.b16 %v4328, %v4328
        %v4361 = vpack.c.b16 %v4329, %v4329
        %v4362 = vpack.c.b16 %v4330, %v4330
        %v4363 = vpack.c.b16 %v4331, %v4331
        %v4364 = vpack.c.b16 %v4332, %v4332
        %v4365 = vpack.c.b16 %v4333, %v4333
        %v4366 = vpack.c.b16 %v4334, %v4334
        %v4367 = vpack.c.b16 %v4335, %v4335
        %v4368 = vpack.c.b16 %v4336, %v4336
        %v4369 = vpack.c.b16 %v4337, %v4337
        %v4370 = vpack.c.b16 %v4338, %v4338
        %v4371 = vpack.c.b16 %v4339, %v4339
        %v4372 = vpack.c.b16 %v4340, %v4340
        %v4373 = vpack.c.b16 %v4341, %v4341
        %v4374 = vpack.c.b16 %v4342, %v4342
        %4407 = vst.msk [vmem:[%s271] sm:$0xf] %vm273, %v4343
        %4408 = vst.msk [vmem:[%s271 + $0x4] sm:$0xf] %vm273, %v4344
        %4409 = vst.msk [vmem:[%s271 + $0x8] sm:$0xf] %vm273, %v4345
        %4410 = vst.msk [vmem:[%s271 + $0xc] sm:$0xf] %vm273, %v4346
        %4411 = vst.msk [vmem:[%s271 + $0x10] sm:$0xf] %vm273, %v4347
        %4412 = vst.msk [vmem:[%s271 + $0x14] sm:$0xf] %vm273, %v4348
        %4413 = vst.msk [vmem:[%s271 + $0x18] sm:$0xf] %vm273, %v4349
        %4414 = vst.msk [vmem:[%s271 + $0x1c] sm:$0xf] %vm273, %v4350
        %4415 = vst.msk [vmem:[%s271 + $0x20] sm:$0xf] %vm273, %v4351
        %4416 = vst.msk [vmem:[%s271 + $0x24] sm:$0xf] %vm273, %v4352
        %4417 = vst.msk [vmem:[%s271 + $0x28] sm:$0xf] %vm273, %v4353
        %4418 = vst.msk [vmem:[%s271 + $0x2c] sm:$0xf] %vm273, %v4354
        %4419 = vst.msk [vmem:[%s271 + $0x30] sm:$0xf] %vm273, %v4355
        %4420 = vst.msk [vmem:[%s271 + $0x34] sm:$0xf] %vm273, %v4356
        %4421 = vst.msk [vmem:[%s271 + $0x38] sm:$0xf] %vm273, %v4357
        %4422 = vst.msk [vmem:[%s271 + $0x3c] sm:$0xf] %vm273, %v4358
        %4423 = vst.msk [vmem:[%s271 + $0x40] sm:$0xf] %vm273, %v4359
        %4424 = vst.msk [vmem:[%s271 + $0x44] sm:$0xf] %vm273, %v4360
        %4425 = vst.msk [vmem:[%s271 + $0x48] sm:$0xf] %vm273, %v4361
        %4426 = vst.msk [vmem:[%s271 + $0x4c] sm:$0xf] %vm273, %v4362
        %4427 = vst.msk [vmem:[%s271 + $0x50] sm:$0xf] %vm273, %v4363
        %4428 = vst.msk [vmem:[%s271 + $0x54] sm:$0xf] %vm273, %v4364
        %4429 = vst.msk [vmem:[%s271 + $0x58] sm:$0xf] %vm273, %v4365
        %4430 = vst.msk [vmem:[%s271 + $0x5c] sm:$0xf] %vm273, %v4366
        %4431 = vst.msk [vmem:[%s271 + $0x60] sm:$0xf] %vm273, %v4367
        %4432 = vst.msk [vmem:[%s271 + $0x64] sm:$0xf] %vm273, %v4368
        %4433 = vst.msk [vmem:[%s271 + $0x68] sm:$0xf] %vm273, %v4369
        %4434 = vst.msk [vmem:[%s271 + $0x6c] sm:$0xf] %vm273, %v4370
        %4435 = vst.msk [vmem:[%s271 + $0x70] sm:$0xf] %vm273, %v4371
        %4436 = vst.msk [vmem:[%s271 + $0x74] sm:$0xf] %vm273, %v4372
        %4437 = vst.msk [vmem:[%s271 + $0x78] sm:$0xf] %vm273, %v4373
        %4438 = vst.msk [vmem:[%s271 + $0x7c] sm:$0xf] %vm273, %v4374
        %p4439 = scmp.lt.s32.totalorder %s20, 1
        %s4440 = scalar_select %p4439, %s20, 1
        %s4441 = smul.addr %s4440, 32
        %s4442 = smul.addr %s4441, 4
        %s4443 = scalar_lea.vmem %s6, %s4442
        // Predicated region
        $region49: #{wide_basic_forward.2} parent=43 // pred_check
          %p4444 = pneg %p169
        $region50: #{wide_basic_forward.2} parent=43 // pred_check_branch
          %4446 = sbr.rel (%p4444) target = $region52
        $region51: #{wide_basic_forward.2} parent=43 // pred_region
          _
        $region52: #{wide_basic_forward.2} parent=43 // pred_fallthru
          _
      $region44: #{wide_basic_forward.2} parent=5 // pred_fallthru
        _
      %p4447 = scmp.le.s32.totalorder 2, %s15
      // Predicated region
      $region53: #{wide_basic_forward.2} parent=5 // pred_check
        %p4448 = pneg %p4447
      $region54: #{wide_basic_forward.2} parent=5 // pred_check_branch
        %4450 = sbr.rel (%p4448) target = $region56
      $region55: #{wide_basic_forward.2} parent=5 // pred_region
        %s4451 = ssub.s32 %s15, 2
        // Predicated region
        $region57: #{wide_basic_forward.2} parent=55 // pred_check
          %p4452 = pneg %p175
        $region58: #{wide_basic_forward.2} parent=55 // pred_check_branch
          %4454 = sbr.rel (%p4452) target = $region60
        $region59: #{wide_basic_forward.2} parent=55 // pred_region
          %p4455 = scmp.lt.s32.totalorder %s21, 1
          %s4456 = scalar_select %p4455, %s21, 1
          %s4457 = smul.addr %s4456, 32
          %s4458 = smul.addr %s4457, 4
          %s4459 = scalar_lea.vmem %s6, %s4458
        $region60: #{wide_basic_forward.2} parent=55 // pred_fallthru
          _
      $region56: #{wide_basic_forward.2} parent=5 // pred_fallthru
        _
    $region6: #{wide_basic_forward.2} parent=1 // loop_footer
      %s19 = sadd.s32 1, %s15
    $region7: #{wide_basic_forward.2} parent=1 // loop_footer_branch
      %14 = sbr.rel target = $region3
    $region8: #{wide_basic_forward.2} parent=1 // loop_exit
      _
    %4460 = vsyncpa [#allocation5], 1
    %s4461 = scalar_lea.sflag [#allocation5], 1
    %4462 = vsyncpa %s4461, 1

</llo_original>
